<compile_context>
chip_gen: v6e
topology: v6e:2x2x1
jax: 0.10.0
libtpu: 0.0.40
codegen_flags: <defaults>
</compile_context>

<pallas_src>
import jax
import jax.numpy as jnp
from jax import lax
from jax.experimental import pallas as pl
from jax.experimental.pallas import tpu as pltpu


# ----------------------------------------------------------------------------
# Fused Pallas kernel: one grid step == one image, everything VMEM-resident.
# ----------------------------------------------------------------------------
def _mnist_fused_kernel(
    patches_ref,   # (4, 144, 32) bf16  conv1 im2col patches, grouped into 4 pool slabs
    w1_ref,        # (32, 32)    bf16  conv1 weights, K padded 25->32, [k, cout]
    b1_ref,        # (1, 32)     f32
    w2_ref,        # (25, 32, 64) bf16 conv2 weights, [dy*5+dx, cin, cout]
    b2_ref,        # (1, 64)     f32
    wfc_ref,       # (16, 64, 10) bf16 fc weights, [s=4h+w, c, out]
    bfc_ref,       # (1, 10)     f32
    out_ref,       # (1, 1, 10)  f32   log-probs for this image
    p1_scr,        # (144, 32)   f32   pool1 output, row = 12*pi + pj
    a2_scr,        # (92, 64)    f32   relu(conv2) output, row = 12*i2 + j2 (valid i2,j2<8)
    c2_scr,        # (91, 64)    f32   pool2 intermediate (j-direction max)
    e2_scr,        # (79, 64)    f32   pool2 output, value for (h,w) at row 24*h + 2*w
):
    f32 = jnp.float32
    bf16 = jnp.bfloat16

    # ---- conv1 + bias + relu + 2x2 maxpool ---------------------------------
    # The 4 slabs are the 4 pool candidates (i%2, j%2); pool1 = elementwise max.
    m = None
    for s in range(4):
        y = jnp.dot(patches_ref[s], w1_ref[...], preferred_element_type=f32)  # (144, 32)
        m = y if m is None else jnp.maximum(m, y)
    # max commutes with the (shared) bias add and with relu.
    p1_scr[...] = jnp.maximum(m + b1_ref[...], 0.0)          # (144, 32), row = 12*pi + pj

    # ---- conv2 (5x5, 32 -> 64) + bias + relu -------------------------------
    # Shifted-slab form of im2col: out[12*i2 + j2] = sum_{dy,dx} P1[12*(i2+dy) + (j2+dx)] @ W[dy,dx]
    # Rows with j2 >= 8 or i2 >= 8 are junk and are simply never read downstream.
    acc2 = jnp.zeros((92, 64), f32)
    for dy in range(5):
        for dx in range(5):
            slab = p1_scr[pl.ds(12 * dy + dx, 92), :].astype(bf16)        # (92, 32)
            acc2 = acc2 + jnp.dot(slab, w2_ref[dy * 5 + dx],
                                  preferred_element_type=f32)             # (92, 64)
    a2_scr[...] = jnp.maximum(acc2 + b2_ref[...], 0.0)

    # ---- 2x2 maxpool on the (8,8) valid region ------------------------------
    # c2[r] = max(a2[r], a2[r+1])        (pairs along j2)
    # e2[r] = max(c2[r], c2[r+12])       (pairs along i2)
    # pooled value for (h, w) lives at e2 row 24*h + 2*w.
    c2_scr[...] = jnp.maximum(a2_scr[pl.ds(0, 91), :], a2_scr[pl.ds(1, 91), :])
    e2_scr[...] = jnp.maximum(c2_scr[pl.ds(0, 79), :], c2_scr[pl.ds(12, 79), :])

    # ---- fc (64*4*4 -> 10) + log_softmax ------------------------------------
    # torch's .view(-1, 64*4*4) flattens in (C, H, W) order; that permutation is folded
    # into wfc_ref, so we just accumulate one (1,64)@(64,10) dot per spatial position.
    acc = jnp.zeros((1, 10), f32)
    for h in range(4):
        for w in range(4):
            s = 4 * h + w
            row = e2_scr[pl.ds(24 * h + 2 * w, 1), :].astype(bf16)        # (1, 64)
            acc = acc + jnp.dot(row, wfc_ref[s], preferred_element_type=f32)
    logits = acc + bfc_ref[...]                                           # (1, 10)

    mx = jnp.max(logits, axis=-1, keepdims=True)
    sh = logits - mx
    lse = jnp.log(jnp.sum(jnp.exp(sh), axis=-1, keepdims=True))
    out_ref[...] = (sh - lse).reshape(1, 1, 10)


# ----------------------------------------------------------------------------
# Wrapper-side layout preparation (one-time weight permutations, conv1 patches).
# ----------------------------------------------------------------------------
def _prep_weights(params):
    f32, bf16 = jnp.float32, jnp.bfloat16
    # conv1: (32,1,5,5) -> (K=25, 32), K zero-padded to 32 (sublane friendly).
    w1m = jnp.transpose(params["w1"].astype(f32).reshape(32, 25))          # (25, 32)
    w1p = jnp.zeros((32, 32), f32).at[:25, :].set(w1m).astype(bf16)        # (32, 32)
    b1 = params["b1"].reshape(1, 32).astype(f32)
    # conv2: (64,32,5,5) -> (25, 32, 64) indexed by k = dy*5 + dx.
    w2m = jnp.transpose(params["w2"].astype(f32), (2, 3, 1, 0)).reshape(25, 32, 64).astype(bf16)
    b2 = params["b2"].reshape(1, 64).astype(f32)
    # fc: (10, 1024) with input index c*16 + 4h + w  ->  (16, 64, 10) indexed by s = 4h + w.
    wfc_r = jnp.transpose(params["wfc"].astype(f32).reshape(10, 64, 16), (2, 1, 0)).astype(bf16)
    bfc = params["bfc"].reshape(1, 10).astype(f32)
    return w1p, b1, w2m, b2, wfc_r, bfc


def _conv1_pool_slabs(x):
    """x: (B,1,28,28) f32 -> (B*4, 144, 32) bf16 conv1 im2col patches.

    Rows are grouped into the four 2x2-pool candidate slabs (slab = 2*(i%2)+(j%2)),
    with within-slab row = 12*(i//2) + (j//2), so pool1 becomes a 4-way slab max
    in the kernel.  Column order is k = dy*5 + dx, zero-padded 25 -> 32.
    """
    B = x.shape[0]
    x2 = x[:, 0]                                                           # (B, 28, 28)
    cols = [x2[:, dy:dy + 24, dx:dx + 24] for dy in range(5) for dx in range(5)]
    p = jnp.stack(cols, axis=-1)                                           # (B, 24, 24, 25)
    p = jnp.pad(p, ((0, 0), (0, 0), (0, 0), (0, 7)))                       # (B, 24, 24, 32)
    p = p.reshape(B, 12, 2, 12, 2, 32).transpose(0, 2, 4, 1, 3, 5)         # (B, i2, j2, pi, pj, K)
    return p.reshape(B * 4, 144, 32).astype(jnp.bfloat16)


def mnist_net_forward(x, params):
    B = x.shape[0]
    w1p, b1, w2m, b2, wfc_r, bfc = _prep_weights(params)
    patches = _conv1_pool_slabs(x.astype(jnp.float32))

    out = pl.pallas_call(
        _mnist_fused_kernel,
        out_shape=jax.ShapeDtypeStruct((B, 1, 10), jnp.float32),
        grid_spec=pltpu.PrefetchScalarGridSpec(
            num_scalar_prefetch=0,
            grid=(B,),
            in_specs=[
                pl.BlockSpec((4, 144, 32), lambda b: (b, 0, 0)),      # conv1 patches (per image)
                pl.BlockSpec((32, 32), lambda b: (0, 0)),             # w1 (resident)
                pl.BlockSpec((1, 32), lambda b: (0, 0)),              # b1
                pl.BlockSpec((25, 32, 64), lambda b: (0, 0, 0)),      # w2 (resident)
                pl.BlockSpec((1, 64), lambda b: (0, 0)),              # b2
                pl.BlockSpec((16, 64, 10), lambda b: (0, 0, 0)),      # wfc (resident)
                pl.BlockSpec((1, 10), lambda b: (0, 0)),              # bfc
            ],
            out_specs=pl.BlockSpec((1, 1, 10), lambda b: (b, 0, 0)),
            scratch_shapes=[
                pltpu.VMEM((144, 32), jnp.float32),   # pool1 output
                pltpu.VMEM((92, 64), jnp.float32),    # relu(conv2)
                pltpu.VMEM((91, 64), jnp.float32),    # pool2 intermediate
                pltpu.VMEM((79, 64), jnp.float32),    # pool2 output
            ],
        ),
        compiler_params=pltpu.CompilerParams(
            dimension_semantics=("parallel",),        # 2 images -> both TCs on v7x
        ),
    )(patches, w1p, b1, w2m, b2, wfc_r, bfc)
    return out.reshape(B, 10)


# ----------------------------------------------------------------------------
# Pure-JAX reference (torch semantics) for a correctness check.
# ----------------------------------------------------------------------------
def mnist_net_reference(x, params):
    x = x.astype(jnp.float32)
    dn = ("NCHW", "OIHW", "NCHW")
    y = lax.conv_general_dilated(x, params["w1"], (1, 1), "VALID",
                                 dimension_numbers=dn, precision=lax.Precision.HIGHEST)
    y = jax.nn.relu(y + params["b1"].reshape(1, -1, 1, 1))
    y = lax.reduce_window(y, -jnp.inf, lax.max, (1, 1, 2, 2), (1, 1, 2, 2), "VALID")
    y = lax.conv_general_dilated(y, params["w2"], (1, 1), "VALID",
                                 dimension_numbers=dn, precision=lax.Precision.HIGHEST)
    y = jax.nn.relu(y + params["b2"].reshape(1, -1, 1, 1))
    y = lax.reduce_window(y, -jnp.inf, lax.max, (1, 1, 2, 2), (1, 1, 2, 2), "VALID")
    flat = y.reshape(y.shape[0], -1)                                  # (B, 64*4*4), (C,H,W) order
    logits = jnp.dot(flat, params["wfc"].T, precision=lax.Precision.HIGHEST) + params["bfc"]
    return jax.nn.log_softmax(logits, axis=-1)


def init_params(key):
    """Deterministic synthetic params with torch-layout shapes."""
    k1, k2, k3, k4, k5, k6 = jax.random.split(key, 6)
    s = 0.1
    return {
        "w1": s * jax.random.normal(k1, (32, 1, 5, 5), jnp.float32),
        "b1": s * jax.random.normal(k2, (32,), jnp.float32),
        "w2": s * jax.random.normal(k3, (64, 32, 5, 5), jnp.float32),
        "b2": s * jax.random.normal(k4, (64,), jnp.float32),
        "wfc": s * jax.random.normal(k5, (10, 64 * 4 * 4), jnp.float32),
        "bfc": s * jax.random.normal(k6, (10,), jnp.float32),
    }


if __name__ == "__main__":
    key = jax.random.PRNGKey(0)
    pkey, xkey = jax.random.split(key)
    params = init_params(pkey)
    # MNIST-shaped input: fc1 = Linear(64*4*4, 10) forces 28x28 spatial.
    x = jax.random.normal(xkey, (2, 1, 28, 28), jnp.float32)

    out = jax.jit(mnist_net_forward)(x, params)
    out = jax.block_until_ready(out)

    assert out.shape == (2, 10)
    # log_softmax rows must exponentiate-sum to 1
    assert bool(jnp.allclose(jnp.sum(jnp.exp(out), axis=1), 1.0, atol=1e-3))
    # match the f32 reference (kernel uses bf16 MXU operands, hence the loose tolerance)
    ref = mnist_net_reference(x, params)
    assert bool(jnp.allclose(out, ref, atol=0.1)), (out, ref)
    print("KERNEL_OK")
</pallas_src>

<mosaic_0001>
module attributes {stable_mosaic.version = 11 : i64} {
  func.func @_mnist_fused_kernel(%arg0: i32, %arg1: memref<4x144x32xbf16, #tpu.memory_space<vmem>>, %arg2: memref<32x32xbf16, #tpu.memory_space<vmem>>, %arg3: memref<1x32xf32, #tpu.memory_space<vmem>>, %arg4: memref<25x32x64xbf16, #tpu.memory_space<vmem>>, %arg5: memref<1x64xf32, #tpu.memory_space<vmem>>, %arg6: memref<16x64x10xbf16, #tpu.memory_space<vmem>>, %arg7: memref<1x10xf32, #tpu.memory_space<vmem>>, %arg8: memref<1x1x10xf32, #tpu.memory_space<vmem>>, %arg9: memref<144x32xf32, #tpu.memory_space<vmem>>, %arg10: memref<92x64xf32, #tpu.memory_space<vmem>>, %arg11: memref<91x64xf32, #tpu.memory_space<vmem>>, %arg12: memref<79x64xf32, #tpu.memory_space<vmem>>) attributes {dimension_semantics = [#tpu.dimension_semantics<parallel>], iteration_bounds = array<i64: 2>, scalar_prefetch = 0 : i64, scratch_operands = 4 : i64, tpu.core_type = #tpu.core_type<tc>, window_params = [{transform_indices = @transform_0, window_bounds = array<i64: 4, 144, 32>}, {pipeline_mode = #tpu.pipeline_mode<synchronous>, transform_indices = @transform_1, window_bounds = array<i64: 32, 32>}, {pipeline_mode = #tpu.pipeline_mode<synchronous>, transform_indices = @transform_2, window_bounds = array<i64: 1, 32>}, {pipeline_mode = #tpu.pipeline_mode<synchronous>, transform_indices = @transform_3, window_bounds = array<i64: 25, 32, 64>}, {pipeline_mode = #tpu.pipeline_mode<synchronous>, transform_indices = @transform_4, window_bounds = array<i64: 1, 64>}, {pipeline_mode = #tpu.pipeline_mode<synchronous>, transform_indices = @transform_5, window_bounds = array<i64: 16, 64, 10>}, {pipeline_mode = #tpu.pipeline_mode<synchronous>, transform_indices = @transform_6, window_bounds = array<i64: 1, 10>}, {transform_indices = @transform_7, window_bounds = array<i64: 1, 1, 10>}]} {
    %c0 = arith.constant 0 : index
    %c0_0 = arith.constant 0 : index
    %c0_1 = arith.constant 0 : index
    %0 = vector.load %arg1[%c0, %c0_0, %c0_1] : memref<4x144x32xbf16, #tpu.memory_space<vmem>>, vector<1x144x32xbf16>
    %1 = vector.shape_cast %0 : vector<1x144x32xbf16> to vector<144x32xbf16>
    %c0_2 = arith.constant 0 : index
    %c0_3 = arith.constant 0 : index
    %2 = vector.load %arg2[%c0_2, %c0_3] : memref<32x32xbf16, #tpu.memory_space<vmem>>, vector<32x32xbf16>
    %cst = arith.constant dense<0.000000e+00> : vector<144x32xf32>
    %3 = tpu.matmul %1, %2, %cst {dimension_numbers = #tpu.dot_dimension_numbers<[1], [0], [0], [1], [0, 0, 1, 1], [], []>} : vector<144x32xbf16>, vector<32x32xbf16>, vector<144x32xf32> -> vector<144x32xf32>
    %c1 = arith.constant 1 : index
    %c0_4 = arith.constant 0 : index
    %c0_5 = arith.constant 0 : index
    %4 = vector.load %arg1[%c1, %c0_4, %c0_5] : memref<4x144x32xbf16, #tpu.memory_space<vmem>>, vector<1x144x32xbf16>
    %5 = vector.shape_cast %4 : vector<1x144x32xbf16> to vector<144x32xbf16>
    %c0_6 = arith.constant 0 : index
    %c0_7 = arith.constant 0 : index
    %6 = vector.load %arg2[%c0_6, %c0_7] : memref<32x32xbf16, #tpu.memory_space<vmem>>, vector<32x32xbf16>
    %cst_8 = arith.constant dense<0.000000e+00> : vector<144x32xf32>
    %7 = tpu.matmul %5, %6, %cst_8 {dimension_numbers = #tpu.dot_dimension_numbers<[1], [0], [0], [1], [0, 0, 1, 1], [], []>} : vector<144x32xbf16>, vector<32x32xbf16>, vector<144x32xf32> -> vector<144x32xf32>
    %8 = arith.maximumf %3, %7 : vector<144x32xf32>
    %c2 = arith.constant 2 : index
    %c0_9 = arith.constant 0 : index
    %c0_10 = arith.constant 0 : index
    %9 = vector.load %arg1[%c2, %c0_9, %c0_10] : memref<4x144x32xbf16, #tpu.memory_space<vmem>>, vector<1x144x32xbf16>
    %10 = vector.shape_cast %9 : vector<1x144x32xbf16> to vector<144x32xbf16>
    %c0_11 = arith.constant 0 : index
    %c0_12 = arith.constant 0 : index
    %11 = vector.load %arg2[%c0_11, %c0_12] : memref<32x32xbf16, #tpu.memory_space<vmem>>, vector<32x32xbf16>
    %cst_13 = arith.constant dense<0.000000e+00> : vector<144x32xf32>
    %12 = tpu.matmul %10, %11, %cst_13 {dimension_numbers = #tpu.dot_dimension_numbers<[1], [0], [0], [1], [0, 0, 1, 1], [], []>} : vector<144x32xbf16>, vector<32x32xbf16>, vector<144x32xf32> -> vector<144x32xf32>
    %13 = arith.maximumf %8, %12 : vector<144x32xf32>
    %c3 = arith.constant 3 : index
    %c0_14 = arith.constant 0 : index
    %c0_15 = arith.constant 0 : index
    %14 = vector.load %arg1[%c3, %c0_14, %c0_15] : memref<4x144x32xbf16, #tpu.memory_space<vmem>>, vector<1x144x32xbf16>
    %15 = vector.shape_cast %14 : vector<1x144x32xbf16> to vector<144x32xbf16>
    %c0_16 = arith.constant 0 : index
    %c0_17 = arith.constant 0 : index
    %16 = vector.load %arg2[%c0_16, %c0_17] : memref<32x32xbf16, #tpu.memory_space<vmem>>, vector<32x32xbf16>
    %cst_18 = arith.constant dense<0.000000e+00> : vector<144x32xf32>
    %17 = tpu.matmul %15, %16, %cst_18 {dimension_numbers = #tpu.dot_dimension_numbers<[1], [0], [0], [1], [0, 0, 1, 1], [], []>} : vector<144x32xbf16>, vector<32x32xbf16>, vector<144x32xf32> -> vector<144x32xf32>
    %18 = arith.maximumf %13, %17 : vector<144x32xf32>
    %c0_19 = arith.constant 0 : index
    %c0_20 = arith.constant 0 : index
    %19 = vector.load %arg3[%c0_19, %c0_20] : memref<1x32xf32, #tpu.memory_space<vmem>>, vector<1x32xf32>
    %20 = vector.broadcast %19 : vector<1x32xf32> to vector<144x32xf32>
    %21 = arith.addf %18, %20 : vector<144x32xf32>
    %cst_21 = arith.constant 0.000000e+00 : f32
    %22 = vector.broadcast %cst_21 : f32 to vector<144x32xf32>
    %23 = arith.maximumf %21, %22 : vector<144x32xf32>
    %c0_22 = arith.constant 0 : index
    %c0_23 = arith.constant 0 : index
    %24 = vector.load %arg9[%c0_22, %c0_23] : memref<144x32xf32, #tpu.memory_space<vmem>>, vector<144x32xf32>
    tpu.vector_store %arg9[%c0_22, %c0_23], %23 {strides = array<i32>} : memref<144x32xf32, #tpu.memory_space<vmem>>, vector<144x32xf32>,
    %cst_24 = arith.constant 0.000000e+00 : f32
    %25 = vector.broadcast %cst_24 : f32 to vector<92x64xf32>
    %c0_25 = arith.constant 0 : index
    %c0_26 = arith.constant 0 : index
    %26 = vector.load %arg9[%c0_25, %c0_26] : memref<144x32xf32, #tpu.memory_space<vmem>>, vector<92x32xf32>
    %27 = arith.truncf %26 : vector<92x32xf32> to vector<92x32xbf16>
    %c0_27 = arith.constant 0 : index
    %c0_28 = arith.constant 0 : index
    %c0_29 = arith.constant 0 : index
    %28 = vector.load %arg4[%c0_27, %c0_28, %c0_29] : memref<25x32x64xbf16, #tpu.memory_space<vmem>>, vector<1x32x64xbf16>
    %29 = vector.shape_cast %28 : vector<1x32x64xbf16> to vector<32x64xbf16>
    %cst_30 = arith.constant dense<0.000000e+00> : vector<92x64xf32>
    %30 = tpu.matmul %27, %29, %cst_30 {dimension_numbers = #tpu.dot_dimension_numbers<[1], [0], [0], [1], [0, 0, 1, 1], [], []>} : vector<92x32xbf16>, vector<32x64xbf16>, vector<92x64xf32> -> vector<92x64xf32>
    %31 = arith.addf %25, %30 : vector<92x64xf32>
    %c1_31 = arith.constant 1 : index
    %c0_32 = arith.constant 0 : index
    %32 = vector.load %arg9[%c1_31, %c0_32] : memref<144x32xf32, #tpu.memory_space<vmem>>, vector<92x32xf32>
    %33 = arith.truncf %32 : vector<92x32xf32> to vector<92x32xbf16>
    %c1_33 = arith.constant 1 : index
    %c0_34 = arith.constant 0 : index
    %c0_35 = arith.constant 0 : index
    %34 = vector.load %arg4[%c1_33, %c0_34, %c0_35] : memref<25x32x64xbf16, #tpu.memory_space<vmem>>, vector<1x32x64xbf16>
    %35 = vector.shape_cast %34 : vector<1x32x64xbf16> to vector<32x64xbf16>
    %cst_36 = arith.constant dense<0.000000e+00> : vector<92x64xf32>
    %36 = tpu.matmul %33, %35, %cst_36 {dimension_numbers = #tpu.dot_dimension_numbers<[1], [0], [0], [1], [0, 0, 1, 1], [], []>} : vector<92x32xbf16>, vector<32x64xbf16>, vector<92x64xf32> -> vector<92x64xf32>
    %37 = arith.addf %31, %36 : vector<92x64xf32>
    %c2_37 = arith.constant 2 : index
    %c0_38 = arith.constant 0 : index
    %38 = vector.load %arg9[%c2_37, %c0_38] : memref<144x32xf32, #tpu.memory_space<vmem>>, vector<92x32xf32>
    %39 = arith.truncf %38 : vector<92x32xf32> to vector<92x32xbf16>
    %c2_39 = arith.constant 2 : index
    %c0_40 = arith.constant 0 : index
    %c0_41 = arith.constant 0 : index
    %40 = vector.load %arg4[%c2_39, %c0_40, %c0_41] : memref<25x32x64xbf16, #tpu.memory_space<vmem>>, vector<1x32x64xbf16>
    %41 = vector.shape_cast %40 : vector<1x32x64xbf16> to vector<32x64xbf16>
    %cst_42 = arith.constant dense<0.000000e+00> : vector<92x64xf32>
    %42 = tpu.matmul %39, %41, %cst_42 {dimension_numbers = #tpu.dot_dimension_numbers<[1], [0], [0], [1], [0, 0, 1, 1], [], []>} : vector<92x32xbf16>, vector<32x64xbf16>, vector<92x64xf32> -> vector<92x64xf32>
    %43 = arith.addf %37, %42 : vector<92x64xf32>
    %c3_43 = arith.constant 3 : index
    %c0_44 = arith.constant 0 : index
    %44 = vector.load %arg9[%c3_43, %c0_44] : memref<144x32xf32, #tpu.memory_space<vmem>>, vector<92x32xf32>
    %45 = arith.truncf %44 : vector<92x32xf32> to vector<92x32xbf16>
    %c3_45 = arith.constant 3 : index
    %c0_46 = arith.constant 0 : index
    %c0_47 = arith.constant 0 : index
    %46 = vector.load %arg4[%c3_45, %c0_46, %c0_47] : memref<25x32x64xbf16, #tpu.memory_space<vmem>>, vector<1x32x64xbf16>
    %47 = vector.shape_cast %46 : vector<1x32x64xbf16> to vector<32x64xbf16>
    %cst_48 = arith.constant dense<0.000000e+00> : vector<92x64xf32>
    %48 = tpu.matmul %45, %47, %cst_48 {dimension_numbers = #tpu.dot_dimension_numbers<[1], [0], [0], [1], [0, 0, 1, 1], [], []>} : vector<92x32xbf16>, vector<32x64xbf16>, vector<92x64xf32> -> vector<92x64xf32>
    %49 = arith.addf %43, %48 : vector<92x64xf32>
    %c4 = arith.constant 4 : index
    %c0_49 = arith.constant 0 : index
    %50 = vector.load %arg9[%c4, %c0_49] : memref<144x32xf32, #tpu.memory_space<vmem>>, vector<92x32xf32>
    %51 = arith.truncf %50 : vector<92x32xf32> to vector<92x32xbf16>
    %c4_50 = arith.constant 4 : index
    %c0_51 = arith.constant 0 : index
    %c0_52 = arith.constant 0 : index
    %52 = vector.load %arg4[%c4_50, %c0_51, %c0_52] : memref<25x32x64xbf16, #tpu.memory_space<vmem>>, vector<1x32x64xbf16>
    %53 = vector.shape_cast %52 : vector<1x32x64xbf16> to vector<32x64xbf16>
    %cst_53 = arith.constant dense<0.000000e+00> : vector<92x64xf32>
    %54 = tpu.matmul %51, %53, %cst_53 {dimension_numbers = #tpu.dot_dimension_numbers<[1], [0], [0], [1], [0, 0, 1, 1], [], []>} : vector<92x32xbf16>, vector<32x64xbf16>, vector<92x64xf32> -> vector<92x64xf32>
    %55 = arith.addf %49, %54 : vector<92x64xf32>
    %c12 = arith.constant 12 : index
    %c0_54 = arith.constant 0 : index
    %56 = vector.load %arg9[%c12, %c0_54] : memref<144x32xf32, #tpu.memory_space<vmem>>, vector<92x32xf32>
    %57 = arith.truncf %56 : vector<92x32xf32> to vector<92x32xbf16>
    %c5 = arith.constant 5 : index
    %c0_55 = arith.constant 0 : index
    %c0_56 = arith.constant 0 : index
    %58 = vector.load %arg4[%c5, %c0_55, %c0_56] : memref<25x32x64xbf16, #tpu.memory_space<vmem>>, vector<1x32x64xbf16>
    %59 = vector.shape_cast %58 : vector<1x32x64xbf16> to vector<32x64xbf16>
    %cst_57 = arith.constant dense<0.000000e+00> : vector<92x64xf32>
    %60 = tpu.matmul %57, %59, %cst_57 {dimension_numbers = #tpu.dot_dimension_numbers<[1], [0], [0], [1], [0, 0, 1, 1], [], []>} : vector<92x32xbf16>, vector<32x64xbf16>, vector<92x64xf32> -> vector<92x64xf32>
    %61 = arith.addf %55, %60 : vector<92x64xf32>
    %c13 = arith.constant 13 : index
    %c0_58 = arith.constant 0 : index
    %62 = vector.load %arg9[%c13, %c0_58] : memref<144x32xf32, #tpu.memory_space<vmem>>, vector<92x32xf32>
    %63 = arith.truncf %62 : vector<92x32xf32> to vector<92x32xbf16>
    %c6 = arith.constant 6 : index
    %c0_59 = arith.constant 0 : index
    %c0_60 = arith.constant 0 : index
    %64 = vector.load %arg4[%c6, %c0_59, %c0_60] : memref<25x32x64xbf16, #tpu.memory_space<vmem>>, vector<1x32x64xbf16>
    %65 = vector.shape_cast %64 : vector<1x32x64xbf16> to vector<32x64xbf16>
    %cst_61 = arith.constant dense<0.000000e+00> : vector<92x64xf32>
    %66 = tpu.matmul %63, %65, %cst_61 {dimension_numbers = #tpu.dot_dimension_numbers<[1], [0], [0], [1], [0, 0, 1, 1], [], []>} : vector<92x32xbf16>, vector<32x64xbf16>, vector<92x64xf32> -> vector<92x64xf32>
    %67 = arith.addf %61, %66 : vector<92x64xf32>
    %c14 = arith.constant 14 : index
    %c0_62 = arith.constant 0 : index
    %68 = vector.load %arg9[%c14, %c0_62] : memref<144x32xf32, #tpu.memory_space<vmem>>, vector<92x32xf32>
    %69 = arith.truncf %68 : vector<92x32xf32> to vector<92x32xbf16>
    %c7 = arith.constant 7 : index
    %c0_63 = arith.constant 0 : index
    %c0_64 = arith.constant 0 : index
    %70 = vector.load %arg4[%c7, %c0_63, %c0_64] : memref<25x32x64xbf16, #tpu.memory_space<vmem>>, vector<1x32x64xbf16>
    %71 = vector.shape_cast %70 : vector<1x32x64xbf16> to vector<32x64xbf16>
    %cst_65 = arith.constant dense<0.000000e+00> : vector<92x64xf32>
    %72 = tpu.matmul %69, %71, %cst_65 {dimension_numbers = #tpu.dot_dimension_numbers<[1], [0], [0], [1], [0, 0, 1, 1], [], []>} : vector<92x32xbf16>, vector<32x64xbf16>, vector<92x64xf32> -> vector<92x64xf32>
    %73 = arith.addf %67, %72 : vector<92x64xf32>
    %c15 = arith.constant 15 : index
    %c0_66 = arith.constant 0 : index
    %74 = vector.load %arg9[%c15, %c0_66] : memref<144x32xf32, #tpu.memory_space<vmem>>, vector<92x32xf32>
    %75 = arith.truncf %74 : vector<92x32xf32> to vector<92x32xbf16>
    %c8 = arith.constant 8 : index
    %c0_67 = arith.constant 0 : index
    %c0_68 = arith.constant 0 : index
    %76 = vector.load %arg4[%c8, %c0_67, %c0_68] : memref<25x32x64xbf16, #tpu.memory_space<vmem>>, vector<1x32x64xbf16>
    %77 = vector.shape_cast %76 : vector<1x32x64xbf16> to vector<32x64xbf16>
    %cst_69 = arith.constant dense<0.000000e+00> : vector<92x64xf32>
    %78 = tpu.matmul %75, %77, %cst_69 {dimension_numbers = #tpu.dot_dimension_numbers<[1], [0], [0], [1], [0, 0, 1, 1], [], []>} : vector<92x32xbf16>, vector<32x64xbf16>, vector<92x64xf32> -> vector<92x64xf32>
    %79 = arith.addf %73, %78 : vector<92x64xf32>
    %c16 = arith.constant 16 : index
    %c0_70 = arith.constant 0 : index
    %80 = vector.load %arg9[%c16, %c0_70] : memref<144x32xf32, #tpu.memory_space<vmem>>, vector<92x32xf32>
    %81 = arith.truncf %80 : vector<92x32xf32> to vector<92x32xbf16>
    %c9 = arith.constant 9 : index
    %c0_71 = arith.constant 0 : index
    %c0_72 = arith.constant 0 : index
    %82 = vector.load %arg4[%c9, %c0_71, %c0_72] : memref<25x32x64xbf16, #tpu.memory_space<vmem>>, vector<1x32x64xbf16>
    %83 = vector.shape_cast %82 : vector<1x32x64xbf16> to vector<32x64xbf16>
    %cst_73 = arith.constant dense<0.000000e+00> : vector<92x64xf32>
    %84 = tpu.matmul %81, %83, %cst_73 {dimension_numbers = #tpu.dot_dimension_numbers<[1], [0], [0], [1], [0, 0, 1, 1], [], []>} : vector<92x32xbf16>, vector<32x64xbf16>, vector<92x64xf32> -> vector<92x64xf32>
    %85 = arith.addf %79, %84 : vector<92x64xf32>
    %c24 = arith.constant 24 : index
    %c0_74 = arith.constant 0 : index
    %86 = vector.load %arg9[%c24, %c0_74] : memref<144x32xf32, #tpu.memory_space<vmem>>, vector<92x32xf32>
    %87 = arith.truncf %86 : vector<92x32xf32> to vector<92x32xbf16>
    %c10 = arith.constant 10 : index
    %c0_75 = arith.constant 0 : index
    %c0_76 = arith.constant 0 : index
    %88 = vector.load %arg4[%c10, %c0_75, %c0_76] : memref<25x32x64xbf16, #tpu.memory_space<vmem>>, vector<1x32x64xbf16>
    %89 = vector.shape_cast %88 : vector<1x32x64xbf16> to vector<32x64xbf16>
    %cst_77 = arith.constant dense<0.000000e+00> : vector<92x64xf32>
    %90 = tpu.matmul %87, %89, %cst_77 {dimension_numbers = #tpu.dot_dimension_numbers<[1], [0], [0], [1], [0, 0, 1, 1], [], []>} : vector<92x32xbf16>, vector<32x64xbf16>, vector<92x64xf32> -> vector<92x64xf32>
    %91 = arith.addf %85, %90 : vector<92x64xf32>
    %c25 = arith.constant 25 : index
    %c0_78 = arith.constant 0 : index
    %92 = vector.load %arg9[%c25, %c0_78] : memref<144x32xf32, #tpu.memory_space<vmem>>, vector<92x32xf32>
    %93 = arith.truncf %92 : vector<92x32xf32> to vector<92x32xbf16>
    %c11 = arith.constant 11 : index
    %c0_79 = arith.constant 0 : index
    %c0_80 = arith.constant 0 : index
    %94 = vector.load %arg4[%c11, %c0_79, %c0_80] : memref<25x32x64xbf16, #tpu.memory_space<vmem>>, vector<1x32x64xbf16>
    %95 = vector.shape_cast %94 : vector<1x32x64xbf16> to vector<32x64xbf16>
    %cst_81 = arith.constant dense<0.000000e+00> : vector<92x64xf32>
    %96 = tpu.matmul %93, %95, %cst_81 {dimension_numbers = #tpu.dot_dimension_numbers<[1], [0], [0], [1], [0, 0, 1, 1], [], []>} : vector<92x32xbf16>, vector<32x64xbf16>, vector<92x64xf32> -> vector<92x64xf32>
    %97 = arith.addf %91, %96 : vector<92x64xf32>
    %c26 = arith.constant 26 : index
    %c0_82 = arith.constant 0 : index
    %98 = vector.load %arg9[%c26, %c0_82] : memref<144x32xf32, #tpu.memory_space<vmem>>, vector<92x32xf32>
    %99 = arith.truncf %98 : vector<92x32xf32> to vector<92x32xbf16>
    %c12_83 = arith.constant 12 : index
    %c0_84 = arith.constant 0 : index
    %c0_85 = arith.constant 0 : index
    %100 = vector.load %arg4[%c12_83, %c0_84, %c0_85] : memref<25x32x64xbf16, #tpu.memory_space<vmem>>, vector<1x32x64xbf16>
    %101 = vector.shape_cast %100 : vector<1x32x64xbf16> to vector<32x64xbf16>
    %cst_86 = arith.constant dense<0.000000e+00> : vector<92x64xf32>
    %102 = tpu.matmul %99, %101, %cst_86 {dimension_numbers = #tpu.dot_dimension_numbers<[1], [0], [0], [1], [0, 0, 1, 1], [], []>} : vector<92x32xbf16>, vector<32x64xbf16>, vector<92x64xf32> -> vector<92x64xf32>
    %103 = arith.addf %97, %102 : vector<92x64xf32>
    %c27 = arith.constant 27 : index
    %c0_87 = arith.constant 0 : index
    %104 = vector.load %arg9[%c27, %c0_87] : memref<144x32xf32, #tpu.memory_space<vmem>>, vector<92x32xf32>
    %105 = arith.truncf %104 : vector<92x32xf32> to vector<92x32xbf16>
    %c13_88 = arith.constant 13 : index
    %c0_89 = arith.constant 0 : index
    %c0_90 = arith.constant 0 : index
    %106 = vector.load %arg4[%c13_88, %c0_89, %c0_90] : memref<25x32x64xbf16, #tpu.memory_space<vmem>>, vector<1x32x64xbf16>
    %107 = vector.shape_cast %106 : vector<1x32x64xbf16> to vector<32x64xbf16>
    %cst_91 = arith.constant dense<0.000000e+00> : vector<92x64xf32>
    %108 = tpu.matmul %105, %107, %cst_91 {dimension_numbers = #tpu.dot_dimension_numbers<[1], [0], [0], [1], [0, 0, 1, 1], [], []>} : vector<92x32xbf16>, vector<32x64xbf16>, vector<92x64xf32> -> vector<92x64xf32>
    %109 = arith.addf %103, %108 : vector<92x64xf32>
    %c28 = arith.constant 28 : index
    %c0_92 = arith.constant 0 : index
    %110 = vector.load %arg9[%c28, %c0_92] : memref<144x32xf32, #tpu.memory_space<vmem>>, vector<92x32xf32>
    %111 = arith.truncf %110 : vector<92x32xf32> to vector<92x32xbf16>
    %c14_93 = arith.constant 14 : index
    %c0_94 = arith.constant 0 : index
    %c0_95 = arith.constant 0 : index
    %112 = vector.load %arg4[%c14_93, %c0_94, %c0_95] : memref<25x32x64xbf16, #tpu.memory_space<vmem>>, vector<1x32x64xbf16>
    %113 = vector.shape_cast %112 : vector<1x32x64xbf16> to vector<32x64xbf16>
    %cst_96 = arith.constant dense<0.000000e+00> : vector<92x64xf32>
    %114 = tpu.matmul %111, %113, %cst_96 {dimension_numbers = #tpu.dot_dimension_numbers<[1], [0], [0], [1], [0, 0, 1, 1], [], []>} : vector<92x32xbf16>, vector<32x64xbf16>, vector<92x64xf32> -> vector<92x64xf32>
    %115 = arith.addf %109, %114 : vector<92x64xf32>
    %c36 = arith.constant 36 : index
    %c0_97 = arith.constant 0 : index
    %116 = vector.load %arg9[%c36, %c0_97] : memref<144x32xf32, #tpu.memory_space<vmem>>, vector<92x32xf32>
    %117 = arith.truncf %116 : vector<92x32xf32> to vector<92x32xbf16>
    %c15_98 = arith.constant 15 : index
    %c0_99 = arith.constant 0 : index
    %c0_100 = arith.constant 0 : index
    %118 = vector.load %arg4[%c15_98, %c0_99, %c0_100] : memref<25x32x64xbf16, #tpu.memory_space<vmem>>, vector<1x32x64xbf16>
    %119 = vector.shape_cast %118 : vector<1x32x64xbf16> to vector<32x64xbf16>
    %cst_101 = arith.constant dense<0.000000e+00> : vector<92x64xf32>
    %120 = tpu.matmul %117, %119, %cst_101 {dimension_numbers = #tpu.dot_dimension_numbers<[1], [0], [0], [1], [0, 0, 1, 1], [], []>} : vector<92x32xbf16>, vector<32x64xbf16>, vector<92x64xf32> -> vector<92x64xf32>
    %121 = arith.addf %115, %120 : vector<92x64xf32>
    %c37 = arith.constant 37 : index
    %c0_102 = arith.constant 0 : index
    %122 = vector.load %arg9[%c37, %c0_102] : memref<144x32xf32, #tpu.memory_space<vmem>>, vector<92x32xf32>
    %123 = arith.truncf %122 : vector<92x32xf32> to vector<92x32xbf16>
    %c16_103 = arith.constant 16 : index
    %c0_104 = arith.constant 0 : index
    %c0_105 = arith.constant 0 : index
    %124 = vector.load %arg4[%c16_103, %c0_104, %c0_105] : memref<25x32x64xbf16, #tpu.memory_space<vmem>>, vector<1x32x64xbf16>
    %125 = vector.shape_cast %124 : vector<1x32x64xbf16> to vector<32x64xbf16>
    %cst_106 = arith.constant dense<0.000000e+00> : vector<92x64xf32>
    %126 = tpu.matmul %123, %125, %cst_106 {dimension_numbers = #tpu.dot_dimension_numbers<[1], [0], [0], [1], [0, 0, 1, 1], [], []>} : vector<92x32xbf16>, vector<32x64xbf16>, vector<92x64xf32> -> vector<92x64xf32>
    %127 = arith.addf %121, %126 : vector<92x64xf32>
    %c38 = arith.constant 38 : index
    %c0_107 = arith.constant 0 : index
    %128 = vector.load %arg9[%c38, %c0_107] : memref<144x32xf32, #tpu.memory_space<vmem>>, vector<92x32xf32>
    %129 = arith.truncf %128 : vector<92x32xf32> to vector<92x32xbf16>
    %c17 = arith.constant 17 : index
    %c0_108 = arith.constant 0 : index
    %c0_109 = arith.constant 0 : index
    %130 = vector.load %arg4[%c17, %c0_108, %c0_109] : memref<25x32x64xbf16, #tpu.memory_space<vmem>>, vector<1x32x64xbf16>
    %131 = vector.shape_cast %130 : vector<1x32x64xbf16> to vector<32x64xbf16>
    %cst_110 = arith.constant dense<0.000000e+00> : vector<92x64xf32>
    %132 = tpu.matmul %129, %131, %cst_110 {dimension_numbers = #tpu.dot_dimension_numbers<[1], [0], [0], [1], [0, 0, 1, 1], [], []>} : vector<92x32xbf16>, vector<32x64xbf16>, vector<92x64xf32> -> vector<92x64xf32>
    %133 = arith.addf %127, %132 : vector<92x64xf32>
    %c39 = arith.constant 39 : index
    %c0_111 = arith.constant 0 : index
    %134 = vector.load %arg9[%c39, %c0_111] : memref<144x32xf32, #tpu.memory_space<vmem>>, vector<92x32xf32>
    %135 = arith.truncf %134 : vector<92x32xf32> to vector<92x32xbf16>
    %c18 = arith.constant 18 : index
    %c0_112 = arith.constant 0 : index
    %c0_113 = arith.constant 0 : index
    %136 = vector.load %arg4[%c18, %c0_112, %c0_113] : memref<25x32x64xbf16, #tpu.memory_space<vmem>>, vector<1x32x64xbf16>
    %137 = vector.shape_cast %136 : vector<1x32x64xbf16> to vector<32x64xbf16>
    %cst_114 = arith.constant dense<0.000000e+00> : vector<92x64xf32>
    %138 = tpu.matmul %135, %137, %cst_114 {dimension_numbers = #tpu.dot_dimension_numbers<[1], [0], [0], [1], [0, 0, 1, 1], [], []>} : vector<92x32xbf16>, vector<32x64xbf16>, vector<92x64xf32> -> vector<92x64xf32>
    %139 = arith.addf %133, %138 : vector<92x64xf32>
    %c40 = arith.constant 40 : index
    %c0_115 = arith.constant 0 : index
    %140 = vector.load %arg9[%c40, %c0_115] : memref<144x32xf32, #tpu.memory_space<vmem>>, vector<92x32xf32>
    %141 = arith.truncf %140 : vector<92x32xf32> to vector<92x32xbf16>
    %c19 = arith.constant 19 : index
    %c0_116 = arith.constant 0 : index
    %c0_117 = arith.constant 0 : index
    %142 = vector.load %arg4[%c19, %c0_116, %c0_117] : memref<25x32x64xbf16, #tpu.memory_space<vmem>>, vector<1x32x64xbf16>
    %143 = vector.shape_cast %142 : vector<1x32x64xbf16> to vector<32x64xbf16>
    %cst_118 = arith.constant dense<0.000000e+00> : vector<92x64xf32>
    %144 = tpu.matmul %141, %143, %cst_118 {dimension_numbers = #tpu.dot_dimension_numbers<[1], [0], [0], [1], [0, 0, 1, 1], [], []>} : vector<92x32xbf16>, vector<32x64xbf16>, vector<92x64xf32> -> vector<92x64xf32>
    %145 = arith.addf %139, %144 : vector<92x64xf32>
    %c48 = arith.constant 48 : index
    %c0_119 = arith.constant 0 : index
    %146 = vector.load %arg9[%c48, %c0_119] : memref<144x32xf32, #tpu.memory_space<vmem>>, vector<92x32xf32>
    %147 = arith.truncf %146 : vector<92x32xf32> to vector<92x32xbf16>
    %c20 = arith.constant 20 : index
    %c0_120 = arith.constant 0 : index
    %c0_121 = arith.constant 0 : index
    %148 = vector.load %arg4[%c20, %c0_120, %c0_121] : memref<25x32x64xbf16, #tpu.memory_space<vmem>>, vector<1x32x64xbf16>
    %149 = vector.shape_cast %148 : vector<1x32x64xbf16> to vector<32x64xbf16>
    %cst_122 = arith.constant dense<0.000000e+00> : vector<92x64xf32>
    %150 = tpu.matmul %147, %149, %cst_122 {dimension_numbers = #tpu.dot_dimension_numbers<[1], [0], [0], [1], [0, 0, 1, 1], [], []>} : vector<92x32xbf16>, vector<32x64xbf16>, vector<92x64xf32> -> vector<92x64xf32>
    %151 = arith.addf %145, %150 : vector<92x64xf32>
    %c49 = arith.constant 49 : index
    %c0_123 = arith.constant 0 : index
    %152 = vector.load %arg9[%c49, %c0_123] : memref<144x32xf32, #tpu.memory_space<vmem>>, vector<92x32xf32>
    %153 = arith.truncf %152 : vector<92x32xf32> to vector<92x32xbf16>
    %c21 = arith.constant 21 : index
    %c0_124 = arith.constant 0 : index
    %c0_125 = arith.constant 0 : index
    %154 = vector.load %arg4[%c21, %c0_124, %c0_125] : memref<25x32x64xbf16, #tpu.memory_space<vmem>>, vector<1x32x64xbf16>
    %155 = vector.shape_cast %154 : vector<1x32x64xbf16> to vector<32x64xbf16>
    %cst_126 = arith.constant dense<0.000000e+00> : vector<92x64xf32>
    %156 = tpu.matmul %153, %155, %cst_126 {dimension_numbers = #tpu.dot_dimension_numbers<[1], [0], [0], [1], [0, 0, 1, 1], [], []>} : vector<92x32xbf16>, vector<32x64xbf16>, vector<92x64xf32> -> vector<92x64xf32>
    %157 = arith.addf %151, %156 : vector<92x64xf32>
    %c50 = arith.constant 50 : index
    %c0_127 = arith.constant 0 : index
    %158 = vector.load %arg9[%c50, %c0_127] : memref<144x32xf32, #tpu.memory_space<vmem>>, vector<92x32xf32>
    %159 = arith.truncf %158 : vector<92x32xf32> to vector<92x32xbf16>
    %c22 = arith.constant 22 : index
    %c0_128 = arith.constant 0 : index
    %c0_129 = arith.constant 0 : index
    %160 = vector.load %arg4[%c22, %c0_128, %c0_129] : memref<25x32x64xbf16, #tpu.memory_space<vmem>>, vector<1x32x64xbf16>
    %161 = vector.shape_cast %160 : vector<1x32x64xbf16> to vector<32x64xbf16>
    %cst_130 = arith.constant dense<0.000000e+00> : vector<92x64xf32>
    %162 = tpu.matmul %159, %161, %cst_130 {dimension_numbers = #tpu.dot_dimension_numbers<[1], [0], [0], [1], [0, 0, 1, 1], [], []>} : vector<92x32xbf16>, vector<32x64xbf16>, vector<92x64xf32> -> vector<92x64xf32>
    %163 = arith.addf %157, %162 : vector<92x64xf32>
    %c51 = arith.constant 51 : index
    %c0_131 = arith.constant 0 : index
    %164 = vector.load %arg9[%c51, %c0_131] : memref<144x32xf32, #tpu.memory_space<vmem>>, vector<92x32xf32>
    %165 = arith.truncf %164 : vector<92x32xf32> to vector<92x32xbf16>
    %c23 = arith.constant 23 : index
    %c0_132 = arith.constant 0 : index
    %c0_133 = arith.constant 0 : index
    %166 = vector.load %arg4[%c23, %c0_132, %c0_133] : memref<25x32x64xbf16, #tpu.memory_space<vmem>>, vector<1x32x64xbf16>
    %167 = vector.shape_cast %166 : vector<1x32x64xbf16> to vector<32x64xbf16>
    %cst_134 = arith.constant dense<0.000000e+00> : vector<92x64xf32>
    %168 = tpu.matmul %165, %167, %cst_134 {dimension_numbers = #tpu.dot_dimension_numbers<[1], [0], [0], [1], [0, 0, 1, 1], [], []>} : vector<92x32xbf16>, vector<32x64xbf16>, vector<92x64xf32> -> vector<92x64xf32>
    %169 = arith.addf %163, %168 : vector<92x64xf32>
    %c52 = arith.constant 52 : index
    %c0_135 = arith.constant 0 : index
    %170 = vector.load %arg9[%c52, %c0_135] : memref<144x32xf32, #tpu.memory_space<vmem>>, vector<92x32xf32>
    %171 = arith.truncf %170 : vector<92x32xf32> to vector<92x32xbf16>
    %c24_136 = arith.constant 24 : index
    %c0_137 = arith.constant 0 : index
    %c0_138 = arith.constant 0 : index
    %172 = vector.load %arg4[%c24_136, %c0_137, %c0_138] : memref<25x32x64xbf16, #tpu.memory_space<vmem>>, vector<1x32x64xbf16>
    %173 = vector.shape_cast %172 : vector<1x32x64xbf16> to vector<32x64xbf16>
    %cst_139 = arith.constant dense<0.000000e+00> : vector<92x64xf32>
    %174 = tpu.matmul %171, %173, %cst_139 {dimension_numbers = #tpu.dot_dimension_numbers<[1], [0], [0], [1], [0, 0, 1, 1], [], []>} : vector<92x32xbf16>, vector<32x64xbf16>, vector<92x64xf32> -> vector<92x64xf32>
    %175 = arith.addf %169, %174 : vector<92x64xf32>
    %c0_140 = arith.constant 0 : index
    %c0_141 = arith.constant 0 : index
    %176 = vector.load %arg5[%c0_140, %c0_141] : memref<1x64xf32, #tpu.memory_space<vmem>>, vector<1x64xf32>
    %177 = vector.broadcast %176 : vector<1x64xf32> to vector<92x64xf32>
    %178 = arith.addf %175, %177 : vector<92x64xf32>
    %cst_142 = arith.constant 0.000000e+00 : f32
    %179 = vector.broadcast %cst_142 : f32 to vector<92x64xf32>
    %180 = arith.maximumf %178, %179 : vector<92x64xf32>
    %c0_143 = arith.constant 0 : index
    %c0_144 = arith.constant 0 : index
    %181 = vector.load %arg10[%c0_143, %c0_144] : memref<92x64xf32, #tpu.memory_space<vmem>>, vector<92x64xf32>
    tpu.vector_store %arg10[%c0_143, %c0_144], %180 {strides = array<i32>} : memref<92x64xf32, #tpu.memory_space<vmem>>, vector<92x64xf32>,
    %c0_145 = arith.constant 0 : index
    %c0_146 = arith.constant 0 : index
    %182 = vector.load %arg10[%c0_145, %c0_146] : memref<92x64xf32, #tpu.memory_space<vmem>>, vector<91x64xf32>
    %c1_147 = arith.constant 1 : index
    %c0_148 = arith.constant 0 : index
    %183 = vector.load %arg10[%c1_147, %c0_148] : memref<92x64xf32, #tpu.memory_space<vmem>>, vector<91x64xf32>
    %184 = arith.maximumf %182, %183 : vector<91x64xf32>
    %c0_149 = arith.constant 0 : index
    %c0_150 = arith.constant 0 : index
    %185 = vector.load %arg11[%c0_149, %c0_150] : memref<91x64xf32, #tpu.memory_space<vmem>>, vector<91x64xf32>
    tpu.vector_store %arg11[%c0_149, %c0_150], %184 {strides = array<i32>} : memref<91x64xf32, #tpu.memory_space<vmem>>, vector<91x64xf32>,
    %c0_151 = arith.constant 0 : index
    %c0_152 = arith.constant 0 : index
    %186 = vector.load %arg11[%c0_151, %c0_152] : memref<91x64xf32, #tpu.memory_space<vmem>>, vector<79x64xf32>
    %c12_153 = arith.constant 12 : index
    %c0_154 = arith.constant 0 : index
    %187 = vector.load %arg11[%c12_153, %c0_154] : memref<91x64xf32, #tpu.memory_space<vmem>>, vector<79x64xf32>
    %188 = arith.maximumf %186, %187 : vector<79x64xf32>
    %c0_155 = arith.constant 0 : index
    %c0_156 = arith.constant 0 : index
    %189 = vector.load %arg12[%c0_155, %c0_156] : memref<79x64xf32, #tpu.memory_space<vmem>>, vector<79x64xf32>
    tpu.vector_store %arg12[%c0_155, %c0_156], %188 {strides = array<i32>} : memref<79x64xf32, #tpu.memory_space<vmem>>, vector<79x64xf32>,
    %cst_157 = arith.constant 0.000000e+00 : f32
    %190 = vector.broadcast %cst_157 : f32 to vector<1x10xf32>
    %c0_158 = arith.constant 0 : index
    %c0_159 = arith.constant 0 : index
    %191 = vector.load %arg12[%c0_158, %c0_159] : memref<79x64xf32, #tpu.memory_space<vmem>>, vector<1x64xf32>
    %192 = arith.truncf %191 : vector<1x64xf32> to vector<1x64xbf16>
    %c0_160 = arith.constant 0 : index
    %c0_161 = arith.constant 0 : index
    %c0_162 = arith.constant 0 : index
    %193 = vector.load %arg6[%c0_160, %c0_161, %c0_162] : memref<16x64x10xbf16, #tpu.memory_space<vmem>>, vector<1x64x10xbf16>
    %194 = vector.shape_cast %193 : vector<1x64x10xbf16> to vector<64x10xbf16>
    %cst_163 = arith.constant dense<0.000000e+00> : vector<1x10xf32>
    %195 = tpu.matmul %192, %194, %cst_163 {dimension_numbers = #tpu.dot_dimension_numbers<[1], [0], [0], [1], [0, 0, 1, 1], [], []>} : vector<1x64xbf16>, vector<64x10xbf16>, vector<1x10xf32> -> vector<1x10xf32>
    %196 = arith.addf %190, %195 : vector<1x10xf32>
    %c2_164 = arith.constant 2 : index
    %c0_165 = arith.constant 0 : index
    %197 = vector.load %arg12[%c2_164, %c0_165] : memref<79x64xf32, #tpu.memory_space<vmem>>, vector<1x64xf32>
    %198 = arith.truncf %197 : vector<1x64xf32> to vector<1x64xbf16>
    %c1_166 = arith.constant 1 : index
    %c0_167 = arith.constant 0 : index
    %c0_168 = arith.constant 0 : index
    %199 = vector.load %arg6[%c1_166, %c0_167, %c0_168] : memref<16x64x10xbf16, #tpu.memory_space<vmem>>, vector<1x64x10xbf16>
    %200 = vector.shape_cast %199 : vector<1x64x10xbf16> to vector<64x10xbf16>
    %cst_169 = arith.constant dense<0.000000e+00> : vector<1x10xf32>
    %201 = tpu.matmul %198, %200, %cst_169 {dimension_numbers = #tpu.dot_dimension_numbers<[1], [0], [0], [1], [0, 0, 1, 1], [], []>} : vector<1x64xbf16>, vector<64x10xbf16>, vector<1x10xf32> -> vector<1x10xf32>
    %202 = arith.addf %196, %201 : vector<1x10xf32>
    %c4_170 = arith.constant 4 : index
    %c0_171 = arith.constant 0 : index
    %203 = vector.load %arg12[%c4_170, %c0_171] : memref<79x64xf32, #tpu.memory_space<vmem>>, vector<1x64xf32>
    %204 = arith.truncf %203 : vector<1x64xf32> to vector<1x64xbf16>
    %c2_172 = arith.constant 2 : index
    %c0_173 = arith.constant 0 : index
    %c0_174 = arith.constant 0 : index
    %205 = vector.load %arg6[%c2_172, %c0_173, %c0_174] : memref<16x64x10xbf16, #tpu.memory_space<vmem>>, vector<1x64x10xbf16>
    %206 = vector.shape_cast %205 : vector<1x64x10xbf16> to vector<64x10xbf16>
    %cst_175 = arith.constant dense<0.000000e+00> : vector<1x10xf32>
    %207 = tpu.matmul %204, %206, %cst_175 {dimension_numbers = #tpu.dot_dimension_numbers<[1], [0], [0], [1], [0, 0, 1, 1], [], []>} : vector<1x64xbf16>, vector<64x10xbf16>, vector<1x10xf32> -> vector<1x10xf32>
    %208 = arith.addf %202, %207 : vector<1x10xf32>
    %c6_176 = arith.constant 6 : index
    %c0_177 = arith.constant 0 : index
    %209 = vector.load %arg12[%c6_176, %c0_177] : memref<79x64xf32, #tpu.memory_space<vmem>>, vector<1x64xf32>
    %210 = arith.truncf %209 : vector<1x64xf32> to vector<1x64xbf16>
    %c3_178 = arith.constant 3 : index
    %c0_179 = arith.constant 0 : index
    %c0_180 = arith.constant 0 : index
    %211 = vector.load %arg6[%c3_178, %c0_179, %c0_180] : memref<16x64x10xbf16, #tpu.memory_space<vmem>>, vector<1x64x10xbf16>
    %212 = vector.shape_cast %211 : vector<1x64x10xbf16> to vector<64x10xbf16>
    %cst_181 = arith.constant dense<0.000000e+00> : vector<1x10xf32>
    %213 = tpu.matmul %210, %212, %cst_181 {dimension_numbers = #tpu.dot_dimension_numbers<[1], [0], [0], [1], [0, 0, 1, 1], [], []>} : vector<1x64xbf16>, vector<64x10xbf16>, vector<1x10xf32> -> vector<1x10xf32>
    %214 = arith.addf %208, %213 : vector<1x10xf32>
    %c24_182 = arith.constant 24 : index
    %c0_183 = arith.constant 0 : index
    %215 = vector.load %arg12[%c24_182, %c0_183] : memref<79x64xf32, #tpu.memory_space<vmem>>, vector<1x64xf32>
    %216 = arith.truncf %215 : vector<1x64xf32> to vector<1x64xbf16>
    %c4_184 = arith.constant 4 : index
    %c0_185 = arith.constant 0 : index
    %c0_186 = arith.constant 0 : index
    %217 = vector.load %arg6[%c4_184, %c0_185, %c0_186] : memref<16x64x10xbf16, #tpu.memory_space<vmem>>, vector<1x64x10xbf16>
    %218 = vector.shape_cast %217 : vector<1x64x10xbf16> to vector<64x10xbf16>
    %cst_187 = arith.constant dense<0.000000e+00> : vector<1x10xf32>
    %219 = tpu.matmul %216, %218, %cst_187 {dimension_numbers = #tpu.dot_dimension_numbers<[1], [0], [0], [1], [0, 0, 1, 1], [], []>} : vector<1x64xbf16>, vector<64x10xbf16>, vector<1x10xf32> -> vector<1x10xf32>
    %220 = arith.addf %214, %219 : vector<1x10xf32>
    %c26_188 = arith.constant 26 : index
    %c0_189 = arith.constant 0 : index
    %221 = vector.load %arg12[%c26_188, %c0_189] : memref<79x64xf32, #tpu.memory_space<vmem>>, vector<1x64xf32>
    %222 = arith.truncf %221 : vector<1x64xf32> to vector<1x64xbf16>
    %c5_190 = arith.constant 5 : index
    %c0_191 = arith.constant 0 : index
    %c0_192 = arith.constant 0 : index
    %223 = vector.load %arg6[%c5_190, %c0_191, %c0_192] : memref<16x64x10xbf16, #tpu.memory_space<vmem>>, vector<1x64x10xbf16>
    %224 = vector.shape_cast %223 : vector<1x64x10xbf16> to vector<64x10xbf16>
    %cst_193 = arith.constant dense<0.000000e+00> : vector<1x10xf32>
    %225 = tpu.matmul %222, %224, %cst_193 {dimension_numbers = #tpu.dot_dimension_numbers<[1], [0], [0], [1], [0, 0, 1, 1], [], []>} : vector<1x64xbf16>, vector<64x10xbf16>, vector<1x10xf32> -> vector<1x10xf32>
    %226 = arith.addf %220, %225 : vector<1x10xf32>
    %c28_194 = arith.constant 28 : index
    %c0_195 = arith.constant 0 : index
    %227 = vector.load %arg12[%c28_194, %c0_195] : memref<79x64xf32, #tpu.memory_space<vmem>>, vector<1x64xf32>
    %228 = arith.truncf %227 : vector<1x64xf32> to vector<1x64xbf16>
    %c6_196 = arith.constant 6 : index
    %c0_197 = arith.constant 0 : index
    %c0_198 = arith.constant 0 : index
    %229 = vector.load %arg6[%c6_196, %c0_197, %c0_198] : memref<16x64x10xbf16, #tpu.memory_space<vmem>>, vector<1x64x10xbf16>
    %230 = vector.shape_cast %229 : vector<1x64x10xbf16> to vector<64x10xbf16>
    %cst_199 = arith.constant dense<0.000000e+00> : vector<1x10xf32>
    %231 = tpu.matmul %228, %230, %cst_199 {dimension_numbers = #tpu.dot_dimension_numbers<[1], [0], [0], [1], [0, 0, 1, 1], [], []>} : vector<1x64xbf16>, vector<64x10xbf16>, vector<1x10xf32> -> vector<1x10xf32>
    %232 = arith.addf %226, %231 : vector<1x10xf32>
    %c30 = arith.constant 30 : index
    %c0_200 = arith.constant 0 : index
    %233 = vector.load %arg12[%c30, %c0_200] : memref<79x64xf32, #tpu.memory_space<vmem>>, vector<1x64xf32>
    %234 = arith.truncf %233 : vector<1x64xf32> to vector<1x64xbf16>
    %c7_201 = arith.constant 7 : index
    %c0_202 = arith.constant 0 : index
    %c0_203 = arith.constant 0 : index
    %235 = vector.load %arg6[%c7_201, %c0_202, %c0_203] : memref<16x64x10xbf16, #tpu.memory_space<vmem>>, vector<1x64x10xbf16>
    %236 = vector.shape_cast %235 : vector<1x64x10xbf16> to vector<64x10xbf16>
    %cst_204 = arith.constant dense<0.000000e+00> : vector<1x10xf32>
    %237 = tpu.matmul %234, %236, %cst_204 {dimension_numbers = #tpu.dot_dimension_numbers<[1], [0], [0], [1], [0, 0, 1, 1], [], []>} : vector<1x64xbf16>, vector<64x10xbf16>, vector<1x10xf32> -> vector<1x10xf32>
    %238 = arith.addf %232, %237 : vector<1x10xf32>
    %c48_205 = arith.constant 48 : index
    %c0_206 = arith.constant 0 : index
    %239 = vector.load %arg12[%c48_205, %c0_206] : memref<79x64xf32, #tpu.memory_space<vmem>>, vector<1x64xf32>
    %240 = arith.truncf %239 : vector<1x64xf32> to vector<1x64xbf16>
    %c8_207 = arith.constant 8 : index
    %c0_208 = arith.constant 0 : index
    %c0_209 = arith.constant 0 : index
    %241 = vector.load %arg6[%c8_207, %c0_208, %c0_209] : memref<16x64x10xbf16, #tpu.memory_space<vmem>>, vector<1x64x10xbf16>
    %242 = vector.shape_cast %241 : vector<1x64x10xbf16> to vector<64x10xbf16>
    %cst_210 = arith.constant dense<0.000000e+00> : vector<1x10xf32>
    %243 = tpu.matmul %240, %242, %cst_210 {dimension_numbers = #tpu.dot_dimension_numbers<[1], [0], [0], [1], [0, 0, 1, 1], [], []>} : vector<1x64xbf16>, vector<64x10xbf16>, vector<1x10xf32> -> vector<1x10xf32>
    %244 = arith.addf %238, %243 : vector<1x10xf32>
    %c50_211 = arith.constant 50 : index
    %c0_212 = arith.constant 0 : index
    %245 = vector.load %arg12[%c50_211, %c0_212] : memref<79x64xf32, #tpu.memory_space<vmem>>, vector<1x64xf32>
    %246 = arith.truncf %245 : vector<1x64xf32> to vector<1x64xbf16>
    %c9_213 = arith.constant 9 : index
    %c0_214 = arith.constant 0 : index
    %c0_215 = arith.constant 0 : index
    %247 = vector.load %arg6[%c9_213, %c0_214, %c0_215] : memref<16x64x10xbf16, #tpu.memory_space<vmem>>, vector<1x64x10xbf16>
    %248 = vector.shape_cast %247 : vector<1x64x10xbf16> to vector<64x10xbf16>
    %cst_216 = arith.constant dense<0.000000e+00> : vector<1x10xf32>
    %249 = tpu.matmul %246, %248, %cst_216 {dimension_numbers = #tpu.dot_dimension_numbers<[1], [0], [0], [1], [0, 0, 1, 1], [], []>} : vector<1x64xbf16>, vector<64x10xbf16>, vector<1x10xf32> -> vector<1x10xf32>
    %250 = arith.addf %244, %249 : vector<1x10xf32>
    %c52_217 = arith.constant 52 : index
    %c0_218 = arith.constant 0 : index
    %251 = vector.load %arg12[%c52_217, %c0_218] : memref<79x64xf32, #tpu.memory_space<vmem>>, vector<1x64xf32>
    %252 = arith.truncf %251 : vector<1x64xf32> to vector<1x64xbf16>
    %c10_219 = arith.constant 10 : index
    %c0_220 = arith.constant 0 : index
    %c0_221 = arith.constant 0 : index
    %253 = vector.load %arg6[%c10_219, %c0_220, %c0_221] : memref<16x64x10xbf16, #tpu.memory_space<vmem>>, vector<1x64x10xbf16>
    %254 = vector.shape_cast %253 : vector<1x64x10xbf16> to vector<64x10xbf16>
    %cst_222 = arith.constant dense<0.000000e+00> : vector<1x10xf32>
    %255 = tpu.matmul %252, %254, %cst_222 {dimension_numbers = #tpu.dot_dimension_numbers<[1], [0], [0], [1], [0, 0, 1, 1], [], []>} : vector<1x64xbf16>, vector<64x10xbf16>, vector<1x10xf32> -> vector<1x10xf32>
    %256 = arith.addf %250, %255 : vector<1x10xf32>
    %c54 = arith.constant 54 : index
    %c0_223 = arith.constant 0 : index
    %257 = vector.load %arg12[%c54, %c0_223] : memref<79x64xf32, #tpu.memory_space<vmem>>, vector<1x64xf32>
    %258 = arith.truncf %257 : vector<1x64xf32> to vector<1x64xbf16>
    %c11_224 = arith.constant 11 : index
    %c0_225 = arith.constant 0 : index
    %c0_226 = arith.constant 0 : index
    %259 = vector.load %arg6[%c11_224, %c0_225, %c0_226] : memref<16x64x10xbf16, #tpu.memory_space<vmem>>, vector<1x64x10xbf16>
    %260 = vector.shape_cast %259 : vector<1x64x10xbf16> to vector<64x10xbf16>
    %cst_227 = arith.constant dense<0.000000e+00> : vector<1x10xf32>
    %261 = tpu.matmul %258, %260, %cst_227 {dimension_numbers = #tpu.dot_dimension_numbers<[1], [0], [0], [1], [0, 0, 1, 1], [], []>} : vector<1x64xbf16>, vector<64x10xbf16>, vector<1x10xf32> -> vector<1x10xf32>
    %262 = arith.addf %256, %261 : vector<1x10xf32>
    %c72 = arith.constant 72 : index
    %c0_228 = arith.constant 0 : index
    %263 = vector.load %arg12[%c72, %c0_228] : memref<79x64xf32, #tpu.memory_space<vmem>>, vector<1x64xf32>
    %264 = arith.truncf %263 : vector<1x64xf32> to vector<1x64xbf16>
    %c12_229 = arith.constant 12 : index
    %c0_230 = arith.constant 0 : index
    %c0_231 = arith.constant 0 : index
    %265 = vector.load %arg6[%c12_229, %c0_230, %c0_231] : memref<16x64x10xbf16, #tpu.memory_space<vmem>>, vector<1x64x10xbf16>
    %266 = vector.shape_cast %265 : vector<1x64x10xbf16> to vector<64x10xbf16>
    %cst_232 = arith.constant dense<0.000000e+00> : vector<1x10xf32>
    %267 = tpu.matmul %264, %266, %cst_232 {dimension_numbers = #tpu.dot_dimension_numbers<[1], [0], [0], [1], [0, 0, 1, 1], [], []>} : vector<1x64xbf16>, vector<64x10xbf16>, vector<1x10xf32> -> vector<1x10xf32>
    %268 = arith.addf %262, %267 : vector<1x10xf32>
    %c74 = arith.constant 74 : index
    %c0_233 = arith.constant 0 : index
    %269 = vector.load %arg12[%c74, %c0_233] : memref<79x64xf32, #tpu.memory_space<vmem>>, vector<1x64xf32>
    %270 = arith.truncf %269 : vector<1x64xf32> to vector<1x64xbf16>
    %c13_234 = arith.constant 13 : index
    %c0_235 = arith.constant 0 : index
    %c0_236 = arith.constant 0 : index
    %271 = vector.load %arg6[%c13_234, %c0_235, %c0_236] : memref<16x64x10xbf16, #tpu.memory_space<vmem>>, vector<1x64x10xbf16>
    %272 = vector.shape_cast %271 : vector<1x64x10xbf16> to vector<64x10xbf16>
    %cst_237 = arith.constant dense<0.000000e+00> : vector<1x10xf32>
    %273 = tpu.matmul %270, %272, %cst_237 {dimension_numbers = #tpu.dot_dimension_numbers<[1], [0], [0], [1], [0, 0, 1, 1], [], []>} : vector<1x64xbf16>, vector<64x10xbf16>, vector<1x10xf32> -> vector<1x10xf32>
    %274 = arith.addf %268, %273 : vector<1x10xf32>
    %c76 = arith.constant 76 : index
    %c0_238 = arith.constant 0 : index
    %275 = vector.load %arg12[%c76, %c0_238] : memref<79x64xf32, #tpu.memory_space<vmem>>, vector<1x64xf32>
    %276 = arith.truncf %275 : vector<1x64xf32> to vector<1x64xbf16>
    %c14_239 = arith.constant 14 : index
    %c0_240 = arith.constant 0 : index
    %c0_241 = arith.constant 0 : index
    %277 = vector.load %arg6[%c14_239, %c0_240, %c0_241] : memref<16x64x10xbf16, #tpu.memory_space<vmem>>, vector<1x64x10xbf16>
    %278 = vector.shape_cast %277 : vector<1x64x10xbf16> to vector<64x10xbf16>
    %cst_242 = arith.constant dense<0.000000e+00> : vector<1x10xf32>
    %279 = tpu.matmul %276, %278, %cst_242 {dimension_numbers = #tpu.dot_dimension_numbers<[1], [0], [0], [1], [0, 0, 1, 1], [], []>} : vector<1x64xbf16>, vector<64x10xbf16>, vector<1x10xf32> -> vector<1x10xf32>
    %280 = arith.addf %274, %279 : vector<1x10xf32>
    %c78 = arith.constant 78 : index
    %c0_243 = arith.constant 0 : index
    %281 = vector.load %arg12[%c78, %c0_243] : memref<79x64xf32, #tpu.memory_space<vmem>>, vector<1x64xf32>
    %282 = arith.truncf %281 : vector<1x64xf32> to vector<1x64xbf16>
    %c15_244 = arith.constant 15 : index
    %c0_245 = arith.constant 0 : index
    %c0_246 = arith.constant 0 : index
    %283 = vector.load %arg6[%c15_244, %c0_245, %c0_246] : memref<16x64x10xbf16, #tpu.memory_space<vmem>>, vector<1x64x10xbf16>
    %284 = vector.shape_cast %283 : vector<1x64x10xbf16> to vector<64x10xbf16>
    %cst_247 = arith.constant dense<0.000000e+00> : vector<1x10xf32>
    %285 = tpu.matmul %282, %284, %cst_247 {dimension_numbers = #tpu.dot_dimension_numbers<[1], [0], [0], [1], [0, 0, 1, 1], [], []>} : vector<1x64xbf16>, vector<64x10xbf16>, vector<1x10xf32> -> vector<1x10xf32>
    %286 = arith.addf %280, %285 : vector<1x10xf32>
    %c0_248 = arith.constant 0 : index
    %c0_249 = arith.constant 0 : index
    %287 = vector.load %arg7[%c0_248, %c0_249] : memref<1x10xf32, #tpu.memory_space<vmem>>, vector<1x10xf32>
    %288 = arith.addf %286, %287 : vector<1x10xf32>
    %cst_250 = arith.constant dense<0xFF800000> : vector<1xf32>
    %289 = vector.multi_reduction <maximumf>, %288, %cst_250 [1] : vector<1x10xf32> to vector<1xf32>
    %290 = vector.shape_cast %289 : vector<1xf32> to vector<1x1xf32>
    %291 = vector.broadcast %290 : vector<1x1xf32> to vector<1x10xf32>
    %292 = arith.subf %288, %291 : vector<1x10xf32>
    %293 = math.exp %292 : vector<1x10xf32>
    %cst_251 = arith.constant dense<0.000000e+00> : vector<1xf32>
    %294 = vector.multi_reduction <add>, %293, %cst_251 [1] : vector<1x10xf32> to vector<1xf32>
    %295 = vector.shape_cast %294 : vector<1xf32> to vector<1x1xf32>
    %296 = math.log %295 : vector<1x1xf32>
    %297 = vector.broadcast %296 : vector<1x1xf32> to vector<1x10xf32>
    %298 = arith.subf %292, %297 : vector<1x10xf32>
    %299 = vector.shape_cast %298 : vector<1x10xf32> to vector<1x1x10xf32>
    %c0_252 = arith.constant 0 : index
    %c0_253 = arith.constant 0 : index
    %c0_254 = arith.constant 0 : index
    %300 = vector.load %arg8[%c0_252, %c0_253, %c0_254] : memref<1x1x10xf32, #tpu.memory_space<vmem>>, vector<1x1x10xf32>
    tpu.vector_store %arg8[%c0_252, %c0_253, %c0_254], %299 {strides = array<i32>} : memref<1x1x10xf32, #tpu.memory_space<vmem>>, vector<1x1x10xf32>,
    return
  }
  func.func @transform_0(%arg0: i32) -> (i32, i32, i32) {
    %c0_i32 = arith.constant 0 : i32
    %c0_i32_0 = arith.constant 0 : i32
    %c0_i32_1 = arith.constant 0 : i32
    return %arg0, %c0_i32, %c0_i32_0 : i32, i32, i32
  }
  func.func @transform_1(%arg0: i32) -> (i32, i32) {
    %c0_i32 = arith.constant 0 : i32
    %c0_i32_0 = arith.constant 0 : i32
    %c0_i32_1 = arith.constant 0 : i32
    return %c0_i32, %c0_i32_0 : i32, i32
  }
  func.func @transform_2(%arg0: i32) -> (i32, i32) {
    %c0_i32 = arith.constant 0 : i32
    %c0_i32_0 = arith.constant 0 : i32
    %c0_i32_1 = arith.constant 0 : i32
    return %c0_i32, %c0_i32_0 : i32, i32
  }
  func.func @transform_3(%arg0: i32) -> (i32, i32, i32) {
    %c0_i32 = arith.constant 0 : i32
    %c0_i32_0 = arith.constant 0 : i32
    %c0_i32_1 = arith.constant 0 : i32
    %c0_i32_2 = arith.constant 0 : i32
    return %c0_i32, %c0_i32_0, %c0_i32_1 : i32, i32, i32
  }
  func.func @transform_4(%arg0: i32) -> (i32, i32) {
    %c0_i32 = arith.constant 0 : i32
    %c0_i32_0 = arith.constant 0 : i32
    %c0_i32_1 = arith.constant 0 : i32
    return %c0_i32, %c0_i32_0 : i32, i32
  }
  func.func @transform_5(%arg0: i32) -> (i32, i32, i32) {
    %c0_i32 = arith.constant 0 : i32
    %c0_i32_0 = arith.constant 0 : i32
    %c0_i32_1 = arith.constant 0 : i32
    %c0_i32_2 = arith.constant 0 : i32
    return %c0_i32, %c0_i32_0, %c0_i32_1 : i32, i32, i32
  }
  func.func @transform_6(%arg0: i32) -> (i32, i32) {
    %c0_i32 = arith.constant 0 : i32
    %c0_i32_0 = arith.constant 0 : i32
    %c0_i32_1 = arith.constant 0 : i32
    return %c0_i32, %c0_i32_0 : i32, i32
  }
  func.func @transform_7(%arg0: i32) -> (i32, i32, i32) {
    %c0_i32 = arith.constant 0 : i32
    %c0_i32_0 = arith.constant 0 : i32
    %c0_i32_1 = arith.constant 0 : i32
    return %arg0, %c0_i32, %c0_i32_0 : i32, i32, i32
  }
}

</mosaic_0001>

<llo_original>
// kernel: mnist_net_forward.1
$region0: #{mnist_net_forward.1}
  #allocation0 [shape = 'u32[]', space=smem, size = 0x4, offset = 0x4, fixed_abs, tag = 'smem constant byte address 0x4 - core index']
  #allocation1 [shape = 'u32[144,128]{1,0:T(1,128)}', space=vmem, size = 0x12000, scoped, tag = 'internal scratch']
  #allocation2 [shape = 'f32[144,32]{1,0:T(8,128)}', space=vmem, size = 0x12000, scoped, tag = 'scratch operand']
  #allocation3 [shape = 'f32[92,64]{1,0:T(8,128)}', space=vmem, size = 0xc000, scoped, tag = 'scratch operand']
  #allocation4 [shape = 'f32[91,64]{1,0:T(8,128)}', space=vmem, size = 0xc000, scoped, tag = 'scratch operand']
  #allocation5 [shape = 'f32[79,64]{1,0:T(8,128)}', space=vmem, size = 0xa000, scoped, tag = 'scratch operand']
  %s0 = inlined_call_operand.vmem [shape: bf16[8,144,32], index: 0, kind: input, shape index: {}]
  %s1 = inlined_call_operand.vmem [shape: bf16[32,32], index: 1, kind: input, shape index: {}]
  %s2 = inlined_call_operand.vmem [shape: f32[1,32], index: 2, kind: input, shape index: {}]
  %s3 = inlined_call_operand.vmem [shape: bf16[25,32,64], index: 3, kind: input, shape index: {}]
  %s4 = inlined_call_operand.vmem [shape: f32[1,64], index: 4, kind: input, shape index: {}]
  %s5 = inlined_call_operand.vmem [shape: bf16[16,64,10], index: 5, kind: input, shape index: {}]
  %s6 = inlined_call_operand.vmem [shape: f32[1,10], index: 6, kind: input, shape index: {}]
  %s7 = inlined_call_operand.hbm [shape: f32[2,1,10], index: 7, kind: output, shape index: {}]
  %s8 = sld [smem:[#allocation0]]
  $region61: #{mnist_net_forward.1} parent=0
    _
  %s10 = ssub.s32 1, %s8
  %s11 = scalar_select 0, %s10, %s8
  $region1: #{mnist_net_forward.1} parent=0
    #allocation6 [shape = 'u8[1024]{0}', space=vmem, size = 0x400, scoped, tag = 'output window, operand 0']
    #allocation7 [shape = 's32[2]{0}', space=sflag, size = 0x8, scoped, tag = 'scoped memory for mnist_net_forward.1']
    %12 = vsyncpa [#allocation7], 0
    %s13 = scalar_lea.sflag [#allocation7], 1
    %14 = vsyncpa %s13, 0
    loop: start=0, step=1, limit=4
    $region2: #{mnist_net_forward.1} parent=1 // loop_pre_header
      _
    $region3: #{mnist_net_forward.1} parent=1 // loop_header
      %s16 = sphi 0, %s20
      %p17 = scmp.ge.s32.totalorder %s16, 4
      %s26 = sphi 0, %s28
      %s29 = sphi 0, %s26
      %s30 = sphi 0, %s29
      %s46 = sphi 0, %s30
      %s50 = sphi 0, %s50
      %s52 = sphi 0, %s50
      %s53 = sphi 0, %s52
      %s67 = sphi 0, %s53
      %s71 = sphi 0, %s71
      %s73 = sphi 0, %s71
      %s74 = sphi 0, %s73
      %s88 = sphi 0, %s74
      %s92 = sphi 0, %s92
      %s94 = sphi 0, %s92
      %s95 = sphi 0, %s94
      %s109 = sphi 0, %s95
      %s113 = sphi 0, %s113
      %s115 = sphi 0, %s113
      %s116 = sphi 0, %s115
      %s130 = sphi 0, %s116
      %s134 = sphi 0, %s134
      %s136 = sphi 0, %s134
      %s137 = sphi 0, %s136
      %s151 = sphi 0, %s137
      %s155 = sphi 0, %s155
      %s157 = sphi 0, %s155
      %s158 = sphi 0, %s157
      %s172 = sphi 0, %s158
      %s178 = sphi 0, %s180
      %s181 = sphi 0, %s178
      %s182 = sphi 0, %s181
      %s198 = sphi 0, %s182
    $region4: #{mnist_net_forward.1} parent=1 // loop_header_branch
      %19 = sbr.rel (%p17) target = $region8
    $region5: #{mnist_net_forward.1} parent=1 // loop_body
      %s21 = ssub.s32 %s16, 1
      %s22 = ssub.s32 %s16, 2
      %s23 = sadd.s32 %s16, 1
      %s24 = ssub.s32 %s16, %s23
      %p25 = scmp.eq.s32.totalorder %s24, 0
      %s27 = sadd.s32 %s26, 1
      %s28 = scalar_select %p25, %s26, %s27
      %p31 = pneg %p25
      %p32 = scmp.eq.s32.totalorder %s16, 1
      %p33 = por %p31, %p32
      %p34 = scmp.ne.s32.totalorder %s26, %s29
      %p35 = scmp.eq.s32.totalorder %s16, 0
      %p36 = por %p34, %p35
      %p37 = scmp.ne.s32.totalorder %s26, %s29
      %p38 = scmp.eq.s32.totalorder %s21, 1
      %p39 = por %p37, %p38
      %p40 = scmp.ne.s32.totalorder %s29, %s30
      %p41 = scmp.eq.s32.totalorder %s21, 0
      %p42 = por %p40, %p41
      %p43 = scmp.ne.s32.totalorder %s29, %s30
      %p44 = scmp.eq.s32.totalorder %s22, 1
      %p45 = por %p43, %p44
      %p47 = scmp.ne.s32.totalorder %s30, %s46
      %p48 = scmp.eq.s32.totalorder %s22, 0
      %p49 = por %p47, %p48
      %s51 = sadd.s32 %s50, 1
      %p54 = scmp.eq.s32.totalorder %s16, 1
      %p55 = scmp.ne.s32.totalorder %s50, %s52
      %p56 = scmp.eq.s32.totalorder %s16, 0
      %p57 = por %p55, %p56
      %p58 = scmp.ne.s32.totalorder %s50, %s52
      %p59 = scmp.eq.s32.totalorder %s21, 1
      %p60 = por %p58, %p59
      %p61 = scmp.ne.s32.totalorder %s52, %s53
      %p62 = scmp.eq.s32.totalorder %s21, 0
      %p63 = por %p61, %p62
      %p64 = scmp.ne.s32.totalorder %s52, %s53
      %p65 = scmp.eq.s32.totalorder %s22, 1
      %p66 = por %p64, %p65
      %p68 = scmp.ne.s32.totalorder %s53, %s67
      %p69 = scmp.eq.s32.totalorder %s22, 0
      %p70 = por %p68, %p69
      %s72 = sadd.s32 %s71, 1
      %p75 = scmp.eq.s32.totalorder %s16, 1
      %p76 = scmp.ne.s32.totalorder %s71, %s73
      %p77 = scmp.eq.s32.totalorder %s16, 0
      %p78 = por %p76, %p77
      %p79 = scmp.ne.s32.totalorder %s71, %s73
      %p80 = scmp.eq.s32.totalorder %s21, 1
      %p81 = por %p79, %p80
      %p82 = scmp.ne.s32.totalorder %s73, %s74
      %p83 = scmp.eq.s32.totalorder %s21, 0
      %p84 = por %p82, %p83
      %p85 = scmp.ne.s32.totalorder %s73, %s74
      %p86 = scmp.eq.s32.totalorder %s22, 1
      %p87 = por %p85, %p86
      %p89 = scmp.ne.s32.totalorder %s74, %s88
      %p90 = scmp.eq.s32.totalorder %s22, 0
      %p91 = por %p89, %p90
      %s93 = sadd.s32 %s92, 1
      %p96 = scmp.eq.s32.totalorder %s16, 1
      %p97 = scmp.ne.s32.totalorder %s92, %s94
      %p98 = scmp.eq.s32.totalorder %s16, 0
      %p99 = por %p97, %p98
      %p100 = scmp.ne.s32.totalorder %s92, %s94
      %p101 = scmp.eq.s32.totalorder %s21, 1
      %p102 = por %p100, %p101
      %p103 = scmp.ne.s32.totalorder %s94, %s95
      %p104 = scmp.eq.s32.totalorder %s21, 0
      %p105 = por %p103, %p104
      %p106 = scmp.ne.s32.totalorder %s94, %s95
      %p107 = scmp.eq.s32.totalorder %s22, 1
      %p108 = por %p106, %p107
      %p110 = scmp.ne.s32.totalorder %s95, %s109
      %p111 = scmp.eq.s32.totalorder %s22, 0
      %p112 = por %p110, %p111
      %s114 = sadd.s32 %s113, 1
      %p117 = scmp.eq.s32.totalorder %s16, 1
      %p118 = scmp.ne.s32.totalorder %s113, %s115
      %p119 = scmp.eq.s32.totalorder %s16, 0
      %p120 = por %p118, %p119
      %p121 = scmp.ne.s32.totalorder %s113, %s115
      %p122 = scmp.eq.s32.totalorder %s21, 1
      %p123 = por %p121, %p122
      %p124 = scmp.ne.s32.totalorder %s115, %s116
      %p125 = scmp.eq.s32.totalorder %s21, 0
      %p126 = por %p124, %p125
      %p127 = scmp.ne.s32.totalorder %s115, %s116
      %p128 = scmp.eq.s32.totalorder %s22, 1
      %p129 = por %p127, %p128
      %p131 = scmp.ne.s32.totalorder %s116, %s130
      %p132 = scmp.eq.s32.totalorder %s22, 0
      %p133 = por %p131, %p132
      %s135 = sadd.s32 %s134, 1
      %p138 = scmp.eq.s32.totalorder %s16, 1
      %p139 = scmp.ne.s32.totalorder %s134, %s136
      %p140 = scmp.eq.s32.totalorder %s16, 0
      %p141 = por %p139, %p140
      %p142 = scmp.ne.s32.totalorder %s134, %s136
      %p143 = scmp.eq.s32.totalorder %s21, 1
      %p144 = por %p142, %p143
      %p145 = scmp.ne.s32.totalorder %s136, %s137
      %p146 = scmp.eq.s32.totalorder %s21, 0
      %p147 = por %p145, %p146
      %p148 = scmp.ne.s32.totalorder %s136, %s137
      %p149 = scmp.eq.s32.totalorder %s22, 1
      %p150 = por %p148, %p149
      %p152 = scmp.ne.s32.totalorder %s137, %s151
      %p153 = scmp.eq.s32.totalorder %s22, 0
      %p154 = por %p152, %p153
      %s156 = sadd.s32 %s155, 1
      %p159 = scmp.eq.s32.totalorder %s16, 1
      %p160 = scmp.ne.s32.totalorder %s155, %s157
      %p161 = scmp.eq.s32.totalorder %s16, 0
      %p162 = por %p160, %p161
      %p163 = scmp.ne.s32.totalorder %s155, %s157
      %p164 = scmp.eq.s32.totalorder %s21, 1
      %p165 = por %p163, %p164
      %p166 = scmp.ne.s32.totalorder %s157, %s158
      %p167 = scmp.eq.s32.totalorder %s21, 0
      %p168 = por %p166, %p167
      %p169 = scmp.ne.s32.totalorder %s157, %s158
      %p170 = scmp.eq.s32.totalorder %s22, 1
      %p171 = por %p169, %p170
      %p173 = scmp.ne.s32.totalorder %s158, %s172
      %p174 = scmp.eq.s32.totalorder %s22, 0
      %p175 = por %p173, %p174
      %s176 = ssub.s32 %s16, %s23
      %p177 = scmp.eq.s32.totalorder %s176, 0
      %s179 = sadd.s32 %s178, 1
      %s180 = scalar_select %p177, %s178, %s179
      %p183 = pneg %p177
      %p184 = scmp.eq.s32.totalorder %s16, 1
      %p185 = por %p183, %p184
      %p186 = scmp.ne.s32.totalorder %s178, %s181
      %p187 = scmp.eq.s32.totalorder %s16, 0
      %p188 = por %p186, %p187
      %p189 = scmp.ne.s32.totalorder %s178, %s181
      %p190 = scmp.eq.s32.totalorder %s21, 1
      %p191 = por %p189, %p190
      %p192 = scmp.ne.s32.totalorder %s181, %s182
      %p193 = scmp.eq.s32.totalorder %s21, 0
      %p194 = por %p192, %p193
      %p195 = scmp.ne.s32.totalorder %s181, %s182
      %p196 = scmp.eq.s32.totalorder %s22, 1
      %p197 = por %p195, %p196
      %p199 = scmp.ne.s32.totalorder %s182, %s198
      %p200 = scmp.eq.s32.totalorder %s22, 0
      %p201 = por %p199, %p200
      %p202 = scmp.le.s32.totalorder 1, %s16
      %p203 = scmp.lt.s32.totalorder %s16, 3
      %p204 = pnand %p202, %p203
      %p205 = pneg %p204
      // Predicated region
      $region9: #{mnist_net_forward.1} parent=5 // pred_check
        _
      $region10: #{mnist_net_forward.1} parent=5 // pred_check_branch
        %207 = sbr.rel (%p204) target = $region12
      $region11: #{mnist_net_forward.1} parent=5 // pred_region
        %s208 = ssub.s32 %s16, 1
        // Predicated region
        $region13: #{mnist_net_forward.1} parent=11 // pred_check
          %p209 = pneg %p63
        $region14: #{mnist_net_forward.1} parent=11 // pred_check_branch
          %211 = sbr.rel (%p209) target = $region16
        $region15: #{mnist_net_forward.1} parent=11 // pred_region
          _
        $region16: #{mnist_net_forward.1} parent=11 // pred_fallthru
          _
        // Predicated region
        $region17: #{mnist_net_forward.1} parent=11 // pred_check
          %p212 = pneg %p84
        $region18: #{mnist_net_forward.1} parent=11 // pred_check_branch
          %214 = sbr.rel (%p212) target = $region20
        $region19: #{mnist_net_forward.1} parent=11 // pred_region
          _
        $region20: #{mnist_net_forward.1} parent=11 // pred_fallthru
          _
        // Predicated region
        $region21: #{mnist_net_forward.1} parent=11 // pred_check
          %p215 = pneg %p105
        $region22: #{mnist_net_forward.1} parent=11 // pred_check_branch
          %217 = sbr.rel (%p215) target = $region24
        $region23: #{mnist_net_forward.1} parent=11 // pred_region
          _
        $region24: #{mnist_net_forward.1} parent=11 // pred_fallthru
          _
        // Predicated region
        $region25: #{mnist_net_forward.1} parent=11 // pred_check
          %p218 = pneg %p126
        $region26: #{mnist_net_forward.1} parent=11 // pred_check_branch
          %220 = sbr.rel (%p218) target = $region28
        $region27: #{mnist_net_forward.1} parent=11 // pred_region
          _
        $region28: #{mnist_net_forward.1} parent=11 // pred_fallthru
          _
        // Predicated region
        $region29: #{mnist_net_forward.1} parent=11 // pred_check
          %p221 = pneg %p147
        $region30: #{mnist_net_forward.1} parent=11 // pred_check_branch
          %223 = sbr.rel (%p221) target = $region32
        $region31: #{mnist_net_forward.1} parent=11 // pred_region
          _
        $region32: #{mnist_net_forward.1} parent=11 // pred_fallthru
          _
        // Predicated region
        $region33: #{mnist_net_forward.1} parent=11 // pred_check
          %p224 = pneg %p168
        $region34: #{mnist_net_forward.1} parent=11 // pred_check_branch
          %226 = sbr.rel (%p224) target = $region36
        $region35: #{mnist_net_forward.1} parent=11 // pred_region
          _
        $region36: #{mnist_net_forward.1} parent=11 // pred_fallthru
          _
      $region12: #{mnist_net_forward.1} parent=5 // pred_fallthru
        _
      %p227 = scmp.lt.s32.totalorder %s16, 2
      // Predicated region
      $region37: #{mnist_net_forward.1} parent=5 // pred_check
        %p228 = pneg %p227
      $region38: #{mnist_net_forward.1} parent=5 // pred_check_branch
        %230 = sbr.rel (%p228) target = $region40
      $region39: #{mnist_net_forward.1} parent=5 // pred_region
        // Predicated region
        $region41: #{mnist_net_forward.1} parent=39 // pred_check
          %p231 = pneg %p36
        $region42: #{mnist_net_forward.1} parent=39 // pred_check_branch
          %233 = sbr.rel (%p231) target = $region44
        $region43: #{mnist_net_forward.1} parent=39 // pred_region
          %s234 = smul.u32 4, %s16
          %p235 = scmp.lt.s32.totalorder %s234, 7
          %s236 = scalar_select %p235, %s234, 7
          %s237 = smul.addr %s236, 18
          %s238 = smul.addr %s237, 4
          %s239 = scalar_lea.vmem %s0, %s238
          %s240 = smul.u32 4, %s16
        $region44: #{mnist_net_forward.1} parent=39 // pred_fallthru
          _
      $region40: #{mnist_net_forward.1} parent=5 // pred_fallthru
        _
      %p241 = scmp.le.s32.totalorder 1, %s16
      %p242 = scmp.lt.s32.totalorder %s16, 3
      %p243 = pnand %p241, %p242
      %p244 = pneg %p243
      // Predicated region
      $region45: #{mnist_net_forward.1} parent=5 // pred_check
        _
      $region46: #{mnist_net_forward.1} parent=5 // pred_check_branch
        %246 = sbr.rel (%p243) target = $region48
      $region47: #{mnist_net_forward.1} parent=5 // pred_region
        %s247 = ssub.s32 %s16, 1
        %s248 = smul.u32 4, %s21
        %p249 = scmp.lt.s32.totalorder %s248, 7
        %s250 = scalar_select %p249, %s248, 7
        %s251 = smul.addr %s250, 18
        %s252 = smul.addr %s251, 4
        %s253 = scalar_lea.vmem %s0, %s252
        %p254 = pneg %p42
        %p255 = pneg %p39
        %p256 = pneg %p63
        %p257 = pneg %p60
        %p258 = pneg %p84
        %p259 = pneg %p81
        %p260 = pneg %p105
        %p261 = pneg %p102
        %p262 = pneg %p126
        %p263 = pneg %p123
        %p264 = pneg %p147
        %p265 = pneg %p144
        %p266 = pneg %p168
        %p267 = pneg %p165
        %p268 = pneg %p194
        %p269 = pneg %p191
        %s270 = sand.u32 %s181, 1
        %s271 = scalar_lea.sflag [#allocation7], %s270
        %s272 = sand.u32 %s181, 1
        %s273 = scalar_lea.vmem [#allocation6], %s272
        %s274 = smul.u32 4, %s21
        %p275 = scmp.lt.s32.totalorder %s274, 7
        %s276 = scalar_select %p275, %s274, 7
        %s277 = smul.addr %s276, 18
        %s278 = smul.addr %s277, 4
        %s279 = scalar_lea.vmem %s0, %s278
        %s280 = smul.u32 4, %s21
        %v282 = vld [vmem:[%s279] sm:$0xf]
        %v283 = vld [vmem:[%s279 + $0x4] sm:$0xf]
        %v284 = vld [vmem:[%s279 + $0x8] sm:$0xf]
        %v285 = vld [vmem:[%s279 + $0xc] sm:$0xf]
        %v286 = vld [vmem:[%s279 + $0x10] sm:$0xf]
        %v287 = vld [vmem:[%s279 + $0x14] sm:$0xf]
        %v288 = vld [vmem:[%s279 + $0x18] sm:$0xf]
        %v289 = vld [vmem:[%s279 + $0x1c] sm:$0xf]
        %v290 = vld [vmem:[%s279 + $0x20] sm:$0xf]
        %v291 = vld [vmem:[%s279 + $0x24] sm:$0xf]
        %v292 = vld [vmem:[%s279 + $0x28] sm:$0xf]
        %v293 = vld [vmem:[%s279 + $0x2c] sm:$0xf]
        %v294 = vld [vmem:[%s279 + $0x30] sm:$0xf]
        %v295 = vld [vmem:[%s279 + $0x34] sm:$0xf]
        %v296 = vld [vmem:[%s279 + $0x38] sm:$0xf]
        %v297 = vld [vmem:[%s279 + $0x3c] sm:$0xf]
        %v298 = vld [vmem:[%s279 + $0x40] sm:$0xf]
        %v299 = vld [vmem:[%s279 + $0x44] sm:$0xf]
        %v300 = vld [vmem:[%s1] sm:$0xf]
        %v301 = vld [vmem:[%s1 + $0x4] sm:$0xf]
        %v302 = vld [vmem:[%s1 + $0x8] sm:$0xf]
        %v303 = vld [vmem:[%s1 + $0xc] sm:$0xf]
        %v322 = vunpack.c.l.b16 %v282
        %v323 = vunpack.c.l.b16 %v283
        %v324 = vunpack.c.l.b16 %v284
        %v325 = vunpack.c.l.b16 %v285
        %v326 = vunpack.c.l.b16 %v286
        %v327 = vunpack.c.l.b16 %v287
        %v328 = vunpack.c.l.b16 %v288
        %v329 = vunpack.c.l.b16 %v289
        %v330 = vunpack.c.l.b16 %v290
        %v331 = vunpack.c.l.b16 %v291
        %v332 = vunpack.c.l.b16 %v292
        %v333 = vunpack.c.l.b16 %v293
        %v334 = vunpack.c.l.b16 %v294
        %v335 = vunpack.c.l.b16 %v295
        %v336 = vunpack.c.l.b16 %v296
        %v337 = vunpack.c.l.b16 %v297
        %v338 = vunpack.c.l.b16 %v298
        %v339 = vunpack.c.l.b16 %v299
        %v340 = vpack.c.b16 %v323, %v322
        %v341 = vpack.c.b16 %v325, %v324
        %v342 = vpack.c.b16 %v327, %v326
        %v343 = vpack.c.b16 %v329, %v328
        %v344 = vpack.c.b16 %v331, %v330
        %v345 = vpack.c.b16 %v333, %v332
        %v346 = vpack.c.b16 %v335, %v334
        %v347 = vpack.c.b16 %v337, %v336
        %v348 = vpack.c.b16 %v339, %v338
        %v353 = vunpack.c.l.b16 %v300
        %v354 = vunpack.c.l.b16 %v301
        %v355 = vunpack.c.l.b16 %v302
        %v356 = vunpack.c.l.b16 %v303
        %v357 = vpack.c.b16 %v354, %v353
        %v358 = vpack.c.b16 %v356, %v355
        %vm361 = vcmask 261120
        %v363 = vsel %vm361, %v340, 0
        %v366 = vsel %vm361, %v341, 0
        %v369 = vsel %vm361, %v342, 0
        %v372 = vsel %vm361, %v343, 0
        %v375 = vsel %vm361, %v344, 0
        %v378 = vsel %vm361, %v345, 0
        %v381 = vsel %vm361, %v346, 0
        %v384 = vsel %vm361, %v347, 0
        %v387 = vsel %vm361, %v348, 0
        %389 = vmatprep.subr.bf16.mxu0 0
        %390 = vmatpush1.bf16.msra.mxu0 0
        %391 = vmatprep.subr.bf16.mxu0 0
        %392 = vmatpush1.bf16.msra.mxu0 0
        %393 = vmatprep.subr.bf16.mxu0 0
        %394 = vmatpush1.bf16.msra.mxu0 0
        %395 = vmatprep.subr.bf16.mxu0 0
        %396 = vmatpush1.bf16.msra.mxu0 0
        %397 = vmatprep.subr.bf16.mxu0 0
        %398 = vmatpush1.bf16.msra.mxu0 0
        %399 = vmatprep.subr.bf16.mxu0 0
        %400 = vmatpush1.bf16.msra.mxu0 0
        %401 = vmatprep.subr.bf16.mxu0 0
        %402 = vmatpush1.bf16.msra.mxu0 %v358
        %403 = vmatprep.subr.bf16.mxu0 0
        %404 = vmatpush1.bf16.msra.mxu0 %v357
        %405 = vmatprep.subr.bf16.mxu0 0
        %406 = vmatpush2.bf16.msra.mxu0 0
        %407 = vmatprep.subr.bf16.mxu0 0
        %408 = vmatpush2.bf16.msra.mxu0 0
        %409 = vmatprep.subr.bf16.mxu0 0
        %410 = vmatpush2.bf16.msra.mxu0 0
        %411 = vmatprep.subr.bf16.mxu0 0
        %412 = vmatpush2.bf16.msra.mxu0 0
        %413 = vmatprep.subr.bf16.mxu0 0
        %414 = vmatpush2.bf16.msra.mxu0 0
        %415 = vmatprep.subr.bf16.mxu0 0
        %416 = vmatpush2.bf16.msra.mxu0 0
        %417 = vmatprep.subr.bf16.mxu0 0
        %418 = vmatpush2.bf16.msra.mxu0 0
        %419 = vmatprep.subr.bf16.mxu0 0
        %420 = vmatpush2.bf16.msra.mxu0 0
        %421 = vmatprep.mubr.bf16.mxu0 0
        %422 = vmatmul.mubr.bf16.gmra.mxu0 %v363
        %v423 = vpop.f32.mrf.mxu0
        %v424 = vadd.f32 0.0, %v423
        %v425 = vpop.f32.mrf.mxu0
        %v426 = vpop.f32.mrf.mxu0
        %v427 = vadd.f32 0.0, %v426
        %v428 = vpop.f32.mrf.mxu0
        %429 = vmatprep.mubr.bf16.mxu0 0
        %430 = vmatmul.mubr.bf16.gmra.mxu0 %v366
        %v431 = vpop.f32.mrf.mxu0
        %v432 = vadd.f32 0.0, %v431
        %v433 = vpop.f32.mrf.mxu0
        %v434 = vpop.f32.mrf.mxu0
        %v435 = vadd.f32 0.0, %v434
        %v436 = vpop.f32.mrf.mxu0
        %437 = vmatprep.mubr.bf16.mxu0 0
        %438 = vmatmul.mubr.bf16.gmra.mxu0 %v369
        %v439 = vpop.f32.mrf.mxu0
        %v440 = vadd.f32 0.0, %v439
        %v441 = vpop.f32.mrf.mxu0
        %v442 = vpop.f32.mrf.mxu0
        %v443 = vadd.f32 0.0, %v442
        %v444 = vpop.f32.mrf.mxu0
        %445 = vmatprep.mubr.bf16.mxu0 0
        %446 = vmatmul.mubr.bf16.gmra.mxu0 %v372
        %v447 = vpop.f32.mrf.mxu0
        %v448 = vadd.f32 0.0, %v447
        %v449 = vpop.f32.mrf.mxu0
        %v450 = vpop.f32.mrf.mxu0
        %v451 = vadd.f32 0.0, %v450
        %v452 = vpop.f32.mrf.mxu0
        %453 = vmatprep.mubr.bf16.mxu0 0
        %454 = vmatmul.mubr.bf16.gmra.mxu0 %v375
        %v455 = vpop.f32.mrf.mxu0
        %v456 = vadd.f32 0.0, %v455
        %v457 = vpop.f32.mrf.mxu0
        %v458 = vpop.f32.mrf.mxu0
        %v459 = vadd.f32 0.0, %v458
        %v460 = vpop.f32.mrf.mxu0
        %461 = vmatprep.mubr.bf16.mxu0 0
        %462 = vmatmul.mubr.bf16.gmra.mxu0 %v378
        %v463 = vpop.f32.mrf.mxu0
        %v464 = vadd.f32 0.0, %v463
        %v465 = vpop.f32.mrf.mxu0
        %v466 = vpop.f32.mrf.mxu0
        %v467 = vadd.f32 0.0, %v466
        %v468 = vpop.f32.mrf.mxu0
        %469 = vmatprep.mubr.bf16.mxu0 0
        %470 = vmatmul.mubr.bf16.gmra.mxu0 %v381
        %v471 = vpop.f32.mrf.mxu0
        %v472 = vadd.f32 0.0, %v471
        %v473 = vpop.f32.mrf.mxu0
        %v474 = vpop.f32.mrf.mxu0
        %v475 = vadd.f32 0.0, %v474
        %v476 = vpop.f32.mrf.mxu0
        %477 = vmatprep.mubr.bf16.mxu0 0
        %478 = vmatmul.mubr.bf16.gmra.mxu0 %v384
        %v479 = vpop.f32.mrf.mxu0
        %v480 = vadd.f32 0.0, %v479
        %v481 = vpop.f32.mrf.mxu0
        %v482 = vpop.f32.mrf.mxu0
        %v483 = vadd.f32 0.0, %v482
        %v484 = vpop.f32.mrf.mxu0
        %485 = vmatprep.mubr.bf16.mxu0 0
        %486 = vmatmul.mubr.bf16.gmra.mxu0 %v387
        %v487 = vpop.f32.mrf.mxu0
        %v488 = vadd.f32 0.0, %v487
        %v489 = vpop.f32.mrf.mxu0
        %v490 = vpop.f32.mrf.mxu0
        %v491 = vadd.f32 0.0, %v490
        %v492 = vpop.f32.mrf.mxu0
        %493 = vdwg.mxu0
        %s494 = scalar_lea.vmem %s279, 72
        %v495 = vld [vmem:[%s494] sm:$0xf]
        %v496 = vld [vmem:[%s494 + $0x4] sm:$0xf]
        %v497 = vld [vmem:[%s494 + $0x8] sm:$0xf]
        %v498 = vld [vmem:[%s494 + $0xc] sm:$0xf]
        %v499 = vld [vmem:[%s494 + $0x10] sm:$0xf]
        %v500 = vld [vmem:[%s494 + $0x14] sm:$0xf]
        %v501 = vld [vmem:[%s494 + $0x18] sm:$0xf]
        %v502 = vld [vmem:[%s494 + $0x1c] sm:$0xf]
        %v503 = vld [vmem:[%s494 + $0x20] sm:$0xf]
        %v504 = vld [vmem:[%s494 + $0x24] sm:$0xf]
        %v505 = vld [vmem:[%s494 + $0x28] sm:$0xf]
        %v506 = vld [vmem:[%s494 + $0x2c] sm:$0xf]
        %v507 = vld [vmem:[%s494 + $0x30] sm:$0xf]
        %v508 = vld [vmem:[%s494 + $0x34] sm:$0xf]
        %v509 = vld [vmem:[%s494 + $0x38] sm:$0xf]
        %v510 = vld [vmem:[%s494 + $0x3c] sm:$0xf]
        %v511 = vld [vmem:[%s494 + $0x40] sm:$0xf]
        %v512 = vld [vmem:[%s494 + $0x44] sm:$0xf]
        %v531 = vunpack.c.l.b16 %v495
        %v532 = vunpack.c.l.b16 %v496
        %v533 = vunpack.c.l.b16 %v497
        %v534 = vunpack.c.l.b16 %v498
        %v535 = vunpack.c.l.b16 %v499
        %v536 = vunpack.c.l.b16 %v500
        %v537 = vunpack.c.l.b16 %v501
        %v538 = vunpack.c.l.b16 %v502
        %v539 = vunpack.c.l.b16 %v503
        %v540 = vunpack.c.l.b16 %v504
        %v541 = vunpack.c.l.b16 %v505
        %v542 = vunpack.c.l.b16 %v506
        %v543 = vunpack.c.l.b16 %v507
        %v544 = vunpack.c.l.b16 %v508
        %v545 = vunpack.c.l.b16 %v509
        %v546 = vunpack.c.l.b16 %v510
        %v547 = vunpack.c.l.b16 %v511
        %v548 = vunpack.c.l.b16 %v512
        %v549 = vpack.c.b16 %v532, %v531
        %v550 = vpack.c.b16 %v534, %v533
        %v551 = vpack.c.b16 %v536, %v535
        %v552 = vpack.c.b16 %v538, %v537
        %v553 = vpack.c.b16 %v540, %v539
        %v554 = vpack.c.b16 %v542, %v541
        %v555 = vpack.c.b16 %v544, %v543
        %v556 = vpack.c.b16 %v546, %v545
        %v557 = vpack.c.b16 %v548, %v547
        %v559 = vsel %vm361, %v549, 0
        %v562 = vsel %vm361, %v550, 0
        %v565 = vsel %vm361, %v551, 0
        %v568 = vsel %vm361, %v552, 0
        %v571 = vsel %vm361, %v553, 0
        %v574 = vsel %vm361, %v554, 0
        %v577 = vsel %vm361, %v555, 0
        %v580 = vsel %vm361, %v556, 0
        %v583 = vsel %vm361, %v557, 0
        %585 = vmatprep.subr.bf16.mxu0 0
        %586 = vmatpush1.bf16.msra.mxu0 0
        %587 = vmatprep.subr.bf16.mxu0 0
        %588 = vmatpush1.bf16.msra.mxu0 0
        %589 = vmatprep.subr.bf16.mxu0 0
        %590 = vmatpush1.bf16.msra.mxu0 0
        %591 = vmatprep.subr.bf16.mxu0 0
        %592 = vmatpush1.bf16.msra.mxu0 0
        %593 = vmatprep.subr.bf16.mxu0 0
        %594 = vmatpush1.bf16.msra.mxu0 0
        %595 = vmatprep.subr.bf16.mxu0 0
        %596 = vmatpush1.bf16.msra.mxu0 0
        %597 = vmatprep.subr.bf16.mxu0 0
        %598 = vmatpush1.bf16.msra.mxu0 %v358
        %599 = vmatprep.subr.bf16.mxu0 0
        %600 = vmatpush1.bf16.msra.mxu0 %v357
        %601 = vmatprep.subr.bf16.mxu0 0
        %602 = vmatpush2.bf16.msra.mxu0 0
        %603 = vmatprep.subr.bf16.mxu0 0
        %604 = vmatpush2.bf16.msra.mxu0 0
        %605 = vmatprep.subr.bf16.mxu0 0
        %606 = vmatpush2.bf16.msra.mxu0 0
        %607 = vmatprep.subr.bf16.mxu0 0
        %608 = vmatpush2.bf16.msra.mxu0 0
        %609 = vmatprep.subr.bf16.mxu0 0
        %610 = vmatpush2.bf16.msra.mxu0 0
        %611 = vmatprep.subr.bf16.mxu0 0
        %612 = vmatpush2.bf16.msra.mxu0 0
        %613 = vmatprep.subr.bf16.mxu0 0
        %614 = vmatpush2.bf16.msra.mxu0 0
        %615 = vmatprep.subr.bf16.mxu0 0
        %616 = vmatpush2.bf16.msra.mxu0 0
        %617 = vmatprep.mubr.bf16.mxu0 0
        %618 = vmatmul.mubr.bf16.gmra.mxu0 %v559
        %v619 = vpop.f32.mrf.mxu0
        %v620 = vadd.f32 0.0, %v619
        %v621 = vpop.f32.mrf.mxu0
        %v622 = vpop.f32.mrf.mxu0
        %v623 = vadd.f32 0.0, %v622
        %v624 = vpop.f32.mrf.mxu0
        %625 = vmatprep.mubr.bf16.mxu0 0
        %626 = vmatmul.mubr.bf16.gmra.mxu0 %v562
        %v627 = vpop.f32.mrf.mxu0
        %v628 = vadd.f32 0.0, %v627
        %v629 = vpop.f32.mrf.mxu0
        %v630 = vpop.f32.mrf.mxu0
        %v631 = vadd.f32 0.0, %v630
        %v632 = vpop.f32.mrf.mxu0
        %633 = vmatprep.mubr.bf16.mxu0 0
        %634 = vmatmul.mubr.bf16.gmra.mxu0 %v565
        %v635 = vpop.f32.mrf.mxu0
        %v636 = vadd.f32 0.0, %v635
        %v637 = vpop.f32.mrf.mxu0
        %v638 = vpop.f32.mrf.mxu0
        %v639 = vadd.f32 0.0, %v638
        %v640 = vpop.f32.mrf.mxu0
        %641 = vmatprep.mubr.bf16.mxu0 0
        %642 = vmatmul.mubr.bf16.gmra.mxu0 %v568
        %v643 = vpop.f32.mrf.mxu0
        %v644 = vadd.f32 0.0, %v643
        %v645 = vpop.f32.mrf.mxu0
        %v646 = vpop.f32.mrf.mxu0
        %v647 = vadd.f32 0.0, %v646
        %v648 = vpop.f32.mrf.mxu0
        %649 = vmatprep.mubr.bf16.mxu0 0
        %650 = vmatmul.mubr.bf16.gmra.mxu0 %v571
        %v651 = vpop.f32.mrf.mxu0
        %v652 = vadd.f32 0.0, %v651
        %v653 = vpop.f32.mrf.mxu0
        %v654 = vpop.f32.mrf.mxu0
        %v655 = vadd.f32 0.0, %v654
        %v656 = vpop.f32.mrf.mxu0
        %657 = vmatprep.mubr.bf16.mxu0 0
        %658 = vmatmul.mubr.bf16.gmra.mxu0 %v574
        %v659 = vpop.f32.mrf.mxu0
        %v660 = vadd.f32 0.0, %v659
        %v661 = vpop.f32.mrf.mxu0
        %v662 = vpop.f32.mrf.mxu0
        %v663 = vadd.f32 0.0, %v662
        %v664 = vpop.f32.mrf.mxu0
        %665 = vmatprep.mubr.bf16.mxu0 0
        %666 = vmatmul.mubr.bf16.gmra.mxu0 %v577
        %v667 = vpop.f32.mrf.mxu0
        %v668 = vadd.f32 0.0, %v667
        %v669 = vpop.f32.mrf.mxu0
        %v670 = vpop.f32.mrf.mxu0
        %v671 = vadd.f32 0.0, %v670
        %v672 = vpop.f32.mrf.mxu0
        %673 = vmatprep.mubr.bf16.mxu0 0
        %674 = vmatmul.mubr.bf16.gmra.mxu0 %v580
        %v675 = vpop.f32.mrf.mxu0
        %v676 = vadd.f32 0.0, %v675
        %v677 = vpop.f32.mrf.mxu0
        %v678 = vpop.f32.mrf.mxu0
        %v679 = vadd.f32 0.0, %v678
        %v680 = vpop.f32.mrf.mxu0
        %681 = vmatprep.mubr.bf16.mxu0 0
        %682 = vmatmul.mubr.bf16.gmra.mxu0 %v583
        %v683 = vpop.f32.mrf.mxu0
        %v684 = vadd.f32 0.0, %v683
        %v685 = vpop.f32.mrf.mxu0
        %v686 = vpop.f32.mrf.mxu0
        %v687 = vadd.f32 0.0, %v686
        %v688 = vpop.f32.mrf.mxu0
        %689 = vdwg.mxu0
        %v690 = vmax.f32 %v424, %v620
        %v691 = vmax.f32 %v427, %v623
        %v692 = vmax.f32 %v432, %v628
        %v693 = vmax.f32 %v435, %v631
        %v694 = vmax.f32 %v440, %v636
        %v695 = vmax.f32 %v443, %v639
        %v696 = vmax.f32 %v448, %v644
        %v697 = vmax.f32 %v451, %v647
        %v698 = vmax.f32 %v456, %v652
        %v699 = vmax.f32 %v459, %v655
        %v700 = vmax.f32 %v464, %v660
        %v701 = vmax.f32 %v467, %v663
        %v702 = vmax.f32 %v472, %v668
        %v703 = vmax.f32 %v475, %v671
        %v704 = vmax.f32 %v480, %v676
        %v705 = vmax.f32 %v483, %v679
        %v706 = vmax.f32 %v488, %v684
        %v707 = vmax.f32 %v491, %v687
        %s708 = scalar_lea.vmem %s279, 144
        %v709 = vld [vmem:[%s708] sm:$0xf]
        %v710 = vld [vmem:[%s708 + $0x4] sm:$0xf]
        %v711 = vld [vmem:[%s708 + $0x8] sm:$0xf]
        %v712 = vld [vmem:[%s708 + $0xc] sm:$0xf]
        %v713 = vld [vmem:[%s708 + $0x10] sm:$0xf]
        %v714 = vld [vmem:[%s708 + $0x14] sm:$0xf]
        %v715 = vld [vmem:[%s708 + $0x18] sm:$0xf]
        %v716 = vld [vmem:[%s708 + $0x1c] sm:$0xf]
        %v717 = vld [vmem:[%s708 + $0x20] sm:$0xf]
        %v718 = vld [vmem:[%s708 + $0x24] sm:$0xf]
        %v719 = vld [vmem:[%s708 + $0x28] sm:$0xf]
        %v720 = vld [vmem:[%s708 + $0x2c] sm:$0xf]
        %v721 = vld [vmem:[%s708 + $0x30] sm:$0xf]
        %v722 = vld [vmem:[%s708 + $0x34] sm:$0xf]
        %v723 = vld [vmem:[%s708 + $0x38] sm:$0xf]
        %v724 = vld [vmem:[%s708 + $0x3c] sm:$0xf]
        %v725 = vld [vmem:[%s708 + $0x40] sm:$0xf]
        %v726 = vld [vmem:[%s708 + $0x44] sm:$0xf]
        %v745 = vunpack.c.l.b16 %v709
        %v746 = vunpack.c.l.b16 %v710
        %v747 = vunpack.c.l.b16 %v711
        %v748 = vunpack.c.l.b16 %v712
        %v749 = vunpack.c.l.b16 %v713
        %v750 = vunpack.c.l.b16 %v714
        %v751 = vunpack.c.l.b16 %v715
        %v752 = vunpack.c.l.b16 %v716
        %v753 = vunpack.c.l.b16 %v717
        %v754 = vunpack.c.l.b16 %v718
        %v755 = vunpack.c.l.b16 %v719
        %v756 = vunpack.c.l.b16 %v720
        %v757 = vunpack.c.l.b16 %v721
        %v758 = vunpack.c.l.b16 %v722
        %v759 = vunpack.c.l.b16 %v723
        %v760 = vunpack.c.l.b16 %v724
        %v761 = vunpack.c.l.b16 %v725
        %v762 = vunpack.c.l.b16 %v726
        %v763 = vpack.c.b16 %v746, %v745
        %v764 = vpack.c.b16 %v748, %v747
        %v765 = vpack.c.b16 %v750, %v749
        %v766 = vpack.c.b16 %v752, %v751
        %v767 = vpack.c.b16 %v754, %v753
        %v768 = vpack.c.b16 %v756, %v755
        %v769 = vpack.c.b16 %v758, %v757
        %v770 = vpack.c.b16 %v760, %v759
        %v771 = vpack.c.b16 %v762, %v761
        %v773 = vsel %vm361, %v763, 0
        %v776 = vsel %vm361, %v764, 0
        %v779 = vsel %vm361, %v765, 0
        %v782 = vsel %vm361, %v766, 0
        %v785 = vsel %vm361, %v767, 0
        %v788 = vsel %vm361, %v768, 0
        %v791 = vsel %vm361, %v769, 0
        %v794 = vsel %vm361, %v770, 0
        %v797 = vsel %vm361, %v771, 0
        %799 = vmatprep.subr.bf16.mxu0 0
        %800 = vmatpush1.bf16.msra.mxu0 0
        %801 = vmatprep.subr.bf16.mxu0 0
        %802 = vmatpush1.bf16.msra.mxu0 0
        %803 = vmatprep.subr.bf16.mxu0 0
        %804 = vmatpush1.bf16.msra.mxu0 0
        %805 = vmatprep.subr.bf16.mxu0 0
        %806 = vmatpush1.bf16.msra.mxu0 0
        %807 = vmatprep.subr.bf16.mxu0 0
        %808 = vmatpush1.bf16.msra.mxu0 0
        %809 = vmatprep.subr.bf16.mxu0 0
        %810 = vmatpush1.bf16.msra.mxu0 0
        %811 = vmatprep.subr.bf16.mxu0 0
        %812 = vmatpush1.bf16.msra.mxu0 %v358
        %813 = vmatprep.subr.bf16.mxu0 0
        %814 = vmatpush1.bf16.msra.mxu0 %v357
        %815 = vmatprep.subr.bf16.mxu0 0
        %816 = vmatpush2.bf16.msra.mxu0 0
        %817 = vmatprep.subr.bf16.mxu0 0
        %818 = vmatpush2.bf16.msra.mxu0 0
        %819 = vmatprep.subr.bf16.mxu0 0
        %820 = vmatpush2.bf16.msra.mxu0 0
        %821 = vmatprep.subr.bf16.mxu0 0
        %822 = vmatpush2.bf16.msra.mxu0 0
        %823 = vmatprep.subr.bf16.mxu0 0
        %824 = vmatpush2.bf16.msra.mxu0 0
        %825 = vmatprep.subr.bf16.mxu0 0
        %826 = vmatpush2.bf16.msra.mxu0 0
        %827 = vmatprep.subr.bf16.mxu0 0
        %828 = vmatpush2.bf16.msra.mxu0 0
        %829 = vmatprep.subr.bf16.mxu0 0
        %830 = vmatpush2.bf16.msra.mxu0 0
        %831 = vmatprep.mubr.bf16.mxu0 0
        %832 = vmatmul.mubr.bf16.gmra.mxu0 %v773
        %v833 = vpop.f32.mrf.mxu0
        %v834 = vadd.f32 0.0, %v833
        %v835 = vpop.f32.mrf.mxu0
        %v836 = vpop.f32.mrf.mxu0
        %v837 = vadd.f32 0.0, %v836
        %v838 = vpop.f32.mrf.mxu0
        %839 = vmatprep.mubr.bf16.mxu0 0
        %840 = vmatmul.mubr.bf16.gmra.mxu0 %v776
        %v841 = vpop.f32.mrf.mxu0
        %v842 = vadd.f32 0.0, %v841
        %v843 = vpop.f32.mrf.mxu0
        %v844 = vpop.f32.mrf.mxu0
        %v845 = vadd.f32 0.0, %v844
        %v846 = vpop.f32.mrf.mxu0
        %847 = vmatprep.mubr.bf16.mxu0 0
        %848 = vmatmul.mubr.bf16.gmra.mxu0 %v779
        %v849 = vpop.f32.mrf.mxu0
        %v850 = vadd.f32 0.0, %v849
        %v851 = vpop.f32.mrf.mxu0
        %v852 = vpop.f32.mrf.mxu0
        %v853 = vadd.f32 0.0, %v852
        %v854 = vpop.f32.mrf.mxu0
        %855 = vmatprep.mubr.bf16.mxu0 0
        %856 = vmatmul.mubr.bf16.gmra.mxu0 %v782
        %v857 = vpop.f32.mrf.mxu0
        %v858 = vadd.f32 0.0, %v857
        %v859 = vpop.f32.mrf.mxu0
        %v860 = vpop.f32.mrf.mxu0
        %v861 = vadd.f32 0.0, %v860
        %v862 = vpop.f32.mrf.mxu0
        %863 = vmatprep.mubr.bf16.mxu0 0
        %864 = vmatmul.mubr.bf16.gmra.mxu0 %v785
        %v865 = vpop.f32.mrf.mxu0
        %v866 = vadd.f32 0.0, %v865
        %v867 = vpop.f32.mrf.mxu0
        %v868 = vpop.f32.mrf.mxu0
        %v869 = vadd.f32 0.0, %v868
        %v870 = vpop.f32.mrf.mxu0
        %871 = vmatprep.mubr.bf16.mxu0 0
        %872 = vmatmul.mubr.bf16.gmra.mxu0 %v788
        %v873 = vpop.f32.mrf.mxu0
        %v874 = vadd.f32 0.0, %v873
        %v875 = vpop.f32.mrf.mxu0
        %v876 = vpop.f32.mrf.mxu0
        %v877 = vadd.f32 0.0, %v876
        %v878 = vpop.f32.mrf.mxu0
        %879 = vmatprep.mubr.bf16.mxu0 0
        %880 = vmatmul.mubr.bf16.gmra.mxu0 %v791
        %v881 = vpop.f32.mrf.mxu0
        %v882 = vadd.f32 0.0, %v881
        %v883 = vpop.f32.mrf.mxu0
        %v884 = vpop.f32.mrf.mxu0
        %v885 = vadd.f32 0.0, %v884
        %v886 = vpop.f32.mrf.mxu0
        %887 = vmatprep.mubr.bf16.mxu0 0
        %888 = vmatmul.mubr.bf16.gmra.mxu0 %v794
        %v889 = vpop.f32.mrf.mxu0
        %v890 = vadd.f32 0.0, %v889
        %v891 = vpop.f32.mrf.mxu0
        %v892 = vpop.f32.mrf.mxu0
        %v893 = vadd.f32 0.0, %v892
        %v894 = vpop.f32.mrf.mxu0
        %895 = vmatprep.mubr.bf16.mxu0 0
        %896 = vmatmul.mubr.bf16.gmra.mxu0 %v797
        %v897 = vpop.f32.mrf.mxu0
        %v898 = vadd.f32 0.0, %v897
        %v899 = vpop.f32.mrf.mxu0
        %v900 = vpop.f32.mrf.mxu0
        %v901 = vadd.f32 0.0, %v900
        %v902 = vpop.f32.mrf.mxu0
        %903 = vdwg.mxu0
        %v904 = vmax.f32 %v690, %v834
        %v905 = vmax.f32 %v691, %v837
        %v906 = vmax.f32 %v692, %v842
        %v907 = vmax.f32 %v693, %v845
        %v908 = vmax.f32 %v694, %v850
        %v909 = vmax.f32 %v695, %v853
        %v910 = vmax.f32 %v696, %v858
        %v911 = vmax.f32 %v697, %v861
        %v912 = vmax.f32 %v698, %v866
        %v913 = vmax.f32 %v699, %v869
        %v914 = vmax.f32 %v700, %v874
        %v915 = vmax.f32 %v701, %v877
        %v916 = vmax.f32 %v702, %v882
        %v917 = vmax.f32 %v703, %v885
        %v918 = vmax.f32 %v704, %v890
        %v919 = vmax.f32 %v705, %v893
        %v920 = vmax.f32 %v706, %v898
        %v921 = vmax.f32 %v707, %v901
        %s922 = scalar_lea.vmem %s279, 216
        %v923 = vld [vmem:[%s922] sm:$0xf]
        %v924 = vld [vmem:[%s922 + $0x4] sm:$0xf]
        %v925 = vld [vmem:[%s922 + $0x8] sm:$0xf]
        %v926 = vld [vmem:[%s922 + $0xc] sm:$0xf]
        %v927 = vld [vmem:[%s922 + $0x10] sm:$0xf]
        %v928 = vld [vmem:[%s922 + $0x14] sm:$0xf]
        %v929 = vld [vmem:[%s922 + $0x18] sm:$0xf]
        %v930 = vld [vmem:[%s922 + $0x1c] sm:$0xf]
        %v931 = vld [vmem:[%s922 + $0x20] sm:$0xf]
        %v932 = vld [vmem:[%s922 + $0x24] sm:$0xf]
        %v933 = vld [vmem:[%s922 + $0x28] sm:$0xf]
        %v934 = vld [vmem:[%s922 + $0x2c] sm:$0xf]
        %v935 = vld [vmem:[%s922 + $0x30] sm:$0xf]
        %v936 = vld [vmem:[%s922 + $0x34] sm:$0xf]
        %v937 = vld [vmem:[%s922 + $0x38] sm:$0xf]
        %v938 = vld [vmem:[%s922 + $0x3c] sm:$0xf]
        %v939 = vld [vmem:[%s922 + $0x40] sm:$0xf]
        %v940 = vld [vmem:[%s922 + $0x44] sm:$0xf]
        %v959 = vunpack.c.l.b16 %v923
        %v960 = vunpack.c.l.b16 %v924
        %v961 = vunpack.c.l.b16 %v925
        %v962 = vunpack.c.l.b16 %v926
        %v963 = vunpack.c.l.b16 %v927
        %v964 = vunpack.c.l.b16 %v928
        %v965 = vunpack.c.l.b16 %v929
        %v966 = vunpack.c.l.b16 %v930
        %v967 = vunpack.c.l.b16 %v931
        %v968 = vunpack.c.l.b16 %v932
        %v969 = vunpack.c.l.b16 %v933
        %v970 = vunpack.c.l.b16 %v934
        %v971 = vunpack.c.l.b16 %v935
        %v972 = vunpack.c.l.b16 %v936
        %v973 = vunpack.c.l.b16 %v937
        %v974 = vunpack.c.l.b16 %v938
        %v975 = vunpack.c.l.b16 %v939
        %v976 = vunpack.c.l.b16 %v940
        %v977 = vpack.c.b16 %v960, %v959
        %v978 = vpack.c.b16 %v962, %v961
        %v979 = vpack.c.b16 %v964, %v963
        %v980 = vpack.c.b16 %v966, %v965
        %v981 = vpack.c.b16 %v968, %v967
        %v982 = vpack.c.b16 %v970, %v969
        %v983 = vpack.c.b16 %v972, %v971
        %v984 = vpack.c.b16 %v974, %v973
        %v985 = vpack.c.b16 %v976, %v975
        %v987 = vsel %vm361, %v977, 0
        %v990 = vsel %vm361, %v978, 0
        %v993 = vsel %vm361, %v979, 0
        %v996 = vsel %vm361, %v980, 0
        %v999 = vsel %vm361, %v981, 0
        %v1002 = vsel %vm361, %v982, 0
        %v1005 = vsel %vm361, %v983, 0
        %v1008 = vsel %vm361, %v984, 0
        %v1011 = vsel %vm361, %v985, 0
        %1013 = vmatprep.subr.bf16.mxu0 0
        %1014 = vmatpush1.bf16.msra.mxu0 0
        %1015 = vmatprep.subr.bf16.mxu0 0
        %1016 = vmatpush1.bf16.msra.mxu0 0
        %1017 = vmatprep.subr.bf16.mxu0 0
        %1018 = vmatpush1.bf16.msra.mxu0 0
        %1019 = vmatprep.subr.bf16.mxu0 0
        %1020 = vmatpush1.bf16.msra.mxu0 0
        %1021 = vmatprep.subr.bf16.mxu0 0
        %1022 = vmatpush1.bf16.msra.mxu0 0
        %1023 = vmatprep.subr.bf16.mxu0 0
        %1024 = vmatpush1.bf16.msra.mxu0 0
        %1025 = vmatprep.subr.bf16.mxu0 0
        %1026 = vmatpush1.bf16.msra.mxu0 %v358
        %1027 = vmatprep.subr.bf16.mxu0 0
        %1028 = vmatpush1.bf16.msra.mxu0 %v357
        %1029 = vmatprep.subr.bf16.mxu0 0
        %1030 = vmatpush2.bf16.msra.mxu0 0
        %1031 = vmatprep.subr.bf16.mxu0 0
        %1032 = vmatpush2.bf16.msra.mxu0 0
        %1033 = vmatprep.subr.bf16.mxu0 0
        %1034 = vmatpush2.bf16.msra.mxu0 0
        %1035 = vmatprep.subr.bf16.mxu0 0
        %1036 = vmatpush2.bf16.msra.mxu0 0
        %1037 = vmatprep.subr.bf16.mxu0 0
        %1038 = vmatpush2.bf16.msra.mxu0 0
        %1039 = vmatprep.subr.bf16.mxu0 0
        %1040 = vmatpush2.bf16.msra.mxu0 0
        %1041 = vmatprep.subr.bf16.mxu0 0
        %1042 = vmatpush2.bf16.msra.mxu0 0
        %1043 = vmatprep.subr.bf16.mxu0 0
        %1044 = vmatpush2.bf16.msra.mxu0 0
        %1045 = vmatprep.mubr.bf16.mxu0 0
        %1046 = vmatmul.mubr.bf16.gmra.mxu0 %v987
        %v1047 = vpop.f32.mrf.mxu0
        %v1048 = vadd.f32 0.0, %v1047
        %v1049 = vpop.f32.mrf.mxu0
        %v1050 = vpop.f32.mrf.mxu0
        %v1051 = vadd.f32 0.0, %v1050
        %v1052 = vpop.f32.mrf.mxu0
        %1053 = vmatprep.mubr.bf16.mxu0 0
        %1054 = vmatmul.mubr.bf16.gmra.mxu0 %v990
        %v1055 = vpop.f32.mrf.mxu0
        %v1056 = vadd.f32 0.0, %v1055
        %v1057 = vpop.f32.mrf.mxu0
        %v1058 = vpop.f32.mrf.mxu0
        %v1059 = vadd.f32 0.0, %v1058
        %v1060 = vpop.f32.mrf.mxu0
        %1061 = vmatprep.mubr.bf16.mxu0 0
        %1062 = vmatmul.mubr.bf16.gmra.mxu0 %v993
        %v1063 = vpop.f32.mrf.mxu0
        %v1064 = vadd.f32 0.0, %v1063
        %v1065 = vpop.f32.mrf.mxu0
        %v1066 = vpop.f32.mrf.mxu0
        %v1067 = vadd.f32 0.0, %v1066
        %v1068 = vpop.f32.mrf.mxu0
        %1069 = vmatprep.mubr.bf16.mxu0 0
        %1070 = vmatmul.mubr.bf16.gmra.mxu0 %v996
        %v1071 = vpop.f32.mrf.mxu0
        %v1072 = vadd.f32 0.0, %v1071
        %v1073 = vpop.f32.mrf.mxu0
        %v1074 = vpop.f32.mrf.mxu0
        %v1075 = vadd.f32 0.0, %v1074
        %v1076 = vpop.f32.mrf.mxu0
        %1077 = vmatprep.mubr.bf16.mxu0 0
        %1078 = vmatmul.mubr.bf16.gmra.mxu0 %v999
        %v1079 = vpop.f32.mrf.mxu0
        %v1080 = vadd.f32 0.0, %v1079
        %v1081 = vpop.f32.mrf.mxu0
        %v1082 = vpop.f32.mrf.mxu0
        %v1083 = vadd.f32 0.0, %v1082
        %v1084 = vpop.f32.mrf.mxu0
        %1085 = vmatprep.mubr.bf16.mxu0 0
        %1086 = vmatmul.mubr.bf16.gmra.mxu0 %v1002
        %v1087 = vpop.f32.mrf.mxu0
        %v1088 = vadd.f32 0.0, %v1087
        %v1089 = vpop.f32.mrf.mxu0
        %v1090 = vpop.f32.mrf.mxu0
        %v1091 = vadd.f32 0.0, %v1090
        %v1092 = vpop.f32.mrf.mxu0
        %1093 = vmatprep.mubr.bf16.mxu0 0
        %1094 = vmatmul.mubr.bf16.gmra.mxu0 %v1005
        %v1095 = vpop.f32.mrf.mxu0
        %v1096 = vadd.f32 0.0, %v1095
        %v1097 = vpop.f32.mrf.mxu0
        %v1098 = vpop.f32.mrf.mxu0
        %v1099 = vadd.f32 0.0, %v1098
        %v1100 = vpop.f32.mrf.mxu0
        %1101 = vmatprep.mubr.bf16.mxu0 0
        %1102 = vmatmul.mubr.bf16.gmra.mxu0 %v1008
        %v1103 = vpop.f32.mrf.mxu0
        %v1104 = vadd.f32 0.0, %v1103
        %v1105 = vpop.f32.mrf.mxu0
        %v1106 = vpop.f32.mrf.mxu0
        %v1107 = vadd.f32 0.0, %v1106
        %v1108 = vpop.f32.mrf.mxu0
        %1109 = vmatprep.mubr.bf16.mxu0 0
        %1110 = vmatmul.mubr.bf16.gmra.mxu0 %v1011
        %v1111 = vpop.f32.mrf.mxu0
        %v1112 = vadd.f32 0.0, %v1111
        %v1113 = vpop.f32.mrf.mxu0
        %v1114 = vpop.f32.mrf.mxu0
        %v1115 = vadd.f32 0.0, %v1114
        %v1116 = vpop.f32.mrf.mxu0
        %1117 = vdwg.mxu0
        %v1118 = vmax.f32 %v904, %v1048
        %v1119 = vmax.f32 %v905, %v1051
        %v1120 = vmax.f32 %v906, %v1056
        %v1121 = vmax.f32 %v907, %v1059
        %v1122 = vmax.f32 %v908, %v1064
        %v1123 = vmax.f32 %v909, %v1067
        %v1124 = vmax.f32 %v910, %v1072
        %v1125 = vmax.f32 %v911, %v1075
        %v1126 = vmax.f32 %v912, %v1080
        %v1127 = vmax.f32 %v913, %v1083
        %v1128 = vmax.f32 %v914, %v1088
        %v1129 = vmax.f32 %v915, %v1091
        %v1130 = vmax.f32 %v916, %v1096
        %v1131 = vmax.f32 %v917, %v1099
        %v1132 = vmax.f32 %v918, %v1104
        %v1133 = vmax.f32 %v919, %v1107
        %v1134 = vmax.f32 %v920, %v1112
        %v1135 = vmax.f32 %v921, %v1115
        %v1136 = vld [vmem:[%s2] sm:$0x1]
        %v1138 = vlaneseq
        %v1139 = vshrl.u32 %v1138, 7
        %v1140 = vsub.s32 0, %v1139
        %v1141 = vrot.slane %v1136, %v1140
        %v1143 = vadd.f32 %v1118, %v1141
        %v1144 = vadd.f32 %v1119, %v1141
        %v1145 = vadd.f32 %v1120, %v1141
        %v1146 = vadd.f32 %v1121, %v1141
        %v1147 = vadd.f32 %v1122, %v1141
        %v1148 = vadd.f32 %v1123, %v1141
        %v1149 = vadd.f32 %v1124, %v1141
        %v1150 = vadd.f32 %v1125, %v1141
        %v1151 = vadd.f32 %v1126, %v1141
        %v1152 = vadd.f32 %v1127, %v1141
        %v1153 = vadd.f32 %v1128, %v1141
        %v1154 = vadd.f32 %v1129, %v1141
        %v1155 = vadd.f32 %v1130, %v1141
        %v1156 = vadd.f32 %v1131, %v1141
        %v1157 = vadd.f32 %v1132, %v1141
        %v1158 = vadd.f32 %v1133, %v1141
        %v1159 = vadd.f32 %v1134, %v1141
        %v1160 = vadd.f32 %v1135, %v1141
        %v1161 = vmax.f32 %v1143, 0.0
        %v1162 = vmax.f32 %v1144, 0.0
        %v1163 = vmax.f32 %v1145, 0.0
        %v1164 = vmax.f32 %v1146, 0.0
        %v1165 = vmax.f32 %v1147, 0.0
        %v1166 = vmax.f32 %v1148, 0.0
        %v1167 = vmax.f32 %v1149, 0.0
        %v1168 = vmax.f32 %v1150, 0.0
        %v1169 = vmax.f32 %v1151, 0.0
        %v1170 = vmax.f32 %v1152, 0.0
        %v1171 = vmax.f32 %v1153, 0.0
        %v1172 = vmax.f32 %v1154, 0.0
        %v1173 = vmax.f32 %v1155, 0.0
        %v1174 = vmax.f32 %v1156, 0.0
        %v1175 = vmax.f32 %v1157, 0.0
        %v1176 = vmax.f32 %v1158, 0.0
        %v1177 = vmax.f32 %v1159, 0.0
        %v1178 = vmax.f32 %v1160, 0.0
        %1179 = vst.msk [vmem:[#allocation2] sm:$0xff] %vm361, %v1161
        %1180 = vst.msk [vmem:[#allocation2 + $0x8] sm:$0xff] %vm361, %v1162
        %1181 = vst.msk [vmem:[#allocation2 + $0x10] sm:$0xff] %vm361, %v1163
        %1182 = vst.msk [vmem:[#allocation2 + $0x18] sm:$0xff] %vm361, %v1164
        %1183 = vst.msk [vmem:[#allocation2 + $0x20] sm:$0xff] %vm361, %v1165
        %1184 = vst.msk [vmem:[#allocation2 + $0x28] sm:$0xff] %vm361, %v1166
        %1185 = vst.msk [vmem:[#allocation2 + $0x30] sm:$0xff] %vm361, %v1167
        %1186 = vst.msk [vmem:[#allocation2 + $0x38] sm:$0xff] %vm361, %v1168
        %1187 = vst.msk [vmem:[#allocation2 + $0x40] sm:$0xff] %vm361, %v1169
        %1188 = vst.msk [vmem:[#allocation2 + $0x48] sm:$0xff] %vm361, %v1170
        %1189 = vst.msk [vmem:[#allocation2 + $0x50] sm:$0xff] %vm361, %v1171
        %1190 = vst.msk [vmem:[#allocation2 + $0x58] sm:$0xff] %vm361, %v1172
        %1191 = vst.msk [vmem:[#allocation2 + $0x60] sm:$0xff] %vm361, %v1173
        %1192 = vst.msk [vmem:[#allocation2 + $0x68] sm:$0xff] %vm361, %v1174
        %1193 = vst.msk [vmem:[#allocation2 + $0x70] sm:$0xff] %vm361, %v1175
        %1194 = vst.msk [vmem:[#allocation2 + $0x78] sm:$0xff] %vm361, %v1176
        %1195 = vst.msk [vmem:[#allocation2 + $0x80] sm:$0xff] %vm361, %v1177
        %1196 = vst.msk [vmem:[#allocation2 + $0x88] sm:$0xff] %vm361, %v1178
        %v1197 = vld [vmem:[#allocation2] sm:$0xff]
        %v1198 = vld [vmem:[#allocation2 + $0x8] sm:$0xff]
        %v1199 = vld [vmem:[#allocation2 + $0x10] sm:$0xff]
        %v1200 = vld [vmem:[#allocation2 + $0x18] sm:$0xff]
        %v1201 = vld [vmem:[#allocation2 + $0x20] sm:$0xff]
        %v1202 = vld [vmem:[#allocation2 + $0x28] sm:$0xff]
        %v1203 = vld [vmem:[#allocation2 + $0x30] sm:$0xff]
        %v1204 = vld [vmem:[#allocation2 + $0x38] sm:$0xff]
        %v1205 = vld [vmem:[#allocation2 + $0x40] sm:$0xff]
        %v1206 = vld [vmem:[#allocation2 + $0x48] sm:$0xff]
        %v1207 = vld [vmem:[#allocation2 + $0x50] sm:$0xff]
        %v1208 = vld [vmem:[#allocation2 + $0x58] sm:$0xf]
        %v1209 = vpack.c.bf16 %v1198, %v1197
        %v1210 = vpack.c.bf16 %v1200, %v1199
        %v1211 = vpack.c.bf16 %v1202, %v1201
        %v1212 = vpack.c.bf16 %v1204, %v1203
        %v1213 = vpack.c.bf16 %v1206, %v1205
        %v1214 = vpack.c.bf16 %v1208, %v1207
        %v1215 = vld [vmem:[%s3] sm:$0xf]
        %v1216 = vld [vmem:[%s3 + $0x4] sm:$0xf]
        %v1217 = vld [vmem:[%s3 + $0x8] sm:$0xf]
        %v1218 = vld [vmem:[%s3 + $0xc] sm:$0xf]
        %v1219 = vld [vmem:[#allocation2 + $0x1] sm:$0xff]
        %v1220 = vld [vmem:[#allocation2 + $0x9] sm:$0xff]
        %v1221 = vld [vmem:[#allocation2 + $0x11] sm:$0xff]
        %v1222 = vld [vmem:[#allocation2 + $0x19] sm:$0xff]
        %v1223 = vld [vmem:[#allocation2 + $0x21] sm:$0xff]
        %v1224 = vld [vmem:[#allocation2 + $0x29] sm:$0xff]
        %v1225 = vld [vmem:[#allocation2 + $0x31] sm:$0xff]
        %v1226 = vld [vmem:[#allocation2 + $0x39] sm:$0xff]
        %v1227 = vld [vmem:[#allocation2 + $0x41] sm:$0xff]
        %v1228 = vld [vmem:[#allocation2 + $0x49] sm:$0xff]
        %v1229 = vld [vmem:[#allocation2 + $0x51] sm:$0xff]
        %v1230 = vld [vmem:[#allocation2 + $0x59] sm:$0xf]
        %v1231 = vpack.c.bf16 %v1220, %v1219
        %v1232 = vpack.c.bf16 %v1222, %v1221
        %v1233 = vpack.c.bf16 %v1224, %v1223
        %v1234 = vpack.c.bf16 %v1226, %v1225
        %v1235 = vpack.c.bf16 %v1228, %v1227
        %v1236 = vpack.c.bf16 %v1230, %v1229
        %s1237 = scalar_lea.vmem %s3, 16
        %v1238 = vld [vmem:[%s1237] sm:$0xf]
        %v1239 = vld [vmem:[%s1237 + $0x4] sm:$0xf]
        %v1240 = vld [vmem:[%s1237 + $0x8] sm:$0xf]
        %v1241 = vld [vmem:[%s1237 + $0xc] sm:$0xf]
        %v1246 = vunpack.c.l.b16 %v1238
        %v1247 = vunpack.c.l.b16 %v1239
        %v1248 = vunpack.c.l.b16 %v1240
        %v1249 = vunpack.c.l.b16 %v1241
        %v1250 = vpack.c.b16 %v1247, %v1246
        %v1251 = vpack.c.b16 %v1249, %v1248
        %v1255 = vsel %vm361, %v1231, 0
        %v1258 = vsel %vm361, %v1232, 0
        %v1261 = vsel %vm361, %v1233, 0
        %v1264 = vsel %vm361, %v1234, 0
        %v1267 = vsel %vm361, %v1235, 0
        %v1270 = vsel %vm361, %v1236, 0
        %1272 = vmatprep.subr.bf16.mxu0 0
        %1273 = vmatpush1.bf16.msra.mxu0 0
        %1274 = vmatprep.subr.bf16.mxu0 0
        %1275 = vmatpush1.bf16.msra.mxu0 0
        %1276 = vmatprep.subr.bf16.mxu0 0
        %1277 = vmatpush1.bf16.msra.mxu0 0
        %1278 = vmatprep.subr.bf16.mxu0 0
        %1279 = vmatpush1.bf16.msra.mxu0 0
        %1280 = vmatprep.subr.bf16.mxu0 0
        %1281 = vmatpush1.bf16.msra.mxu0 0
        %1282 = vmatprep.subr.bf16.mxu0 0
        %1283 = vmatpush1.bf16.msra.mxu0 0
        %1284 = vmatprep.subr.bf16.mxu0 0
        %1285 = vmatpush1.bf16.msra.mxu0 %v1251
        %1286 = vmatprep.subr.bf16.mxu0 0
        %1287 = vmatpush1.bf16.msra.mxu0 %v1250
        %1288 = vmatprep.subr.bf16.mxu0 0
        %1289 = vmatpush2.bf16.msra.mxu0 0
        %1290 = vmatprep.subr.bf16.mxu0 0
        %1291 = vmatpush2.bf16.msra.mxu0 0
        %1292 = vmatprep.subr.bf16.mxu0 0
        %1293 = vmatpush2.bf16.msra.mxu0 0
        %1294 = vmatprep.subr.bf16.mxu0 0
        %1295 = vmatpush2.bf16.msra.mxu0 0
        %1296 = vmatprep.subr.bf16.mxu0 0
        %1297 = vmatpush2.bf16.msra.mxu0 0
        %1298 = vmatprep.subr.bf16.mxu0 0
        %1299 = vmatpush2.bf16.msra.mxu0 0
        %1300 = vmatprep.subr.bf16.mxu0 0
        %1301 = vmatpush2.bf16.msra.mxu0 0
        %1302 = vmatprep.subr.bf16.mxu0 0
        %1303 = vmatpush2.bf16.msra.mxu0 0
        %1304 = vmatprep.mubr.bf16.mxu0 0
        %1305 = vmatmul.mubr.bf16.gmra.mxu0 %v1255
        %v1306 = vpop.f32.mrf.mxu0
        %v1307 = vadd.f32 0.0, %v1306
        %v1308 = vpop.f32.mrf.mxu0
        %v1309 = vpop.f32.mrf.mxu0
        %v1310 = vadd.f32 0.0, %v1309
        %v1311 = vpop.f32.mrf.mxu0
        %1312 = vmatprep.mubr.bf16.mxu0 0
        %1313 = vmatmul.mubr.bf16.gmra.mxu0 %v1258
        %v1314 = vpop.f32.mrf.mxu0
        %v1315 = vadd.f32 0.0, %v1314
        %v1316 = vpop.f32.mrf.mxu0
        %v1317 = vpop.f32.mrf.mxu0
        %v1318 = vadd.f32 0.0, %v1317
        %v1319 = vpop.f32.mrf.mxu0
        %1320 = vmatprep.mubr.bf16.mxu0 0
        %1321 = vmatmul.mubr.bf16.gmra.mxu0 %v1261
        %v1322 = vpop.f32.mrf.mxu0
        %v1323 = vadd.f32 0.0, %v1322
        %v1324 = vpop.f32.mrf.mxu0
        %v1325 = vpop.f32.mrf.mxu0
        %v1326 = vadd.f32 0.0, %v1325
        %v1327 = vpop.f32.mrf.mxu0
        %1328 = vmatprep.mubr.bf16.mxu0 0
        %1329 = vmatmul.mubr.bf16.gmra.mxu0 %v1264
        %v1330 = vpop.f32.mrf.mxu0
        %v1331 = vadd.f32 0.0, %v1330
        %v1332 = vpop.f32.mrf.mxu0
        %v1333 = vpop.f32.mrf.mxu0
        %v1334 = vadd.f32 0.0, %v1333
        %v1335 = vpop.f32.mrf.mxu0
        %1336 = vmatprep.mubr.bf16.mxu0 0
        %1337 = vmatmul.mubr.bf16.gmra.mxu0 %v1267
        %v1338 = vpop.f32.mrf.mxu0
        %v1339 = vadd.f32 0.0, %v1338
        %v1340 = vpop.f32.mrf.mxu0
        %v1341 = vpop.f32.mrf.mxu0
        %v1342 = vadd.f32 0.0, %v1341
        %v1343 = vpop.f32.mrf.mxu0
        %1344 = vmatprep.mubr.bf16.mxu0 0
        %1345 = vmatmul.mubr.bf16.gmra.mxu0 %v1270
        %v1346 = vpop.f32.mrf.mxu0
        %v1347 = vadd.f32 0.0, %v1346
        %v1348 = vpop.f32.mrf.mxu0
        %v1349 = vpop.f32.mrf.mxu0
        %v1350 = vadd.f32 0.0, %v1349
        %v1351 = vpop.f32.mrf.mxu0
        %1352 = vdwg.mxu0
        %v1357 = vunpack.c.l.b16 %v1215
        %v1358 = vunpack.c.l.b16 %v1216
        %v1359 = vunpack.c.l.b16 %v1217
        %v1360 = vunpack.c.l.b16 %v1218
        %v1361 = vpack.c.b16 %v1358, %v1357
        %v1362 = vpack.c.b16 %v1360, %v1359
        %v1366 = vsel %vm361, %v1209, 0
        %v1369 = vsel %vm361, %v1210, 0
        %v1372 = vsel %vm361, %v1211, 0
        %v1375 = vsel %vm361, %v1212, 0
        %v1378 = vsel %vm361, %v1213, 0
        %v1381 = vsel %vm361, %v1214, 0
        %1383 = vmatprep.subr.bf16.mxu0 0
        %1384 = vmatpush1.bf16.msra.mxu0 0
        %1385 = vmatprep.subr.bf16.mxu0 0
        %1386 = vmatpush1.bf16.msra.mxu0 0
        %1387 = vmatprep.subr.bf16.mxu0 0
        %1388 = vmatpush1.bf16.msra.mxu0 0
        %1389 = vmatprep.subr.bf16.mxu0 0
        %1390 = vmatpush1.bf16.msra.mxu0 0
        %1391 = vmatprep.subr.bf16.mxu0 0
        %1392 = vmatpush1.bf16.msra.mxu0 0
        %1393 = vmatprep.subr.bf16.mxu0 0
        %1394 = vmatpush1.bf16.msra.mxu0 0
        %1395 = vmatprep.subr.bf16.mxu0 0
        %1396 = vmatpush1.bf16.msra.mxu0 %v1362
        %1397 = vmatprep.subr.bf16.mxu0 0
        %1398 = vmatpush1.bf16.msra.mxu0 %v1361
        %1399 = vmatprep.subr.bf16.mxu0 0
        %1400 = vmatpush2.bf16.msra.mxu0 0
        %1401 = vmatprep.subr.bf16.mxu0 0
        %1402 = vmatpush2.bf16.msra.mxu0 0
        %1403 = vmatprep.subr.bf16.mxu0 0
        %1404 = vmatpush2.bf16.msra.mxu0 0
        %1405 = vmatprep.subr.bf16.mxu0 0
        %1406 = vmatpush2.bf16.msra.mxu0 0
        %1407 = vmatprep.subr.bf16.mxu0 0
        %1408 = vmatpush2.bf16.msra.mxu0 0
        %1409 = vmatprep.subr.bf16.mxu0 0
        %1410 = vmatpush2.bf16.msra.mxu0 0
        %1411 = vmatprep.subr.bf16.mxu0 0
        %1412 = vmatpush2.bf16.msra.mxu0 0
        %1413 = vmatprep.subr.bf16.mxu0 0
        %1414 = vmatpush2.bf16.msra.mxu0 0
        %1415 = vmatprep.mubr.bf16.mxu0 0
        %1416 = vmatmul.mubr.bf16.gmra.mxu0 %v1366
        %v1417 = vpop.f32.mrf.mxu0
        %v1418 = vadd.f32 %v1307, %v1417
        %v1419 = vpop.f32.mrf.mxu0
        %v1420 = vpop.f32.mrf.mxu0
        %v1421 = vadd.f32 %v1310, %v1420
        %v1422 = vpop.f32.mrf.mxu0
        %1423 = vmatprep.mubr.bf16.mxu0 0
        %1424 = vmatmul.mubr.bf16.gmra.mxu0 %v1369
        %v1425 = vpop.f32.mrf.mxu0
        %v1426 = vadd.f32 %v1315, %v1425
        %v1427 = vpop.f32.mrf.mxu0
        %v1428 = vpop.f32.mrf.mxu0
        %v1429 = vadd.f32 %v1318, %v1428
        %v1430 = vpop.f32.mrf.mxu0
        %1431 = vmatprep.mubr.bf16.mxu0 0
        %1432 = vmatmul.mubr.bf16.gmra.mxu0 %v1372
        %v1433 = vpop.f32.mrf.mxu0
        %v1434 = vadd.f32 %v1323, %v1433
        %v1435 = vpop.f32.mrf.mxu0
        %v1436 = vpop.f32.mrf.mxu0
        %v1437 = vadd.f32 %v1326, %v1436
        %v1438 = vpop.f32.mrf.mxu0
        %1439 = vmatprep.mubr.bf16.mxu0 0
        %1440 = vmatmul.mubr.bf16.gmra.mxu0 %v1375
        %v1441 = vpop.f32.mrf.mxu0
        %v1442 = vadd.f32 %v1331, %v1441
        %v1443 = vpop.f32.mrf.mxu0
        %v1444 = vpop.f32.mrf.mxu0
        %v1445 = vadd.f32 %v1334, %v1444
        %v1446 = vpop.f32.mrf.mxu0
        %1447 = vmatprep.mubr.bf16.mxu0 0
        %1448 = vmatmul.mubr.bf16.gmra.mxu0 %v1378
        %v1449 = vpop.f32.mrf.mxu0
        %v1450 = vadd.f32 %v1339, %v1449
        %v1451 = vpop.f32.mrf.mxu0
        %v1452 = vpop.f32.mrf.mxu0
        %v1453 = vadd.f32 %v1342, %v1452
        %v1454 = vpop.f32.mrf.mxu0
        %1455 = vmatprep.mubr.bf16.mxu0 0
        %1456 = vmatmul.mubr.bf16.gmra.mxu0 %v1381
        %v1457 = vpop.f32.mrf.mxu0
        %v1458 = vadd.f32 %v1347, %v1457
        %v1459 = vpop.f32.mrf.mxu0
        %v1460 = vpop.f32.mrf.mxu0
        %v1461 = vadd.f32 %v1350, %v1460
        %v1462 = vpop.f32.mrf.mxu0
        %1463 = vdwg.mxu0
        %v1464 = vld [vmem:[#allocation2 + $0x2] sm:$0xff]
        %v1465 = vld [vmem:[#allocation2 + $0xa] sm:$0xff]
        %v1466 = vld [vmem:[#allocation2 + $0x12] sm:$0xff]
        %v1467 = vld [vmem:[#allocation2 + $0x1a] sm:$0xff]
        %v1468 = vld [vmem:[#allocation2 + $0x22] sm:$0xff]
        %v1469 = vld [vmem:[#allocation2 + $0x2a] sm:$0xff]
        %v1470 = vld [vmem:[#allocation2 + $0x32] sm:$0xff]
        %v1471 = vld [vmem:[#allocation2 + $0x3a] sm:$0xff]
        %v1472 = vld [vmem:[#allocation2 + $0x42] sm:$0xff]
        %v1473 = vld [vmem:[#allocation2 + $0x4a] sm:$0xff]
        %v1474 = vld [vmem:[#allocation2 + $0x52] sm:$0xff]
        %v1475 = vld [vmem:[#allocation2 + $0x5a] sm:$0xf]
        %v1476 = vpack.c.bf16 %v1465, %v1464
        %v1477 = vpack.c.bf16 %v1467, %v1466
        %v1478 = vpack.c.bf16 %v1469, %v1468
        %v1479 = vpack.c.bf16 %v1471, %v1470
        %v1480 = vpack.c.bf16 %v1473, %v1472
        %v1481 = vpack.c.bf16 %v1475, %v1474
        %s1482 = scalar_lea.vmem %s3, 32
        %v1483 = vld [vmem:[%s1482] sm:$0xf]
        %v1484 = vld [vmem:[%s1482 + $0x4] sm:$0xf]
        %v1485 = vld [vmem:[%s1482 + $0x8] sm:$0xf]
        %v1486 = vld [vmem:[%s1482 + $0xc] sm:$0xf]
        %v1491 = vunpack.c.l.b16 %v1483
        %v1492 = vunpack.c.l.b16 %v1484
        %v1493 = vunpack.c.l.b16 %v1485
        %v1494 = vunpack.c.l.b16 %v1486
        %v1495 = vpack.c.b16 %v1492, %v1491
        %v1496 = vpack.c.b16 %v1494, %v1493
        %v1500 = vsel %vm361, %v1476, 0
        %v1503 = vsel %vm361, %v1477, 0
        %v1506 = vsel %vm361, %v1478, 0
        %v1509 = vsel %vm361, %v1479, 0
        %v1512 = vsel %vm361, %v1480, 0
        %v1515 = vsel %vm361, %v1481, 0
        %1517 = vmatprep.subr.bf16.mxu0 0
        %1518 = vmatpush1.bf16.msra.mxu0 0
        %1519 = vmatprep.subr.bf16.mxu0 0
        %1520 = vmatpush1.bf16.msra.mxu0 0
        %1521 = vmatprep.subr.bf16.mxu0 0
        %1522 = vmatpush1.bf16.msra.mxu0 0
        %1523 = vmatprep.subr.bf16.mxu0 0
        %1524 = vmatpush1.bf16.msra.mxu0 0
        %1525 = vmatprep.subr.bf16.mxu0 0
        %1526 = vmatpush1.bf16.msra.mxu0 0
        %1527 = vmatprep.subr.bf16.mxu0 0
        %1528 = vmatpush1.bf16.msra.mxu0 0
        %1529 = vmatprep.subr.bf16.mxu0 0
        %1530 = vmatpush1.bf16.msra.mxu0 %v1496
        %1531 = vmatprep.subr.bf16.mxu0 0
        %1532 = vmatpush1.bf16.msra.mxu0 %v1495
        %1533 = vmatprep.subr.bf16.mxu0 0
        %1534 = vmatpush2.bf16.msra.mxu0 0
        %1535 = vmatprep.subr.bf16.mxu0 0
        %1536 = vmatpush2.bf16.msra.mxu0 0
        %1537 = vmatprep.subr.bf16.mxu0 0
        %1538 = vmatpush2.bf16.msra.mxu0 0
        %1539 = vmatprep.subr.bf16.mxu0 0
        %1540 = vmatpush2.bf16.msra.mxu0 0
        %1541 = vmatprep.subr.bf16.mxu0 0
        %1542 = vmatpush2.bf16.msra.mxu0 0
        %1543 = vmatprep.subr.bf16.mxu0 0
        %1544 = vmatpush2.bf16.msra.mxu0 0
        %1545 = vmatprep.subr.bf16.mxu0 0
        %1546 = vmatpush2.bf16.msra.mxu0 0
        %1547 = vmatprep.subr.bf16.mxu0 0
        %1548 = vmatpush2.bf16.msra.mxu0 0
        %1549 = vmatprep.mubr.bf16.mxu0 0
        %1550 = vmatmul.mubr.bf16.gmra.mxu0 %v1500
        %v1551 = vpop.f32.mrf.mxu0
        %v1552 = vadd.f32 0.0, %v1551
        %v1553 = vpop.f32.mrf.mxu0
        %v1554 = vpop.f32.mrf.mxu0
        %v1555 = vadd.f32 0.0, %v1554
        %v1556 = vpop.f32.mrf.mxu0
        %1557 = vmatprep.mubr.bf16.mxu0 0
        %1558 = vmatmul.mubr.bf16.gmra.mxu0 %v1503
        %v1559 = vpop.f32.mrf.mxu0
        %v1560 = vadd.f32 0.0, %v1559
        %v1561 = vpop.f32.mrf.mxu0
        %v1562 = vpop.f32.mrf.mxu0
        %v1563 = vadd.f32 0.0, %v1562
        %v1564 = vpop.f32.mrf.mxu0
        %1565 = vmatprep.mubr.bf16.mxu0 0
        %1566 = vmatmul.mubr.bf16.gmra.mxu0 %v1506
        %v1567 = vpop.f32.mrf.mxu0
        %v1568 = vadd.f32 0.0, %v1567
        %v1569 = vpop.f32.mrf.mxu0
        %v1570 = vpop.f32.mrf.mxu0
        %v1571 = vadd.f32 0.0, %v1570
        %v1572 = vpop.f32.mrf.mxu0
        %1573 = vmatprep.mubr.bf16.mxu0 0
        %1574 = vmatmul.mubr.bf16.gmra.mxu0 %v1509
        %v1575 = vpop.f32.mrf.mxu0
        %v1576 = vadd.f32 0.0, %v1575
        %v1577 = vpop.f32.mrf.mxu0
        %v1578 = vpop.f32.mrf.mxu0
        %v1579 = vadd.f32 0.0, %v1578
        %v1580 = vpop.f32.mrf.mxu0
        %1581 = vmatprep.mubr.bf16.mxu0 0
        %1582 = vmatmul.mubr.bf16.gmra.mxu0 %v1512
        %v1583 = vpop.f32.mrf.mxu0
        %v1584 = vadd.f32 0.0, %v1583
        %v1585 = vpop.f32.mrf.mxu0
        %v1586 = vpop.f32.mrf.mxu0
        %v1587 = vadd.f32 0.0, %v1586
        %v1588 = vpop.f32.mrf.mxu0
        %1589 = vmatprep.mubr.bf16.mxu0 0
        %1590 = vmatmul.mubr.bf16.gmra.mxu0 %v1515
        %v1591 = vpop.f32.mrf.mxu0
        %v1592 = vadd.f32 0.0, %v1591
        %v1593 = vpop.f32.mrf.mxu0
        %v1594 = vpop.f32.mrf.mxu0
        %v1595 = vadd.f32 0.0, %v1594
        %v1596 = vpop.f32.mrf.mxu0
        %1597 = vdwg.mxu0
        %v1598 = vadd.f32 %v1418, %v1552
        %v1599 = vadd.f32 %v1421, %v1555
        %v1600 = vadd.f32 %v1426, %v1560
        %v1601 = vadd.f32 %v1429, %v1563
        %v1602 = vadd.f32 %v1434, %v1568
        %v1603 = vadd.f32 %v1437, %v1571
        %v1604 = vadd.f32 %v1442, %v1576
        %v1605 = vadd.f32 %v1445, %v1579
        %v1606 = vadd.f32 %v1450, %v1584
        %v1607 = vadd.f32 %v1453, %v1587
        %v1608 = vadd.f32 %v1458, %v1592
        %v1609 = vadd.f32 %v1461, %v1595
        %v1610 = vld [vmem:[#allocation2 + $0x3] sm:$0xff]
        %v1611 = vld [vmem:[#allocation2 + $0xb] sm:$0xff]
        %v1612 = vld [vmem:[#allocation2 + $0x13] sm:$0xff]
        %v1613 = vld [vmem:[#allocation2 + $0x1b] sm:$0xff]
        %v1614 = vld [vmem:[#allocation2 + $0x23] sm:$0xff]
        %v1615 = vld [vmem:[#allocation2 + $0x2b] sm:$0xff]
        %v1616 = vld [vmem:[#allocation2 + $0x33] sm:$0xff]
        %v1617 = vld [vmem:[#allocation2 + $0x3b] sm:$0xff]
        %v1618 = vld [vmem:[#allocation2 + $0x43] sm:$0xff]
        %v1619 = vld [vmem:[#allocation2 + $0x4b] sm:$0xff]
        %v1620 = vld [vmem:[#allocation2 + $0x53] sm:$0xff]
        %v1621 = vld [vmem:[#allocation2 + $0x5b] sm:$0xf]
        %v1622 = vpack.c.bf16 %v1611, %v1610
        %v1623 = vpack.c.bf16 %v1613, %v1612
        %v1624 = vpack.c.bf16 %v1615, %v1614
        %v1625 = vpack.c.bf16 %v1617, %v1616
        %v1626 = vpack.c.bf16 %v1619, %v1618
        %v1627 = vpack.c.bf16 %v1621, %v1620
        %s1628 = scalar_lea.vmem %s3, 48
        %v1629 = vld [vmem:[%s1628] sm:$0xf]
        %v1630 = vld [vmem:[%s1628 + $0x4] sm:$0xf]
        %v1631 = vld [vmem:[%s1628 + $0x8] sm:$0xf]
        %v1632 = vld [vmem:[%s1628 + $0xc] sm:$0xf]
        %v1637 = vunpack.c.l.b16 %v1629
        %v1638 = vunpack.c.l.b16 %v1630
        %v1639 = vunpack.c.l.b16 %v1631
        %v1640 = vunpack.c.l.b16 %v1632
        %v1641 = vpack.c.b16 %v1638, %v1637
        %v1642 = vpack.c.b16 %v1640, %v1639
        %v1646 = vsel %vm361, %v1622, 0
        %v1649 = vsel %vm361, %v1623, 0
        %v1652 = vsel %vm361, %v1624, 0
        %v1655 = vsel %vm361, %v1625, 0
        %v1658 = vsel %vm361, %v1626, 0
        %v1661 = vsel %vm361, %v1627, 0
        %1663 = vmatprep.subr.bf16.mxu0 0
        %1664 = vmatpush1.bf16.msra.mxu0 0
        %1665 = vmatprep.subr.bf16.mxu0 0
        %1666 = vmatpush1.bf16.msra.mxu0 0
        %1667 = vmatprep.subr.bf16.mxu0 0
        %1668 = vmatpush1.bf16.msra.mxu0 0
        %1669 = vmatprep.subr.bf16.mxu0 0
        %1670 = vmatpush1.bf16.msra.mxu0 0
        %1671 = vmatprep.subr.bf16.mxu0 0
        %1672 = vmatpush1.bf16.msra.mxu0 0
        %1673 = vmatprep.subr.bf16.mxu0 0
        %1674 = vmatpush1.bf16.msra.mxu0 0
        %1675 = vmatprep.subr.bf16.mxu0 0
        %1676 = vmatpush1.bf16.msra.mxu0 %v1642
        %1677 = vmatprep.subr.bf16.mxu0 0
        %1678 = vmatpush1.bf16.msra.mxu0 %v1641
        %1679 = vmatprep.subr.bf16.mxu0 0
        %1680 = vmatpush2.bf16.msra.mxu0 0
        %1681 = vmatprep.subr.bf16.mxu0 0
        %1682 = vmatpush2.bf16.msra.mxu0 0
        %1683 = vmatprep.subr.bf16.mxu0 0
        %1684 = vmatpush2.bf16.msra.mxu0 0
        %1685 = vmatprep.subr.bf16.mxu0 0
        %1686 = vmatpush2.bf16.msra.mxu0 0
        %1687 = vmatprep.subr.bf16.mxu0 0
        %1688 = vmatpush2.bf16.msra.mxu0 0
        %1689 = vmatprep.subr.bf16.mxu0 0
        %1690 = vmatpush2.bf16.msra.mxu0 0
        %1691 = vmatprep.subr.bf16.mxu0 0
        %1692 = vmatpush2.bf16.msra.mxu0 0
        %1693 = vmatprep.subr.bf16.mxu0 0
        %1694 = vmatpush2.bf16.msra.mxu0 0
        %1695 = vmatprep.mubr.bf16.mxu0 0
        %1696 = vmatmul.mubr.bf16.gmra.mxu0 %v1646
        %v1697 = vpop.f32.mrf.mxu0
        %v1698 = vadd.f32 0.0, %v1697
        %v1699 = vpop.f32.mrf.mxu0
        %v1700 = vpop.f32.mrf.mxu0
        %v1701 = vadd.f32 0.0, %v1700
        %v1702 = vpop.f32.mrf.mxu0
        %1703 = vmatprep.mubr.bf16.mxu0 0
        %1704 = vmatmul.mubr.bf16.gmra.mxu0 %v1649
        %v1705 = vpop.f32.mrf.mxu0
        %v1706 = vadd.f32 0.0, %v1705
        %v1707 = vpop.f32.mrf.mxu0
        %v1708 = vpop.f32.mrf.mxu0
        %v1709 = vadd.f32 0.0, %v1708
        %v1710 = vpop.f32.mrf.mxu0
        %1711 = vmatprep.mubr.bf16.mxu0 0
        %1712 = vmatmul.mubr.bf16.gmra.mxu0 %v1652
        %v1713 = vpop.f32.mrf.mxu0
        %v1714 = vadd.f32 0.0, %v1713
        %v1715 = vpop.f32.mrf.mxu0
        %v1716 = vpop.f32.mrf.mxu0
        %v1717 = vadd.f32 0.0, %v1716
        %v1718 = vpop.f32.mrf.mxu0
        %1719 = vmatprep.mubr.bf16.mxu0 0
        %1720 = vmatmul.mubr.bf16.gmra.mxu0 %v1655
        %v1721 = vpop.f32.mrf.mxu0
        %v1722 = vadd.f32 0.0, %v1721
        %v1723 = vpop.f32.mrf.mxu0
        %v1724 = vpop.f32.mrf.mxu0
        %v1725 = vadd.f32 0.0, %v1724
        %v1726 = vpop.f32.mrf.mxu0
        %1727 = vmatprep.mubr.bf16.mxu0 0
        %1728 = vmatmul.mubr.bf16.gmra.mxu0 %v1658
        %v1729 = vpop.f32.mrf.mxu0
        %v1730 = vadd.f32 0.0, %v1729
        %v1731 = vpop.f32.mrf.mxu0
        %v1732 = vpop.f32.mrf.mxu0
        %v1733 = vadd.f32 0.0, %v1732
        %v1734 = vpop.f32.mrf.mxu0
        %1735 = vmatprep.mubr.bf16.mxu0 0
        %1736 = vmatmul.mubr.bf16.gmra.mxu0 %v1661
        %v1737 = vpop.f32.mrf.mxu0
        %v1738 = vadd.f32 0.0, %v1737
        %v1739 = vpop.f32.mrf.mxu0
        %v1740 = vpop.f32.mrf.mxu0
        %v1741 = vadd.f32 0.0, %v1740
        %v1742 = vpop.f32.mrf.mxu0
        %1743 = vdwg.mxu0
        %v1744 = vadd.f32 %v1598, %v1698
        %v1745 = vadd.f32 %v1599, %v1701
        %v1746 = vadd.f32 %v1600, %v1706
        %v1747 = vadd.f32 %v1601, %v1709
        %v1748 = vadd.f32 %v1602, %v1714
        %v1749 = vadd.f32 %v1603, %v1717
        %v1750 = vadd.f32 %v1604, %v1722
        %v1751 = vadd.f32 %v1605, %v1725
        %v1752 = vadd.f32 %v1606, %v1730
        %v1753 = vadd.f32 %v1607, %v1733
        %v1754 = vadd.f32 %v1608, %v1738
        %v1755 = vadd.f32 %v1609, %v1741
        %v1756 = vld [vmem:[#allocation2 + $0x4] sm:$0xff]
        %v1757 = vld [vmem:[#allocation2 + $0xc] sm:$0xff]
        %v1758 = vld [vmem:[#allocation2 + $0x14] sm:$0xff]
        %v1759 = vld [vmem:[#allocation2 + $0x1c] sm:$0xff]
        %v1760 = vld [vmem:[#allocation2 + $0x24] sm:$0xff]
        %v1761 = vld [vmem:[#allocation2 + $0x2c] sm:$0xff]
        %v1762 = vld [vmem:[#allocation2 + $0x34] sm:$0xff]
        %v1763 = vld [vmem:[#allocation2 + $0x3c] sm:$0xff]
        %v1764 = vld [vmem:[#allocation2 + $0x44] sm:$0xff]
        %v1765 = vld [vmem:[#allocation2 + $0x4c] sm:$0xff]
        %v1766 = vld [vmem:[#allocation2 + $0x54] sm:$0xff]
        %v1767 = vld [vmem:[#allocation2 + $0x5c] sm:$0xf]
        %v1768 = vpack.c.bf16 %v1757, %v1756
        %v1769 = vpack.c.bf16 %v1759, %v1758
        %v1770 = vpack.c.bf16 %v1761, %v1760
        %v1771 = vpack.c.bf16 %v1763, %v1762
        %v1772 = vpack.c.bf16 %v1765, %v1764
        %v1773 = vpack.c.bf16 %v1767, %v1766
        %s1774 = scalar_lea.vmem %s3, 64
        %v1775 = vld [vmem:[%s1774] sm:$0xf]
        %v1776 = vld [vmem:[%s1774 + $0x4] sm:$0xf]
        %v1777 = vld [vmem:[%s1774 + $0x8] sm:$0xf]
        %v1778 = vld [vmem:[%s1774 + $0xc] sm:$0xf]
        %v1783 = vunpack.c.l.b16 %v1775
        %v1784 = vunpack.c.l.b16 %v1776
        %v1785 = vunpack.c.l.b16 %v1777
        %v1786 = vunpack.c.l.b16 %v1778
        %v1787 = vpack.c.b16 %v1784, %v1783
        %v1788 = vpack.c.b16 %v1786, %v1785
        %v1792 = vsel %vm361, %v1768, 0
        %v1795 = vsel %vm361, %v1769, 0
        %v1798 = vsel %vm361, %v1770, 0
        %v1801 = vsel %vm361, %v1771, 0
        %v1804 = vsel %vm361, %v1772, 0
        %v1807 = vsel %vm361, %v1773, 0
        %1809 = vmatprep.subr.bf16.mxu0 0
        %1810 = vmatpush1.bf16.msra.mxu0 0
        %1811 = vmatprep.subr.bf16.mxu0 0
        %1812 = vmatpush1.bf16.msra.mxu0 0
        %1813 = vmatprep.subr.bf16.mxu0 0
        %1814 = vmatpush1.bf16.msra.mxu0 0
        %1815 = vmatprep.subr.bf16.mxu0 0
        %1816 = vmatpush1.bf16.msra.mxu0 0
        %1817 = vmatprep.subr.bf16.mxu0 0
        %1818 = vmatpush1.bf16.msra.mxu0 0
        %1819 = vmatprep.subr.bf16.mxu0 0
        %1820 = vmatpush1.bf16.msra.mxu0 0
        %1821 = vmatprep.subr.bf16.mxu0 0
        %1822 = vmatpush1.bf16.msra.mxu0 %v1788
        %1823 = vmatprep.subr.bf16.mxu0 0
        %1824 = vmatpush1.bf16.msra.mxu0 %v1787
        %1825 = vmatprep.subr.bf16.mxu0 0
        %1826 = vmatpush2.bf16.msra.mxu0 0
        %1827 = vmatprep.subr.bf16.mxu0 0
        %1828 = vmatpush2.bf16.msra.mxu0 0
        %1829 = vmatprep.subr.bf16.mxu0 0
        %1830 = vmatpush2.bf16.msra.mxu0 0
        %1831 = vmatprep.subr.bf16.mxu0 0
        %1832 = vmatpush2.bf16.msra.mxu0 0
        %1833 = vmatprep.subr.bf16.mxu0 0
        %1834 = vmatpush2.bf16.msra.mxu0 0
        %1835 = vmatprep.subr.bf16.mxu0 0
        %1836 = vmatpush2.bf16.msra.mxu0 0
        %1837 = vmatprep.subr.bf16.mxu0 0
        %1838 = vmatpush2.bf16.msra.mxu0 0
        %1839 = vmatprep.subr.bf16.mxu0 0
        %1840 = vmatpush2.bf16.msra.mxu0 0
        %1841 = vmatprep.mubr.bf16.mxu0 0
        %1842 = vmatmul.mubr.bf16.gmra.mxu0 %v1792
        %v1843 = vpop.f32.mrf.mxu0
        %v1844 = vadd.f32 0.0, %v1843
        %v1845 = vpop.f32.mrf.mxu0
        %v1846 = vpop.f32.mrf.mxu0
        %v1847 = vadd.f32 0.0, %v1846
        %v1848 = vpop.f32.mrf.mxu0
        %1849 = vmatprep.mubr.bf16.mxu0 0
        %1850 = vmatmul.mubr.bf16.gmra.mxu0 %v1795
        %v1851 = vpop.f32.mrf.mxu0
        %v1852 = vadd.f32 0.0, %v1851
        %v1853 = vpop.f32.mrf.mxu0
        %v1854 = vpop.f32.mrf.mxu0
        %v1855 = vadd.f32 0.0, %v1854
        %v1856 = vpop.f32.mrf.mxu0
        %1857 = vmatprep.mubr.bf16.mxu0 0
        %1858 = vmatmul.mubr.bf16.gmra.mxu0 %v1798
        %v1859 = vpop.f32.mrf.mxu0
        %v1860 = vadd.f32 0.0, %v1859
        %v1861 = vpop.f32.mrf.mxu0
        %v1862 = vpop.f32.mrf.mxu0
        %v1863 = vadd.f32 0.0, %v1862
        %v1864 = vpop.f32.mrf.mxu0
        %1865 = vmatprep.mubr.bf16.mxu0 0
        %1866 = vmatmul.mubr.bf16.gmra.mxu0 %v1801
        %v1867 = vpop.f32.mrf.mxu0
        %v1868 = vadd.f32 0.0, %v1867
        %v1869 = vpop.f32.mrf.mxu0
        %v1870 = vpop.f32.mrf.mxu0
        %v1871 = vadd.f32 0.0, %v1870
        %v1872 = vpop.f32.mrf.mxu0
        %1873 = vmatprep.mubr.bf16.mxu0 0
        %1874 = vmatmul.mubr.bf16.gmra.mxu0 %v1804
        %v1875 = vpop.f32.mrf.mxu0
        %v1876 = vadd.f32 0.0, %v1875
        %v1877 = vpop.f32.mrf.mxu0
        %v1878 = vpop.f32.mrf.mxu0
        %v1879 = vadd.f32 0.0, %v1878
        %v1880 = vpop.f32.mrf.mxu0
        %1881 = vmatprep.mubr.bf16.mxu0 0
        %1882 = vmatmul.mubr.bf16.gmra.mxu0 %v1807
        %v1883 = vpop.f32.mrf.mxu0
        %v1884 = vadd.f32 0.0, %v1883
        %v1885 = vpop.f32.mrf.mxu0
        %v1886 = vpop.f32.mrf.mxu0
        %v1887 = vadd.f32 0.0, %v1886
        %v1888 = vpop.f32.mrf.mxu0
        %1889 = vdwg.mxu0
        %v1890 = vadd.f32 %v1744, %v1844
        %v1891 = vadd.f32 %v1745, %v1847
        %v1892 = vadd.f32 %v1746, %v1852
        %v1893 = vadd.f32 %v1747, %v1855
        %v1894 = vadd.f32 %v1748, %v1860
        %v1895 = vadd.f32 %v1749, %v1863
        %v1896 = vadd.f32 %v1750, %v1868
        %v1897 = vadd.f32 %v1751, %v1871
        %v1898 = vadd.f32 %v1752, %v1876
        %v1899 = vadd.f32 %v1753, %v1879
        %v1900 = vadd.f32 %v1754, %v1884
        %v1901 = vadd.f32 %v1755, %v1887
        %v1902 = vld [vmem:[#allocation2 + $0xc] sm:$0xff]
        %v1903 = vld [vmem:[#allocation2 + $0x14] sm:$0xff]
        %v1904 = vld [vmem:[#allocation2 + $0x1c] sm:$0xff]
        %v1905 = vld [vmem:[#allocation2 + $0x24] sm:$0xff]
        %v1906 = vld [vmem:[#allocation2 + $0x2c] sm:$0xff]
        %v1907 = vld [vmem:[#allocation2 + $0x34] sm:$0xff]
        %v1908 = vld [vmem:[#allocation2 + $0x3c] sm:$0xff]
        %v1909 = vld [vmem:[#allocation2 + $0x44] sm:$0xff]
        %v1910 = vld [vmem:[#allocation2 + $0x4c] sm:$0xff]
        %v1911 = vld [vmem:[#allocation2 + $0x54] sm:$0xff]
        %v1912 = vld [vmem:[#allocation2 + $0x5c] sm:$0xff]
        %v1913 = vld [vmem:[#allocation2 + $0x64] sm:$0xf]
        %v1914 = vpack.c.bf16 %v1903, %v1902
        %v1915 = vpack.c.bf16 %v1905, %v1904
        %v1916 = vpack.c.bf16 %v1907, %v1906
        %v1917 = vpack.c.bf16 %v1909, %v1908
        %v1918 = vpack.c.bf16 %v1911, %v1910
        %v1919 = vpack.c.bf16 %v1913, %v1912
        %s1920 = scalar_lea.vmem %s3, 80
        %v1921 = vld [vmem:[%s1920] sm:$0xf]
        %v1922 = vld [vmem:[%s1920 + $0x4] sm:$0xf]
        %v1923 = vld [vmem:[%s1920 + $0x8] sm:$0xf]
        %v1924 = vld [vmem:[%s1920 + $0xc] sm:$0xf]
        %v1929 = vunpack.c.l.b16 %v1921
        %v1930 = vunpack.c.l.b16 %v1922
        %v1931 = vunpack.c.l.b16 %v1923
        %v1932 = vunpack.c.l.b16 %v1924
        %v1933 = vpack.c.b16 %v1930, %v1929
        %v1934 = vpack.c.b16 %v1932, %v1931
        %v1938 = vsel %vm361, %v1914, 0
        %v1941 = vsel %vm361, %v1915, 0
        %v1944 = vsel %vm361, %v1916, 0
        %v1947 = vsel %vm361, %v1917, 0
        %v1950 = vsel %vm361, %v1918, 0
        %v1953 = vsel %vm361, %v1919, 0
        %1955 = vmatprep.subr.bf16.mxu0 0
        %1956 = vmatpush1.bf16.msra.mxu0 0
        %1957 = vmatprep.subr.bf16.mxu0 0
        %1958 = vmatpush1.bf16.msra.mxu0 0
        %1959 = vmatprep.subr.bf16.mxu0 0
        %1960 = vmatpush1.bf16.msra.mxu0 0
        %1961 = vmatprep.subr.bf16.mxu0 0
        %1962 = vmatpush1.bf16.msra.mxu0 0
        %1963 = vmatprep.subr.bf16.mxu0 0
        %1964 = vmatpush1.bf16.msra.mxu0 0
        %1965 = vmatprep.subr.bf16.mxu0 0
        %1966 = vmatpush1.bf16.msra.mxu0 0
        %1967 = vmatprep.subr.bf16.mxu0 0
        %1968 = vmatpush1.bf16.msra.mxu0 %v1934
        %1969 = vmatprep.subr.bf16.mxu0 0
        %1970 = vmatpush1.bf16.msra.mxu0 %v1933
        %1971 = vmatprep.subr.bf16.mxu0 0
        %1972 = vmatpush2.bf16.msra.mxu0 0
        %1973 = vmatprep.subr.bf16.mxu0 0
        %1974 = vmatpush2.bf16.msra.mxu0 0
        %1975 = vmatprep.subr.bf16.mxu0 0
        %1976 = vmatpush2.bf16.msra.mxu0 0
        %1977 = vmatprep.subr.bf16.mxu0 0
        %1978 = vmatpush2.bf16.msra.mxu0 0
        %1979 = vmatprep.subr.bf16.mxu0 0
        %1980 = vmatpush2.bf16.msra.mxu0 0
        %1981 = vmatprep.subr.bf16.mxu0 0
        %1982 = vmatpush2.bf16.msra.mxu0 0
        %1983 = vmatprep.subr.bf16.mxu0 0
        %1984 = vmatpush2.bf16.msra.mxu0 0
        %1985 = vmatprep.subr.bf16.mxu0 0
        %1986 = vmatpush2.bf16.msra.mxu0 0
        %1987 = vmatprep.mubr.bf16.mxu0 0
        %1988 = vmatmul.mubr.bf16.gmra.mxu0 %v1938
        %v1989 = vpop.f32.mrf.mxu0
        %v1990 = vadd.f32 0.0, %v1989
        %v1991 = vpop.f32.mrf.mxu0
        %v1992 = vpop.f32.mrf.mxu0
        %v1993 = vadd.f32 0.0, %v1992
        %v1994 = vpop.f32.mrf.mxu0
        %1995 = vmatprep.mubr.bf16.mxu0 0
        %1996 = vmatmul.mubr.bf16.gmra.mxu0 %v1941
        %v1997 = vpop.f32.mrf.mxu0
        %v1998 = vadd.f32 0.0, %v1997
        %v1999 = vpop.f32.mrf.mxu0
        %v2000 = vpop.f32.mrf.mxu0
        %v2001 = vadd.f32 0.0, %v2000
        %v2002 = vpop.f32.mrf.mxu0
        %2003 = vmatprep.mubr.bf16.mxu0 0
        %2004 = vmatmul.mubr.bf16.gmra.mxu0 %v1944
        %v2005 = vpop.f32.mrf.mxu0
        %v2006 = vadd.f32 0.0, %v2005
        %v2007 = vpop.f32.mrf.mxu0
        %v2008 = vpop.f32.mrf.mxu0
        %v2009 = vadd.f32 0.0, %v2008
        %v2010 = vpop.f32.mrf.mxu0
        %2011 = vmatprep.mubr.bf16.mxu0 0
        %2012 = vmatmul.mubr.bf16.gmra.mxu0 %v1947
        %v2013 = vpop.f32.mrf.mxu0
        %v2014 = vadd.f32 0.0, %v2013
        %v2015 = vpop.f32.mrf.mxu0
        %v2016 = vpop.f32.mrf.mxu0
        %v2017 = vadd.f32 0.0, %v2016
        %v2018 = vpop.f32.mrf.mxu0
        %2019 = vmatprep.mubr.bf16.mxu0 0
        %2020 = vmatmul.mubr.bf16.gmra.mxu0 %v1950
        %v2021 = vpop.f32.mrf.mxu0
        %v2022 = vadd.f32 0.0, %v2021
        %v2023 = vpop.f32.mrf.mxu0
        %v2024 = vpop.f32.mrf.mxu0
        %v2025 = vadd.f32 0.0, %v2024
        %v2026 = vpop.f32.mrf.mxu0
        %2027 = vmatprep.mubr.bf16.mxu0 0
        %2028 = vmatmul.mubr.bf16.gmra.mxu0 %v1953
        %v2029 = vpop.f32.mrf.mxu0
        %v2030 = vadd.f32 0.0, %v2029
        %v2031 = vpop.f32.mrf.mxu0
        %v2032 = vpop.f32.mrf.mxu0
        %v2033 = vadd.f32 0.0, %v2032
        %v2034 = vpop.f32.mrf.mxu0
        %2035 = vdwg.mxu0
        %v2036 = vadd.f32 %v1890, %v1990
        %v2037 = vadd.f32 %v1891, %v1993
        %v2038 = vadd.f32 %v1892, %v1998
        %v2039 = vadd.f32 %v1893, %v2001
        %v2040 = vadd.f32 %v1894, %v2006
        %v2041 = vadd.f32 %v1895, %v2009
        %v2042 = vadd.f32 %v1896, %v2014
        %v2043 = vadd.f32 %v1897, %v2017
        %v2044 = vadd.f32 %v1898, %v2022
        %v2045 = vadd.f32 %v1899, %v2025
        %v2046 = vadd.f32 %v1900, %v2030
        %v2047 = vadd.f32 %v1901, %v2033
        %v2048 = vld [vmem:[#allocation2 + $0xd] sm:$0xff]
        %v2049 = vld [vmem:[#allocation2 + $0x15] sm:$0xff]
        %v2050 = vld [vmem:[#allocation2 + $0x1d] sm:$0xff]
        %v2051 = vld [vmem:[#allocation2 + $0x25] sm:$0xff]
        %v2052 = vld [vmem:[#allocation2 + $0x2d] sm:$0xff]
        %v2053 = vld [vmem:[#allocation2 + $0x35] sm:$0xff]
        %v2054 = vld [vmem:[#allocation2 + $0x3d] sm:$0xff]
        %v2055 = vld [vmem:[#allocation2 + $0x45] sm:$0xff]
        %v2056 = vld [vmem:[#allocation2 + $0x4d] sm:$0xff]
        %v2057 = vld [vmem:[#allocation2 + $0x55] sm:$0xff]
        %v2058 = vld [vmem:[#allocation2 + $0x5d] sm:$0xff]
        %v2059 = vld [vmem:[#allocation2 + $0x65] sm:$0xf]
        %v2060 = vpack.c.bf16 %v2049, %v2048
        %v2061 = vpack.c.bf16 %v2051, %v2050
        %v2062 = vpack.c.bf16 %v2053, %v2052
        %v2063 = vpack.c.bf16 %v2055, %v2054
        %v2064 = vpack.c.bf16 %v2057, %v2056
        %v2065 = vpack.c.bf16 %v2059, %v2058
        %s2066 = scalar_lea.vmem %s3, 96
        %v2067 = vld [vmem:[%s2066] sm:$0xf]
        %v2068 = vld [vmem:[%s2066 + $0x4] sm:$0xf]
        %v2069 = vld [vmem:[%s2066 + $0x8] sm:$0xf]
        %v2070 = vld [vmem:[%s2066 + $0xc] sm:$0xf]
        %v2075 = vunpack.c.l.b16 %v2067
        %v2076 = vunpack.c.l.b16 %v2068
        %v2077 = vunpack.c.l.b16 %v2069
        %v2078 = vunpack.c.l.b16 %v2070
        %v2079 = vpack.c.b16 %v2076, %v2075
        %v2080 = vpack.c.b16 %v2078, %v2077
        %v2084 = vsel %vm361, %v2060, 0
        %v2087 = vsel %vm361, %v2061, 0
        %v2090 = vsel %vm361, %v2062, 0
        %v2093 = vsel %vm361, %v2063, 0
        %v2096 = vsel %vm361, %v2064, 0
        %v2099 = vsel %vm361, %v2065, 0
        %2101 = vmatprep.subr.bf16.mxu0 0
        %2102 = vmatpush1.bf16.msra.mxu0 0
        %2103 = vmatprep.subr.bf16.mxu0 0
        %2104 = vmatpush1.bf16.msra.mxu0 0
        %2105 = vmatprep.subr.bf16.mxu0 0
        %2106 = vmatpush1.bf16.msra.mxu0 0
        %2107 = vmatprep.subr.bf16.mxu0 0
        %2108 = vmatpush1.bf16.msra.mxu0 0
        %2109 = vmatprep.subr.bf16.mxu0 0
        %2110 = vmatpush1.bf16.msra.mxu0 0
        %2111 = vmatprep.subr.bf16.mxu0 0
        %2112 = vmatpush1.bf16.msra.mxu0 0
        %2113 = vmatprep.subr.bf16.mxu0 0
        %2114 = vmatpush1.bf16.msra.mxu0 %v2080
        %2115 = vmatprep.subr.bf16.mxu0 0
        %2116 = vmatpush1.bf16.msra.mxu0 %v2079
        %2117 = vmatprep.subr.bf16.mxu0 0
        %2118 = vmatpush2.bf16.msra.mxu0 0
        %2119 = vmatprep.subr.bf16.mxu0 0
        %2120 = vmatpush2.bf16.msra.mxu0 0
        %2121 = vmatprep.subr.bf16.mxu0 0
        %2122 = vmatpush2.bf16.msra.mxu0 0
        %2123 = vmatprep.subr.bf16.mxu0 0
        %2124 = vmatpush2.bf16.msra.mxu0 0
        %2125 = vmatprep.subr.bf16.mxu0 0
        %2126 = vmatpush2.bf16.msra.mxu0 0
        %2127 = vmatprep.subr.bf16.mxu0 0
        %2128 = vmatpush2.bf16.msra.mxu0 0
        %2129 = vmatprep.subr.bf16.mxu0 0
        %2130 = vmatpush2.bf16.msra.mxu0 0
        %2131 = vmatprep.subr.bf16.mxu0 0
        %2132 = vmatpush2.bf16.msra.mxu0 0
        %2133 = vmatprep.mubr.bf16.mxu0 0
        %2134 = vmatmul.mubr.bf16.gmra.mxu0 %v2084
        %v2135 = vpop.f32.mrf.mxu0
        %v2136 = vadd.f32 0.0, %v2135
        %v2137 = vpop.f32.mrf.mxu0
        %v2138 = vpop.f32.mrf.mxu0
        %v2139 = vadd.f32 0.0, %v2138
        %v2140 = vpop.f32.mrf.mxu0
        %2141 = vmatprep.mubr.bf16.mxu0 0
        %2142 = vmatmul.mubr.bf16.gmra.mxu0 %v2087
        %v2143 = vpop.f32.mrf.mxu0
        %v2144 = vadd.f32 0.0, %v2143
        %v2145 = vpop.f32.mrf.mxu0
        %v2146 = vpop.f32.mrf.mxu0
        %v2147 = vadd.f32 0.0, %v2146
        %v2148 = vpop.f32.mrf.mxu0
        %2149 = vmatprep.mubr.bf16.mxu0 0
        %2150 = vmatmul.mubr.bf16.gmra.mxu0 %v2090
        %v2151 = vpop.f32.mrf.mxu0
        %v2152 = vadd.f32 0.0, %v2151
        %v2153 = vpop.f32.mrf.mxu0
        %v2154 = vpop.f32.mrf.mxu0
        %v2155 = vadd.f32 0.0, %v2154
        %v2156 = vpop.f32.mrf.mxu0
        %2157 = vmatprep.mubr.bf16.mxu0 0
        %2158 = vmatmul.mubr.bf16.gmra.mxu0 %v2093
        %v2159 = vpop.f32.mrf.mxu0
        %v2160 = vadd.f32 0.0, %v2159
        %v2161 = vpop.f32.mrf.mxu0
        %v2162 = vpop.f32.mrf.mxu0
        %v2163 = vadd.f32 0.0, %v2162
        %v2164 = vpop.f32.mrf.mxu0
        %2165 = vmatprep.mubr.bf16.mxu0 0
        %2166 = vmatmul.mubr.bf16.gmra.mxu0 %v2096
        %v2167 = vpop.f32.mrf.mxu0
        %v2168 = vadd.f32 0.0, %v2167
        %v2169 = vpop.f32.mrf.mxu0
        %v2170 = vpop.f32.mrf.mxu0
        %v2171 = vadd.f32 0.0, %v2170
        %v2172 = vpop.f32.mrf.mxu0
        %2173 = vmatprep.mubr.bf16.mxu0 0
        %2174 = vmatmul.mubr.bf16.gmra.mxu0 %v2099
        %v2175 = vpop.f32.mrf.mxu0
        %v2176 = vadd.f32 0.0, %v2175
        %v2177 = vpop.f32.mrf.mxu0
        %v2178 = vpop.f32.mrf.mxu0
        %v2179 = vadd.f32 0.0, %v2178
        %v2180 = vpop.f32.mrf.mxu0
        %2181 = vdwg.mxu0
        %v2182 = vadd.f32 %v2036, %v2136
        %v2183 = vadd.f32 %v2037, %v2139
        %v2184 = vadd.f32 %v2038, %v2144
        %v2185 = vadd.f32 %v2039, %v2147
        %v2186 = vadd.f32 %v2040, %v2152
        %v2187 = vadd.f32 %v2041, %v2155
        %v2188 = vadd.f32 %v2042, %v2160
        %v2189 = vadd.f32 %v2043, %v2163
        %v2190 = vadd.f32 %v2044, %v2168
        %v2191 = vadd.f32 %v2045, %v2171
        %v2192 = vadd.f32 %v2046, %v2176
        %v2193 = vadd.f32 %v2047, %v2179
        %v2194 = vld [vmem:[#allocation2 + $0xe] sm:$0xff]
        %v2195 = vld [vmem:[#allocation2 + $0x16] sm:$0xff]
        %v2196 = vld [vmem:[#allocation2 + $0x1e] sm:$0xff]
        %v2197 = vld [vmem:[#allocation2 + $0x26] sm:$0xff]
        %v2198 = vld [vmem:[#allocation2 + $0x2e] sm:$0xff]
        %v2199 = vld [vmem:[#allocation2 + $0x36] sm:$0xff]
        %v2200 = vld [vmem:[#allocation2 + $0x3e] sm:$0xff]
        %v2201 = vld [vmem:[#allocation2 + $0x46] sm:$0xff]
        %v2202 = vld [vmem:[#allocation2 + $0x4e] sm:$0xff]
        %v2203 = vld [vmem:[#allocation2 + $0x56] sm:$0xff]
        %v2204 = vld [vmem:[#allocation2 + $0x5e] sm:$0xff]
        %v2205 = vld [vmem:[#allocation2 + $0x66] sm:$0xf]
        %v2206 = vpack.c.bf16 %v2195, %v2194
        %v2207 = vpack.c.bf16 %v2197, %v2196
        %v2208 = vpack.c.bf16 %v2199, %v2198
        %v2209 = vpack.c.bf16 %v2201, %v2200
        %v2210 = vpack.c.bf16 %v2203, %v2202
        %v2211 = vpack.c.bf16 %v2205, %v2204
        %s2212 = scalar_lea.vmem %s3, 112
        %v2213 = vld [vmem:[%s2212] sm:$0xf]
        %v2214 = vld [vmem:[%s2212 + $0x4] sm:$0xf]
        %v2215 = vld [vmem:[%s2212 + $0x8] sm:$0xf]
        %v2216 = vld [vmem:[%s2212 + $0xc] sm:$0xf]
        %v2221 = vunpack.c.l.b16 %v2213
        %v2222 = vunpack.c.l.b16 %v2214
        %v2223 = vunpack.c.l.b16 %v2215
        %v2224 = vunpack.c.l.b16 %v2216
        %v2225 = vpack.c.b16 %v2222, %v2221
        %v2226 = vpack.c.b16 %v2224, %v2223
        %v2230 = vsel %vm361, %v2206, 0
        %v2233 = vsel %vm361, %v2207, 0
        %v2236 = vsel %vm361, %v2208, 0
        %v2239 = vsel %vm361, %v2209, 0
        %v2242 = vsel %vm361, %v2210, 0
        %v2245 = vsel %vm361, %v2211, 0
        %2247 = vmatprep.subr.bf16.mxu0 0
        %2248 = vmatpush1.bf16.msra.mxu0 0
        %2249 = vmatprep.subr.bf16.mxu0 0
        %2250 = vmatpush1.bf16.msra.mxu0 0
        %2251 = vmatprep.subr.bf16.mxu0 0
        %2252 = vmatpush1.bf16.msra.mxu0 0
        %2253 = vmatprep.subr.bf16.mxu0 0
        %2254 = vmatpush1.bf16.msra.mxu0 0
        %2255 = vmatprep.subr.bf16.mxu0 0
        %2256 = vmatpush1.bf16.msra.mxu0 0
        %2257 = vmatprep.subr.bf16.mxu0 0
        %2258 = vmatpush1.bf16.msra.mxu0 0
        %2259 = vmatprep.subr.bf16.mxu0 0
        %2260 = vmatpush1.bf16.msra.mxu0 %v2226
        %2261 = vmatprep.subr.bf16.mxu0 0
        %2262 = vmatpush1.bf16.msra.mxu0 %v2225
        %2263 = vmatprep.subr.bf16.mxu0 0
        %2264 = vmatpush2.bf16.msra.mxu0 0
        %2265 = vmatprep.subr.bf16.mxu0 0
        %2266 = vmatpush2.bf16.msra.mxu0 0
        %2267 = vmatprep.subr.bf16.mxu0 0
        %2268 = vmatpush2.bf16.msra.mxu0 0
        %2269 = vmatprep.subr.bf16.mxu0 0
        %2270 = vmatpush2.bf16.msra.mxu0 0
        %2271 = vmatprep.subr.bf16.mxu0 0
        %2272 = vmatpush2.bf16.msra.mxu0 0
        %2273 = vmatprep.subr.bf16.mxu0 0
        %2274 = vmatpush2.bf16.msra.mxu0 0
        %2275 = vmatprep.subr.bf16.mxu0 0
        %2276 = vmatpush2.bf16.msra.mxu0 0
        %2277 = vmatprep.subr.bf16.mxu0 0
        %2278 = vmatpush2.bf16.msra.mxu0 0
        %2279 = vmatprep.mubr.bf16.mxu0 0
        %2280 = vmatmul.mubr.bf16.gmra.mxu0 %v2230
        %v2281 = vpop.f32.mrf.mxu0
        %v2282 = vadd.f32 0.0, %v2281
        %v2283 = vpop.f32.mrf.mxu0
        %v2284 = vpop.f32.mrf.mxu0
        %v2285 = vadd.f32 0.0, %v2284
        %v2286 = vpop.f32.mrf.mxu0
        %2287 = vmatprep.mubr.bf16.mxu0 0
        %2288 = vmatmul.mubr.bf16.gmra.mxu0 %v2233
        %v2289 = vpop.f32.mrf.mxu0
        %v2290 = vadd.f32 0.0, %v2289
        %v2291 = vpop.f32.mrf.mxu0
        %v2292 = vpop.f32.mrf.mxu0
        %v2293 = vadd.f32 0.0, %v2292
        %v2294 = vpop.f32.mrf.mxu0
        %2295 = vmatprep.mubr.bf16.mxu0 0
        %2296 = vmatmul.mubr.bf16.gmra.mxu0 %v2236
        %v2297 = vpop.f32.mrf.mxu0
        %v2298 = vadd.f32 0.0, %v2297
        %v2299 = vpop.f32.mrf.mxu0
        %v2300 = vpop.f32.mrf.mxu0
        %v2301 = vadd.f32 0.0, %v2300
        %v2302 = vpop.f32.mrf.mxu0
        %2303 = vmatprep.mubr.bf16.mxu0 0
        %2304 = vmatmul.mubr.bf16.gmra.mxu0 %v2239
        %v2305 = vpop.f32.mrf.mxu0
        %v2306 = vadd.f32 0.0, %v2305
        %v2307 = vpop.f32.mrf.mxu0
        %v2308 = vpop.f32.mrf.mxu0
        %v2309 = vadd.f32 0.0, %v2308
        %v2310 = vpop.f32.mrf.mxu0
        %2311 = vmatprep.mubr.bf16.mxu0 0
        %2312 = vmatmul.mubr.bf16.gmra.mxu0 %v2242
        %v2313 = vpop.f32.mrf.mxu0
        %v2314 = vadd.f32 0.0, %v2313
        %v2315 = vpop.f32.mrf.mxu0
        %v2316 = vpop.f32.mrf.mxu0
        %v2317 = vadd.f32 0.0, %v2316
        %v2318 = vpop.f32.mrf.mxu0
        %2319 = vmatprep.mubr.bf16.mxu0 0
        %2320 = vmatmul.mubr.bf16.gmra.mxu0 %v2245
        %v2321 = vpop.f32.mrf.mxu0
        %v2322 = vadd.f32 0.0, %v2321
        %v2323 = vpop.f32.mrf.mxu0
        %v2324 = vpop.f32.mrf.mxu0
        %v2325 = vadd.f32 0.0, %v2324
        %v2326 = vpop.f32.mrf.mxu0
        %2327 = vdwg.mxu0
        %v2328 = vadd.f32 %v2182, %v2282
        %v2329 = vadd.f32 %v2183, %v2285
        %v2330 = vadd.f32 %v2184, %v2290
        %v2331 = vadd.f32 %v2185, %v2293
        %v2332 = vadd.f32 %v2186, %v2298
        %v2333 = vadd.f32 %v2187, %v2301
        %v2334 = vadd.f32 %v2188, %v2306
        %v2335 = vadd.f32 %v2189, %v2309
        %v2336 = vadd.f32 %v2190, %v2314
        %v2337 = vadd.f32 %v2191, %v2317
        %v2338 = vadd.f32 %v2192, %v2322
        %v2339 = vadd.f32 %v2193, %v2325
        %v2340 = vld [vmem:[#allocation2 + $0xf] sm:$0xff]
        %v2341 = vld [vmem:[#allocation2 + $0x17] sm:$0xff]
        %v2342 = vld [vmem:[#allocation2 + $0x1f] sm:$0xff]
        %v2343 = vld [vmem:[#allocation2 + $0x27] sm:$0xff]
        %v2344 = vld [vmem:[#allocation2 + $0x2f] sm:$0xff]
        %v2345 = vld [vmem:[#allocation2 + $0x37] sm:$0xff]
        %v2346 = vld [vmem:[#allocation2 + $0x3f] sm:$0xff]
        %v2347 = vld [vmem:[#allocation2 + $0x47] sm:$0xff]
        %v2348 = vld [vmem:[#allocation2 + $0x4f] sm:$0xff]
        %v2349 = vld [vmem:[#allocation2 + $0x57] sm:$0xff]
        %v2350 = vld [vmem:[#allocation2 + $0x5f] sm:$0xff]
        %v2351 = vld [vmem:[#allocation2 + $0x67] sm:$0xf]
        %v2352 = vpack.c.bf16 %v2341, %v2340
        %v2353 = vpack.c.bf16 %v2343, %v2342
        %v2354 = vpack.c.bf16 %v2345, %v2344
        %v2355 = vpack.c.bf16 %v2347, %v2346
        %v2356 = vpack.c.bf16 %v2349, %v2348
        %v2357 = vpack.c.bf16 %v2351, %v2350
        %s2358 = scalar_lea.vmem %s3, 128
        %v2359 = vld [vmem:[%s2358] sm:$0xf]
        %v2360 = vld [vmem:[%s2358 + $0x4] sm:$0xf]
        %v2361 = vld [vmem:[%s2358 + $0x8] sm:$0xf]
        %v2362 = vld [vmem:[%s2358 + $0xc] sm:$0xf]
        %v2367 = vunpack.c.l.b16 %v2359
        %v2368 = vunpack.c.l.b16 %v2360
        %v2369 = vunpack.c.l.b16 %v2361
        %v2370 = vunpack.c.l.b16 %v2362
        %v2371 = vpack.c.b16 %v2368, %v2367
        %v2372 = vpack.c.b16 %v2370, %v2369
        %v2376 = vsel %vm361, %v2352, 0
        %v2379 = vsel %vm361, %v2353, 0
        %v2382 = vsel %vm361, %v2354, 0
        %v2385 = vsel %vm361, %v2355, 0
        %v2388 = vsel %vm361, %v2356, 0
        %v2391 = vsel %vm361, %v2357, 0
        %2393 = vmatprep.subr.bf16.mxu0 0
        %2394 = vmatpush1.bf16.msra.mxu0 0
        %2395 = vmatprep.subr.bf16.mxu0 0
        %2396 = vmatpush1.bf16.msra.mxu0 0
        %2397 = vmatprep.subr.bf16.mxu0 0
        %2398 = vmatpush1.bf16.msra.mxu0 0
        %2399 = vmatprep.subr.bf16.mxu0 0
        %2400 = vmatpush1.bf16.msra.mxu0 0
        %2401 = vmatprep.subr.bf16.mxu0 0
        %2402 = vmatpush1.bf16.msra.mxu0 0
        %2403 = vmatprep.subr.bf16.mxu0 0
        %2404 = vmatpush1.bf16.msra.mxu0 0
        %2405 = vmatprep.subr.bf16.mxu0 0
        %2406 = vmatpush1.bf16.msra.mxu0 %v2372
        %2407 = vmatprep.subr.bf16.mxu0 0
        %2408 = vmatpush1.bf16.msra.mxu0 %v2371
        %2409 = vmatprep.subr.bf16.mxu0 0
        %2410 = vmatpush2.bf16.msra.mxu0 0
        %2411 = vmatprep.subr.bf16.mxu0 0
        %2412 = vmatpush2.bf16.msra.mxu0 0
        %2413 = vmatprep.subr.bf16.mxu0 0
        %2414 = vmatpush2.bf16.msra.mxu0 0
        %2415 = vmatprep.subr.bf16.mxu0 0
        %2416 = vmatpush2.bf16.msra.mxu0 0
        %2417 = vmatprep.subr.bf16.mxu0 0
        %2418 = vmatpush2.bf16.msra.mxu0 0
        %2419 = vmatprep.subr.bf16.mxu0 0
        %2420 = vmatpush2.bf16.msra.mxu0 0
        %2421 = vmatprep.subr.bf16.mxu0 0
        %2422 = vmatpush2.bf16.msra.mxu0 0
        %2423 = vmatprep.subr.bf16.mxu0 0
        %2424 = vmatpush2.bf16.msra.mxu0 0
        %2425 = vmatprep.mubr.bf16.mxu0 0
        %2426 = vmatmul.mubr.bf16.gmra.mxu0 %v2376
        %v2427 = vpop.f32.mrf.mxu0
        %v2428 = vadd.f32 0.0, %v2427
        %v2429 = vpop.f32.mrf.mxu0
        %v2430 = vpop.f32.mrf.mxu0
        %v2431 = vadd.f32 0.0, %v2430
        %v2432 = vpop.f32.mrf.mxu0
        %2433 = vmatprep.mubr.bf16.mxu0 0
        %2434 = vmatmul.mubr.bf16.gmra.mxu0 %v2379
        %v2435 = vpop.f32.mrf.mxu0
        %v2436 = vadd.f32 0.0, %v2435
        %v2437 = vpop.f32.mrf.mxu0
        %v2438 = vpop.f32.mrf.mxu0
        %v2439 = vadd.f32 0.0, %v2438
        %v2440 = vpop.f32.mrf.mxu0
        %2441 = vmatprep.mubr.bf16.mxu0 0
        %2442 = vmatmul.mubr.bf16.gmra.mxu0 %v2382
        %v2443 = vpop.f32.mrf.mxu0
        %v2444 = vadd.f32 0.0, %v2443
        %v2445 = vpop.f32.mrf.mxu0
        %v2446 = vpop.f32.mrf.mxu0
        %v2447 = vadd.f32 0.0, %v2446
        %v2448 = vpop.f32.mrf.mxu0
        %2449 = vmatprep.mubr.bf16.mxu0 0
        %2450 = vmatmul.mubr.bf16.gmra.mxu0 %v2385
        %v2451 = vpop.f32.mrf.mxu0
        %v2452 = vadd.f32 0.0, %v2451
        %v2453 = vpop.f32.mrf.mxu0
        %v2454 = vpop.f32.mrf.mxu0
        %v2455 = vadd.f32 0.0, %v2454
        %v2456 = vpop.f32.mrf.mxu0
        %2457 = vmatprep.mubr.bf16.mxu0 0
        %2458 = vmatmul.mubr.bf16.gmra.mxu0 %v2388
        %v2459 = vpop.f32.mrf.mxu0
        %v2460 = vadd.f32 0.0, %v2459
        %v2461 = vpop.f32.mrf.mxu0
        %v2462 = vpop.f32.mrf.mxu0
        %v2463 = vadd.f32 0.0, %v2462
        %v2464 = vpop.f32.mrf.mxu0
        %2465 = vmatprep.mubr.bf16.mxu0 0
        %2466 = vmatmul.mubr.bf16.gmra.mxu0 %v2391
        %v2467 = vpop.f32.mrf.mxu0
        %v2468 = vadd.f32 0.0, %v2467
        %v2469 = vpop.f32.mrf.mxu0
        %v2470 = vpop.f32.mrf.mxu0
        %v2471 = vadd.f32 0.0, %v2470
        %v2472 = vpop.f32.mrf.mxu0
        %2473 = vdwg.mxu0
        %v2474 = vadd.f32 %v2328, %v2428
        %v2475 = vadd.f32 %v2329, %v2431
        %v2476 = vadd.f32 %v2330, %v2436
        %v2477 = vadd.f32 %v2331, %v2439
        %v2478 = vadd.f32 %v2332, %v2444
        %v2479 = vadd.f32 %v2333, %v2447
        %v2480 = vadd.f32 %v2334, %v2452
        %v2481 = vadd.f32 %v2335, %v2455
        %v2482 = vadd.f32 %v2336, %v2460
        %v2483 = vadd.f32 %v2337, %v2463
        %v2484 = vadd.f32 %v2338, %v2468
        %v2485 = vadd.f32 %v2339, %v2471
        %v2486 = vld [vmem:[#allocation2 + $0x10] sm:$0xff]
        %v2487 = vld [vmem:[#allocation2 + $0x18] sm:$0xff]
        %v2488 = vld [vmem:[#allocation2 + $0x20] sm:$0xff]
        %v2489 = vld [vmem:[#allocation2 + $0x28] sm:$0xff]
        %v2490 = vld [vmem:[#allocation2 + $0x30] sm:$0xff]
        %v2491 = vld [vmem:[#allocation2 + $0x38] sm:$0xff]
        %v2492 = vld [vmem:[#allocation2 + $0x40] sm:$0xff]
        %v2493 = vld [vmem:[#allocation2 + $0x48] sm:$0xff]
        %v2494 = vld [vmem:[#allocation2 + $0x50] sm:$0xff]
        %v2495 = vld [vmem:[#allocation2 + $0x58] sm:$0xff]
        %v2496 = vld [vmem:[#allocation2 + $0x60] sm:$0xff]
        %v2497 = vld [vmem:[#allocation2 + $0x68] sm:$0xf]
        %v2498 = vpack.c.bf16 %v2487, %v2486
        %v2499 = vpack.c.bf16 %v2489, %v2488
        %v2500 = vpack.c.bf16 %v2491, %v2490
        %v2501 = vpack.c.bf16 %v2493, %v2492
        %v2502 = vpack.c.bf16 %v2495, %v2494
        %v2503 = vpack.c.bf16 %v2497, %v2496
        %s2504 = scalar_lea.vmem %s3, 144
        %v2505 = vld [vmem:[%s2504] sm:$0xf]
        %v2506 = vld [vmem:[%s2504 + $0x4] sm:$0xf]
        %v2507 = vld [vmem:[%s2504 + $0x8] sm:$0xf]
        %v2508 = vld [vmem:[%s2504 + $0xc] sm:$0xf]
        %v2513 = vunpack.c.l.b16 %v2505
        %v2514 = vunpack.c.l.b16 %v2506
        %v2515 = vunpack.c.l.b16 %v2507
        %v2516 = vunpack.c.l.b16 %v2508
        %v2517 = vpack.c.b16 %v2514, %v2513
        %v2518 = vpack.c.b16 %v2516, %v2515
        %v2522 = vsel %vm361, %v2498, 0
        %v2525 = vsel %vm361, %v2499, 0
        %v2528 = vsel %vm361, %v2500, 0
        %v2531 = vsel %vm361, %v2501, 0
        %v2534 = vsel %vm361, %v2502, 0
        %v2537 = vsel %vm361, %v2503, 0
        %2539 = vmatprep.subr.bf16.mxu0 0
        %2540 = vmatpush1.bf16.msra.mxu0 0
        %2541 = vmatprep.subr.bf16.mxu0 0
        %2542 = vmatpush1.bf16.msra.mxu0 0
        %2543 = vmatprep.subr.bf16.mxu0 0
        %2544 = vmatpush1.bf16.msra.mxu0 0
        %2545 = vmatprep.subr.bf16.mxu0 0
        %2546 = vmatpush1.bf16.msra.mxu0 0
        %2547 = vmatprep.subr.bf16.mxu0 0
        %2548 = vmatpush1.bf16.msra.mxu0 0
        %2549 = vmatprep.subr.bf16.mxu0 0
        %2550 = vmatpush1.bf16.msra.mxu0 0
        %2551 = vmatprep.subr.bf16.mxu0 0
        %2552 = vmatpush1.bf16.msra.mxu0 %v2518
        %2553 = vmatprep.subr.bf16.mxu0 0
        %2554 = vmatpush1.bf16.msra.mxu0 %v2517
        %2555 = vmatprep.subr.bf16.mxu0 0
        %2556 = vmatpush2.bf16.msra.mxu0 0
        %2557 = vmatprep.subr.bf16.mxu0 0
        %2558 = vmatpush2.bf16.msra.mxu0 0
        %2559 = vmatprep.subr.bf16.mxu0 0
        %2560 = vmatpush2.bf16.msra.mxu0 0
        %2561 = vmatprep.subr.bf16.mxu0 0
        %2562 = vmatpush2.bf16.msra.mxu0 0
        %2563 = vmatprep.subr.bf16.mxu0 0
        %2564 = vmatpush2.bf16.msra.mxu0 0
        %2565 = vmatprep.subr.bf16.mxu0 0
        %2566 = vmatpush2.bf16.msra.mxu0 0
        %2567 = vmatprep.subr.bf16.mxu0 0
        %2568 = vmatpush2.bf16.msra.mxu0 0
        %2569 = vmatprep.subr.bf16.mxu0 0
        %2570 = vmatpush2.bf16.msra.mxu0 0
        %2571 = vmatprep.mubr.bf16.mxu0 0
        %2572 = vmatmul.mubr.bf16.gmra.mxu0 %v2522
        %v2573 = vpop.f32.mrf.mxu0
        %v2574 = vadd.f32 0.0, %v2573
        %v2575 = vpop.f32.mrf.mxu0
        %v2576 = vpop.f32.mrf.mxu0
        %v2577 = vadd.f32 0.0, %v2576
        %v2578 = vpop.f32.mrf.mxu0
        %2579 = vmatprep.mubr.bf16.mxu0 0
        %2580 = vmatmul.mubr.bf16.gmra.mxu0 %v2525
        %v2581 = vpop.f32.mrf.mxu0
        %v2582 = vadd.f32 0.0, %v2581
        %v2583 = vpop.f32.mrf.mxu0
        %v2584 = vpop.f32.mrf.mxu0
        %v2585 = vadd.f32 0.0, %v2584
        %v2586 = vpop.f32.mrf.mxu0
        %2587 = vmatprep.mubr.bf16.mxu0 0
        %2588 = vmatmul.mubr.bf16.gmra.mxu0 %v2528
        %v2589 = vpop.f32.mrf.mxu0
        %v2590 = vadd.f32 0.0, %v2589
        %v2591 = vpop.f32.mrf.mxu0
        %v2592 = vpop.f32.mrf.mxu0
        %v2593 = vadd.f32 0.0, %v2592
        %v2594 = vpop.f32.mrf.mxu0
        %2595 = vmatprep.mubr.bf16.mxu0 0
        %2596 = vmatmul.mubr.bf16.gmra.mxu0 %v2531
        %v2597 = vpop.f32.mrf.mxu0
        %v2598 = vadd.f32 0.0, %v2597
        %v2599 = vpop.f32.mrf.mxu0
        %v2600 = vpop.f32.mrf.mxu0
        %v2601 = vadd.f32 0.0, %v2600
        %v2602 = vpop.f32.mrf.mxu0
        %2603 = vmatprep.mubr.bf16.mxu0 0
        %2604 = vmatmul.mubr.bf16.gmra.mxu0 %v2534
        %v2605 = vpop.f32.mrf.mxu0
        %v2606 = vadd.f32 0.0, %v2605
        %v2607 = vpop.f32.mrf.mxu0
        %v2608 = vpop.f32.mrf.mxu0
        %v2609 = vadd.f32 0.0, %v2608
        %v2610 = vpop.f32.mrf.mxu0
        %2611 = vmatprep.mubr.bf16.mxu0 0
        %2612 = vmatmul.mubr.bf16.gmra.mxu0 %v2537
        %v2613 = vpop.f32.mrf.mxu0
        %v2614 = vadd.f32 0.0, %v2613
        %v2615 = vpop.f32.mrf.mxu0
        %v2616 = vpop.f32.mrf.mxu0
        %v2617 = vadd.f32 0.0, %v2616
        %v2618 = vpop.f32.mrf.mxu0
        %2619 = vdwg.mxu0
        %v2620 = vadd.f32 %v2474, %v2574
        %v2621 = vadd.f32 %v2475, %v2577
        %v2622 = vadd.f32 %v2476, %v2582
        %v2623 = vadd.f32 %v2477, %v2585
        %v2624 = vadd.f32 %v2478, %v2590
        %v2625 = vadd.f32 %v2479, %v2593
        %v2626 = vadd.f32 %v2480, %v2598
        %v2627 = vadd.f32 %v2481, %v2601
        %v2628 = vadd.f32 %v2482, %v2606
        %v2629 = vadd.f32 %v2483, %v2609
        %v2630 = vadd.f32 %v2484, %v2614
        %v2631 = vadd.f32 %v2485, %v2617
        %v2632 = vld [vmem:[#allocation2 + $0x18] sm:$0xff]
        %v2633 = vld [vmem:[#allocation2 + $0x20] sm:$0xff]
        %v2634 = vld [vmem:[#allocation2 + $0x28] sm:$0xff]
        %v2635 = vld [vmem:[#allocation2 + $0x30] sm:$0xff]
        %v2636 = vld [vmem:[#allocation2 + $0x38] sm:$0xff]
        %v2637 = vld [vmem:[#allocation2 + $0x40] sm:$0xff]
        %v2638 = vld [vmem:[#allocation2 + $0x48] sm:$0xff]
        %v2639 = vld [vmem:[#allocation2 + $0x50] sm:$0xff]
        %v2640 = vld [vmem:[#allocation2 + $0x58] sm:$0xff]
        %v2641 = vld [vmem:[#allocation2 + $0x60] sm:$0xff]
        %v2642 = vld [vmem:[#allocation2 + $0x68] sm:$0xff]
        %v2643 = vld [vmem:[#allocation2 + $0x70] sm:$0xf]
        %v2644 = vpack.c.bf16 %v2633, %v2632
        %v2645 = vpack.c.bf16 %v2635, %v2634
        %v2646 = vpack.c.bf16 %v2637, %v2636
        %v2647 = vpack.c.bf16 %v2639, %v2638
        %v2648 = vpack.c.bf16 %v2641, %v2640
        %v2649 = vpack.c.bf16 %v2643, %v2642
        %s2650 = scalar_lea.vmem %s3, 160
        %v2651 = vld [vmem:[%s2650] sm:$0xf]
        %v2652 = vld [vmem:[%s2650 + $0x4] sm:$0xf]
        %v2653 = vld [vmem:[%s2650 + $0x8] sm:$0xf]
        %v2654 = vld [vmem:[%s2650 + $0xc] sm:$0xf]
        %v2659 = vunpack.c.l.b16 %v2651
        %v2660 = vunpack.c.l.b16 %v2652
        %v2661 = vunpack.c.l.b16 %v2653
        %v2662 = vunpack.c.l.b16 %v2654
        %v2663 = vpack.c.b16 %v2660, %v2659
        %v2664 = vpack.c.b16 %v2662, %v2661
        %v2668 = vsel %vm361, %v2644, 0
        %v2671 = vsel %vm361, %v2645, 0
        %v2674 = vsel %vm361, %v2646, 0
        %v2677 = vsel %vm361, %v2647, 0
        %v2680 = vsel %vm361, %v2648, 0
        %v2683 = vsel %vm361, %v2649, 0
        %2685 = vmatprep.subr.bf16.mxu0 0
        %2686 = vmatpush1.bf16.msra.mxu0 0
        %2687 = vmatprep.subr.bf16.mxu0 0
        %2688 = vmatpush1.bf16.msra.mxu0 0
        %2689 = vmatprep.subr.bf16.mxu0 0
        %2690 = vmatpush1.bf16.msra.mxu0 0
        %2691 = vmatprep.subr.bf16.mxu0 0
        %2692 = vmatpush1.bf16.msra.mxu0 0
        %2693 = vmatprep.subr.bf16.mxu0 0
        %2694 = vmatpush1.bf16.msra.mxu0 0
        %2695 = vmatprep.subr.bf16.mxu0 0
        %2696 = vmatpush1.bf16.msra.mxu0 0
        %2697 = vmatprep.subr.bf16.mxu0 0
        %2698 = vmatpush1.bf16.msra.mxu0 %v2664
        %2699 = vmatprep.subr.bf16.mxu0 0
        %2700 = vmatpush1.bf16.msra.mxu0 %v2663
        %2701 = vmatprep.subr.bf16.mxu0 0
        %2702 = vmatpush2.bf16.msra.mxu0 0
        %2703 = vmatprep.subr.bf16.mxu0 0
        %2704 = vmatpush2.bf16.msra.mxu0 0
        %2705 = vmatprep.subr.bf16.mxu0 0
        %2706 = vmatpush2.bf16.msra.mxu0 0
        %2707 = vmatprep.subr.bf16.mxu0 0
        %2708 = vmatpush2.bf16.msra.mxu0 0
        %2709 = vmatprep.subr.bf16.mxu0 0
        %2710 = vmatpush2.bf16.msra.mxu0 0
        %2711 = vmatprep.subr.bf16.mxu0 0
        %2712 = vmatpush2.bf16.msra.mxu0 0
        %2713 = vmatprep.subr.bf16.mxu0 0
        %2714 = vmatpush2.bf16.msra.mxu0 0
        %2715 = vmatprep.subr.bf16.mxu0 0
        %2716 = vmatpush2.bf16.msra.mxu0 0
        %2717 = vmatprep.mubr.bf16.mxu0 0
        %2718 = vmatmul.mubr.bf16.gmra.mxu0 %v2668
        %v2719 = vpop.f32.mrf.mxu0
        %v2720 = vadd.f32 0.0, %v2719
        %v2721 = vpop.f32.mrf.mxu0
        %v2722 = vpop.f32.mrf.mxu0
        %v2723 = vadd.f32 0.0, %v2722
        %v2724 = vpop.f32.mrf.mxu0
        %2725 = vmatprep.mubr.bf16.mxu0 0
        %2726 = vmatmul.mubr.bf16.gmra.mxu0 %v2671
        %v2727 = vpop.f32.mrf.mxu0
        %v2728 = vadd.f32 0.0, %v2727
        %v2729 = vpop.f32.mrf.mxu0
        %v2730 = vpop.f32.mrf.mxu0
        %v2731 = vadd.f32 0.0, %v2730
        %v2732 = vpop.f32.mrf.mxu0
        %2733 = vmatprep.mubr.bf16.mxu0 0
        %2734 = vmatmul.mubr.bf16.gmra.mxu0 %v2674
        %v2735 = vpop.f32.mrf.mxu0
        %v2736 = vadd.f32 0.0, %v2735
        %v2737 = vpop.f32.mrf.mxu0
        %v2738 = vpop.f32.mrf.mxu0
        %v2739 = vadd.f32 0.0, %v2738
        %v2740 = vpop.f32.mrf.mxu0
        %2741 = vmatprep.mubr.bf16.mxu0 0
        %2742 = vmatmul.mubr.bf16.gmra.mxu0 %v2677
        %v2743 = vpop.f32.mrf.mxu0
        %v2744 = vadd.f32 0.0, %v2743
        %v2745 = vpop.f32.mrf.mxu0
        %v2746 = vpop.f32.mrf.mxu0
        %v2747 = vadd.f32 0.0, %v2746
        %v2748 = vpop.f32.mrf.mxu0
        %2749 = vmatprep.mubr.bf16.mxu0 0
        %2750 = vmatmul.mubr.bf16.gmra.mxu0 %v2680
        %v2751 = vpop.f32.mrf.mxu0
        %v2752 = vadd.f32 0.0, %v2751
        %v2753 = vpop.f32.mrf.mxu0
        %v2754 = vpop.f32.mrf.mxu0
        %v2755 = vadd.f32 0.0, %v2754
        %v2756 = vpop.f32.mrf.mxu0
        %2757 = vmatprep.mubr.bf16.mxu0 0
        %2758 = vmatmul.mubr.bf16.gmra.mxu0 %v2683
        %v2759 = vpop.f32.mrf.mxu0
        %v2760 = vadd.f32 0.0, %v2759
        %v2761 = vpop.f32.mrf.mxu0
        %v2762 = vpop.f32.mrf.mxu0
        %v2763 = vadd.f32 0.0, %v2762
        %v2764 = vpop.f32.mrf.mxu0
        %2765 = vdwg.mxu0
        %v2766 = vadd.f32 %v2620, %v2720
        %v2767 = vadd.f32 %v2621, %v2723
        %v2768 = vadd.f32 %v2622, %v2728
        %v2769 = vadd.f32 %v2623, %v2731
        %v2770 = vadd.f32 %v2624, %v2736
        %v2771 = vadd.f32 %v2625, %v2739
        %v2772 = vadd.f32 %v2626, %v2744
        %v2773 = vadd.f32 %v2627, %v2747
        %v2774 = vadd.f32 %v2628, %v2752
        %v2775 = vadd.f32 %v2629, %v2755
        %v2776 = vadd.f32 %v2630, %v2760
        %v2777 = vadd.f32 %v2631, %v2763
        %v2778 = vld [vmem:[#allocation2 + $0x19] sm:$0xff]
        %v2779 = vld [vmem:[#allocation2 + $0x21] sm:$0xff]
        %v2780 = vld [vmem:[#allocation2 + $0x29] sm:$0xff]
        %v2781 = vld [vmem:[#allocation2 + $0x31] sm:$0xff]
        %v2782 = vld [vmem:[#allocation2 + $0x39] sm:$0xff]
        %v2783 = vld [vmem:[#allocation2 + $0x41] sm:$0xff]
        %v2784 = vld [vmem:[#allocation2 + $0x49] sm:$0xff]
        %v2785 = vld [vmem:[#allocation2 + $0x51] sm:$0xff]
        %v2786 = vld [vmem:[#allocation2 + $0x59] sm:$0xff]
        %v2787 = vld [vmem:[#allocation2 + $0x61] sm:$0xff]
        %v2788 = vld [vmem:[#allocation2 + $0x69] sm:$0xff]
        %v2789 = vld [vmem:[#allocation2 + $0x71] sm:$0xf]
        %v2790 = vpack.c.bf16 %v2779, %v2778
        %v2791 = vpack.c.bf16 %v2781, %v2780
        %v2792 = vpack.c.bf16 %v2783, %v2782
        %v2793 = vpack.c.bf16 %v2785, %v2784
        %v2794 = vpack.c.bf16 %v2787, %v2786
        %v2795 = vpack.c.bf16 %v2789, %v2788
        %s2796 = scalar_lea.vmem %s3, 176
        %v2797 = vld [vmem:[%s2796] sm:$0xf]
        %v2798 = vld [vmem:[%s2796 + $0x4] sm:$0xf]
        %v2799 = vld [vmem:[%s2796 + $0x8] sm:$0xf]
        %v2800 = vld [vmem:[%s2796 + $0xc] sm:$0xf]
        %v2805 = vunpack.c.l.b16 %v2797
        %v2806 = vunpack.c.l.b16 %v2798
        %v2807 = vunpack.c.l.b16 %v2799
        %v2808 = vunpack.c.l.b16 %v2800
        %v2809 = vpack.c.b16 %v2806, %v2805
        %v2810 = vpack.c.b16 %v2808, %v2807
        %v2814 = vsel %vm361, %v2790, 0
        %v2817 = vsel %vm361, %v2791, 0
        %v2820 = vsel %vm361, %v2792, 0
        %v2823 = vsel %vm361, %v2793, 0
        %v2826 = vsel %vm361, %v2794, 0
        %v2829 = vsel %vm361, %v2795, 0
        %2831 = vmatprep.subr.bf16.mxu0 0
        %2832 = vmatpush1.bf16.msra.mxu0 0
        %2833 = vmatprep.subr.bf16.mxu0 0
        %2834 = vmatpush1.bf16.msra.mxu0 0
        %2835 = vmatprep.subr.bf16.mxu0 0
        %2836 = vmatpush1.bf16.msra.mxu0 0
        %2837 = vmatprep.subr.bf16.mxu0 0
        %2838 = vmatpush1.bf16.msra.mxu0 0
        %2839 = vmatprep.subr.bf16.mxu0 0
        %2840 = vmatpush1.bf16.msra.mxu0 0
        %2841 = vmatprep.subr.bf16.mxu0 0
        %2842 = vmatpush1.bf16.msra.mxu0 0
        %2843 = vmatprep.subr.bf16.mxu0 0
        %2844 = vmatpush1.bf16.msra.mxu0 %v2810
        %2845 = vmatprep.subr.bf16.mxu0 0
        %2846 = vmatpush1.bf16.msra.mxu0 %v2809
        %2847 = vmatprep.subr.bf16.mxu0 0
        %2848 = vmatpush2.bf16.msra.mxu0 0
        %2849 = vmatprep.subr.bf16.mxu0 0
        %2850 = vmatpush2.bf16.msra.mxu0 0
        %2851 = vmatprep.subr.bf16.mxu0 0
        %2852 = vmatpush2.bf16.msra.mxu0 0
        %2853 = vmatprep.subr.bf16.mxu0 0
        %2854 = vmatpush2.bf16.msra.mxu0 0
        %2855 = vmatprep.subr.bf16.mxu0 0
        %2856 = vmatpush2.bf16.msra.mxu0 0
        %2857 = vmatprep.subr.bf16.mxu0 0
        %2858 = vmatpush2.bf16.msra.mxu0 0
        %2859 = vmatprep.subr.bf16.mxu0 0
        %2860 = vmatpush2.bf16.msra.mxu0 0
        %2861 = vmatprep.subr.bf16.mxu0 0
        %2862 = vmatpush2.bf16.msra.mxu0 0
        %2863 = vmatprep.mubr.bf16.mxu0 0
        %2864 = vmatmul.mubr.bf16.gmra.mxu0 %v2814
        %v2865 = vpop.f32.mrf.mxu0
        %v2866 = vadd.f32 0.0, %v2865
        %v2867 = vpop.f32.mrf.mxu0
        %v2868 = vpop.f32.mrf.mxu0
        %v2869 = vadd.f32 0.0, %v2868
        %v2870 = vpop.f32.mrf.mxu0
        %2871 = vmatprep.mubr.bf16.mxu0 0
        %2872 = vmatmul.mubr.bf16.gmra.mxu0 %v2817
        %v2873 = vpop.f32.mrf.mxu0
        %v2874 = vadd.f32 0.0, %v2873
        %v2875 = vpop.f32.mrf.mxu0
        %v2876 = vpop.f32.mrf.mxu0
        %v2877 = vadd.f32 0.0, %v2876
        %v2878 = vpop.f32.mrf.mxu0
        %2879 = vmatprep.mubr.bf16.mxu0 0
        %2880 = vmatmul.mubr.bf16.gmra.mxu0 %v2820
        %v2881 = vpop.f32.mrf.mxu0
        %v2882 = vadd.f32 0.0, %v2881
        %v2883 = vpop.f32.mrf.mxu0
        %v2884 = vpop.f32.mrf.mxu0
        %v2885 = vadd.f32 0.0, %v2884
        %v2886 = vpop.f32.mrf.mxu0
        %2887 = vmatprep.mubr.bf16.mxu0 0
        %2888 = vmatmul.mubr.bf16.gmra.mxu0 %v2823
        %v2889 = vpop.f32.mrf.mxu0
        %v2890 = vadd.f32 0.0, %v2889
        %v2891 = vpop.f32.mrf.mxu0
        %v2892 = vpop.f32.mrf.mxu0
        %v2893 = vadd.f32 0.0, %v2892
        %v2894 = vpop.f32.mrf.mxu0
        %2895 = vmatprep.mubr.bf16.mxu0 0
        %2896 = vmatmul.mubr.bf16.gmra.mxu0 %v2826
        %v2897 = vpop.f32.mrf.mxu0
        %v2898 = vadd.f32 0.0, %v2897
        %v2899 = vpop.f32.mrf.mxu0
        %v2900 = vpop.f32.mrf.mxu0
        %v2901 = vadd.f32 0.0, %v2900
        %v2902 = vpop.f32.mrf.mxu0
        %2903 = vmatprep.mubr.bf16.mxu0 0
        %2904 = vmatmul.mubr.bf16.gmra.mxu0 %v2829
        %v2905 = vpop.f32.mrf.mxu0
        %v2906 = vadd.f32 0.0, %v2905
        %v2907 = vpop.f32.mrf.mxu0
        %v2908 = vpop.f32.mrf.mxu0
        %v2909 = vadd.f32 0.0, %v2908
        %v2910 = vpop.f32.mrf.mxu0
        %2911 = vdwg.mxu0
        %v2912 = vadd.f32 %v2766, %v2866
        %v2913 = vadd.f32 %v2767, %v2869
        %v2914 = vadd.f32 %v2768, %v2874
        %v2915 = vadd.f32 %v2769, %v2877
        %v2916 = vadd.f32 %v2770, %v2882
        %v2917 = vadd.f32 %v2771, %v2885
        %v2918 = vadd.f32 %v2772, %v2890
        %v2919 = vadd.f32 %v2773, %v2893
        %v2920 = vadd.f32 %v2774, %v2898
        %v2921 = vadd.f32 %v2775, %v2901
        %v2922 = vadd.f32 %v2776, %v2906
        %v2923 = vadd.f32 %v2777, %v2909
        %v2924 = vld [vmem:[#allocation2 + $0x1a] sm:$0xff]
        %v2925 = vld [vmem:[#allocation2 + $0x22] sm:$0xff]
        %v2926 = vld [vmem:[#allocation2 + $0x2a] sm:$0xff]
        %v2927 = vld [vmem:[#allocation2 + $0x32] sm:$0xff]
        %v2928 = vld [vmem:[#allocation2 + $0x3a] sm:$0xff]
        %v2929 = vld [vmem:[#allocation2 + $0x42] sm:$0xff]
        %v2930 = vld [vmem:[#allocation2 + $0x4a] sm:$0xff]
        %v2931 = vld [vmem:[#allocation2 + $0x52] sm:$0xff]
        %v2932 = vld [vmem:[#allocation2 + $0x5a] sm:$0xff]
        %v2933 = vld [vmem:[#allocation2 + $0x62] sm:$0xff]
        %v2934 = vld [vmem:[#allocation2 + $0x6a] sm:$0xff]
        %v2935 = vld [vmem:[#allocation2 + $0x72] sm:$0xf]
        %v2936 = vpack.c.bf16 %v2925, %v2924
        %v2937 = vpack.c.bf16 %v2927, %v2926
        %v2938 = vpack.c.bf16 %v2929, %v2928
        %v2939 = vpack.c.bf16 %v2931, %v2930
        %v2940 = vpack.c.bf16 %v2933, %v2932
        %v2941 = vpack.c.bf16 %v2935, %v2934
        %s2942 = scalar_lea.vmem %s3, 192
        %v2943 = vld [vmem:[%s2942] sm:$0xf]
        %v2944 = vld [vmem:[%s2942 + $0x4] sm:$0xf]
        %v2945 = vld [vmem:[%s2942 + $0x8] sm:$0xf]
        %v2946 = vld [vmem:[%s2942 + $0xc] sm:$0xf]
        %v2951 = vunpack.c.l.b16 %v2943
        %v2952 = vunpack.c.l.b16 %v2944
        %v2953 = vunpack.c.l.b16 %v2945
        %v2954 = vunpack.c.l.b16 %v2946
        %v2955 = vpack.c.b16 %v2952, %v2951
        %v2956 = vpack.c.b16 %v2954, %v2953
        %v2960 = vsel %vm361, %v2936, 0
        %v2963 = vsel %vm361, %v2937, 0
        %v2966 = vsel %vm361, %v2938, 0
        %v2969 = vsel %vm361, %v2939, 0
        %v2972 = vsel %vm361, %v2940, 0
        %v2975 = vsel %vm361, %v2941, 0
        %2977 = vmatprep.subr.bf16.mxu0 0
        %2978 = vmatpush1.bf16.msra.mxu0 0
        %2979 = vmatprep.subr.bf16.mxu0 0
        %2980 = vmatpush1.bf16.msra.mxu0 0
        %2981 = vmatprep.subr.bf16.mxu0 0
        %2982 = vmatpush1.bf16.msra.mxu0 0
        %2983 = vmatprep.subr.bf16.mxu0 0
        %2984 = vmatpush1.bf16.msra.mxu0 0
        %2985 = vmatprep.subr.bf16.mxu0 0
        %2986 = vmatpush1.bf16.msra.mxu0 0
        %2987 = vmatprep.subr.bf16.mxu0 0
        %2988 = vmatpush1.bf16.msra.mxu0 0
        %2989 = vmatprep.subr.bf16.mxu0 0
        %2990 = vmatpush1.bf16.msra.mxu0 %v2956
        %2991 = vmatprep.subr.bf16.mxu0 0
        %2992 = vmatpush1.bf16.msra.mxu0 %v2955
        %2993 = vmatprep.subr.bf16.mxu0 0
        %2994 = vmatpush2.bf16.msra.mxu0 0
        %2995 = vmatprep.subr.bf16.mxu0 0
        %2996 = vmatpush2.bf16.msra.mxu0 0
        %2997 = vmatprep.subr.bf16.mxu0 0
        %2998 = vmatpush2.bf16.msra.mxu0 0
        %2999 = vmatprep.subr.bf16.mxu0 0
        %3000 = vmatpush2.bf16.msra.mxu0 0
        %3001 = vmatprep.subr.bf16.mxu0 0
        %3002 = vmatpush2.bf16.msra.mxu0 0
        %3003 = vmatprep.subr.bf16.mxu0 0
        %3004 = vmatpush2.bf16.msra.mxu0 0
        %3005 = vmatprep.subr.bf16.mxu0 0
        %3006 = vmatpush2.bf16.msra.mxu0 0
        %3007 = vmatprep.subr.bf16.mxu0 0
        %3008 = vmatpush2.bf16.msra.mxu0 0
        %3009 = vmatprep.mubr.bf16.mxu0 0
        %3010 = vmatmul.mubr.bf16.gmra.mxu0 %v2960
        %v3011 = vpop.f32.mrf.mxu0
        %v3012 = vadd.f32 0.0, %v3011
        %v3013 = vpop.f32.mrf.mxu0
        %v3014 = vpop.f32.mrf.mxu0
        %v3015 = vadd.f32 0.0, %v3014
        %v3016 = vpop.f32.mrf.mxu0
        %3017 = vmatprep.mubr.bf16.mxu0 0
        %3018 = vmatmul.mubr.bf16.gmra.mxu0 %v2963
        %v3019 = vpop.f32.mrf.mxu0
        %v3020 = vadd.f32 0.0, %v3019
        %v3021 = vpop.f32.mrf.mxu0
        %v3022 = vpop.f32.mrf.mxu0
        %v3023 = vadd.f32 0.0, %v3022
        %v3024 = vpop.f32.mrf.mxu0
        %3025 = vmatprep.mubr.bf16.mxu0 0
        %3026 = vmatmul.mubr.bf16.gmra.mxu0 %v2966
        %v3027 = vpop.f32.mrf.mxu0
        %v3028 = vadd.f32 0.0, %v3027
        %v3029 = vpop.f32.mrf.mxu0
        %v3030 = vpop.f32.mrf.mxu0
        %v3031 = vadd.f32 0.0, %v3030
        %v3032 = vpop.f32.mrf.mxu0
        %3033 = vmatprep.mubr.bf16.mxu0 0
        %3034 = vmatmul.mubr.bf16.gmra.mxu0 %v2969
        %v3035 = vpop.f32.mrf.mxu0
        %v3036 = vadd.f32 0.0, %v3035
        %v3037 = vpop.f32.mrf.mxu0
        %v3038 = vpop.f32.mrf.mxu0
        %v3039 = vadd.f32 0.0, %v3038
        %v3040 = vpop.f32.mrf.mxu0
        %3041 = vmatprep.mubr.bf16.mxu0 0
        %3042 = vmatmul.mubr.bf16.gmra.mxu0 %v2972
        %v3043 = vpop.f32.mrf.mxu0
        %v3044 = vadd.f32 0.0, %v3043
        %v3045 = vpop.f32.mrf.mxu0
        %v3046 = vpop.f32.mrf.mxu0
        %v3047 = vadd.f32 0.0, %v3046
        %v3048 = vpop.f32.mrf.mxu0
        %3049 = vmatprep.mubr.bf16.mxu0 0
        %3050 = vmatmul.mubr.bf16.gmra.mxu0 %v2975
        %v3051 = vpop.f32.mrf.mxu0
        %v3052 = vadd.f32 0.0, %v3051
        %v3053 = vpop.f32.mrf.mxu0
        %v3054 = vpop.f32.mrf.mxu0
        %v3055 = vadd.f32 0.0, %v3054
        %v3056 = vpop.f32.mrf.mxu0
        %3057 = vdwg.mxu0
        %v3058 = vadd.f32 %v2912, %v3012
        %v3059 = vadd.f32 %v2913, %v3015
        %v3060 = vadd.f32 %v2914, %v3020
        %v3061 = vadd.f32 %v2915, %v3023
        %v3062 = vadd.f32 %v2916, %v3028
        %v3063 = vadd.f32 %v2917, %v3031
        %v3064 = vadd.f32 %v2918, %v3036
        %v3065 = vadd.f32 %v2919, %v3039
        %v3066 = vadd.f32 %v2920, %v3044
        %v3067 = vadd.f32 %v2921, %v3047
        %v3068 = vadd.f32 %v2922, %v3052
        %v3069 = vadd.f32 %v2923, %v3055
        %v3070 = vld [vmem:[#allocation2 + $0x1b] sm:$0xff]
        %v3071 = vld [vmem:[#allocation2 + $0x23] sm:$0xff]
        %v3072 = vld [vmem:[#allocation2 + $0x2b] sm:$0xff]
        %v3073 = vld [vmem:[#allocation2 + $0x33] sm:$0xff]
        %v3074 = vld [vmem:[#allocation2 + $0x3b] sm:$0xff]
        %v3075 = vld [vmem:[#allocation2 + $0x43] sm:$0xff]
        %v3076 = vld [vmem:[#allocation2 + $0x4b] sm:$0xff]
        %v3077 = vld [vmem:[#allocation2 + $0x53] sm:$0xff]
        %v3078 = vld [vmem:[#allocation2 + $0x5b] sm:$0xff]
        %v3079 = vld [vmem:[#allocation2 + $0x63] sm:$0xff]
        %v3080 = vld [vmem:[#allocation2 + $0x6b] sm:$0xff]
        %v3081 = vld [vmem:[#allocation2 + $0x73] sm:$0xf]
        %v3082 = vpack.c.bf16 %v3071, %v3070
        %v3083 = vpack.c.bf16 %v3073, %v3072
        %v3084 = vpack.c.bf16 %v3075, %v3074
        %v3085 = vpack.c.bf16 %v3077, %v3076
        %v3086 = vpack.c.bf16 %v3079, %v3078
        %v3087 = vpack.c.bf16 %v3081, %v3080
        %s3088 = scalar_lea.vmem %s3, 208
        %v3089 = vld [vmem:[%s3088] sm:$0xf]
        %v3090 = vld [vmem:[%s3088 + $0x4] sm:$0xf]
        %v3091 = vld [vmem:[%s3088 + $0x8] sm:$0xf]
        %v3092 = vld [vmem:[%s3088 + $0xc] sm:$0xf]
        %v3097 = vunpack.c.l.b16 %v3089
        %v3098 = vunpack.c.l.b16 %v3090
        %v3099 = vunpack.c.l.b16 %v3091
        %v3100 = vunpack.c.l.b16 %v3092
        %v3101 = vpack.c.b16 %v3098, %v3097
        %v3102 = vpack.c.b16 %v3100, %v3099
        %v3106 = vsel %vm361, %v3082, 0
        %v3109 = vsel %vm361, %v3083, 0
        %v3112 = vsel %vm361, %v3084, 0
        %v3115 = vsel %vm361, %v3085, 0
        %v3118 = vsel %vm361, %v3086, 0
        %v3121 = vsel %vm361, %v3087, 0
        %3123 = vmatprep.subr.bf16.mxu0 0
        %3124 = vmatpush1.bf16.msra.mxu0 0
        %3125 = vmatprep.subr.bf16.mxu0 0
        %3126 = vmatpush1.bf16.msra.mxu0 0
        %3127 = vmatprep.subr.bf16.mxu0 0
        %3128 = vmatpush1.bf16.msra.mxu0 0
        %3129 = vmatprep.subr.bf16.mxu0 0
        %3130 = vmatpush1.bf16.msra.mxu0 0
        %3131 = vmatprep.subr.bf16.mxu0 0
        %3132 = vmatpush1.bf16.msra.mxu0 0
        %3133 = vmatprep.subr.bf16.mxu0 0
        %3134 = vmatpush1.bf16.msra.mxu0 0
        %3135 = vmatprep.subr.bf16.mxu0 0
        %3136 = vmatpush1.bf16.msra.mxu0 %v3102
        %3137 = vmatprep.subr.bf16.mxu0 0
        %3138 = vmatpush1.bf16.msra.mxu0 %v3101
        %3139 = vmatprep.subr.bf16.mxu0 0
        %3140 = vmatpush2.bf16.msra.mxu0 0
        %3141 = vmatprep.subr.bf16.mxu0 0
        %3142 = vmatpush2.bf16.msra.mxu0 0
        %3143 = vmatprep.subr.bf16.mxu0 0
        %3144 = vmatpush2.bf16.msra.mxu0 0
        %3145 = vmatprep.subr.bf16.mxu0 0
        %3146 = vmatpush2.bf16.msra.mxu0 0
        %3147 = vmatprep.subr.bf16.mxu0 0
        %3148 = vmatpush2.bf16.msra.mxu0 0
        %3149 = vmatprep.subr.bf16.mxu0 0
        %3150 = vmatpush2.bf16.msra.mxu0 0
        %3151 = vmatprep.subr.bf16.mxu0 0
        %3152 = vmatpush2.bf16.msra.mxu0 0
        %3153 = vmatprep.subr.bf16.mxu0 0
        %3154 = vmatpush2.bf16.msra.mxu0 0
        %3155 = vmatprep.mubr.bf16.mxu0 0
        %3156 = vmatmul.mubr.bf16.gmra.mxu0 %v3106
        %v3157 = vpop.f32.mrf.mxu0
        %v3158 = vadd.f32 0.0, %v3157
        %v3159 = vpop.f32.mrf.mxu0
        %v3160 = vpop.f32.mrf.mxu0
        %v3161 = vadd.f32 0.0, %v3160
        %v3162 = vpop.f32.mrf.mxu0
        %3163 = vmatprep.mubr.bf16.mxu0 0
        %3164 = vmatmul.mubr.bf16.gmra.mxu0 %v3109
        %v3165 = vpop.f32.mrf.mxu0
        %v3166 = vadd.f32 0.0, %v3165
        %v3167 = vpop.f32.mrf.mxu0
        %v3168 = vpop.f32.mrf.mxu0
        %v3169 = vadd.f32 0.0, %v3168
        %v3170 = vpop.f32.mrf.mxu0
        %3171 = vmatprep.mubr.bf16.mxu0 0
        %3172 = vmatmul.mubr.bf16.gmra.mxu0 %v3112
        %v3173 = vpop.f32.mrf.mxu0
        %v3174 = vadd.f32 0.0, %v3173
        %v3175 = vpop.f32.mrf.mxu0
        %v3176 = vpop.f32.mrf.mxu0
        %v3177 = vadd.f32 0.0, %v3176
        %v3178 = vpop.f32.mrf.mxu0
        %3179 = vmatprep.mubr.bf16.mxu0 0
        %3180 = vmatmul.mubr.bf16.gmra.mxu0 %v3115
        %v3181 = vpop.f32.mrf.mxu0
        %v3182 = vadd.f32 0.0, %v3181
        %v3183 = vpop.f32.mrf.mxu0
        %v3184 = vpop.f32.mrf.mxu0
        %v3185 = vadd.f32 0.0, %v3184
        %v3186 = vpop.f32.mrf.mxu0
        %3187 = vmatprep.mubr.bf16.mxu0 0
        %3188 = vmatmul.mubr.bf16.gmra.mxu0 %v3118
        %v3189 = vpop.f32.mrf.mxu0
        %v3190 = vadd.f32 0.0, %v3189
        %v3191 = vpop.f32.mrf.mxu0
        %v3192 = vpop.f32.mrf.mxu0
        %v3193 = vadd.f32 0.0, %v3192
        %v3194 = vpop.f32.mrf.mxu0
        %3195 = vmatprep.mubr.bf16.mxu0 0
        %3196 = vmatmul.mubr.bf16.gmra.mxu0 %v3121
        %v3197 = vpop.f32.mrf.mxu0
        %v3198 = vadd.f32 0.0, %v3197
        %v3199 = vpop.f32.mrf.mxu0
        %v3200 = vpop.f32.mrf.mxu0
        %v3201 = vadd.f32 0.0, %v3200
        %v3202 = vpop.f32.mrf.mxu0
        %3203 = vdwg.mxu0
        %v3204 = vadd.f32 %v3058, %v3158
        %v3205 = vadd.f32 %v3059, %v3161
        %v3206 = vadd.f32 %v3060, %v3166
        %v3207 = vadd.f32 %v3061, %v3169
        %v3208 = vadd.f32 %v3062, %v3174
        %v3209 = vadd.f32 %v3063, %v3177
        %v3210 = vadd.f32 %v3064, %v3182
        %v3211 = vadd.f32 %v3065, %v3185
        %v3212 = vadd.f32 %v3066, %v3190
        %v3213 = vadd.f32 %v3067, %v3193
        %v3214 = vadd.f32 %v3068, %v3198
        %v3215 = vadd.f32 %v3069, %v3201
        %v3216 = vld [vmem:[#allocation2 + $0x1c] sm:$0xff]
        %v3217 = vld [vmem:[#allocation2 + $0x24] sm:$0xff]
        %v3218 = vld [vmem:[#allocation2 + $0x2c] sm:$0xff]
        %v3219 = vld [vmem:[#allocation2 + $0x34] sm:$0xff]
        %v3220 = vld [vmem:[#allocation2 + $0x3c] sm:$0xff]
        %v3221 = vld [vmem:[#allocation2 + $0x44] sm:$0xff]
        %v3222 = vld [vmem:[#allocation2 + $0x4c] sm:$0xff]
        %v3223 = vld [vmem:[#allocation2 + $0x54] sm:$0xff]
        %v3224 = vld [vmem:[#allocation2 + $0x5c] sm:$0xff]
        %v3225 = vld [vmem:[#allocation2 + $0x64] sm:$0xff]
        %v3226 = vld [vmem:[#allocation2 + $0x6c] sm:$0xff]
        %v3227 = vld [vmem:[#allocation2 + $0x74] sm:$0xf]
        %v3228 = vpack.c.bf16 %v3217, %v3216
        %v3229 = vpack.c.bf16 %v3219, %v3218
        %v3230 = vpack.c.bf16 %v3221, %v3220
        %v3231 = vpack.c.bf16 %v3223, %v3222
        %v3232 = vpack.c.bf16 %v3225, %v3224
        %v3233 = vpack.c.bf16 %v3227, %v3226
        %s3234 = scalar_lea.vmem %s3, 224
        %v3235 = vld [vmem:[%s3234] sm:$0xf]
        %v3236 = vld [vmem:[%s3234 + $0x4] sm:$0xf]
        %v3237 = vld [vmem:[%s3234 + $0x8] sm:$0xf]
        %v3238 = vld [vmem:[%s3234 + $0xc] sm:$0xf]
        %v3243 = vunpack.c.l.b16 %v3235
        %v3244 = vunpack.c.l.b16 %v3236
        %v3245 = vunpack.c.l.b16 %v3237
        %v3246 = vunpack.c.l.b16 %v3238
        %v3247 = vpack.c.b16 %v3244, %v3243
        %v3248 = vpack.c.b16 %v3246, %v3245
        %v3252 = vsel %vm361, %v3228, 0
        %v3255 = vsel %vm361, %v3229, 0
        %v3258 = vsel %vm361, %v3230, 0
        %v3261 = vsel %vm361, %v3231, 0
        %v3264 = vsel %vm361, %v3232, 0
        %v3267 = vsel %vm361, %v3233, 0
        %3269 = vmatprep.subr.bf16.mxu0 0
        %3270 = vmatpush1.bf16.msra.mxu0 0
        %3271 = vmatprep.subr.bf16.mxu0 0
        %3272 = vmatpush1.bf16.msra.mxu0 0
        %3273 = vmatprep.subr.bf16.mxu0 0
        %3274 = vmatpush1.bf16.msra.mxu0 0
        %3275 = vmatprep.subr.bf16.mxu0 0
        %3276 = vmatpush1.bf16.msra.mxu0 0
        %3277 = vmatprep.subr.bf16.mxu0 0
        %3278 = vmatpush1.bf16.msra.mxu0 0
        %3279 = vmatprep.subr.bf16.mxu0 0
        %3280 = vmatpush1.bf16.msra.mxu0 0
        %3281 = vmatprep.subr.bf16.mxu0 0
        %3282 = vmatpush1.bf16.msra.mxu0 %v3248
        %3283 = vmatprep.subr.bf16.mxu0 0
        %3284 = vmatpush1.bf16.msra.mxu0 %v3247
        %3285 = vmatprep.subr.bf16.mxu0 0
        %3286 = vmatpush2.bf16.msra.mxu0 0
        %3287 = vmatprep.subr.bf16.mxu0 0
        %3288 = vmatpush2.bf16.msra.mxu0 0
        %3289 = vmatprep.subr.bf16.mxu0 0
        %3290 = vmatpush2.bf16.msra.mxu0 0
        %3291 = vmatprep.subr.bf16.mxu0 0
        %3292 = vmatpush2.bf16.msra.mxu0 0
        %3293 = vmatprep.subr.bf16.mxu0 0
        %3294 = vmatpush2.bf16.msra.mxu0 0
        %3295 = vmatprep.subr.bf16.mxu0 0
        %3296 = vmatpush2.bf16.msra.mxu0 0
        %3297 = vmatprep.subr.bf16.mxu0 0
        %3298 = vmatpush2.bf16.msra.mxu0 0
        %3299 = vmatprep.subr.bf16.mxu0 0
        %3300 = vmatpush2.bf16.msra.mxu0 0
        %3301 = vmatprep.mubr.bf16.mxu0 0
        %3302 = vmatmul.mubr.bf16.gmra.mxu0 %v3252
        %v3303 = vpop.f32.mrf.mxu0
        %v3304 = vadd.f32 0.0, %v3303
        %v3305 = vpop.f32.mrf.mxu0
        %v3306 = vpop.f32.mrf.mxu0
        %v3307 = vadd.f32 0.0, %v3306
        %v3308 = vpop.f32.mrf.mxu0
        %3309 = vmatprep.mubr.bf16.mxu0 0
        %3310 = vmatmul.mubr.bf16.gmra.mxu0 %v3255
        %v3311 = vpop.f32.mrf.mxu0
        %v3312 = vadd.f32 0.0, %v3311
        %v3313 = vpop.f32.mrf.mxu0
        %v3314 = vpop.f32.mrf.mxu0
        %v3315 = vadd.f32 0.0, %v3314
        %v3316 = vpop.f32.mrf.mxu0
        %3317 = vmatprep.mubr.bf16.mxu0 0
        %3318 = vmatmul.mubr.bf16.gmra.mxu0 %v3258
        %v3319 = vpop.f32.mrf.mxu0
        %v3320 = vadd.f32 0.0, %v3319
        %v3321 = vpop.f32.mrf.mxu0
        %v3322 = vpop.f32.mrf.mxu0
        %v3323 = vadd.f32 0.0, %v3322
        %v3324 = vpop.f32.mrf.mxu0
        %3325 = vmatprep.mubr.bf16.mxu0 0
        %3326 = vmatmul.mubr.bf16.gmra.mxu0 %v3261
        %v3327 = vpop.f32.mrf.mxu0
        %v3328 = vadd.f32 0.0, %v3327
        %v3329 = vpop.f32.mrf.mxu0
        %v3330 = vpop.f32.mrf.mxu0
        %v3331 = vadd.f32 0.0, %v3330
        %v3332 = vpop.f32.mrf.mxu0
        %3333 = vmatprep.mubr.bf16.mxu0 0
        %3334 = vmatmul.mubr.bf16.gmra.mxu0 %v3264
        %v3335 = vpop.f32.mrf.mxu0
        %v3336 = vadd.f32 0.0, %v3335
        %v3337 = vpop.f32.mrf.mxu0
        %v3338 = vpop.f32.mrf.mxu0
        %v3339 = vadd.f32 0.0, %v3338
        %v3340 = vpop.f32.mrf.mxu0
        %3341 = vmatprep.mubr.bf16.mxu0 0
        %3342 = vmatmul.mubr.bf16.gmra.mxu0 %v3267
        %v3343 = vpop.f32.mrf.mxu0
        %v3344 = vadd.f32 0.0, %v3343
        %v3345 = vpop.f32.mrf.mxu0
        %v3346 = vpop.f32.mrf.mxu0
        %v3347 = vadd.f32 0.0, %v3346
        %v3348 = vpop.f32.mrf.mxu0
        %3349 = vdwg.mxu0
        %v3350 = vadd.f32 %v3204, %v3304
        %v3351 = vadd.f32 %v3205, %v3307
        %v3352 = vadd.f32 %v3206, %v3312
        %v3353 = vadd.f32 %v3207, %v3315
        %v3354 = vadd.f32 %v3208, %v3320
        %v3355 = vadd.f32 %v3209, %v3323
        %v3356 = vadd.f32 %v3210, %v3328
        %v3357 = vadd.f32 %v3211, %v3331
        %v3358 = vadd.f32 %v3212, %v3336
        %v3359 = vadd.f32 %v3213, %v3339
        %v3360 = vadd.f32 %v3214, %v3344
        %v3361 = vadd.f32 %v3215, %v3347
        %v3362 = vld [vmem:[#allocation2 + $0x24] sm:$0xff]
        %v3363 = vld [vmem:[#allocation2 + $0x2c] sm:$0xff]
        %v3364 = vld [vmem:[#allocation2 + $0x34] sm:$0xff]
        %v3365 = vld [vmem:[#allocation2 + $0x3c] sm:$0xff]
        %v3366 = vld [vmem:[#allocation2 + $0x44] sm:$0xff]
        %v3367 = vld [vmem:[#allocation2 + $0x4c] sm:$0xff]
        %v3368 = vld [vmem:[#allocation2 + $0x54] sm:$0xff]
        %v3369 = vld [vmem:[#allocation2 + $0x5c] sm:$0xff]
        %v3370 = vld [vmem:[#allocation2 + $0x64] sm:$0xff]
        %v3371 = vld [vmem:[#allocation2 + $0x6c] sm:$0xff]
        %v3372 = vld [vmem:[#allocation2 + $0x74] sm:$0xff]
        %v3373 = vld [vmem:[#allocation2 + $0x7c] sm:$0xf]
        %v3374 = vpack.c.bf16 %v3363, %v3362
        %v3375 = vpack.c.bf16 %v3365, %v3364
        %v3376 = vpack.c.bf16 %v3367, %v3366
        %v3377 = vpack.c.bf16 %v3369, %v3368
        %v3378 = vpack.c.bf16 %v3371, %v3370
        %v3379 = vpack.c.bf16 %v3373, %v3372
        %s3380 = scalar_lea.vmem %s3, 240
        %v3381 = vld [vmem:[%s3380] sm:$0xf]
        %v3382 = vld [vmem:[%s3380 + $0x4] sm:$0xf]
        %v3383 = vld [vmem:[%s3380 + $0x8] sm:$0xf]
        %v3384 = vld [vmem:[%s3380 + $0xc] sm:$0xf]
        %v3389 = vunpack.c.l.b16 %v3381
        %v3390 = vunpack.c.l.b16 %v3382
        %v3391 = vunpack.c.l.b16 %v3383
        %v3392 = vunpack.c.l.b16 %v3384
        %v3393 = vpack.c.b16 %v3390, %v3389
        %v3394 = vpack.c.b16 %v3392, %v3391
        %v3398 = vsel %vm361, %v3374, 0
        %v3401 = vsel %vm361, %v3375, 0
        %v3404 = vsel %vm361, %v3376, 0
        %v3407 = vsel %vm361, %v3377, 0
        %v3410 = vsel %vm361, %v3378, 0
        %v3413 = vsel %vm361, %v3379, 0
        %3415 = vmatprep.subr.bf16.mxu0 0
        %3416 = vmatpush1.bf16.msra.mxu0 0
        %3417 = vmatprep.subr.bf16.mxu0 0
        %3418 = vmatpush1.bf16.msra.mxu0 0
        %3419 = vmatprep.subr.bf16.mxu0 0
        %3420 = vmatpush1.bf16.msra.mxu0 0
        %3421 = vmatprep.subr.bf16.mxu0 0
        %3422 = vmatpush1.bf16.msra.mxu0 0
        %3423 = vmatprep.subr.bf16.mxu0 0
        %3424 = vmatpush1.bf16.msra.mxu0 0
        %3425 = vmatprep.subr.bf16.mxu0 0
        %3426 = vmatpush1.bf16.msra.mxu0 0
        %3427 = vmatprep.subr.bf16.mxu0 0
        %3428 = vmatpush1.bf16.msra.mxu0 %v3394
        %3429 = vmatprep.subr.bf16.mxu0 0
        %3430 = vmatpush1.bf16.msra.mxu0 %v3393
        %3431 = vmatprep.subr.bf16.mxu0 0
        %3432 = vmatpush2.bf16.msra.mxu0 0
        %3433 = vmatprep.subr.bf16.mxu0 0
        %3434 = vmatpush2.bf16.msra.mxu0 0
        %3435 = vmatprep.subr.bf16.mxu0 0
        %3436 = vmatpush2.bf16.msra.mxu0 0
        %3437 = vmatprep.subr.bf16.mxu0 0
        %3438 = vmatpush2.bf16.msra.mxu0 0
        %3439 = vmatprep.subr.bf16.mxu0 0
        %3440 = vmatpush2.bf16.msra.mxu0 0
        %3441 = vmatprep.subr.bf16.mxu0 0
        %3442 = vmatpush2.bf16.msra.mxu0 0
        %3443 = vmatprep.subr.bf16.mxu0 0
        %3444 = vmatpush2.bf16.msra.mxu0 0
        %3445 = vmatprep.subr.bf16.mxu0 0
        %3446 = vmatpush2.bf16.msra.mxu0 0
        %3447 = vmatprep.mubr.bf16.mxu0 0
        %3448 = vmatmul.mubr.bf16.gmra.mxu0 %v3398
        %v3449 = vpop.f32.mrf.mxu0
        %v3450 = vadd.f32 0.0, %v3449
        %v3451 = vpop.f32.mrf.mxu0
        %v3452 = vpop.f32.mrf.mxu0
        %v3453 = vadd.f32 0.0, %v3452
        %v3454 = vpop.f32.mrf.mxu0
        %3455 = vmatprep.mubr.bf16.mxu0 0
        %3456 = vmatmul.mubr.bf16.gmra.mxu0 %v3401
        %v3457 = vpop.f32.mrf.mxu0
        %v3458 = vadd.f32 0.0, %v3457
        %v3459 = vpop.f32.mrf.mxu0
        %v3460 = vpop.f32.mrf.mxu0
        %v3461 = vadd.f32 0.0, %v3460
        %v3462 = vpop.f32.mrf.mxu0
        %3463 = vmatprep.mubr.bf16.mxu0 0
        %3464 = vmatmul.mubr.bf16.gmra.mxu0 %v3404
        %v3465 = vpop.f32.mrf.mxu0
        %v3466 = vadd.f32 0.0, %v3465
        %v3467 = vpop.f32.mrf.mxu0
        %v3468 = vpop.f32.mrf.mxu0
        %v3469 = vadd.f32 0.0, %v3468
        %v3470 = vpop.f32.mrf.mxu0
        %3471 = vmatprep.mubr.bf16.mxu0 0
        %3472 = vmatmul.mubr.bf16.gmra.mxu0 %v3407
        %v3473 = vpop.f32.mrf.mxu0
        %v3474 = vadd.f32 0.0, %v3473
        %v3475 = vpop.f32.mrf.mxu0
        %v3476 = vpop.f32.mrf.mxu0
        %v3477 = vadd.f32 0.0, %v3476
        %v3478 = vpop.f32.mrf.mxu0
        %3479 = vmatprep.mubr.bf16.mxu0 0
        %3480 = vmatmul.mubr.bf16.gmra.mxu0 %v3410
        %v3481 = vpop.f32.mrf.mxu0
        %v3482 = vadd.f32 0.0, %v3481
        %v3483 = vpop.f32.mrf.mxu0
        %v3484 = vpop.f32.mrf.mxu0
        %v3485 = vadd.f32 0.0, %v3484
        %v3486 = vpop.f32.mrf.mxu0
        %3487 = vmatprep.mubr.bf16.mxu0 0
        %3488 = vmatmul.mubr.bf16.gmra.mxu0 %v3413
        %v3489 = vpop.f32.mrf.mxu0
        %v3490 = vadd.f32 0.0, %v3489
        %v3491 = vpop.f32.mrf.mxu0
        %v3492 = vpop.f32.mrf.mxu0
        %v3493 = vadd.f32 0.0, %v3492
        %v3494 = vpop.f32.mrf.mxu0
        %3495 = vdwg.mxu0
        %v3496 = vadd.f32 %v3350, %v3450
        %v3497 = vadd.f32 %v3351, %v3453
        %v3498 = vadd.f32 %v3352, %v3458
        %v3499 = vadd.f32 %v3353, %v3461
        %v3500 = vadd.f32 %v3354, %v3466
        %v3501 = vadd.f32 %v3355, %v3469
        %v3502 = vadd.f32 %v3356, %v3474
        %v3503 = vadd.f32 %v3357, %v3477
        %v3504 = vadd.f32 %v3358, %v3482
        %v3505 = vadd.f32 %v3359, %v3485
        %v3506 = vadd.f32 %v3360, %v3490
        %v3507 = vadd.f32 %v3361, %v3493
        %v3508 = vld [vmem:[#allocation2 + $0x25] sm:$0xff]
        %v3509 = vld [vmem:[#allocation2 + $0x2d] sm:$0xff]
        %v3510 = vld [vmem:[#allocation2 + $0x35] sm:$0xff]
        %v3511 = vld [vmem:[#allocation2 + $0x3d] sm:$0xff]
        %v3512 = vld [vmem:[#allocation2 + $0x45] sm:$0xff]
        %v3513 = vld [vmem:[#allocation2 + $0x4d] sm:$0xff]
        %v3514 = vld [vmem:[#allocation2 + $0x55] sm:$0xff]
        %v3515 = vld [vmem:[#allocation2 + $0x5d] sm:$0xff]
        %v3516 = vld [vmem:[#allocation2 + $0x65] sm:$0xff]
        %v3517 = vld [vmem:[#allocation2 + $0x6d] sm:$0xff]
        %v3518 = vld [vmem:[#allocation2 + $0x75] sm:$0xff]
        %v3519 = vld [vmem:[#allocation2 + $0x7d] sm:$0xf]
        %v3520 = vpack.c.bf16 %v3509, %v3508
        %v3521 = vpack.c.bf16 %v3511, %v3510
        %v3522 = vpack.c.bf16 %v3513, %v3512
        %v3523 = vpack.c.bf16 %v3515, %v3514
        %v3524 = vpack.c.bf16 %v3517, %v3516
        %v3525 = vpack.c.bf16 %v3519, %v3518
        %s3526 = scalar_lea.vmem %s3, 256
        %v3527 = vld [vmem:[%s3526] sm:$0xf]
        %v3528 = vld [vmem:[%s3526 + $0x4] sm:$0xf]
        %v3529 = vld [vmem:[%s3526 + $0x8] sm:$0xf]
        %v3530 = vld [vmem:[%s3526 + $0xc] sm:$0xf]
        %v3535 = vunpack.c.l.b16 %v3527
        %v3536 = vunpack.c.l.b16 %v3528
        %v3537 = vunpack.c.l.b16 %v3529
        %v3538 = vunpack.c.l.b16 %v3530
        %v3539 = vpack.c.b16 %v3536, %v3535
        %v3540 = vpack.c.b16 %v3538, %v3537
        %v3544 = vsel %vm361, %v3520, 0
        %v3547 = vsel %vm361, %v3521, 0
        %v3550 = vsel %vm361, %v3522, 0
        %v3553 = vsel %vm361, %v3523, 0
        %v3556 = vsel %vm361, %v3524, 0
        %v3559 = vsel %vm361, %v3525, 0
        %3561 = vmatprep.subr.bf16.mxu0 0
        %3562 = vmatpush1.bf16.msra.mxu0 0
        %3563 = vmatprep.subr.bf16.mxu0 0
        %3564 = vmatpush1.bf16.msra.mxu0 0
        %3565 = vmatprep.subr.bf16.mxu0 0
        %3566 = vmatpush1.bf16.msra.mxu0 0
        %3567 = vmatprep.subr.bf16.mxu0 0
        %3568 = vmatpush1.bf16.msra.mxu0 0
        %3569 = vmatprep.subr.bf16.mxu0 0
        %3570 = vmatpush1.bf16.msra.mxu0 0
        %3571 = vmatprep.subr.bf16.mxu0 0
        %3572 = vmatpush1.bf16.msra.mxu0 0
        %3573 = vmatprep.subr.bf16.mxu0 0
        %3574 = vmatpush1.bf16.msra.mxu0 %v3540
        %3575 = vmatprep.subr.bf16.mxu0 0
        %3576 = vmatpush1.bf16.msra.mxu0 %v3539
        %3577 = vmatprep.subr.bf16.mxu0 0
        %3578 = vmatpush2.bf16.msra.mxu0 0
        %3579 = vmatprep.subr.bf16.mxu0 0
        %3580 = vmatpush2.bf16.msra.mxu0 0
        %3581 = vmatprep.subr.bf16.mxu0 0
        %3582 = vmatpush2.bf16.msra.mxu0 0
        %3583 = vmatprep.subr.bf16.mxu0 0
        %3584 = vmatpush2.bf16.msra.mxu0 0
        %3585 = vmatprep.subr.bf16.mxu0 0
        %3586 = vmatpush2.bf16.msra.mxu0 0
        %3587 = vmatprep.subr.bf16.mxu0 0
        %3588 = vmatpush2.bf16.msra.mxu0 0
        %3589 = vmatprep.subr.bf16.mxu0 0
        %3590 = vmatpush2.bf16.msra.mxu0 0
        %3591 = vmatprep.subr.bf16.mxu0 0
        %3592 = vmatpush2.bf16.msra.mxu0 0
        %3593 = vmatprep.mubr.bf16.mxu0 0
        %3594 = vmatmul.mubr.bf16.gmra.mxu0 %v3544
        %v3595 = vpop.f32.mrf.mxu0
        %v3596 = vadd.f32 0.0, %v3595
        %v3597 = vpop.f32.mrf.mxu0
        %v3598 = vpop.f32.mrf.mxu0
        %v3599 = vadd.f32 0.0, %v3598
        %v3600 = vpop.f32.mrf.mxu0
        %3601 = vmatprep.mubr.bf16.mxu0 0
        %3602 = vmatmul.mubr.bf16.gmra.mxu0 %v3547
        %v3603 = vpop.f32.mrf.mxu0
        %v3604 = vadd.f32 0.0, %v3603
        %v3605 = vpop.f32.mrf.mxu0
        %v3606 = vpop.f32.mrf.mxu0
        %v3607 = vadd.f32 0.0, %v3606
        %v3608 = vpop.f32.mrf.mxu0
        %3609 = vmatprep.mubr.bf16.mxu0 0
        %3610 = vmatmul.mubr.bf16.gmra.mxu0 %v3550
        %v3611 = vpop.f32.mrf.mxu0
        %v3612 = vadd.f32 0.0, %v3611
        %v3613 = vpop.f32.mrf.mxu0
        %v3614 = vpop.f32.mrf.mxu0
        %v3615 = vadd.f32 0.0, %v3614
        %v3616 = vpop.f32.mrf.mxu0
        %3617 = vmatprep.mubr.bf16.mxu0 0
        %3618 = vmatmul.mubr.bf16.gmra.mxu0 %v3553
        %v3619 = vpop.f32.mrf.mxu0
        %v3620 = vadd.f32 0.0, %v3619
        %v3621 = vpop.f32.mrf.mxu0
        %v3622 = vpop.f32.mrf.mxu0
        %v3623 = vadd.f32 0.0, %v3622
        %v3624 = vpop.f32.mrf.mxu0
        %3625 = vmatprep.mubr.bf16.mxu0 0
        %3626 = vmatmul.mubr.bf16.gmra.mxu0 %v3556
        %v3627 = vpop.f32.mrf.mxu0
        %v3628 = vadd.f32 0.0, %v3627
        %v3629 = vpop.f32.mrf.mxu0
        %v3630 = vpop.f32.mrf.mxu0
        %v3631 = vadd.f32 0.0, %v3630
        %v3632 = vpop.f32.mrf.mxu0
        %3633 = vmatprep.mubr.bf16.mxu0 0
        %3634 = vmatmul.mubr.bf16.gmra.mxu0 %v3559
        %v3635 = vpop.f32.mrf.mxu0
        %v3636 = vadd.f32 0.0, %v3635
        %v3637 = vpop.f32.mrf.mxu0
        %v3638 = vpop.f32.mrf.mxu0
        %v3639 = vadd.f32 0.0, %v3638
        %v3640 = vpop.f32.mrf.mxu0
        %3641 = vdwg.mxu0
        %v3642 = vadd.f32 %v3496, %v3596
        %v3643 = vadd.f32 %v3497, %v3599
        %v3644 = vadd.f32 %v3498, %v3604
        %v3645 = vadd.f32 %v3499, %v3607
        %v3646 = vadd.f32 %v3500, %v3612
        %v3647 = vadd.f32 %v3501, %v3615
        %v3648 = vadd.f32 %v3502, %v3620
        %v3649 = vadd.f32 %v3503, %v3623
        %v3650 = vadd.f32 %v3504, %v3628
        %v3651 = vadd.f32 %v3505, %v3631
        %v3652 = vadd.f32 %v3506, %v3636
        %v3653 = vadd.f32 %v3507, %v3639
        %v3654 = vld [vmem:[#allocation2 + $0x26] sm:$0xff]
        %v3655 = vld [vmem:[#allocation2 + $0x2e] sm:$0xff]
        %v3656 = vld [vmem:[#allocation2 + $0x36] sm:$0xff]
        %v3657 = vld [vmem:[#allocation2 + $0x3e] sm:$0xff]
        %v3658 = vld [vmem:[#allocation2 + $0x46] sm:$0xff]
        %v3659 = vld [vmem:[#allocation2 + $0x4e] sm:$0xff]
        %v3660 = vld [vmem:[#allocation2 + $0x56] sm:$0xff]
        %v3661 = vld [vmem:[#allocation2 + $0x5e] sm:$0xff]
        %v3662 = vld [vmem:[#allocation2 + $0x66] sm:$0xff]
        %v3663 = vld [vmem:[#allocation2 + $0x6e] sm:$0xff]
        %v3664 = vld [vmem:[#allocation2 + $0x76] sm:$0xff]
        %v3665 = vld [vmem:[#allocation2 + $0x7e] sm:$0xf]
        %v3666 = vpack.c.bf16 %v3655, %v3654
        %v3667 = vpack.c.bf16 %v3657, %v3656
        %v3668 = vpack.c.bf16 %v3659, %v3658
        %v3669 = vpack.c.bf16 %v3661, %v3660
        %v3670 = vpack.c.bf16 %v3663, %v3662
        %v3671 = vpack.c.bf16 %v3665, %v3664
        %s3672 = scalar_lea.vmem %s3, 272
        %v3673 = vld [vmem:[%s3672] sm:$0xf]
        %v3674 = vld [vmem:[%s3672 + $0x4] sm:$0xf]
        %v3675 = vld [vmem:[%s3672 + $0x8] sm:$0xf]
        %v3676 = vld [vmem:[%s3672 + $0xc] sm:$0xf]
        %v3681 = vunpack.c.l.b16 %v3673
        %v3682 = vunpack.c.l.b16 %v3674
        %v3683 = vunpack.c.l.b16 %v3675
        %v3684 = vunpack.c.l.b16 %v3676
        %v3685 = vpack.c.b16 %v3682, %v3681
        %v3686 = vpack.c.b16 %v3684, %v3683
        %v3690 = vsel %vm361, %v3666, 0
        %v3693 = vsel %vm361, %v3667, 0
        %v3696 = vsel %vm361, %v3668, 0
        %v3699 = vsel %vm361, %v3669, 0
        %v3702 = vsel %vm361, %v3670, 0
        %v3705 = vsel %vm361, %v3671, 0
        %3707 = vmatprep.subr.bf16.mxu0 0
        %3708 = vmatpush1.bf16.msra.mxu0 0
        %3709 = vmatprep.subr.bf16.mxu0 0
        %3710 = vmatpush1.bf16.msra.mxu0 0
        %3711 = vmatprep.subr.bf16.mxu0 0
        %3712 = vmatpush1.bf16.msra.mxu0 0
        %3713 = vmatprep.subr.bf16.mxu0 0
        %3714 = vmatpush1.bf16.msra.mxu0 0
        %3715 = vmatprep.subr.bf16.mxu0 0
        %3716 = vmatpush1.bf16.msra.mxu0 0
        %3717 = vmatprep.subr.bf16.mxu0 0
        %3718 = vmatpush1.bf16.msra.mxu0 0
        %3719 = vmatprep.subr.bf16.mxu0 0
        %3720 = vmatpush1.bf16.msra.mxu0 %v3686
        %3721 = vmatprep.subr.bf16.mxu0 0
        %3722 = vmatpush1.bf16.msra.mxu0 %v3685
        %3723 = vmatprep.subr.bf16.mxu0 0
        %3724 = vmatpush2.bf16.msra.mxu0 0
        %3725 = vmatprep.subr.bf16.mxu0 0
        %3726 = vmatpush2.bf16.msra.mxu0 0
        %3727 = vmatprep.subr.bf16.mxu0 0
        %3728 = vmatpush2.bf16.msra.mxu0 0
        %3729 = vmatprep.subr.bf16.mxu0 0
        %3730 = vmatpush2.bf16.msra.mxu0 0
        %3731 = vmatprep.subr.bf16.mxu0 0
        %3732 = vmatpush2.bf16.msra.mxu0 0
        %3733 = vmatprep.subr.bf16.mxu0 0
        %3734 = vmatpush2.bf16.msra.mxu0 0
        %3735 = vmatprep.subr.bf16.mxu0 0
        %3736 = vmatpush2.bf16.msra.mxu0 0
        %3737 = vmatprep.subr.bf16.mxu0 0
        %3738 = vmatpush2.bf16.msra.mxu0 0
        %3739 = vmatprep.mubr.bf16.mxu0 0
        %3740 = vmatmul.mubr.bf16.gmra.mxu0 %v3690
        %v3741 = vpop.f32.mrf.mxu0
        %v3742 = vadd.f32 0.0, %v3741
        %v3743 = vpop.f32.mrf.mxu0
        %v3744 = vpop.f32.mrf.mxu0
        %v3745 = vadd.f32 0.0, %v3744
        %v3746 = vpop.f32.mrf.mxu0
        %3747 = vmatprep.mubr.bf16.mxu0 0
        %3748 = vmatmul.mubr.bf16.gmra.mxu0 %v3693
        %v3749 = vpop.f32.mrf.mxu0
        %v3750 = vadd.f32 0.0, %v3749
        %v3751 = vpop.f32.mrf.mxu0
        %v3752 = vpop.f32.mrf.mxu0
        %v3753 = vadd.f32 0.0, %v3752
        %v3754 = vpop.f32.mrf.mxu0
        %3755 = vmatprep.mubr.bf16.mxu0 0
        %3756 = vmatmul.mubr.bf16.gmra.mxu0 %v3696
        %v3757 = vpop.f32.mrf.mxu0
        %v3758 = vadd.f32 0.0, %v3757
        %v3759 = vpop.f32.mrf.mxu0
        %v3760 = vpop.f32.mrf.mxu0
        %v3761 = vadd.f32 0.0, %v3760
        %v3762 = vpop.f32.mrf.mxu0
        %3763 = vmatprep.mubr.bf16.mxu0 0
        %3764 = vmatmul.mubr.bf16.gmra.mxu0 %v3699
        %v3765 = vpop.f32.mrf.mxu0
        %v3766 = vadd.f32 0.0, %v3765
        %v3767 = vpop.f32.mrf.mxu0
        %v3768 = vpop.f32.mrf.mxu0
        %v3769 = vadd.f32 0.0, %v3768
        %v3770 = vpop.f32.mrf.mxu0
        %3771 = vmatprep.mubr.bf16.mxu0 0
        %3772 = vmatmul.mubr.bf16.gmra.mxu0 %v3702
        %v3773 = vpop.f32.mrf.mxu0
        %v3774 = vadd.f32 0.0, %v3773
        %v3775 = vpop.f32.mrf.mxu0
        %v3776 = vpop.f32.mrf.mxu0
        %v3777 = vadd.f32 0.0, %v3776
        %v3778 = vpop.f32.mrf.mxu0
        %3779 = vmatprep.mubr.bf16.mxu0 0
        %3780 = vmatmul.mubr.bf16.gmra.mxu0 %v3705
        %v3781 = vpop.f32.mrf.mxu0
        %v3782 = vadd.f32 0.0, %v3781
        %v3783 = vpop.f32.mrf.mxu0
        %v3784 = vpop.f32.mrf.mxu0
        %v3785 = vadd.f32 0.0, %v3784
        %v3786 = vpop.f32.mrf.mxu0
        %3787 = vdwg.mxu0
        %v3788 = vadd.f32 %v3642, %v3742
        %v3789 = vadd.f32 %v3643, %v3745
        %v3790 = vadd.f32 %v3644, %v3750
        %v3791 = vadd.f32 %v3645, %v3753
        %v3792 = vadd.f32 %v3646, %v3758
        %v3793 = vadd.f32 %v3647, %v3761
        %v3794 = vadd.f32 %v3648, %v3766
        %v3795 = vadd.f32 %v3649, %v3769
        %v3796 = vadd.f32 %v3650, %v3774
        %v3797 = vadd.f32 %v3651, %v3777
        %v3798 = vadd.f32 %v3652, %v3782
        %v3799 = vadd.f32 %v3653, %v3785
        %v3800 = vld [vmem:[#allocation2 + $0x27] sm:$0xff]
        %v3801 = vld [vmem:[#allocation2 + $0x2f] sm:$0xff]
        %v3802 = vld [vmem:[#allocation2 + $0x37] sm:$0xff]
        %v3803 = vld [vmem:[#allocation2 + $0x3f] sm:$0xff]
        %v3804 = vld [vmem:[#allocation2 + $0x47] sm:$0xff]
        %v3805 = vld [vmem:[#allocation2 + $0x4f] sm:$0xff]
        %v3806 = vld [vmem:[#allocation2 + $0x57] sm:$0xff]
        %v3807 = vld [vmem:[#allocation2 + $0x5f] sm:$0xff]
        %v3808 = vld [vmem:[#allocation2 + $0x67] sm:$0xff]
        %v3809 = vld [vmem:[#allocation2 + $0x6f] sm:$0xff]
        %v3810 = vld [vmem:[#allocation2 + $0x77] sm:$0xff]
        %v3811 = vld [vmem:[#allocation2 + $0x7f] sm:$0xf]
        %v3812 = vpack.c.bf16 %v3801, %v3800
        %v3813 = vpack.c.bf16 %v3803, %v3802
        %v3814 = vpack.c.bf16 %v3805, %v3804
        %v3815 = vpack.c.bf16 %v3807, %v3806
        %v3816 = vpack.c.bf16 %v3809, %v3808
        %v3817 = vpack.c.bf16 %v3811, %v3810
        %s3818 = scalar_lea.vmem %s3, 288
        %v3819 = vld [vmem:[%s3818] sm:$0xf]
        %v3820 = vld [vmem:[%s3818 + $0x4] sm:$0xf]
        %v3821 = vld [vmem:[%s3818 + $0x8] sm:$0xf]
        %v3822 = vld [vmem:[%s3818 + $0xc] sm:$0xf]
        %v3827 = vunpack.c.l.b16 %v3819
        %v3828 = vunpack.c.l.b16 %v3820
        %v3829 = vunpack.c.l.b16 %v3821
        %v3830 = vunpack.c.l.b16 %v3822
        %v3831 = vpack.c.b16 %v3828, %v3827
        %v3832 = vpack.c.b16 %v3830, %v3829
        %v3836 = vsel %vm361, %v3812, 0
        %v3839 = vsel %vm361, %v3813, 0
        %v3842 = vsel %vm361, %v3814, 0
        %v3845 = vsel %vm361, %v3815, 0
        %v3848 = vsel %vm361, %v3816, 0
        %v3851 = vsel %vm361, %v3817, 0
        %3853 = vmatprep.subr.bf16.mxu0 0
        %3854 = vmatpush1.bf16.msra.mxu0 0
        %3855 = vmatprep.subr.bf16.mxu0 0
        %3856 = vmatpush1.bf16.msra.mxu0 0
        %3857 = vmatprep.subr.bf16.mxu0 0
        %3858 = vmatpush1.bf16.msra.mxu0 0
        %3859 = vmatprep.subr.bf16.mxu0 0
        %3860 = vmatpush1.bf16.msra.mxu0 0
        %3861 = vmatprep.subr.bf16.mxu0 0
        %3862 = vmatpush1.bf16.msra.mxu0 0
        %3863 = vmatprep.subr.bf16.mxu0 0
        %3864 = vmatpush1.bf16.msra.mxu0 0
        %3865 = vmatprep.subr.bf16.mxu0 0
        %3866 = vmatpush1.bf16.msra.mxu0 %v3832
        %3867 = vmatprep.subr.bf16.mxu0 0
        %3868 = vmatpush1.bf16.msra.mxu0 %v3831
        %3869 = vmatprep.subr.bf16.mxu0 0
        %3870 = vmatpush2.bf16.msra.mxu0 0
        %3871 = vmatprep.subr.bf16.mxu0 0
        %3872 = vmatpush2.bf16.msra.mxu0 0
        %3873 = vmatprep.subr.bf16.mxu0 0
        %3874 = vmatpush2.bf16.msra.mxu0 0
        %3875 = vmatprep.subr.bf16.mxu0 0
        %3876 = vmatpush2.bf16.msra.mxu0 0
        %3877 = vmatprep.subr.bf16.mxu0 0
        %3878 = vmatpush2.bf16.msra.mxu0 0
        %3879 = vmatprep.subr.bf16.mxu0 0
        %3880 = vmatpush2.bf16.msra.mxu0 0
        %3881 = vmatprep.subr.bf16.mxu0 0
        %3882 = vmatpush2.bf16.msra.mxu0 0
        %3883 = vmatprep.subr.bf16.mxu0 0
        %3884 = vmatpush2.bf16.msra.mxu0 0
        %3885 = vmatprep.mubr.bf16.mxu0 0
        %3886 = vmatmul.mubr.bf16.gmra.mxu0 %v3836
        %v3887 = vpop.f32.mrf.mxu0
        %v3888 = vadd.f32 0.0, %v3887
        %v3889 = vpop.f32.mrf.mxu0
        %v3890 = vpop.f32.mrf.mxu0
        %v3891 = vadd.f32 0.0, %v3890
        %v3892 = vpop.f32.mrf.mxu0
        %3893 = vmatprep.mubr.bf16.mxu0 0
        %3894 = vmatmul.mubr.bf16.gmra.mxu0 %v3839
        %v3895 = vpop.f32.mrf.mxu0
        %v3896 = vadd.f32 0.0, %v3895
        %v3897 = vpop.f32.mrf.mxu0
        %v3898 = vpop.f32.mrf.mxu0
        %v3899 = vadd.f32 0.0, %v3898
        %v3900 = vpop.f32.mrf.mxu0
        %3901 = vmatprep.mubr.bf16.mxu0 0
        %3902 = vmatmul.mubr.bf16.gmra.mxu0 %v3842
        %v3903 = vpop.f32.mrf.mxu0
        %v3904 = vadd.f32 0.0, %v3903
        %v3905 = vpop.f32.mrf.mxu0
        %v3906 = vpop.f32.mrf.mxu0
        %v3907 = vadd.f32 0.0, %v3906
        %v3908 = vpop.f32.mrf.mxu0
        %3909 = vmatprep.mubr.bf16.mxu0 0
        %3910 = vmatmul.mubr.bf16.gmra.mxu0 %v3845
        %v3911 = vpop.f32.mrf.mxu0
        %v3912 = vadd.f32 0.0, %v3911
        %v3913 = vpop.f32.mrf.mxu0
        %v3914 = vpop.f32.mrf.mxu0
        %v3915 = vadd.f32 0.0, %v3914
        %v3916 = vpop.f32.mrf.mxu0
        %3917 = vmatprep.mubr.bf16.mxu0 0
        %3918 = vmatmul.mubr.bf16.gmra.mxu0 %v3848
        %v3919 = vpop.f32.mrf.mxu0
        %v3920 = vadd.f32 0.0, %v3919
        %v3921 = vpop.f32.mrf.mxu0
        %v3922 = vpop.f32.mrf.mxu0
        %v3923 = vadd.f32 0.0, %v3922
        %v3924 = vpop.f32.mrf.mxu0
        %3925 = vmatprep.mubr.bf16.mxu0 0
        %3926 = vmatmul.mubr.bf16.gmra.mxu0 %v3851
        %v3927 = vpop.f32.mrf.mxu0
        %v3928 = vadd.f32 0.0, %v3927
        %v3929 = vpop.f32.mrf.mxu0
        %v3930 = vpop.f32.mrf.mxu0
        %v3931 = vadd.f32 0.0, %v3930
        %v3932 = vpop.f32.mrf.mxu0
        %3933 = vdwg.mxu0
        %v3934 = vadd.f32 %v3788, %v3888
        %v3935 = vadd.f32 %v3789, %v3891
        %v3936 = vadd.f32 %v3790, %v3896
        %v3937 = vadd.f32 %v3791, %v3899
        %v3938 = vadd.f32 %v3792, %v3904
        %v3939 = vadd.f32 %v3793, %v3907
        %v3940 = vadd.f32 %v3794, %v3912
        %v3941 = vadd.f32 %v3795, %v3915
        %v3942 = vadd.f32 %v3796, %v3920
        %v3943 = vadd.f32 %v3797, %v3923
        %v3944 = vadd.f32 %v3798, %v3928
        %v3945 = vadd.f32 %v3799, %v3931
        %v3946 = vld [vmem:[#allocation2 + $0x28] sm:$0xff]
        %v3947 = vld [vmem:[#allocation2 + $0x30] sm:$0xff]
        %v3948 = vld [vmem:[#allocation2 + $0x38] sm:$0xff]
        %v3949 = vld [vmem:[#allocation2 + $0x40] sm:$0xff]
        %v3950 = vld [vmem:[#allocation2 + $0x48] sm:$0xff]
        %v3951 = vld [vmem:[#allocation2 + $0x50] sm:$0xff]
        %v3952 = vld [vmem:[#allocation2 + $0x58] sm:$0xff]
        %v3953 = vld [vmem:[#allocation2 + $0x60] sm:$0xff]
        %v3954 = vld [vmem:[#allocation2 + $0x68] sm:$0xff]
        %v3955 = vld [vmem:[#allocation2 + $0x70] sm:$0xff]
        %v3956 = vld [vmem:[#allocation2 + $0x78] sm:$0xff]
        %v3957 = vld [vmem:[#allocation2 + $0x80] sm:$0xf]
        %v3958 = vpack.c.bf16 %v3947, %v3946
        %v3959 = vpack.c.bf16 %v3949, %v3948
        %v3960 = vpack.c.bf16 %v3951, %v3950
        %v3961 = vpack.c.bf16 %v3953, %v3952
        %v3962 = vpack.c.bf16 %v3955, %v3954
        %v3963 = vpack.c.bf16 %v3957, %v3956
        %s3964 = scalar_lea.vmem %s3, 304
        %v3965 = vld [vmem:[%s3964] sm:$0xf]
        %v3966 = vld [vmem:[%s3964 + $0x4] sm:$0xf]
        %v3967 = vld [vmem:[%s3964 + $0x8] sm:$0xf]
        %v3968 = vld [vmem:[%s3964 + $0xc] sm:$0xf]
        %v3973 = vunpack.c.l.b16 %v3965
        %v3974 = vunpack.c.l.b16 %v3966
        %v3975 = vunpack.c.l.b16 %v3967
        %v3976 = vunpack.c.l.b16 %v3968
        %v3977 = vpack.c.b16 %v3974, %v3973
        %v3978 = vpack.c.b16 %v3976, %v3975
        %v3982 = vsel %vm361, %v3958, 0
        %v3985 = vsel %vm361, %v3959, 0
        %v3988 = vsel %vm361, %v3960, 0
        %v3991 = vsel %vm361, %v3961, 0
        %v3994 = vsel %vm361, %v3962, 0
        %v3997 = vsel %vm361, %v3963, 0
        %3999 = vmatprep.subr.bf16.mxu0 0
        %4000 = vmatpush1.bf16.msra.mxu0 0
        %4001 = vmatprep.subr.bf16.mxu0 0
        %4002 = vmatpush1.bf16.msra.mxu0 0
        %4003 = vmatprep.subr.bf16.mxu0 0
        %4004 = vmatpush1.bf16.msra.mxu0 0
        %4005 = vmatprep.subr.bf16.mxu0 0
        %4006 = vmatpush1.bf16.msra.mxu0 0
        %4007 = vmatprep.subr.bf16.mxu0 0
        %4008 = vmatpush1.bf16.msra.mxu0 0
        %4009 = vmatprep.subr.bf16.mxu0 0
        %4010 = vmatpush1.bf16.msra.mxu0 0
        %4011 = vmatprep.subr.bf16.mxu0 0
        %4012 = vmatpush1.bf16.msra.mxu0 %v3978
        %4013 = vmatprep.subr.bf16.mxu0 0
        %4014 = vmatpush1.bf16.msra.mxu0 %v3977
        %4015 = vmatprep.subr.bf16.mxu0 0
        %4016 = vmatpush2.bf16.msra.mxu0 0
        %4017 = vmatprep.subr.bf16.mxu0 0
        %4018 = vmatpush2.bf16.msra.mxu0 0
        %4019 = vmatprep.subr.bf16.mxu0 0
        %4020 = vmatpush2.bf16.msra.mxu0 0
        %4021 = vmatprep.subr.bf16.mxu0 0
        %4022 = vmatpush2.bf16.msra.mxu0 0
        %4023 = vmatprep.subr.bf16.mxu0 0
        %4024 = vmatpush2.bf16.msra.mxu0 0
        %4025 = vmatprep.subr.bf16.mxu0 0
        %4026 = vmatpush2.bf16.msra.mxu0 0
        %4027 = vmatprep.subr.bf16.mxu0 0
        %4028 = vmatpush2.bf16.msra.mxu0 0
        %4029 = vmatprep.subr.bf16.mxu0 0
        %4030 = vmatpush2.bf16.msra.mxu0 0
        %4031 = vmatprep.mubr.bf16.mxu0 0
        %4032 = vmatmul.mubr.bf16.gmra.mxu0 %v3982
        %v4033 = vpop.f32.mrf.mxu0
        %v4034 = vadd.f32 0.0, %v4033
        %v4035 = vpop.f32.mrf.mxu0
        %v4036 = vpop.f32.mrf.mxu0
        %v4037 = vadd.f32 0.0, %v4036
        %v4038 = vpop.f32.mrf.mxu0
        %4039 = vmatprep.mubr.bf16.mxu0 0
        %4040 = vmatmul.mubr.bf16.gmra.mxu0 %v3985
        %v4041 = vpop.f32.mrf.mxu0
        %v4042 = vadd.f32 0.0, %v4041
        %v4043 = vpop.f32.mrf.mxu0
        %v4044 = vpop.f32.mrf.mxu0
        %v4045 = vadd.f32 0.0, %v4044
        %v4046 = vpop.f32.mrf.mxu0
        %4047 = vmatprep.mubr.bf16.mxu0 0
        %4048 = vmatmul.mubr.bf16.gmra.mxu0 %v3988
        %v4049 = vpop.f32.mrf.mxu0
        %v4050 = vadd.f32 0.0, %v4049
        %v4051 = vpop.f32.mrf.mxu0
        %v4052 = vpop.f32.mrf.mxu0
        %v4053 = vadd.f32 0.0, %v4052
        %v4054 = vpop.f32.mrf.mxu0
        %4055 = vmatprep.mubr.bf16.mxu0 0
        %4056 = vmatmul.mubr.bf16.gmra.mxu0 %v3991
        %v4057 = vpop.f32.mrf.mxu0
        %v4058 = vadd.f32 0.0, %v4057
        %v4059 = vpop.f32.mrf.mxu0
        %v4060 = vpop.f32.mrf.mxu0
        %v4061 = vadd.f32 0.0, %v4060
        %v4062 = vpop.f32.mrf.mxu0
        %4063 = vmatprep.mubr.bf16.mxu0 0
        %4064 = vmatmul.mubr.bf16.gmra.mxu0 %v3994
        %v4065 = vpop.f32.mrf.mxu0
        %v4066 = vadd.f32 0.0, %v4065
        %v4067 = vpop.f32.mrf.mxu0
        %v4068 = vpop.f32.mrf.mxu0
        %v4069 = vadd.f32 0.0, %v4068
        %v4070 = vpop.f32.mrf.mxu0
        %4071 = vmatprep.mubr.bf16.mxu0 0
        %4072 = vmatmul.mubr.bf16.gmra.mxu0 %v3997
        %v4073 = vpop.f32.mrf.mxu0
        %v4074 = vadd.f32 0.0, %v4073
        %v4075 = vpop.f32.mrf.mxu0
        %v4076 = vpop.f32.mrf.mxu0
        %v4077 = vadd.f32 0.0, %v4076
        %v4078 = vpop.f32.mrf.mxu0
        %4079 = vdwg.mxu0
        %v4080 = vadd.f32 %v3934, %v4034
        %v4081 = vadd.f32 %v3935, %v4037
        %v4082 = vadd.f32 %v3936, %v4042
        %v4083 = vadd.f32 %v3937, %v4045
        %v4084 = vadd.f32 %v3938, %v4050
        %v4085 = vadd.f32 %v3939, %v4053
        %v4086 = vadd.f32 %v3940, %v4058
        %v4087 = vadd.f32 %v3941, %v4061
        %v4088 = vadd.f32 %v3942, %v4066
        %v4089 = vadd.f32 %v3943, %v4069
        %v4090 = vadd.f32 %v3944, %v4074
        %v4091 = vadd.f32 %v3945, %v4077
        %v4092 = vld [vmem:[#allocation2 + $0x30] sm:$0xff]
        %v4093 = vld [vmem:[#allocation2 + $0x38] sm:$0xff]
        %v4094 = vld [vmem:[#allocation2 + $0x40] sm:$0xff]
        %v4095 = vld [vmem:[#allocation2 + $0x48] sm:$0xff]
        %v4096 = vld [vmem:[#allocation2 + $0x50] sm:$0xff]
        %v4097 = vld [vmem:[#allocation2 + $0x58] sm:$0xff]
        %v4098 = vld [vmem:[#allocation2 + $0x60] sm:$0xff]
        %v4099 = vld [vmem:[#allocation2 + $0x68] sm:$0xff]
        %v4100 = vld [vmem:[#allocation2 + $0x70] sm:$0xff]
        %v4101 = vld [vmem:[#allocation2 + $0x78] sm:$0xff]
        %v4102 = vld [vmem:[#allocation2 + $0x80] sm:$0xff]
        %v4103 = vld [vmem:[#allocation2 + $0x88] sm:$0xf]
        %v4104 = vpack.c.bf16 %v4093, %v4092
        %v4105 = vpack.c.bf16 %v4095, %v4094
        %v4106 = vpack.c.bf16 %v4097, %v4096
        %v4107 = vpack.c.bf16 %v4099, %v4098
        %v4108 = vpack.c.bf16 %v4101, %v4100
        %v4109 = vpack.c.bf16 %v4103, %v4102
        %s4110 = scalar_lea.vmem %s3, 320
        %v4111 = vld [vmem:[%s4110] sm:$0xf]
        %v4112 = vld [vmem:[%s4110 + $0x4] sm:$0xf]
        %v4113 = vld [vmem:[%s4110 + $0x8] sm:$0xf]
        %v4114 = vld [vmem:[%s4110 + $0xc] sm:$0xf]
        %v4119 = vunpack.c.l.b16 %v4111
        %v4120 = vunpack.c.l.b16 %v4112
        %v4121 = vunpack.c.l.b16 %v4113
        %v4122 = vunpack.c.l.b16 %v4114
        %v4123 = vpack.c.b16 %v4120, %v4119
        %v4124 = vpack.c.b16 %v4122, %v4121
        %v4128 = vsel %vm361, %v4104, 0
        %v4131 = vsel %vm361, %v4105, 0
        %v4134 = vsel %vm361, %v4106, 0
        %v4137 = vsel %vm361, %v4107, 0
        %v4140 = vsel %vm361, %v4108, 0
        %v4143 = vsel %vm361, %v4109, 0
        %4145 = vmatprep.subr.bf16.mxu0 0
        %4146 = vmatpush1.bf16.msra.mxu0 0
        %4147 = vmatprep.subr.bf16.mxu0 0
        %4148 = vmatpush1.bf16.msra.mxu0 0
        %4149 = vmatprep.subr.bf16.mxu0 0
        %4150 = vmatpush1.bf16.msra.mxu0 0
        %4151 = vmatprep.subr.bf16.mxu0 0
        %4152 = vmatpush1.bf16.msra.mxu0 0
        %4153 = vmatprep.subr.bf16.mxu0 0
        %4154 = vmatpush1.bf16.msra.mxu0 0
        %4155 = vmatprep.subr.bf16.mxu0 0
        %4156 = vmatpush1.bf16.msra.mxu0 0
        %4157 = vmatprep.subr.bf16.mxu0 0
        %4158 = vmatpush1.bf16.msra.mxu0 %v4124
        %4159 = vmatprep.subr.bf16.mxu0 0
        %4160 = vmatpush1.bf16.msra.mxu0 %v4123
        %4161 = vmatprep.subr.bf16.mxu0 0
        %4162 = vmatpush2.bf16.msra.mxu0 0
        %4163 = vmatprep.subr.bf16.mxu0 0
        %4164 = vmatpush2.bf16.msra.mxu0 0
        %4165 = vmatprep.subr.bf16.mxu0 0
        %4166 = vmatpush2.bf16.msra.mxu0 0
        %4167 = vmatprep.subr.bf16.mxu0 0
        %4168 = vmatpush2.bf16.msra.mxu0 0
        %4169 = vmatprep.subr.bf16.mxu0 0
        %4170 = vmatpush2.bf16.msra.mxu0 0
        %4171 = vmatprep.subr.bf16.mxu0 0
        %4172 = vmatpush2.bf16.msra.mxu0 0
        %4173 = vmatprep.subr.bf16.mxu0 0
        %4174 = vmatpush2.bf16.msra.mxu0 0
        %4175 = vmatprep.subr.bf16.mxu0 0
        %4176 = vmatpush2.bf16.msra.mxu0 0
        %4177 = vmatprep.mubr.bf16.mxu0 0
        %4178 = vmatmul.mubr.bf16.gmra.mxu0 %v4128
        %v4179 = vpop.f32.mrf.mxu0
        %v4180 = vadd.f32 0.0, %v4179
        %v4181 = vpop.f32.mrf.mxu0
        %v4182 = vpop.f32.mrf.mxu0
        %v4183 = vadd.f32 0.0, %v4182
        %v4184 = vpop.f32.mrf.mxu0
        %4185 = vmatprep.mubr.bf16.mxu0 0
        %4186 = vmatmul.mubr.bf16.gmra.mxu0 %v4131
        %v4187 = vpop.f32.mrf.mxu0
        %v4188 = vadd.f32 0.0, %v4187
        %v4189 = vpop.f32.mrf.mxu0
        %v4190 = vpop.f32.mrf.mxu0
        %v4191 = vadd.f32 0.0, %v4190
        %v4192 = vpop.f32.mrf.mxu0
        %4193 = vmatprep.mubr.bf16.mxu0 0
        %4194 = vmatmul.mubr.bf16.gmra.mxu0 %v4134
        %v4195 = vpop.f32.mrf.mxu0
        %v4196 = vadd.f32 0.0, %v4195
        %v4197 = vpop.f32.mrf.mxu0
        %v4198 = vpop.f32.mrf.mxu0
        %v4199 = vadd.f32 0.0, %v4198
        %v4200 = vpop.f32.mrf.mxu0
        %4201 = vmatprep.mubr.bf16.mxu0 0
        %4202 = vmatmul.mubr.bf16.gmra.mxu0 %v4137
        %v4203 = vpop.f32.mrf.mxu0
        %v4204 = vadd.f32 0.0, %v4203
        %v4205 = vpop.f32.mrf.mxu0
        %v4206 = vpop.f32.mrf.mxu0
        %v4207 = vadd.f32 0.0, %v4206
        %v4208 = vpop.f32.mrf.mxu0
        %4209 = vmatprep.mubr.bf16.mxu0 0
        %4210 = vmatmul.mubr.bf16.gmra.mxu0 %v4140
        %v4211 = vpop.f32.mrf.mxu0
        %v4212 = vadd.f32 0.0, %v4211
        %v4213 = vpop.f32.mrf.mxu0
        %v4214 = vpop.f32.mrf.mxu0
        %v4215 = vadd.f32 0.0, %v4214
        %v4216 = vpop.f32.mrf.mxu0
        %4217 = vmatprep.mubr.bf16.mxu0 0
        %4218 = vmatmul.mubr.bf16.gmra.mxu0 %v4143
        %v4219 = vpop.f32.mrf.mxu0
        %v4220 = vadd.f32 0.0, %v4219
        %v4221 = vpop.f32.mrf.mxu0
        %v4222 = vpop.f32.mrf.mxu0
        %v4223 = vadd.f32 0.0, %v4222
        %v4224 = vpop.f32.mrf.mxu0
        %4225 = vdwg.mxu0
        %v4226 = vadd.f32 %v4080, %v4180
        %v4227 = vadd.f32 %v4081, %v4183
        %v4228 = vadd.f32 %v4082, %v4188
        %v4229 = vadd.f32 %v4083, %v4191
        %v4230 = vadd.f32 %v4084, %v4196
        %v4231 = vadd.f32 %v4085, %v4199
        %v4232 = vadd.f32 %v4086, %v4204
        %v4233 = vadd.f32 %v4087, %v4207
        %v4234 = vadd.f32 %v4088, %v4212
        %v4235 = vadd.f32 %v4089, %v4215
        %v4236 = vadd.f32 %v4090, %v4220
        %v4237 = vadd.f32 %v4091, %v4223
        %v4238 = vld [vmem:[#allocation2 + $0x31] sm:$0xff]
        %v4239 = vld [vmem:[#allocation2 + $0x39] sm:$0xff]
        %v4240 = vld [vmem:[#allocation2 + $0x41] sm:$0xff]
        %v4241 = vld [vmem:[#allocation2 + $0x49] sm:$0xff]
        %v4242 = vld [vmem:[#allocation2 + $0x51] sm:$0xff]
        %v4243 = vld [vmem:[#allocation2 + $0x59] sm:$0xff]
        %v4244 = vld [vmem:[#allocation2 + $0x61] sm:$0xff]
        %v4245 = vld [vmem:[#allocation2 + $0x69] sm:$0xff]
        %v4246 = vld [vmem:[#allocation2 + $0x71] sm:$0xff]
        %v4247 = vld [vmem:[#allocation2 + $0x79] sm:$0xff]
        %v4248 = vld [vmem:[#allocation2 + $0x81] sm:$0xff]
        %v4249 = vld [vmem:[#allocation2 + $0x89] sm:$0xf]
        %v4250 = vpack.c.bf16 %v4239, %v4238
        %v4251 = vpack.c.bf16 %v4241, %v4240
        %v4252 = vpack.c.bf16 %v4243, %v4242
        %v4253 = vpack.c.bf16 %v4245, %v4244
        %v4254 = vpack.c.bf16 %v4247, %v4246
        %v4255 = vpack.c.bf16 %v4249, %v4248
        %s4256 = scalar_lea.vmem %s3, 336
        %v4257 = vld [vmem:[%s4256] sm:$0xf]
        %v4258 = vld [vmem:[%s4256 + $0x4] sm:$0xf]
        %v4259 = vld [vmem:[%s4256 + $0x8] sm:$0xf]
        %v4260 = vld [vmem:[%s4256 + $0xc] sm:$0xf]
        %v4265 = vunpack.c.l.b16 %v4257
        %v4266 = vunpack.c.l.b16 %v4258
        %v4267 = vunpack.c.l.b16 %v4259
        %v4268 = vunpack.c.l.b16 %v4260
        %v4269 = vpack.c.b16 %v4266, %v4265
        %v4270 = vpack.c.b16 %v4268, %v4267
        %v4274 = vsel %vm361, %v4250, 0
        %v4277 = vsel %vm361, %v4251, 0
        %v4280 = vsel %vm361, %v4252, 0
        %v4283 = vsel %vm361, %v4253, 0
        %v4286 = vsel %vm361, %v4254, 0
        %v4289 = vsel %vm361, %v4255, 0
        %4291 = vmatprep.subr.bf16.mxu0 0
        %4292 = vmatpush1.bf16.msra.mxu0 0
        %4293 = vmatprep.subr.bf16.mxu0 0
        %4294 = vmatpush1.bf16.msra.mxu0 0
        %4295 = vmatprep.subr.bf16.mxu0 0
        %4296 = vmatpush1.bf16.msra.mxu0 0
        %4297 = vmatprep.subr.bf16.mxu0 0
        %4298 = vmatpush1.bf16.msra.mxu0 0
        %4299 = vmatprep.subr.bf16.mxu0 0
        %4300 = vmatpush1.bf16.msra.mxu0 0
        %4301 = vmatprep.subr.bf16.mxu0 0
        %4302 = vmatpush1.bf16.msra.mxu0 0
        %4303 = vmatprep.subr.bf16.mxu0 0
        %4304 = vmatpush1.bf16.msra.mxu0 %v4270
        %4305 = vmatprep.subr.bf16.mxu0 0
        %4306 = vmatpush1.bf16.msra.mxu0 %v4269
        %4307 = vmatprep.subr.bf16.mxu0 0
        %4308 = vmatpush2.bf16.msra.mxu0 0
        %4309 = vmatprep.subr.bf16.mxu0 0
        %4310 = vmatpush2.bf16.msra.mxu0 0
        %4311 = vmatprep.subr.bf16.mxu0 0
        %4312 = vmatpush2.bf16.msra.mxu0 0
        %4313 = vmatprep.subr.bf16.mxu0 0
        %4314 = vmatpush2.bf16.msra.mxu0 0
        %4315 = vmatprep.subr.bf16.mxu0 0
        %4316 = vmatpush2.bf16.msra.mxu0 0
        %4317 = vmatprep.subr.bf16.mxu0 0
        %4318 = vmatpush2.bf16.msra.mxu0 0
        %4319 = vmatprep.subr.bf16.mxu0 0
        %4320 = vmatpush2.bf16.msra.mxu0 0
        %4321 = vmatprep.subr.bf16.mxu0 0
        %4322 = vmatpush2.bf16.msra.mxu0 0
        %4323 = vmatprep.mubr.bf16.mxu0 0
        %4324 = vmatmul.mubr.bf16.gmra.mxu0 %v4274
        %v4325 = vpop.f32.mrf.mxu0
        %v4326 = vadd.f32 0.0, %v4325
        %v4327 = vpop.f32.mrf.mxu0
        %v4328 = vpop.f32.mrf.mxu0
        %v4329 = vadd.f32 0.0, %v4328
        %v4330 = vpop.f32.mrf.mxu0
        %4331 = vmatprep.mubr.bf16.mxu0 0
        %4332 = vmatmul.mubr.bf16.gmra.mxu0 %v4277
        %v4333 = vpop.f32.mrf.mxu0
        %v4334 = vadd.f32 0.0, %v4333
        %v4335 = vpop.f32.mrf.mxu0
        %v4336 = vpop.f32.mrf.mxu0
        %v4337 = vadd.f32 0.0, %v4336
        %v4338 = vpop.f32.mrf.mxu0
        %4339 = vmatprep.mubr.bf16.mxu0 0
        %4340 = vmatmul.mubr.bf16.gmra.mxu0 %v4280
        %v4341 = vpop.f32.mrf.mxu0
        %v4342 = vadd.f32 0.0, %v4341
        %v4343 = vpop.f32.mrf.mxu0
        %v4344 = vpop.f32.mrf.mxu0
        %v4345 = vadd.f32 0.0, %v4344
        %v4346 = vpop.f32.mrf.mxu0
        %4347 = vmatprep.mubr.bf16.mxu0 0
        %4348 = vmatmul.mubr.bf16.gmra.mxu0 %v4283
        %v4349 = vpop.f32.mrf.mxu0
        %v4350 = vadd.f32 0.0, %v4349
        %v4351 = vpop.f32.mrf.mxu0
        %v4352 = vpop.f32.mrf.mxu0
        %v4353 = vadd.f32 0.0, %v4352
        %v4354 = vpop.f32.mrf.mxu0
        %4355 = vmatprep.mubr.bf16.mxu0 0
        %4356 = vmatmul.mubr.bf16.gmra.mxu0 %v4286
        %v4357 = vpop.f32.mrf.mxu0
        %v4358 = vadd.f32 0.0, %v4357
        %v4359 = vpop.f32.mrf.mxu0
        %v4360 = vpop.f32.mrf.mxu0
        %v4361 = vadd.f32 0.0, %v4360
        %v4362 = vpop.f32.mrf.mxu0
        %4363 = vmatprep.mubr.bf16.mxu0 0
        %4364 = vmatmul.mubr.bf16.gmra.mxu0 %v4289
        %v4365 = vpop.f32.mrf.mxu0
        %v4366 = vadd.f32 0.0, %v4365
        %v4367 = vpop.f32.mrf.mxu0
        %v4368 = vpop.f32.mrf.mxu0
        %v4369 = vadd.f32 0.0, %v4368
        %v4370 = vpop.f32.mrf.mxu0
        %4371 = vdwg.mxu0
        %v4372 = vadd.f32 %v4226, %v4326
        %v4373 = vadd.f32 %v4227, %v4329
        %v4374 = vadd.f32 %v4228, %v4334
        %v4375 = vadd.f32 %v4229, %v4337
        %v4376 = vadd.f32 %v4230, %v4342
        %v4377 = vadd.f32 %v4231, %v4345
        %v4378 = vadd.f32 %v4232, %v4350
        %v4379 = vadd.f32 %v4233, %v4353
        %v4380 = vadd.f32 %v4234, %v4358
        %v4381 = vadd.f32 %v4235, %v4361
        %v4382 = vadd.f32 %v4236, %v4366
        %v4383 = vadd.f32 %v4237, %v4369
        %v4384 = vld [vmem:[#allocation2 + $0x32] sm:$0xff]
        %v4385 = vld [vmem:[#allocation2 + $0x3a] sm:$0xff]
        %v4386 = vld [vmem:[#allocation2 + $0x42] sm:$0xff]
        %v4387 = vld [vmem:[#allocation2 + $0x4a] sm:$0xff]
        %v4388 = vld [vmem:[#allocation2 + $0x52] sm:$0xff]
        %v4389 = vld [vmem:[#allocation2 + $0x5a] sm:$0xff]
        %v4390 = vld [vmem:[#allocation2 + $0x62] sm:$0xff]
        %v4391 = vld [vmem:[#allocation2 + $0x6a] sm:$0xff]
        %v4392 = vld [vmem:[#allocation2 + $0x72] sm:$0xff]
        %v4393 = vld [vmem:[#allocation2 + $0x7a] sm:$0xff]
        %v4394 = vld [vmem:[#allocation2 + $0x82] sm:$0xff]
        %v4395 = vld [vmem:[#allocation2 + $0x8a] sm:$0xf]
        %v4396 = vpack.c.bf16 %v4385, %v4384
        %v4397 = vpack.c.bf16 %v4387, %v4386
        %v4398 = vpack.c.bf16 %v4389, %v4388
        %v4399 = vpack.c.bf16 %v4391, %v4390
        %v4400 = vpack.c.bf16 %v4393, %v4392
        %v4401 = vpack.c.bf16 %v4395, %v4394
        %s4402 = scalar_lea.vmem %s3, 352
        %v4403 = vld [vmem:[%s4402] sm:$0xf]
        %v4404 = vld [vmem:[%s4402 + $0x4] sm:$0xf]
        %v4405 = vld [vmem:[%s4402 + $0x8] sm:$0xf]
        %v4406 = vld [vmem:[%s4402 + $0xc] sm:$0xf]
        %v4411 = vunpack.c.l.b16 %v4403
        %v4412 = vunpack.c.l.b16 %v4404
        %v4413 = vunpack.c.l.b16 %v4405
        %v4414 = vunpack.c.l.b16 %v4406
        %v4415 = vpack.c.b16 %v4412, %v4411
        %v4416 = vpack.c.b16 %v4414, %v4413
        %v4420 = vsel %vm361, %v4396, 0
        %v4423 = vsel %vm361, %v4397, 0
        %v4426 = vsel %vm361, %v4398, 0
        %v4429 = vsel %vm361, %v4399, 0
        %v4432 = vsel %vm361, %v4400, 0
        %v4435 = vsel %vm361, %v4401, 0
        %4437 = vmatprep.subr.bf16.mxu0 0
        %4438 = vmatpush1.bf16.msra.mxu0 0
        %4439 = vmatprep.subr.bf16.mxu0 0
        %4440 = vmatpush1.bf16.msra.mxu0 0
        %4441 = vmatprep.subr.bf16.mxu0 0
        %4442 = vmatpush1.bf16.msra.mxu0 0
        %4443 = vmatprep.subr.bf16.mxu0 0
        %4444 = vmatpush1.bf16.msra.mxu0 0
        %4445 = vmatprep.subr.bf16.mxu0 0
        %4446 = vmatpush1.bf16.msra.mxu0 0
        %4447 = vmatprep.subr.bf16.mxu0 0
        %4448 = vmatpush1.bf16.msra.mxu0 0
        %4449 = vmatprep.subr.bf16.mxu0 0
        %4450 = vmatpush1.bf16.msra.mxu0 %v4416
        %4451 = vmatprep.subr.bf16.mxu0 0
        %4452 = vmatpush1.bf16.msra.mxu0 %v4415
        %4453 = vmatprep.subr.bf16.mxu0 0
        %4454 = vmatpush2.bf16.msra.mxu0 0
        %4455 = vmatprep.subr.bf16.mxu0 0
        %4456 = vmatpush2.bf16.msra.mxu0 0
        %4457 = vmatprep.subr.bf16.mxu0 0
        %4458 = vmatpush2.bf16.msra.mxu0 0
        %4459 = vmatprep.subr.bf16.mxu0 0
        %4460 = vmatpush2.bf16.msra.mxu0 0
        %4461 = vmatprep.subr.bf16.mxu0 0
        %4462 = vmatpush2.bf16.msra.mxu0 0
        %4463 = vmatprep.subr.bf16.mxu0 0
        %4464 = vmatpush2.bf16.msra.mxu0 0
        %4465 = vmatprep.subr.bf16.mxu0 0
        %4466 = vmatpush2.bf16.msra.mxu0 0
        %4467 = vmatprep.subr.bf16.mxu0 0
        %4468 = vmatpush2.bf16.msra.mxu0 0
        %4469 = vmatprep.mubr.bf16.mxu0 0
        %4470 = vmatmul.mubr.bf16.gmra.mxu0 %v4420
        %v4471 = vpop.f32.mrf.mxu0
        %v4472 = vadd.f32 0.0, %v4471
        %v4473 = vpop.f32.mrf.mxu0
        %v4474 = vpop.f32.mrf.mxu0
        %v4475 = vadd.f32 0.0, %v4474
        %v4476 = vpop.f32.mrf.mxu0
        %4477 = vmatprep.mubr.bf16.mxu0 0
        %4478 = vmatmul.mubr.bf16.gmra.mxu0 %v4423
        %v4479 = vpop.f32.mrf.mxu0
        %v4480 = vadd.f32 0.0, %v4479
        %v4481 = vpop.f32.mrf.mxu0
        %v4482 = vpop.f32.mrf.mxu0
        %v4483 = vadd.f32 0.0, %v4482
        %v4484 = vpop.f32.mrf.mxu0
        %4485 = vmatprep.mubr.bf16.mxu0 0
        %4486 = vmatmul.mubr.bf16.gmra.mxu0 %v4426
        %v4487 = vpop.f32.mrf.mxu0
        %v4488 = vadd.f32 0.0, %v4487
        %v4489 = vpop.f32.mrf.mxu0
        %v4490 = vpop.f32.mrf.mxu0
        %v4491 = vadd.f32 0.0, %v4490
        %v4492 = vpop.f32.mrf.mxu0
        %4493 = vmatprep.mubr.bf16.mxu0 0
        %4494 = vmatmul.mubr.bf16.gmra.mxu0 %v4429
        %v4495 = vpop.f32.mrf.mxu0
        %v4496 = vadd.f32 0.0, %v4495
        %v4497 = vpop.f32.mrf.mxu0
        %v4498 = vpop.f32.mrf.mxu0
        %v4499 = vadd.f32 0.0, %v4498
        %v4500 = vpop.f32.mrf.mxu0
        %4501 = vmatprep.mubr.bf16.mxu0 0
        %4502 = vmatmul.mubr.bf16.gmra.mxu0 %v4432
        %v4503 = vpop.f32.mrf.mxu0
        %v4504 = vadd.f32 0.0, %v4503
        %v4505 = vpop.f32.mrf.mxu0
        %v4506 = vpop.f32.mrf.mxu0
        %v4507 = vadd.f32 0.0, %v4506
        %v4508 = vpop.f32.mrf.mxu0
        %4509 = vmatprep.mubr.bf16.mxu0 0
        %4510 = vmatmul.mubr.bf16.gmra.mxu0 %v4435
        %v4511 = vpop.f32.mrf.mxu0
        %v4512 = vadd.f32 0.0, %v4511
        %v4513 = vpop.f32.mrf.mxu0
        %v4514 = vpop.f32.mrf.mxu0
        %v4515 = vadd.f32 0.0, %v4514
        %v4516 = vpop.f32.mrf.mxu0
        %4517 = vdwg.mxu0
        %v4518 = vadd.f32 %v4372, %v4472
        %v4519 = vadd.f32 %v4373, %v4475
        %v4520 = vadd.f32 %v4374, %v4480
        %v4521 = vadd.f32 %v4375, %v4483
        %v4522 = vadd.f32 %v4376, %v4488
        %v4523 = vadd.f32 %v4377, %v4491
        %v4524 = vadd.f32 %v4378, %v4496
        %v4525 = vadd.f32 %v4379, %v4499
        %v4526 = vadd.f32 %v4380, %v4504
        %v4527 = vadd.f32 %v4381, %v4507
        %v4528 = vadd.f32 %v4382, %v4512
        %v4529 = vadd.f32 %v4383, %v4515
        %v4530 = vld [vmem:[#allocation2 + $0x33] sm:$0xff]
        %v4531 = vld [vmem:[#allocation2 + $0x3b] sm:$0xff]
        %v4532 = vld [vmem:[#allocation2 + $0x43] sm:$0xff]
        %v4533 = vld [vmem:[#allocation2 + $0x4b] sm:$0xff]
        %v4534 = vld [vmem:[#allocation2 + $0x53] sm:$0xff]
        %v4535 = vld [vmem:[#allocation2 + $0x5b] sm:$0xff]
        %v4536 = vld [vmem:[#allocation2 + $0x63] sm:$0xff]
        %v4537 = vld [vmem:[#allocation2 + $0x6b] sm:$0xff]
        %v4538 = vld [vmem:[#allocation2 + $0x73] sm:$0xff]
        %v4539 = vld [vmem:[#allocation2 + $0x7b] sm:$0xff]
        %v4540 = vld [vmem:[#allocation2 + $0x83] sm:$0xff]
        %v4541 = vld [vmem:[#allocation2 + $0x8b] sm:$0xf]
        %v4542 = vpack.c.bf16 %v4531, %v4530
        %v4543 = vpack.c.bf16 %v4533, %v4532
        %v4544 = vpack.c.bf16 %v4535, %v4534
        %v4545 = vpack.c.bf16 %v4537, %v4536
        %v4546 = vpack.c.bf16 %v4539, %v4538
        %v4547 = vpack.c.bf16 %v4541, %v4540
        %s4548 = scalar_lea.vmem %s3, 368
        %v4549 = vld [vmem:[%s4548] sm:$0xf]
        %v4550 = vld [vmem:[%s4548 + $0x4] sm:$0xf]
        %v4551 = vld [vmem:[%s4548 + $0x8] sm:$0xf]
        %v4552 = vld [vmem:[%s4548 + $0xc] sm:$0xf]
        %v4557 = vunpack.c.l.b16 %v4549
        %v4558 = vunpack.c.l.b16 %v4550
        %v4559 = vunpack.c.l.b16 %v4551
        %v4560 = vunpack.c.l.b16 %v4552
        %v4561 = vpack.c.b16 %v4558, %v4557
        %v4562 = vpack.c.b16 %v4560, %v4559
        %v4566 = vsel %vm361, %v4542, 0
        %v4569 = vsel %vm361, %v4543, 0
        %v4572 = vsel %vm361, %v4544, 0
        %v4575 = vsel %vm361, %v4545, 0
        %v4578 = vsel %vm361, %v4546, 0
        %v4581 = vsel %vm361, %v4547, 0
        %4583 = vmatprep.subr.bf16.mxu0 0
        %4584 = vmatpush1.bf16.msra.mxu0 0
        %4585 = vmatprep.subr.bf16.mxu0 0
        %4586 = vmatpush1.bf16.msra.mxu0 0
        %4587 = vmatprep.subr.bf16.mxu0 0
        %4588 = vmatpush1.bf16.msra.mxu0 0
        %4589 = vmatprep.subr.bf16.mxu0 0
        %4590 = vmatpush1.bf16.msra.mxu0 0
        %4591 = vmatprep.subr.bf16.mxu0 0
        %4592 = vmatpush1.bf16.msra.mxu0 0
        %4593 = vmatprep.subr.bf16.mxu0 0
        %4594 = vmatpush1.bf16.msra.mxu0 0
        %4595 = vmatprep.subr.bf16.mxu0 0
        %4596 = vmatpush1.bf16.msra.mxu0 %v4562
        %4597 = vmatprep.subr.bf16.mxu0 0
        %4598 = vmatpush1.bf16.msra.mxu0 %v4561
        %4599 = vmatprep.subr.bf16.mxu0 0
        %4600 = vmatpush2.bf16.msra.mxu0 0
        %4601 = vmatprep.subr.bf16.mxu0 0
        %4602 = vmatpush2.bf16.msra.mxu0 0
        %4603 = vmatprep.subr.bf16.mxu0 0
        %4604 = vmatpush2.bf16.msra.mxu0 0
        %4605 = vmatprep.subr.bf16.mxu0 0
        %4606 = vmatpush2.bf16.msra.mxu0 0
        %4607 = vmatprep.subr.bf16.mxu0 0
        %4608 = vmatpush2.bf16.msra.mxu0 0
        %4609 = vmatprep.subr.bf16.mxu0 0
        %4610 = vmatpush2.bf16.msra.mxu0 0
        %4611 = vmatprep.subr.bf16.mxu0 0
        %4612 = vmatpush2.bf16.msra.mxu0 0
        %4613 = vmatprep.subr.bf16.mxu0 0
        %4614 = vmatpush2.bf16.msra.mxu0 0
        %4615 = vmatprep.mubr.bf16.mxu0 0
        %4616 = vmatmul.mubr.bf16.gmra.mxu0 %v4566
        %v4617 = vpop.f32.mrf.mxu0
        %v4618 = vadd.f32 0.0, %v4617
        %v4619 = vpop.f32.mrf.mxu0
        %v4620 = vpop.f32.mrf.mxu0
        %v4621 = vadd.f32 0.0, %v4620
        %v4622 = vpop.f32.mrf.mxu0
        %4623 = vmatprep.mubr.bf16.mxu0 0
        %4624 = vmatmul.mubr.bf16.gmra.mxu0 %v4569
        %v4625 = vpop.f32.mrf.mxu0
        %v4626 = vadd.f32 0.0, %v4625
        %v4627 = vpop.f32.mrf.mxu0
        %v4628 = vpop.f32.mrf.mxu0
        %v4629 = vadd.f32 0.0, %v4628
        %v4630 = vpop.f32.mrf.mxu0
        %4631 = vmatprep.mubr.bf16.mxu0 0
        %4632 = vmatmul.mubr.bf16.gmra.mxu0 %v4572
        %v4633 = vpop.f32.mrf.mxu0
        %v4634 = vadd.f32 0.0, %v4633
        %v4635 = vpop.f32.mrf.mxu0
        %v4636 = vpop.f32.mrf.mxu0
        %v4637 = vadd.f32 0.0, %v4636
        %v4638 = vpop.f32.mrf.mxu0
        %4639 = vmatprep.mubr.bf16.mxu0 0
        %4640 = vmatmul.mubr.bf16.gmra.mxu0 %v4575
        %v4641 = vpop.f32.mrf.mxu0
        %v4642 = vadd.f32 0.0, %v4641
        %v4643 = vpop.f32.mrf.mxu0
        %v4644 = vpop.f32.mrf.mxu0
        %v4645 = vadd.f32 0.0, %v4644
        %v4646 = vpop.f32.mrf.mxu0
        %4647 = vmatprep.mubr.bf16.mxu0 0
        %4648 = vmatmul.mubr.bf16.gmra.mxu0 %v4578
        %v4649 = vpop.f32.mrf.mxu0
        %v4650 = vadd.f32 0.0, %v4649
        %v4651 = vpop.f32.mrf.mxu0
        %v4652 = vpop.f32.mrf.mxu0
        %v4653 = vadd.f32 0.0, %v4652
        %v4654 = vpop.f32.mrf.mxu0
        %4655 = vmatprep.mubr.bf16.mxu0 0
        %4656 = vmatmul.mubr.bf16.gmra.mxu0 %v4581
        %v4657 = vpop.f32.mrf.mxu0
        %v4658 = vadd.f32 0.0, %v4657
        %v4659 = vpop.f32.mrf.mxu0
        %v4660 = vpop.f32.mrf.mxu0
        %v4661 = vadd.f32 0.0, %v4660
        %v4662 = vpop.f32.mrf.mxu0
        %4663 = vdwg.mxu0
        %v4664 = vadd.f32 %v4518, %v4618
        %v4665 = vadd.f32 %v4519, %v4621
        %v4666 = vadd.f32 %v4520, %v4626
        %v4667 = vadd.f32 %v4521, %v4629
        %v4668 = vadd.f32 %v4522, %v4634
        %v4669 = vadd.f32 %v4523, %v4637
        %v4670 = vadd.f32 %v4524, %v4642
        %v4671 = vadd.f32 %v4525, %v4645
        %v4672 = vadd.f32 %v4526, %v4650
        %v4673 = vadd.f32 %v4527, %v4653
        %v4674 = vadd.f32 %v4528, %v4658
        %v4675 = vadd.f32 %v4529, %v4661
        %v4676 = vld [vmem:[#allocation2 + $0x34] sm:$0xff]
        %v4677 = vld [vmem:[#allocation2 + $0x3c] sm:$0xff]
        %v4678 = vld [vmem:[#allocation2 + $0x44] sm:$0xff]
        %v4679 = vld [vmem:[#allocation2 + $0x4c] sm:$0xff]
        %v4680 = vld [vmem:[#allocation2 + $0x54] sm:$0xff]
        %v4681 = vld [vmem:[#allocation2 + $0x5c] sm:$0xff]
        %v4682 = vld [vmem:[#allocation2 + $0x64] sm:$0xff]
        %v4683 = vld [vmem:[#allocation2 + $0x6c] sm:$0xff]
        %v4684 = vld [vmem:[#allocation2 + $0x74] sm:$0xff]
        %v4685 = vld [vmem:[#allocation2 + $0x7c] sm:$0xff]
        %v4686 = vld [vmem:[#allocation2 + $0x84] sm:$0xff]
        %v4687 = vld [vmem:[#allocation2 + $0x8c] sm:$0xf]
        %v4688 = vpack.c.bf16 %v4677, %v4676
        %v4689 = vpack.c.bf16 %v4679, %v4678
        %v4690 = vpack.c.bf16 %v4681, %v4680
        %v4691 = vpack.c.bf16 %v4683, %v4682
        %v4692 = vpack.c.bf16 %v4685, %v4684
        %v4693 = vpack.c.bf16 %v4687, %v4686
        %s4694 = scalar_lea.vmem %s3, 384
        %v4695 = vld [vmem:[%s4694] sm:$0xf]
        %v4696 = vld [vmem:[%s4694 + $0x4] sm:$0xf]
        %v4697 = vld [vmem:[%s4694 + $0x8] sm:$0xf]
        %v4698 = vld [vmem:[%s4694 + $0xc] sm:$0xf]
        %v4703 = vunpack.c.l.b16 %v4695
        %v4704 = vunpack.c.l.b16 %v4696
        %v4705 = vunpack.c.l.b16 %v4697
        %v4706 = vunpack.c.l.b16 %v4698
        %v4707 = vpack.c.b16 %v4704, %v4703
        %v4708 = vpack.c.b16 %v4706, %v4705
        %v4712 = vsel %vm361, %v4688, 0
        %v4715 = vsel %vm361, %v4689, 0
        %v4718 = vsel %vm361, %v4690, 0
        %v4721 = vsel %vm361, %v4691, 0
        %v4724 = vsel %vm361, %v4692, 0
        %v4727 = vsel %vm361, %v4693, 0
        %4729 = vmatprep.subr.bf16.mxu0 0
        %4730 = vmatpush1.bf16.msra.mxu0 0
        %4731 = vmatprep.subr.bf16.mxu0 0
        %4732 = vmatpush1.bf16.msra.mxu0 0
        %4733 = vmatprep.subr.bf16.mxu0 0
        %4734 = vmatpush1.bf16.msra.mxu0 0
        %4735 = vmatprep.subr.bf16.mxu0 0
        %4736 = vmatpush1.bf16.msra.mxu0 0
        %4737 = vmatprep.subr.bf16.mxu0 0
        %4738 = vmatpush1.bf16.msra.mxu0 0
        %4739 = vmatprep.subr.bf16.mxu0 0
        %4740 = vmatpush1.bf16.msra.mxu0 0
        %4741 = vmatprep.subr.bf16.mxu0 0
        %4742 = vmatpush1.bf16.msra.mxu0 %v4708
        %4743 = vmatprep.subr.bf16.mxu0 0
        %4744 = vmatpush1.bf16.msra.mxu0 %v4707
        %4745 = vmatprep.subr.bf16.mxu0 0
        %4746 = vmatpush2.bf16.msra.mxu0 0
        %4747 = vmatprep.subr.bf16.mxu0 0
        %4748 = vmatpush2.bf16.msra.mxu0 0
        %4749 = vmatprep.subr.bf16.mxu0 0
        %4750 = vmatpush2.bf16.msra.mxu0 0
        %4751 = vmatprep.subr.bf16.mxu0 0
        %4752 = vmatpush2.bf16.msra.mxu0 0
        %4753 = vmatprep.subr.bf16.mxu0 0
        %4754 = vmatpush2.bf16.msra.mxu0 0
        %4755 = vmatprep.subr.bf16.mxu0 0
        %4756 = vmatpush2.bf16.msra.mxu0 0
        %4757 = vmatprep.subr.bf16.mxu0 0
        %4758 = vmatpush2.bf16.msra.mxu0 0
        %4759 = vmatprep.subr.bf16.mxu0 0
        %4760 = vmatpush2.bf16.msra.mxu0 0
        %4761 = vmatprep.mubr.bf16.mxu0 0
        %4762 = vmatmul.mubr.bf16.gmra.mxu0 %v4712
        %v4763 = vpop.f32.mrf.mxu0
        %v4764 = vadd.f32 0.0, %v4763
        %v4765 = vpop.f32.mrf.mxu0
        %v4766 = vpop.f32.mrf.mxu0
        %v4767 = vadd.f32 0.0, %v4766
        %v4768 = vpop.f32.mrf.mxu0
        %4769 = vmatprep.mubr.bf16.mxu0 0
        %4770 = vmatmul.mubr.bf16.gmra.mxu0 %v4715
        %v4771 = vpop.f32.mrf.mxu0
        %v4772 = vadd.f32 0.0, %v4771
        %v4773 = vpop.f32.mrf.mxu0
        %v4774 = vpop.f32.mrf.mxu0
        %v4775 = vadd.f32 0.0, %v4774
        %v4776 = vpop.f32.mrf.mxu0
        %4777 = vmatprep.mubr.bf16.mxu0 0
        %4778 = vmatmul.mubr.bf16.gmra.mxu0 %v4718
        %v4779 = vpop.f32.mrf.mxu0
        %v4780 = vadd.f32 0.0, %v4779
        %v4781 = vpop.f32.mrf.mxu0
        %v4782 = vpop.f32.mrf.mxu0
        %v4783 = vadd.f32 0.0, %v4782
        %v4784 = vpop.f32.mrf.mxu0
        %4785 = vmatprep.mubr.bf16.mxu0 0
        %4786 = vmatmul.mubr.bf16.gmra.mxu0 %v4721
        %v4787 = vpop.f32.mrf.mxu0
        %v4788 = vadd.f32 0.0, %v4787
        %v4789 = vpop.f32.mrf.mxu0
        %v4790 = vpop.f32.mrf.mxu0
        %v4791 = vadd.f32 0.0, %v4790
        %v4792 = vpop.f32.mrf.mxu0
        %4793 = vmatprep.mubr.bf16.mxu0 0
        %4794 = vmatmul.mubr.bf16.gmra.mxu0 %v4724
        %v4795 = vpop.f32.mrf.mxu0
        %v4796 = vadd.f32 0.0, %v4795
        %v4797 = vpop.f32.mrf.mxu0
        %v4798 = vpop.f32.mrf.mxu0
        %v4799 = vadd.f32 0.0, %v4798
        %v4800 = vpop.f32.mrf.mxu0
        %4801 = vmatprep.mubr.bf16.mxu0 0
        %4802 = vmatmul.mubr.bf16.gmra.mxu0 %v4727
        %v4803 = vpop.f32.mrf.mxu0
        %v4804 = vadd.f32 0.0, %v4803
        %v4805 = vpop.f32.mrf.mxu0
        %v4806 = vpop.f32.mrf.mxu0
        %v4807 = vadd.f32 0.0, %v4806
        %v4808 = vpop.f32.mrf.mxu0
        %4809 = vdwg.mxu0
        %v4810 = vadd.f32 %v4664, %v4764
        %v4811 = vadd.f32 %v4665, %v4767
        %v4812 = vadd.f32 %v4666, %v4772
        %v4813 = vadd.f32 %v4667, %v4775
        %v4814 = vadd.f32 %v4668, %v4780
        %v4815 = vadd.f32 %v4669, %v4783
        %v4816 = vadd.f32 %v4670, %v4788
        %v4817 = vadd.f32 %v4671, %v4791
        %v4818 = vadd.f32 %v4672, %v4796
        %v4819 = vadd.f32 %v4673, %v4799
        %v4820 = vadd.f32 %v4674, %v4804
        %v4821 = vadd.f32 %v4675, %v4807
        %v4822 = vld [vmem:[%s4] sm:$0x1]
        %v4824 = vlaneseq
        %v4825 = vshrl.u32 %v4824, 7
        %v4826 = vsub.s32 0, %v4825
        %v4827 = vrot.slane %v4822, %v4826
        %v4829 = vadd.f32 %v4810, %v4827
        %v4830 = vadd.f32 %v4811, %v4827
        %v4831 = vadd.f32 %v4812, %v4827
        %v4832 = vadd.f32 %v4813, %v4827
        %v4833 = vadd.f32 %v4814, %v4827
        %v4834 = vadd.f32 %v4815, %v4827
        %v4835 = vadd.f32 %v4816, %v4827
        %v4836 = vadd.f32 %v4817, %v4827
        %v4837 = vadd.f32 %v4818, %v4827
        %v4838 = vadd.f32 %v4819, %v4827
        %v4839 = vadd.f32 %v4820, %v4827
        %v4840 = vadd.f32 %v4821, %v4827
        %v4841 = vmax.f32 %v4829, 0.0
        %v4842 = vmax.f32 %v4830, 0.0
        %v4843 = vmax.f32 %v4831, 0.0
        %v4844 = vmax.f32 %v4832, 0.0
        %v4845 = vmax.f32 %v4833, 0.0
        %v4846 = vmax.f32 %v4834, 0.0
        %v4847 = vmax.f32 %v4835, 0.0
        %v4848 = vmax.f32 %v4836, 0.0
        %v4849 = vmax.f32 %v4837, 0.0
        %v4850 = vmax.f32 %v4838, 0.0
        %v4851 = vmax.f32 %v4839, 0.0
        %v4852 = vmax.f32 %v4840, 0.0
        %vm4853 = vcmask 523264
        %4854 = vst.msk [vmem:[#allocation3] sm:$0xff] %vm4853, %v4841
        %4855 = vst.msk [vmem:[#allocation3 + $0x8] sm:$0xff] %vm4853, %v4842
        %4856 = vst.msk [vmem:[#allocation3 + $0x10] sm:$0xff] %vm4853, %v4843
        %4857 = vst.msk [vmem:[#allocation3 + $0x18] sm:$0xff] %vm4853, %v4844
        %4858 = vst.msk [vmem:[#allocation3 + $0x20] sm:$0xff] %vm4853, %v4845
        %4859 = vst.msk [vmem:[#allocation3 + $0x28] sm:$0xff] %vm4853, %v4846
        %4860 = vst.msk [vmem:[#allocation3 + $0x30] sm:$0xff] %vm4853, %v4847
        %4861 = vst.msk [vmem:[#allocation3 + $0x38] sm:$0xff] %vm4853, %v4848
        %4862 = vst.msk [vmem:[#allocation3 + $0x40] sm:$0xff] %vm4853, %v4849
        %4863 = vst.msk [vmem:[#allocation3 + $0x48] sm:$0xff] %vm4853, %v4850
        %4864 = vst.msk [vmem:[#allocation3 + $0x50] sm:$0xff] %vm4853, %v4851
        %vm4865 = vcmask 519168
        %4866 = vst.msk [vmem:[#allocation3 + $0x58] sm:$0xf] %vm4865, %v4852
        %v4867 = vld [vmem:[#allocation3] sm:$0xff]
        %v4868 = vld [vmem:[#allocation3 + $0x8] sm:$0xff]
        %v4869 = vld [vmem:[#allocation3 + $0x10] sm:$0xff]
        %v4870 = vld [vmem:[#allocation3 + $0x18] sm:$0xff]
        %v4871 = vld [vmem:[#allocation3 + $0x20] sm:$0xff]
        %v4872 = vld [vmem:[#allocation3 + $0x28] sm:$0xff]
        %v4873 = vld [vmem:[#allocation3 + $0x30] sm:$0xff]
        %v4874 = vld [vmem:[#allocation3 + $0x38] sm:$0xff]
        %v4875 = vld [vmem:[#allocation3 + $0x40] sm:$0xff]
        %v4876 = vld [vmem:[#allocation3 + $0x48] sm:$0xff]
        %v4877 = vld [vmem:[#allocation3 + $0x50] sm:$0xff]
        %v4878 = vld [vmem:[#allocation3 + $0x58] sm:$0x7]
        %v4879 = vld [vmem:[#allocation3 + $0x1] sm:$0xff]
        %v4880 = vld [vmem:[#allocation3 + $0x9] sm:$0xff]
        %v4881 = vld [vmem:[#allocation3 + $0x11] sm:$0xff]
        %v4882 = vld [vmem:[#allocation3 + $0x19] sm:$0xff]
        %v4883 = vld [vmem:[#allocation3 + $0x21] sm:$0xff]
        %v4884 = vld [vmem:[#allocation3 + $0x29] sm:$0xff]
        %v4885 = vld [vmem:[#allocation3 + $0x31] sm:$0xff]
        %v4886 = vld [vmem:[#allocation3 + $0x39] sm:$0xff]
        %v4887 = vld [vmem:[#allocation3 + $0x41] sm:$0xff]
        %v4888 = vld [vmem:[#allocation3 + $0x49] sm:$0xff]
        %v4889 = vld [vmem:[#allocation3 + $0x51] sm:$0xff]
        %v4890 = vld [vmem:[#allocation3 + $0x59] sm:$0x7]
        %v4891 = vmax.f32 %v4867, %v4879
        %v4892 = vmax.f32 %v4868, %v4880
        %v4893 = vmax.f32 %v4869, %v4881
        %v4894 = vmax.f32 %v4870, %v4882
        %v4895 = vmax.f32 %v4871, %v4883
        %v4896 = vmax.f32 %v4872, %v4884
        %v4897 = vmax.f32 %v4873, %v4885
        %v4898 = vmax.f32 %v4874, %v4886
        %v4899 = vmax.f32 %v4875, %v4887
        %v4900 = vmax.f32 %v4876, %v4888
        %v4901 = vmax.f32 %v4877, %v4889
        %v4902 = vmax.f32 %v4878, %v4890
        %4903 = vst.msk [vmem:[#allocation4] sm:$0xff] %vm4853, %v4891
        %4904 = vst.msk [vmem:[#allocation4 + $0x8] sm:$0xff] %vm4853, %v4892
        %4905 = vst.msk [vmem:[#allocation4 + $0x10] sm:$0xff] %vm4853, %v4893
        %4906 = vst.msk [vmem:[#allocation4 + $0x18] sm:$0xff] %vm4853, %v4894
        %4907 = vst.msk [vmem:[#allocation4 + $0x20] sm:$0xff] %vm4853, %v4895
        %4908 = vst.msk [vmem:[#allocation4 + $0x28] sm:$0xff] %vm4853, %v4896
        %4909 = vst.msk [vmem:[#allocation4 + $0x30] sm:$0xff] %vm4853, %v4897
        %4910 = vst.msk [vmem:[#allocation4 + $0x38] sm:$0xff] %vm4853, %v4898
        %4911 = vst.msk [vmem:[#allocation4 + $0x40] sm:$0xff] %vm4853, %v4899
        %4912 = vst.msk [vmem:[#allocation4 + $0x48] sm:$0xff] %vm4853, %v4900
        %4913 = vst.msk [vmem:[#allocation4 + $0x50] sm:$0xff] %vm4853, %v4901
        %vm4914 = vcmask 518144
        %4915 = vst.msk [vmem:[#allocation4 + $0x58] sm:$0x7] %vm4914, %v4902
        %v4916 = vld [vmem:[#allocation4] sm:$0xff]
        %v4917 = vld [vmem:[#allocation4 + $0x8] sm:$0xff]
        %v4918 = vld [vmem:[#allocation4 + $0x10] sm:$0xff]
        %v4919 = vld [vmem:[#allocation4 + $0x18] sm:$0xff]
        %v4920 = vld [vmem:[#allocation4 + $0x20] sm:$0xff]
        %v4921 = vld [vmem:[#allocation4 + $0x28] sm:$0xff]
        %v4922 = vld [vmem:[#allocation4 + $0x30] sm:$0xff]
        %v4923 = vld [vmem:[#allocation4 + $0x38] sm:$0xff]
        %v4924 = vld [vmem:[#allocation4 + $0x40] sm:$0xff]
        %v4925 = vld [vmem:[#allocation4 + $0x48] sm:$0x7f]
        %v4926 = vld [vmem:[#allocation4 + $0xc] sm:$0xff]
        %v4927 = vld [vmem:[#allocation4 + $0x14] sm:$0xff]
        %v4928 = vld [vmem:[#allocation4 + $0x1c] sm:$0xff]
        %v4929 = vld [vmem:[#allocation4 + $0x24] sm:$0xff]
        %v4930 = vld [vmem:[#allocation4 + $0x2c] sm:$0xff]
        %v4931 = vld [vmem:[#allocation4 + $0x34] sm:$0xff]
        %v4932 = vld [vmem:[#allocation4 + $0x3c] sm:$0xff]
        %v4933 = vld [vmem:[#allocation4 + $0x44] sm:$0xff]
        %v4934 = vld [vmem:[#allocation4 + $0x4c] sm:$0xff]
        %v4935 = vld [vmem:[#allocation4 + $0x54] sm:$0x7f]
        %v4936 = vmax.f32 %v4916, %v4926
        %v4937 = vmax.f32 %v4917, %v4927
        %v4938 = vmax.f32 %v4918, %v4928
        %v4939 = vmax.f32 %v4919, %v4929
        %v4940 = vmax.f32 %v4920, %v4930
        %v4941 = vmax.f32 %v4921, %v4931
        %v4942 = vmax.f32 %v4922, %v4932
        %v4943 = vmax.f32 %v4923, %v4933
        %v4944 = vmax.f32 %v4924, %v4934
        %v4945 = vmax.f32 %v4925, %v4935
        %4946 = vst.msk [vmem:[#allocation5] sm:$0xff] %vm4853, %v4936
        %4947 = vst.msk [vmem:[#allocation5 + $0x8] sm:$0xff] %vm4853, %v4937
        %4948 = vst.msk [vmem:[#allocation5 + $0x10] sm:$0xff] %vm4853, %v4938
        %4949 = vst.msk [vmem:[#allocation5 + $0x18] sm:$0xff] %vm4853, %v4939
        %4950 = vst.msk [vmem:[#allocation5 + $0x20] sm:$0xff] %vm4853, %v4940
        %4951 = vst.msk [vmem:[#allocation5 + $0x28] sm:$0xff] %vm4853, %v4941
        %4952 = vst.msk [vmem:[#allocation5 + $0x30] sm:$0xff] %vm4853, %v4942
        %4953 = vst.msk [vmem:[#allocation5 + $0x38] sm:$0xff] %vm4853, %v4943
        %4954 = vst.msk [vmem:[#allocation5 + $0x40] sm:$0xff] %vm4853, %v4944
        %vm4955 = vcmask 522240
        %4956 = vst.msk [vmem:[#allocation5 + $0x48] sm:$0x7f] %vm4955, %v4945
        %v4957 = vld [vmem:[#allocation5] sm:$0x1]
        %v4958 = vpack.c.bf16 %v4957, %v4957
        %v4959 = vld [vmem:[%s5] sm:$0xf]
        %v4960 = vld [vmem:[%s5 + $0x4] sm:$0xf]
        %v4961 = vld [vmem:[%s5 + $0x8] sm:$0xf]
        %v4962 = vld [vmem:[%s5 + $0xc] sm:$0xf]
        %v4963 = vld [vmem:[%s5 + $0x10] sm:$0xf]
        %v4964 = vld [vmem:[%s5 + $0x14] sm:$0xf]
        %v4965 = vld [vmem:[%s5 + $0x18] sm:$0xf]
        %v4966 = vld [vmem:[%s5 + $0x1c] sm:$0xf]
        %v4967 = vld [vmem:[#allocation5 + $0x2] sm:$0x1]
        %v4968 = vpack.c.bf16 %v4967, %v4967
        %s4969 = scalar_lea.vmem %s5, 32
        %v4970 = vld [vmem:[%s4969] sm:$0xf]
        %v4971 = vld [vmem:[%s4969 + $0x4] sm:$0xf]
        %v4972 = vld [vmem:[%s4969 + $0x8] sm:$0xf]
        %v4973 = vld [vmem:[%s4969 + $0xc] sm:$0xf]
        %v4974 = vld [vmem:[%s4969 + $0x10] sm:$0xf]
        %v4975 = vld [vmem:[%s4969 + $0x14] sm:$0xf]
        %v4976 = vld [vmem:[%s4969 + $0x18] sm:$0xf]
        %v4977 = vld [vmem:[%s4969 + $0x1c] sm:$0xf]
        %v4986 = vunpack.c.l.b16 %v4970
        %v4987 = vunpack.c.l.b16 %v4971
        %v4988 = vunpack.c.l.b16 %v4972
        %v4989 = vunpack.c.l.b16 %v4973
        %v4990 = vunpack.c.l.b16 %v4974
        %v4991 = vunpack.c.l.b16 %v4975
        %v4992 = vunpack.c.l.b16 %v4976
        %v4993 = vunpack.c.l.b16 %v4977
        %v4994 = vpack.c.b16 %v4987, %v4986
        %v4995 = vpack.c.b16 %v4989, %v4988
        %v4996 = vpack.c.b16 %v4991, %v4990
        %v4997 = vpack.c.b16 %v4993, %v4992
        %v5003 = vsel %vm4853, %v4968, 0
        %5005 = vmatprep.subr.bf16.mxu0 0
        %5006 = vmatpush1.bf16.msra.mxu0 0
        %5007 = vmatprep.subr.bf16.mxu0 0
        %5008 = vmatpush1.bf16.msra.mxu0 0
        %5009 = vmatprep.subr.bf16.mxu0 0
        %5010 = vmatpush1.bf16.msra.mxu0 0
        %5011 = vmatprep.subr.bf16.mxu0 0
        %5012 = vmatpush1.bf16.msra.mxu0 0
        %5013 = vmatprep.subr.bf16.mxu0 0
        %5014 = vmatpush1.bf16.msra.mxu0 %v4997
        %5015 = vmatprep.subr.bf16.mxu0 0
        %5016 = vmatpush1.bf16.msra.mxu0 %v4996
        %5017 = vmatprep.subr.bf16.mxu0 0
        %5018 = vmatpush1.bf16.msra.mxu0 %v4995
        %5019 = vmatprep.subr.bf16.mxu0 0
        %5020 = vmatpush1.bf16.msra.mxu0 %v4994
        %5021 = vmatprep.subr.bf16.mxu0 0
        %5022 = vmatpush2.bf16.msra.mxu0 0
        %5023 = vmatprep.subr.bf16.mxu0 0
        %5024 = vmatpush2.bf16.msra.mxu0 0
        %5025 = vmatprep.subr.bf16.mxu0 0
        %5026 = vmatpush2.bf16.msra.mxu0 0
        %5027 = vmatprep.subr.bf16.mxu0 0
        %5028 = vmatpush2.bf16.msra.mxu0 0
        %5029 = vmatprep.subr.bf16.mxu0 0
        %5030 = vmatpush2.bf16.msra.mxu0 0
        %5031 = vmatprep.subr.bf16.mxu0 0
        %5032 = vmatpush2.bf16.msra.mxu0 0
        %5033 = vmatprep.subr.bf16.mxu0 0
        %5034 = vmatpush2.bf16.msra.mxu0 0
        %5035 = vmatprep.subr.bf16.mxu0 0
        %5036 = vmatpush2.bf16.msra.mxu0 0
        %5037 = vmatprep.mubr.bf16.mxu0 0
        %5038 = vmatmul.mubr.bf16.gmra.mxu0 %v5003
        %v5039 = vpop.f32.mrf.mxu0
        %v5040 = vadd.f32 0.0, %v5039
        %v5041 = vpop.f32.mrf.mxu0
        %v5042 = vpop.f32.mrf.mxu0
        %v5043 = vpop.f32.mrf.mxu0
        %5044 = vdwg.mxu0
        %v5053 = vunpack.c.l.b16 %v4959
        %v5054 = vunpack.c.l.b16 %v4960
        %v5055 = vunpack.c.l.b16 %v4961
        %v5056 = vunpack.c.l.b16 %v4962
        %v5057 = vunpack.c.l.b16 %v4963
        %v5058 = vunpack.c.l.b16 %v4964
        %v5059 = vunpack.c.l.b16 %v4965
        %v5060 = vunpack.c.l.b16 %v4966
        %v5061 = vpack.c.b16 %v5054, %v5053
        %v5062 = vpack.c.b16 %v5056, %v5055
        %v5063 = vpack.c.b16 %v5058, %v5057
        %v5064 = vpack.c.b16 %v5060, %v5059
        %v5070 = vsel %vm4853, %v4958, 0
        %5072 = vmatprep.subr.bf16.mxu0 0
        %5073 = vmatpush1.bf16.msra.mxu0 0
        %5074 = vmatprep.subr.bf16.mxu0 0
        %5075 = vmatpush1.bf16.msra.mxu0 0
        %5076 = vmatprep.subr.bf16.mxu0 0
        %5077 = vmatpush1.bf16.msra.mxu0 0
        %5078 = vmatprep.subr.bf16.mxu0 0
        %5079 = vmatpush1.bf16.msra.mxu0 0
        %5080 = vmatprep.subr.bf16.mxu0 0
        %5081 = vmatpush1.bf16.msra.mxu0 %v5064
        %5082 = vmatprep.subr.bf16.mxu0 0
        %5083 = vmatpush1.bf16.msra.mxu0 %v5063
        %5084 = vmatprep.subr.bf16.mxu0 0
        %5085 = vmatpush1.bf16.msra.mxu0 %v5062
        %5086 = vmatprep.subr.bf16.mxu0 0
        %5087 = vmatpush1.bf16.msra.mxu0 %v5061
        %5088 = vmatprep.subr.bf16.mxu0 0
        %5089 = vmatpush2.bf16.msra.mxu0 0
        %5090 = vmatprep.subr.bf16.mxu0 0
        %5091 = vmatpush2.bf16.msra.mxu0 0
        %5092 = vmatprep.subr.bf16.mxu0 0
        %5093 = vmatpush2.bf16.msra.mxu0 0
        %5094 = vmatprep.subr.bf16.mxu0 0
        %5095 = vmatpush2.bf16.msra.mxu0 0
        %5096 = vmatprep.subr.bf16.mxu0 0
        %5097 = vmatpush2.bf16.msra.mxu0 0
        %5098 = vmatprep.subr.bf16.mxu0 0
        %5099 = vmatpush2.bf16.msra.mxu0 0
        %5100 = vmatprep.subr.bf16.mxu0 0
        %5101 = vmatpush2.bf16.msra.mxu0 0
        %5102 = vmatprep.subr.bf16.mxu0 0
        %5103 = vmatpush2.bf16.msra.mxu0 0
        %5104 = vmatprep.mubr.bf16.mxu0 0
        %5105 = vmatmul.mubr.bf16.gmra.mxu0 %v5070
        %v5106 = vpop.f32.mrf.mxu0
        %v5107 = vadd.f32 %v5040, %v5106
        %v5108 = vpop.f32.mrf.mxu0
        %v5109 = vpop.f32.mrf.mxu0
        %v5110 = vpop.f32.mrf.mxu0
        %5111 = vdwg.mxu0
        %v5112 = vld [vmem:[#allocation5 + $0x4] sm:$0x1]
        %v5113 = vpack.c.bf16 %v5112, %v5112
        %s5114 = scalar_lea.vmem %s5, 64
        %v5115 = vld [vmem:[%s5114] sm:$0xf]
        %v5116 = vld [vmem:[%s5114 + $0x4] sm:$0xf]
        %v5117 = vld [vmem:[%s5114 + $0x8] sm:$0xf]
        %v5118 = vld [vmem:[%s5114 + $0xc] sm:$0xf]
        %v5119 = vld [vmem:[%s5114 + $0x10] sm:$0xf]
        %v5120 = vld [vmem:[%s5114 + $0x14] sm:$0xf]
        %v5121 = vld [vmem:[%s5114 + $0x18] sm:$0xf]
        %v5122 = vld [vmem:[%s5114 + $0x1c] sm:$0xf]
        %v5131 = vunpack.c.l.b16 %v5115
        %v5132 = vunpack.c.l.b16 %v5116
        %v5133 = vunpack.c.l.b16 %v5117
        %v5134 = vunpack.c.l.b16 %v5118
        %v5135 = vunpack.c.l.b16 %v5119
        %v5136 = vunpack.c.l.b16 %v5120
        %v5137 = vunpack.c.l.b16 %v5121
        %v5138 = vunpack.c.l.b16 %v5122
        %v5139 = vpack.c.b16 %v5132, %v5131
        %v5140 = vpack.c.b16 %v5134, %v5133
        %v5141 = vpack.c.b16 %v5136, %v5135
        %v5142 = vpack.c.b16 %v5138, %v5137
        %v5148 = vsel %vm4853, %v5113, 0
        %5150 = vmatprep.subr.bf16.mxu0 0
        %5151 = vmatpush1.bf16.msra.mxu0 0
        %5152 = vmatprep.subr.bf16.mxu0 0
        %5153 = vmatpush1.bf16.msra.mxu0 0
        %5154 = vmatprep.subr.bf16.mxu0 0
        %5155 = vmatpush1.bf16.msra.mxu0 0
        %5156 = vmatprep.subr.bf16.mxu0 0
        %5157 = vmatpush1.bf16.msra.mxu0 0
        %5158 = vmatprep.subr.bf16.mxu0 0
        %5159 = vmatpush1.bf16.msra.mxu0 %v5142
        %5160 = vmatprep.subr.bf16.mxu0 0
        %5161 = vmatpush1.bf16.msra.mxu0 %v5141
        %5162 = vmatprep.subr.bf16.mxu0 0
        %5163 = vmatpush1.bf16.msra.mxu0 %v5140
        %5164 = vmatprep.subr.bf16.mxu0 0
        %5165 = vmatpush1.bf16.msra.mxu0 %v5139
        %5166 = vmatprep.subr.bf16.mxu0 0
        %5167 = vmatpush2.bf16.msra.mxu0 0
        %5168 = vmatprep.subr.bf16.mxu0 0
        %5169 = vmatpush2.bf16.msra.mxu0 0
        %5170 = vmatprep.subr.bf16.mxu0 0
        %5171 = vmatpush2.bf16.msra.mxu0 0
        %5172 = vmatprep.subr.bf16.mxu0 0
        %5173 = vmatpush2.bf16.msra.mxu0 0
        %5174 = vmatprep.subr.bf16.mxu0 0
        %5175 = vmatpush2.bf16.msra.mxu0 0
        %5176 = vmatprep.subr.bf16.mxu0 0
        %5177 = vmatpush2.bf16.msra.mxu0 0
        %5178 = vmatprep.subr.bf16.mxu0 0
        %5179 = vmatpush2.bf16.msra.mxu0 0
        %5180 = vmatprep.subr.bf16.mxu0 0
        %5181 = vmatpush2.bf16.msra.mxu0 0
        %5182 = vmatprep.mubr.bf16.mxu0 0
        %5183 = vmatmul.mubr.bf16.gmra.mxu0 %v5148
        %v5184 = vpop.f32.mrf.mxu0
        %v5185 = vadd.f32 0.0, %v5184
        %v5186 = vpop.f32.mrf.mxu0
        %v5187 = vpop.f32.mrf.mxu0
        %v5188 = vpop.f32.mrf.mxu0
        %5189 = vdwg.mxu0
        %v5190 = vadd.f32 %v5107, %v5185
        %v5191 = vld [vmem:[#allocation5 + $0x6] sm:$0x1]
        %v5192 = vpack.c.bf16 %v5191, %v5191
        %s5193 = scalar_lea.vmem %s5, 96
        %v5194 = vld [vmem:[%s5193] sm:$0xf]
        %v5195 = vld [vmem:[%s5193 + $0x4] sm:$0xf]
        %v5196 = vld [vmem:[%s5193 + $0x8] sm:$0xf]
        %v5197 = vld [vmem:[%s5193 + $0xc] sm:$0xf]
        %v5198 = vld [vmem:[%s5193 + $0x10] sm:$0xf]
        %v5199 = vld [vmem:[%s5193 + $0x14] sm:$0xf]
        %v5200 = vld [vmem:[%s5193 + $0x18] sm:$0xf]
        %v5201 = vld [vmem:[%s5193 + $0x1c] sm:$0xf]
        %v5210 = vunpack.c.l.b16 %v5194
        %v5211 = vunpack.c.l.b16 %v5195
        %v5212 = vunpack.c.l.b16 %v5196
        %v5213 = vunpack.c.l.b16 %v5197
        %v5214 = vunpack.c.l.b16 %v5198
        %v5215 = vunpack.c.l.b16 %v5199
        %v5216 = vunpack.c.l.b16 %v5200
        %v5217 = vunpack.c.l.b16 %v5201
        %v5218 = vpack.c.b16 %v5211, %v5210
        %v5219 = vpack.c.b16 %v5213, %v5212
        %v5220 = vpack.c.b16 %v5215, %v5214
        %v5221 = vpack.c.b16 %v5217, %v5216
        %v5227 = vsel %vm4853, %v5192, 0
        %5229 = vmatprep.subr.bf16.mxu0 0
        %5230 = vmatpush1.bf16.msra.mxu0 0
        %5231 = vmatprep.subr.bf16.mxu0 0
        %5232 = vmatpush1.bf16.msra.mxu0 0
        %5233 = vmatprep.subr.bf16.mxu0 0
        %5234 = vmatpush1.bf16.msra.mxu0 0
        %5235 = vmatprep.subr.bf16.mxu0 0
        %5236 = vmatpush1.bf16.msra.mxu0 0
        %5237 = vmatprep.subr.bf16.mxu0 0
        %5238 = vmatpush1.bf16.msra.mxu0 %v5221
        %5239 = vmatprep.subr.bf16.mxu0 0
        %5240 = vmatpush1.bf16.msra.mxu0 %v5220
        %5241 = vmatprep.subr.bf16.mxu0 0
        %5242 = vmatpush1.bf16.msra.mxu0 %v5219
        %5243 = vmatprep.subr.bf16.mxu0 0
        %5244 = vmatpush1.bf16.msra.mxu0 %v5218
        %5245 = vmatprep.subr.bf16.mxu0 0
        %5246 = vmatpush2.bf16.msra.mxu0 0
        %5247 = vmatprep.subr.bf16.mxu0 0
        %5248 = vmatpush2.bf16.msra.mxu0 0
        %5249 = vmatprep.subr.bf16.mxu0 0
        %5250 = vmatpush2.bf16.msra.mxu0 0
        %5251 = vmatprep.subr.bf16.mxu0 0
        %5252 = vmatpush2.bf16.msra.mxu0 0
        %5253 = vmatprep.subr.bf16.mxu0 0
        %5254 = vmatpush2.bf16.msra.mxu0 0
        %5255 = vmatprep.subr.bf16.mxu0 0
        %5256 = vmatpush2.bf16.msra.mxu0 0
        %5257 = vmatprep.subr.bf16.mxu0 0
        %5258 = vmatpush2.bf16.msra.mxu0 0
        %5259 = vmatprep.subr.bf16.mxu0 0
        %5260 = vmatpush2.bf16.msra.mxu0 0
        %5261 = vmatprep.mubr.bf16.mxu0 0
        %5262 = vmatmul.mubr.bf16.gmra.mxu0 %v5227
        %v5263 = vpop.f32.mrf.mxu0
        %v5264 = vadd.f32 0.0, %v5263
        %v5265 = vpop.f32.mrf.mxu0
        %v5266 = vpop.f32.mrf.mxu0
        %v5267 = vpop.f32.mrf.mxu0
        %5268 = vdwg.mxu0
        %v5269 = vadd.f32 %v5190, %v5264
        %v5270 = vld [vmem:[#allocation5 + $0x18] sm:$0x1]
        %v5271 = vpack.c.bf16 %v5270, %v5270
        %s5272 = scalar_lea.vmem %s5, 128
        %v5273 = vld [vmem:[%s5272] sm:$0xf]
        %v5274 = vld [vmem:[%s5272 + $0x4] sm:$0xf]
        %v5275 = vld [vmem:[%s5272 + $0x8] sm:$0xf]
        %v5276 = vld [vmem:[%s5272 + $0xc] sm:$0xf]
        %v5277 = vld [vmem:[%s5272 + $0x10] sm:$0xf]
        %v5278 = vld [vmem:[%s5272 + $0x14] sm:$0xf]
        %v5279 = vld [vmem:[%s5272 + $0x18] sm:$0xf]
        %v5280 = vld [vmem:[%s5272 + $0x1c] sm:$0xf]
        %v5289 = vunpack.c.l.b16 %v5273
        %v5290 = vunpack.c.l.b16 %v5274
        %v5291 = vunpack.c.l.b16 %v5275
        %v5292 = vunpack.c.l.b16 %v5276
        %v5293 = vunpack.c.l.b16 %v5277
        %v5294 = vunpack.c.l.b16 %v5278
        %v5295 = vunpack.c.l.b16 %v5279
        %v5296 = vunpack.c.l.b16 %v5280
        %v5297 = vpack.c.b16 %v5290, %v5289
        %v5298 = vpack.c.b16 %v5292, %v5291
        %v5299 = vpack.c.b16 %v5294, %v5293
        %v5300 = vpack.c.b16 %v5296, %v5295
        %v5306 = vsel %vm4853, %v5271, 0
        %5308 = vmatprep.subr.bf16.mxu0 0
        %5309 = vmatpush1.bf16.msra.mxu0 0
        %5310 = vmatprep.subr.bf16.mxu0 0
        %5311 = vmatpush1.bf16.msra.mxu0 0
        %5312 = vmatprep.subr.bf16.mxu0 0
        %5313 = vmatpush1.bf16.msra.mxu0 0
        %5314 = vmatprep.subr.bf16.mxu0 0
        %5315 = vmatpush1.bf16.msra.mxu0 0
        %5316 = vmatprep.subr.bf16.mxu0 0
        %5317 = vmatpush1.bf16.msra.mxu0 %v5300
        %5318 = vmatprep.subr.bf16.mxu0 0
        %5319 = vmatpush1.bf16.msra.mxu0 %v5299
        %5320 = vmatprep.subr.bf16.mxu0 0
        %5321 = vmatpush1.bf16.msra.mxu0 %v5298
        %5322 = vmatprep.subr.bf16.mxu0 0
        %5323 = vmatpush1.bf16.msra.mxu0 %v5297
        %5324 = vmatprep.subr.bf16.mxu0 0
        %5325 = vmatpush2.bf16.msra.mxu0 0
        %5326 = vmatprep.subr.bf16.mxu0 0
        %5327 = vmatpush2.bf16.msra.mxu0 0
        %5328 = vmatprep.subr.bf16.mxu0 0
        %5329 = vmatpush2.bf16.msra.mxu0 0
        %5330 = vmatprep.subr.bf16.mxu0 0
        %5331 = vmatpush2.bf16.msra.mxu0 0
        %5332 = vmatprep.subr.bf16.mxu0 0
        %5333 = vmatpush2.bf16.msra.mxu0 0
        %5334 = vmatprep.subr.bf16.mxu0 0
        %5335 = vmatpush2.bf16.msra.mxu0 0
        %5336 = vmatprep.subr.bf16.mxu0 0
        %5337 = vmatpush2.bf16.msra.mxu0 0
        %5338 = vmatprep.subr.bf16.mxu0 0
        %5339 = vmatpush2.bf16.msra.mxu0 0
        %5340 = vmatprep.mubr.bf16.mxu0 0
        %5341 = vmatmul.mubr.bf16.gmra.mxu0 %v5306
        %v5342 = vpop.f32.mrf.mxu0
        %v5343 = vadd.f32 0.0, %v5342
        %v5344 = vpop.f32.mrf.mxu0
        %v5345 = vpop.f32.mrf.mxu0
        %v5346 = vpop.f32.mrf.mxu0
        %5347 = vdwg.mxu0
        %v5348 = vadd.f32 %v5269, %v5343
        %v5349 = vld [vmem:[#allocation5 + $0x1a] sm:$0x1]
        %v5350 = vpack.c.bf16 %v5349, %v5349
        %s5351 = scalar_lea.vmem %s5, 160
        %v5352 = vld [vmem:[%s5351] sm:$0xf]
        %v5353 = vld [vmem:[%s5351 + $0x4] sm:$0xf]
        %v5354 = vld [vmem:[%s5351 + $0x8] sm:$0xf]
        %v5355 = vld [vmem:[%s5351 + $0xc] sm:$0xf]
        %v5356 = vld [vmem:[%s5351 + $0x10] sm:$0xf]
        %v5357 = vld [vmem:[%s5351 + $0x14] sm:$0xf]
        %v5358 = vld [vmem:[%s5351 + $0x18] sm:$0xf]
        %v5359 = vld [vmem:[%s5351 + $0x1c] sm:$0xf]
        %v5368 = vunpack.c.l.b16 %v5352
        %v5369 = vunpack.c.l.b16 %v5353
        %v5370 = vunpack.c.l.b16 %v5354
        %v5371 = vunpack.c.l.b16 %v5355
        %v5372 = vunpack.c.l.b16 %v5356
        %v5373 = vunpack.c.l.b16 %v5357
        %v5374 = vunpack.c.l.b16 %v5358
        %v5375 = vunpack.c.l.b16 %v5359
        %v5376 = vpack.c.b16 %v5369, %v5368
        %v5377 = vpack.c.b16 %v5371, %v5370
        %v5378 = vpack.c.b16 %v5373, %v5372
        %v5379 = vpack.c.b16 %v5375, %v5374
        %v5385 = vsel %vm4853, %v5350, 0
        %5387 = vmatprep.subr.bf16.mxu0 0
        %5388 = vmatpush1.bf16.msra.mxu0 0
        %5389 = vmatprep.subr.bf16.mxu0 0
        %5390 = vmatpush1.bf16.msra.mxu0 0
        %5391 = vmatprep.subr.bf16.mxu0 0
        %5392 = vmatpush1.bf16.msra.mxu0 0
        %5393 = vmatprep.subr.bf16.mxu0 0
        %5394 = vmatpush1.bf16.msra.mxu0 0
        %5395 = vmatprep.subr.bf16.mxu0 0
        %5396 = vmatpush1.bf16.msra.mxu0 %v5379
        %5397 = vmatprep.subr.bf16.mxu0 0
        %5398 = vmatpush1.bf16.msra.mxu0 %v5378
        %5399 = vmatprep.subr.bf16.mxu0 0
        %5400 = vmatpush1.bf16.msra.mxu0 %v5377
        %5401 = vmatprep.subr.bf16.mxu0 0
        %5402 = vmatpush1.bf16.msra.mxu0 %v5376
        %5403 = vmatprep.subr.bf16.mxu0 0
        %5404 = vmatpush2.bf16.msra.mxu0 0
        %5405 = vmatprep.subr.bf16.mxu0 0
        %5406 = vmatpush2.bf16.msra.mxu0 0
        %5407 = vmatprep.subr.bf16.mxu0 0
        %5408 = vmatpush2.bf16.msra.mxu0 0
        %5409 = vmatprep.subr.bf16.mxu0 0
        %5410 = vmatpush2.bf16.msra.mxu0 0
        %5411 = vmatprep.subr.bf16.mxu0 0
        %5412 = vmatpush2.bf16.msra.mxu0 0
        %5413 = vmatprep.subr.bf16.mxu0 0
        %5414 = vmatpush2.bf16.msra.mxu0 0
        %5415 = vmatprep.subr.bf16.mxu0 0
        %5416 = vmatpush2.bf16.msra.mxu0 0
        %5417 = vmatprep.subr.bf16.mxu0 0
        %5418 = vmatpush2.bf16.msra.mxu0 0
        %5419 = vmatprep.mubr.bf16.mxu0 0
        %5420 = vmatmul.mubr.bf16.gmra.mxu0 %v5385
        %v5421 = vpop.f32.mrf.mxu0
        %v5422 = vadd.f32 0.0, %v5421
        %v5423 = vpop.f32.mrf.mxu0
        %v5424 = vpop.f32.mrf.mxu0
        %v5425 = vpop.f32.mrf.mxu0
        %5426 = vdwg.mxu0
        %v5427 = vadd.f32 %v5348, %v5422
        %v5428 = vld [vmem:[#allocation5 + $0x1c] sm:$0x1]
        %v5429 = vpack.c.bf16 %v5428, %v5428
        %s5430 = scalar_lea.vmem %s5, 192
        %v5431 = vld [vmem:[%s5430] sm:$0xf]
        %v5432 = vld [vmem:[%s5430 + $0x4] sm:$0xf]
        %v5433 = vld [vmem:[%s5430 + $0x8] sm:$0xf]
        %v5434 = vld [vmem:[%s5430 + $0xc] sm:$0xf]
        %v5435 = vld [vmem:[%s5430 + $0x10] sm:$0xf]
        %v5436 = vld [vmem:[%s5430 + $0x14] sm:$0xf]
        %v5437 = vld [vmem:[%s5430 + $0x18] sm:$0xf]
        %v5438 = vld [vmem:[%s5430 + $0x1c] sm:$0xf]
        %v5447 = vunpack.c.l.b16 %v5431
        %v5448 = vunpack.c.l.b16 %v5432
        %v5449 = vunpack.c.l.b16 %v5433
        %v5450 = vunpack.c.l.b16 %v5434
        %v5451 = vunpack.c.l.b16 %v5435
        %v5452 = vunpack.c.l.b16 %v5436
        %v5453 = vunpack.c.l.b16 %v5437
        %v5454 = vunpack.c.l.b16 %v5438
        %v5455 = vpack.c.b16 %v5448, %v5447
        %v5456 = vpack.c.b16 %v5450, %v5449
        %v5457 = vpack.c.b16 %v5452, %v5451
        %v5458 = vpack.c.b16 %v5454, %v5453
        %v5464 = vsel %vm4853, %v5429, 0
        %5466 = vmatprep.subr.bf16.mxu0 0
        %5467 = vmatpush1.bf16.msra.mxu0 0
        %5468 = vmatprep.subr.bf16.mxu0 0
        %5469 = vmatpush1.bf16.msra.mxu0 0
        %5470 = vmatprep.subr.bf16.mxu0 0
        %5471 = vmatpush1.bf16.msra.mxu0 0
        %5472 = vmatprep.subr.bf16.mxu0 0
        %5473 = vmatpush1.bf16.msra.mxu0 0
        %5474 = vmatprep.subr.bf16.mxu0 0
        %5475 = vmatpush1.bf16.msra.mxu0 %v5458
        %5476 = vmatprep.subr.bf16.mxu0 0
        %5477 = vmatpush1.bf16.msra.mxu0 %v5457
        %5478 = vmatprep.subr.bf16.mxu0 0
        %5479 = vmatpush1.bf16.msra.mxu0 %v5456
        %5480 = vmatprep.subr.bf16.mxu0 0
        %5481 = vmatpush1.bf16.msra.mxu0 %v5455
        %5482 = vmatprep.subr.bf16.mxu0 0
        %5483 = vmatpush2.bf16.msra.mxu0 0
        %5484 = vmatprep.subr.bf16.mxu0 0
        %5485 = vmatpush2.bf16.msra.mxu0 0
        %5486 = vmatprep.subr.bf16.mxu0 0
        %5487 = vmatpush2.bf16.msra.mxu0 0
        %5488 = vmatprep.subr.bf16.mxu0 0
        %5489 = vmatpush2.bf16.msra.mxu0 0
        %5490 = vmatprep.subr.bf16.mxu0 0
        %5491 = vmatpush2.bf16.msra.mxu0 0
        %5492 = vmatprep.subr.bf16.mxu0 0
        %5493 = vmatpush2.bf16.msra.mxu0 0
        %5494 = vmatprep.subr.bf16.mxu0 0
        %5495 = vmatpush2.bf16.msra.mxu0 0
        %5496 = vmatprep.subr.bf16.mxu0 0
        %5497 = vmatpush2.bf16.msra.mxu0 0
        %5498 = vmatprep.mubr.bf16.mxu0 0
        %5499 = vmatmul.mubr.bf16.gmra.mxu0 %v5464
        %v5500 = vpop.f32.mrf.mxu0
        %v5501 = vadd.f32 0.0, %v5500
        %v5502 = vpop.f32.mrf.mxu0
        %v5503 = vpop.f32.mrf.mxu0
        %v5504 = vpop.f32.mrf.mxu0
        %5505 = vdwg.mxu0
        %v5506 = vadd.f32 %v5427, %v5501
        %v5507 = vld [vmem:[#allocation5 + $0x1e] sm:$0x1]
        %v5508 = vpack.c.bf16 %v5507, %v5507
        %s5509 = scalar_lea.vmem %s5, 224
        %v5510 = vld [vmem:[%s5509] sm:$0xf]
        %v5511 = vld [vmem:[%s5509 + $0x4] sm:$0xf]
        %v5512 = vld [vmem:[%s5509 + $0x8] sm:$0xf]
        %v5513 = vld [vmem:[%s5509 + $0xc] sm:$0xf]
        %v5514 = vld [vmem:[%s5509 + $0x10] sm:$0xf]
        %v5515 = vld [vmem:[%s5509 + $0x14] sm:$0xf]
        %v5516 = vld [vmem:[%s5509 + $0x18] sm:$0xf]
        %v5517 = vld [vmem:[%s5509 + $0x1c] sm:$0xf]
        %v5526 = vunpack.c.l.b16 %v5510
        %v5527 = vunpack.c.l.b16 %v5511
        %v5528 = vunpack.c.l.b16 %v5512
        %v5529 = vunpack.c.l.b16 %v5513
        %v5530 = vunpack.c.l.b16 %v5514
        %v5531 = vunpack.c.l.b16 %v5515
        %v5532 = vunpack.c.l.b16 %v5516
        %v5533 = vunpack.c.l.b16 %v5517
        %v5534 = vpack.c.b16 %v5527, %v5526
        %v5535 = vpack.c.b16 %v5529, %v5528
        %v5536 = vpack.c.b16 %v5531, %v5530
        %v5537 = vpack.c.b16 %v5533, %v5532
        %v5543 = vsel %vm4853, %v5508, 0
        %5545 = vmatprep.subr.bf16.mxu0 0
        %5546 = vmatpush1.bf16.msra.mxu0 0
        %5547 = vmatprep.subr.bf16.mxu0 0
        %5548 = vmatpush1.bf16.msra.mxu0 0
        %5549 = vmatprep.subr.bf16.mxu0 0
        %5550 = vmatpush1.bf16.msra.mxu0 0
        %5551 = vmatprep.subr.bf16.mxu0 0
        %5552 = vmatpush1.bf16.msra.mxu0 0
        %5553 = vmatprep.subr.bf16.mxu0 0
        %5554 = vmatpush1.bf16.msra.mxu0 %v5537
        %5555 = vmatprep.subr.bf16.mxu0 0
        %5556 = vmatpush1.bf16.msra.mxu0 %v5536
        %5557 = vmatprep.subr.bf16.mxu0 0
        %5558 = vmatpush1.bf16.msra.mxu0 %v5535
        %5559 = vmatprep.subr.bf16.mxu0 0
        %5560 = vmatpush1.bf16.msra.mxu0 %v5534
        %5561 = vmatprep.subr.bf16.mxu0 0
        %5562 = vmatpush2.bf16.msra.mxu0 0
        %5563 = vmatprep.subr.bf16.mxu0 0
        %5564 = vmatpush2.bf16.msra.mxu0 0
        %5565 = vmatprep.subr.bf16.mxu0 0
        %5566 = vmatpush2.bf16.msra.mxu0 0
        %5567 = vmatprep.subr.bf16.mxu0 0
        %5568 = vmatpush2.bf16.msra.mxu0 0
        %5569 = vmatprep.subr.bf16.mxu0 0
        %5570 = vmatpush2.bf16.msra.mxu0 0
        %5571 = vmatprep.subr.bf16.mxu0 0
        %5572 = vmatpush2.bf16.msra.mxu0 0
        %5573 = vmatprep.subr.bf16.mxu0 0
        %5574 = vmatpush2.bf16.msra.mxu0 0
        %5575 = vmatprep.subr.bf16.mxu0 0
        %5576 = vmatpush2.bf16.msra.mxu0 0
        %5577 = vmatprep.mubr.bf16.mxu0 0
        %5578 = vmatmul.mubr.bf16.gmra.mxu0 %v5543
        %v5579 = vpop.f32.mrf.mxu0
        %v5580 = vadd.f32 0.0, %v5579
        %v5581 = vpop.f32.mrf.mxu0
        %v5582 = vpop.f32.mrf.mxu0
        %v5583 = vpop.f32.mrf.mxu0
        %5584 = vdwg.mxu0
        %v5585 = vadd.f32 %v5506, %v5580
        %v5586 = vld [vmem:[#allocation5 + $0x30] sm:$0x1]
        %v5587 = vpack.c.bf16 %v5586, %v5586
        %s5588 = scalar_lea.vmem %s5, 256
        %v5589 = vld [vmem:[%s5588] sm:$0xf]
        %v5590 = vld [vmem:[%s5588 + $0x4] sm:$0xf]
        %v5591 = vld [vmem:[%s5588 + $0x8] sm:$0xf]
        %v5592 = vld [vmem:[%s5588 + $0xc] sm:$0xf]
        %v5593 = vld [vmem:[%s5588 + $0x10] sm:$0xf]
        %v5594 = vld [vmem:[%s5588 + $0x14] sm:$0xf]
        %v5595 = vld [vmem:[%s5588 + $0x18] sm:$0xf]
        %v5596 = vld [vmem:[%s5588 + $0x1c] sm:$0xf]
        %v5605 = vunpack.c.l.b16 %v5589
        %v5606 = vunpack.c.l.b16 %v5590
        %v5607 = vunpack.c.l.b16 %v5591
        %v5608 = vunpack.c.l.b16 %v5592
        %v5609 = vunpack.c.l.b16 %v5593
        %v5610 = vunpack.c.l.b16 %v5594
        %v5611 = vunpack.c.l.b16 %v5595
        %v5612 = vunpack.c.l.b16 %v5596
        %v5613 = vpack.c.b16 %v5606, %v5605
        %v5614 = vpack.c.b16 %v5608, %v5607
        %v5615 = vpack.c.b16 %v5610, %v5609
        %v5616 = vpack.c.b16 %v5612, %v5611
        %v5622 = vsel %vm4853, %v5587, 0
        %5624 = vmatprep.subr.bf16.mxu0 0
        %5625 = vmatpush1.bf16.msra.mxu0 0
        %5626 = vmatprep.subr.bf16.mxu0 0
        %5627 = vmatpush1.bf16.msra.mxu0 0
        %5628 = vmatprep.subr.bf16.mxu0 0
        %5629 = vmatpush1.bf16.msra.mxu0 0
        %5630 = vmatprep.subr.bf16.mxu0 0
        %5631 = vmatpush1.bf16.msra.mxu0 0
        %5632 = vmatprep.subr.bf16.mxu0 0
        %5633 = vmatpush1.bf16.msra.mxu0 %v5616
        %5634 = vmatprep.subr.bf16.mxu0 0
        %5635 = vmatpush1.bf16.msra.mxu0 %v5615
        %5636 = vmatprep.subr.bf16.mxu0 0
        %5637 = vmatpush1.bf16.msra.mxu0 %v5614
        %5638 = vmatprep.subr.bf16.mxu0 0
        %5639 = vmatpush1.bf16.msra.mxu0 %v5613
        %5640 = vmatprep.subr.bf16.mxu0 0
        %5641 = vmatpush2.bf16.msra.mxu0 0
        %5642 = vmatprep.subr.bf16.mxu0 0
        %5643 = vmatpush2.bf16.msra.mxu0 0
        %5644 = vmatprep.subr.bf16.mxu0 0
        %5645 = vmatpush2.bf16.msra.mxu0 0
        %5646 = vmatprep.subr.bf16.mxu0 0
        %5647 = vmatpush2.bf16.msra.mxu0 0
        %5648 = vmatprep.subr.bf16.mxu0 0
        %5649 = vmatpush2.bf16.msra.mxu0 0
        %5650 = vmatprep.subr.bf16.mxu0 0
        %5651 = vmatpush2.bf16.msra.mxu0 0
        %5652 = vmatprep.subr.bf16.mxu0 0
        %5653 = vmatpush2.bf16.msra.mxu0 0
        %5654 = vmatprep.subr.bf16.mxu0 0
        %5655 = vmatpush2.bf16.msra.mxu0 0
        %5656 = vmatprep.mubr.bf16.mxu0 0
        %5657 = vmatmul.mubr.bf16.gmra.mxu0 %v5622
        %v5658 = vpop.f32.mrf.mxu0
        %v5659 = vadd.f32 0.0, %v5658
        %v5660 = vpop.f32.mrf.mxu0
        %v5661 = vpop.f32.mrf.mxu0
        %v5662 = vpop.f32.mrf.mxu0
        %5663 = vdwg.mxu0
        %v5664 = vadd.f32 %v5585, %v5659
        %v5665 = vld [vmem:[#allocation5 + $0x32] sm:$0x1]
        %v5666 = vpack.c.bf16 %v5665, %v5665
        %s5667 = scalar_lea.vmem %s5, 288
        %v5668 = vld [vmem:[%s5667] sm:$0xf]
        %v5669 = vld [vmem:[%s5667 + $0x4] sm:$0xf]
        %v5670 = vld [vmem:[%s5667 + $0x8] sm:$0xf]
        %v5671 = vld [vmem:[%s5667 + $0xc] sm:$0xf]
        %v5672 = vld [vmem:[%s5667 + $0x10] sm:$0xf]
        %v5673 = vld [vmem:[%s5667 + $0x14] sm:$0xf]
        %v5674 = vld [vmem:[%s5667 + $0x18] sm:$0xf]
        %v5675 = vld [vmem:[%s5667 + $0x1c] sm:$0xf]
        %v5684 = vunpack.c.l.b16 %v5668
        %v5685 = vunpack.c.l.b16 %v5669
        %v5686 = vunpack.c.l.b16 %v5670
        %v5687 = vunpack.c.l.b16 %v5671
        %v5688 = vunpack.c.l.b16 %v5672
        %v5689 = vunpack.c.l.b16 %v5673
        %v5690 = vunpack.c.l.b16 %v5674
        %v5691 = vunpack.c.l.b16 %v5675
        %v5692 = vpack.c.b16 %v5685, %v5684
        %v5693 = vpack.c.b16 %v5687, %v5686
        %v5694 = vpack.c.b16 %v5689, %v5688
        %v5695 = vpack.c.b16 %v5691, %v5690
        %v5701 = vsel %vm4853, %v5666, 0
        %5703 = vmatprep.subr.bf16.mxu0 0
        %5704 = vmatpush1.bf16.msra.mxu0 0
        %5705 = vmatprep.subr.bf16.mxu0 0
        %5706 = vmatpush1.bf16.msra.mxu0 0
        %5707 = vmatprep.subr.bf16.mxu0 0
        %5708 = vmatpush1.bf16.msra.mxu0 0
        %5709 = vmatprep.subr.bf16.mxu0 0
        %5710 = vmatpush1.bf16.msra.mxu0 0
        %5711 = vmatprep.subr.bf16.mxu0 0
        %5712 = vmatpush1.bf16.msra.mxu0 %v5695
        %5713 = vmatprep.subr.bf16.mxu0 0
        %5714 = vmatpush1.bf16.msra.mxu0 %v5694
        %5715 = vmatprep.subr.bf16.mxu0 0
        %5716 = vmatpush1.bf16.msra.mxu0 %v5693
        %5717 = vmatprep.subr.bf16.mxu0 0
        %5718 = vmatpush1.bf16.msra.mxu0 %v5692
        %5719 = vmatprep.subr.bf16.mxu0 0
        %5720 = vmatpush2.bf16.msra.mxu0 0
        %5721 = vmatprep.subr.bf16.mxu0 0
        %5722 = vmatpush2.bf16.msra.mxu0 0
        %5723 = vmatprep.subr.bf16.mxu0 0
        %5724 = vmatpush2.bf16.msra.mxu0 0
        %5725 = vmatprep.subr.bf16.mxu0 0
        %5726 = vmatpush2.bf16.msra.mxu0 0
        %5727 = vmatprep.subr.bf16.mxu0 0
        %5728 = vmatpush2.bf16.msra.mxu0 0
        %5729 = vmatprep.subr.bf16.mxu0 0
        %5730 = vmatpush2.bf16.msra.mxu0 0
        %5731 = vmatprep.subr.bf16.mxu0 0
        %5732 = vmatpush2.bf16.msra.mxu0 0
        %5733 = vmatprep.subr.bf16.mxu0 0
        %5734 = vmatpush2.bf16.msra.mxu0 0
        %5735 = vmatprep.mubr.bf16.mxu0 0
        %5736 = vmatmul.mubr.bf16.gmra.mxu0 %v5701
        %v5737 = vpop.f32.mrf.mxu0
        %v5738 = vadd.f32 0.0, %v5737
        %v5739 = vpop.f32.mrf.mxu0
        %v5740 = vpop.f32.mrf.mxu0
        %v5741 = vpop.f32.mrf.mxu0
        %5742 = vdwg.mxu0
        %v5743 = vadd.f32 %v5664, %v5738
        %v5744 = vld [vmem:[#allocation5 + $0x34] sm:$0x1]
        %v5745 = vpack.c.bf16 %v5744, %v5744
        %s5746 = scalar_lea.vmem %s5, 320
        %v5747 = vld [vmem:[%s5746] sm:$0xf]
        %v5748 = vld [vmem:[%s5746 + $0x4] sm:$0xf]
        %v5749 = vld [vmem:[%s5746 + $0x8] sm:$0xf]
        %v5750 = vld [vmem:[%s5746 + $0xc] sm:$0xf]
        %v5751 = vld [vmem:[%s5746 + $0x10] sm:$0xf]
        %v5752 = vld [vmem:[%s5746 + $0x14] sm:$0xf]
        %v5753 = vld [vmem:[%s5746 + $0x18] sm:$0xf]
        %v5754 = vld [vmem:[%s5746 + $0x1c] sm:$0xf]
        %v5763 = vunpack.c.l.b16 %v5747
        %v5764 = vunpack.c.l.b16 %v5748
        %v5765 = vunpack.c.l.b16 %v5749
        %v5766 = vunpack.c.l.b16 %v5750
        %v5767 = vunpack.c.l.b16 %v5751
        %v5768 = vunpack.c.l.b16 %v5752
        %v5769 = vunpack.c.l.b16 %v5753
        %v5770 = vunpack.c.l.b16 %v5754
        %v5771 = vpack.c.b16 %v5764, %v5763
        %v5772 = vpack.c.b16 %v5766, %v5765
        %v5773 = vpack.c.b16 %v5768, %v5767
        %v5774 = vpack.c.b16 %v5770, %v5769
        %v5780 = vsel %vm4853, %v5745, 0
        %5782 = vmatprep.subr.bf16.mxu0 0
        %5783 = vmatpush1.bf16.msra.mxu0 0
        %5784 = vmatprep.subr.bf16.mxu0 0
        %5785 = vmatpush1.bf16.msra.mxu0 0
        %5786 = vmatprep.subr.bf16.mxu0 0
        %5787 = vmatpush1.bf16.msra.mxu0 0
        %5788 = vmatprep.subr.bf16.mxu0 0
        %5789 = vmatpush1.bf16.msra.mxu0 0
        %5790 = vmatprep.subr.bf16.mxu0 0
        %5791 = vmatpush1.bf16.msra.mxu0 %v5774
        %5792 = vmatprep.subr.bf16.mxu0 0
        %5793 = vmatpush1.bf16.msra.mxu0 %v5773
        %5794 = vmatprep.subr.bf16.mxu0 0
        %5795 = vmatpush1.bf16.msra.mxu0 %v5772
        %5796 = vmatprep.subr.bf16.mxu0 0
        %5797 = vmatpush1.bf16.msra.mxu0 %v5771
        %5798 = vmatprep.subr.bf16.mxu0 0
        %5799 = vmatpush2.bf16.msra.mxu0 0
        %5800 = vmatprep.subr.bf16.mxu0 0
        %5801 = vmatpush2.bf16.msra.mxu0 0
        %5802 = vmatprep.subr.bf16.mxu0 0
        %5803 = vmatpush2.bf16.msra.mxu0 0
        %5804 = vmatprep.subr.bf16.mxu0 0
        %5805 = vmatpush2.bf16.msra.mxu0 0
        %5806 = vmatprep.subr.bf16.mxu0 0
        %5807 = vmatpush2.bf16.msra.mxu0 0
        %5808 = vmatprep.subr.bf16.mxu0 0
        %5809 = vmatpush2.bf16.msra.mxu0 0
        %5810 = vmatprep.subr.bf16.mxu0 0
        %5811 = vmatpush2.bf16.msra.mxu0 0
        %5812 = vmatprep.subr.bf16.mxu0 0
        %5813 = vmatpush2.bf16.msra.mxu0 0
        %5814 = vmatprep.mubr.bf16.mxu0 0
        %5815 = vmatmul.mubr.bf16.gmra.mxu0 %v5780
        %v5816 = vpop.f32.mrf.mxu0
        %v5817 = vadd.f32 0.0, %v5816
        %v5818 = vpop.f32.mrf.mxu0
        %v5819 = vpop.f32.mrf.mxu0
        %v5820 = vpop.f32.mrf.mxu0
        %5821 = vdwg.mxu0
        %v5822 = vadd.f32 %v5743, %v5817
        %v5823 = vld [vmem:[#allocation5 + $0x36] sm:$0x1]
        %v5824 = vpack.c.bf16 %v5823, %v5823
        %s5825 = scalar_lea.vmem %s5, 352
        %v5826 = vld [vmem:[%s5825] sm:$0xf]
        %v5827 = vld [vmem:[%s5825 + $0x4] sm:$0xf]
        %v5828 = vld [vmem:[%s5825 + $0x8] sm:$0xf]
        %v5829 = vld [vmem:[%s5825 + $0xc] sm:$0xf]
        %v5830 = vld [vmem:[%s5825 + $0x10] sm:$0xf]
        %v5831 = vld [vmem:[%s5825 + $0x14] sm:$0xf]
        %v5832 = vld [vmem:[%s5825 + $0x18] sm:$0xf]
        %v5833 = vld [vmem:[%s5825 + $0x1c] sm:$0xf]
        %v5842 = vunpack.c.l.b16 %v5826
        %v5843 = vunpack.c.l.b16 %v5827
        %v5844 = vunpack.c.l.b16 %v5828
        %v5845 = vunpack.c.l.b16 %v5829
        %v5846 = vunpack.c.l.b16 %v5830
        %v5847 = vunpack.c.l.b16 %v5831
        %v5848 = vunpack.c.l.b16 %v5832
        %v5849 = vunpack.c.l.b16 %v5833
        %v5850 = vpack.c.b16 %v5843, %v5842
        %v5851 = vpack.c.b16 %v5845, %v5844
        %v5852 = vpack.c.b16 %v5847, %v5846
        %v5853 = vpack.c.b16 %v5849, %v5848
        %v5859 = vsel %vm4853, %v5824, 0
        %5861 = vmatprep.subr.bf16.mxu0 0
        %5862 = vmatpush1.bf16.msra.mxu0 0
        %5863 = vmatprep.subr.bf16.mxu0 0
        %5864 = vmatpush1.bf16.msra.mxu0 0
        %5865 = vmatprep.subr.bf16.mxu0 0
        %5866 = vmatpush1.bf16.msra.mxu0 0
        %5867 = vmatprep.subr.bf16.mxu0 0
        %5868 = vmatpush1.bf16.msra.mxu0 0
        %5869 = vmatprep.subr.bf16.mxu0 0
        %5870 = vmatpush1.bf16.msra.mxu0 %v5853
        %5871 = vmatprep.subr.bf16.mxu0 0
        %5872 = vmatpush1.bf16.msra.mxu0 %v5852
        %5873 = vmatprep.subr.bf16.mxu0 0
        %5874 = vmatpush1.bf16.msra.mxu0 %v5851
        %5875 = vmatprep.subr.bf16.mxu0 0
        %5876 = vmatpush1.bf16.msra.mxu0 %v5850
        %5877 = vmatprep.subr.bf16.mxu0 0
        %5878 = vmatpush2.bf16.msra.mxu0 0
        %5879 = vmatprep.subr.bf16.mxu0 0
        %5880 = vmatpush2.bf16.msra.mxu0 0
        %5881 = vmatprep.subr.bf16.mxu0 0
        %5882 = vmatpush2.bf16.msra.mxu0 0
        %5883 = vmatprep.subr.bf16.mxu0 0
        %5884 = vmatpush2.bf16.msra.mxu0 0
        %5885 = vmatprep.subr.bf16.mxu0 0
        %5886 = vmatpush2.bf16.msra.mxu0 0
        %5887 = vmatprep.subr.bf16.mxu0 0
        %5888 = vmatpush2.bf16.msra.mxu0 0
        %5889 = vmatprep.subr.bf16.mxu0 0
        %5890 = vmatpush2.bf16.msra.mxu0 0
        %5891 = vmatprep.subr.bf16.mxu0 0
        %5892 = vmatpush2.bf16.msra.mxu0 0
        %5893 = vmatprep.mubr.bf16.mxu0 0
        %5894 = vmatmul.mubr.bf16.gmra.mxu0 %v5859
        %v5895 = vpop.f32.mrf.mxu0
        %v5896 = vadd.f32 0.0, %v5895
        %v5897 = vpop.f32.mrf.mxu0
        %v5898 = vpop.f32.mrf.mxu0
        %v5899 = vpop.f32.mrf.mxu0
        %5900 = vdwg.mxu0
        %v5901 = vadd.f32 %v5822, %v5896
        %v5902 = vld [vmem:[#allocation5 + $0x48] sm:$0x1]
        %v5903 = vpack.c.bf16 %v5902, %v5902
        %s5904 = scalar_lea.vmem %s5, 384
        %v5905 = vld [vmem:[%s5904] sm:$0xf]
        %v5906 = vld [vmem:[%s5904 + $0x4] sm:$0xf]
        %v5907 = vld [vmem:[%s5904 + $0x8] sm:$0xf]
        %v5908 = vld [vmem:[%s5904 + $0xc] sm:$0xf]
        %v5909 = vld [vmem:[%s5904 + $0x10] sm:$0xf]
        %v5910 = vld [vmem:[%s5904 + $0x14] sm:$0xf]
        %v5911 = vld [vmem:[%s5904 + $0x18] sm:$0xf]
        %v5912 = vld [vmem:[%s5904 + $0x1c] sm:$0xf]
        %v5921 = vunpack.c.l.b16 %v5905
        %v5922 = vunpack.c.l.b16 %v5906
        %v5923 = vunpack.c.l.b16 %v5907
        %v5924 = vunpack.c.l.b16 %v5908
        %v5925 = vunpack.c.l.b16 %v5909
        %v5926 = vunpack.c.l.b16 %v5910
        %v5927 = vunpack.c.l.b16 %v5911
        %v5928 = vunpack.c.l.b16 %v5912
        %v5929 = vpack.c.b16 %v5922, %v5921
        %v5930 = vpack.c.b16 %v5924, %v5923
        %v5931 = vpack.c.b16 %v5926, %v5925
        %v5932 = vpack.c.b16 %v5928, %v5927
        %v5938 = vsel %vm4853, %v5903, 0
        %5940 = vmatprep.subr.bf16.mxu0 0
        %5941 = vmatpush1.bf16.msra.mxu0 0
        %5942 = vmatprep.subr.bf16.mxu0 0
        %5943 = vmatpush1.bf16.msra.mxu0 0
        %5944 = vmatprep.subr.bf16.mxu0 0
        %5945 = vmatpush1.bf16.msra.mxu0 0
        %5946 = vmatprep.subr.bf16.mxu0 0
        %5947 = vmatpush1.bf16.msra.mxu0 0
        %5948 = vmatprep.subr.bf16.mxu0 0
        %5949 = vmatpush1.bf16.msra.mxu0 %v5932
        %5950 = vmatprep.subr.bf16.mxu0 0
        %5951 = vmatpush1.bf16.msra.mxu0 %v5931
        %5952 = vmatprep.subr.bf16.mxu0 0
        %5953 = vmatpush1.bf16.msra.mxu0 %v5930
        %5954 = vmatprep.subr.bf16.mxu0 0
        %5955 = vmatpush1.bf16.msra.mxu0 %v5929
        %5956 = vmatprep.subr.bf16.mxu0 0
        %5957 = vmatpush2.bf16.msra.mxu0 0
        %5958 = vmatprep.subr.bf16.mxu0 0
        %5959 = vmatpush2.bf16.msra.mxu0 0
        %5960 = vmatprep.subr.bf16.mxu0 0
        %5961 = vmatpush2.bf16.msra.mxu0 0
        %5962 = vmatprep.subr.bf16.mxu0 0
        %5963 = vmatpush2.bf16.msra.mxu0 0
        %5964 = vmatprep.subr.bf16.mxu0 0
        %5965 = vmatpush2.bf16.msra.mxu0 0
        %5966 = vmatprep.subr.bf16.mxu0 0
        %5967 = vmatpush2.bf16.msra.mxu0 0
        %5968 = vmatprep.subr.bf16.mxu0 0
        %5969 = vmatpush2.bf16.msra.mxu0 0
        %5970 = vmatprep.subr.bf16.mxu0 0
        %5971 = vmatpush2.bf16.msra.mxu0 0
        %5972 = vmatprep.mubr.bf16.mxu0 0
        %5973 = vmatmul.mubr.bf16.gmra.mxu0 %v5938
        %v5974 = vpop.f32.mrf.mxu0
        %v5975 = vadd.f32 0.0, %v5974
        %v5976 = vpop.f32.mrf.mxu0
        %v5977 = vpop.f32.mrf.mxu0
        %v5978 = vpop.f32.mrf.mxu0
        %5979 = vdwg.mxu0
        %v5980 = vadd.f32 %v5901, %v5975
        %v5981 = vld [vmem:[#allocation5 + $0x4a] sm:$0x1]
        %v5982 = vpack.c.bf16 %v5981, %v5981
        %s5983 = scalar_lea.vmem %s5, 416
        %v5984 = vld [vmem:[%s5983] sm:$0xf]
        %v5985 = vld [vmem:[%s5983 + $0x4] sm:$0xf]
        %v5986 = vld [vmem:[%s5983 + $0x8] sm:$0xf]
        %v5987 = vld [vmem:[%s5983 + $0xc] sm:$0xf]
        %v5988 = vld [vmem:[%s5983 + $0x10] sm:$0xf]
        %v5989 = vld [vmem:[%s5983 + $0x14] sm:$0xf]
        %v5990 = vld [vmem:[%s5983 + $0x18] sm:$0xf]
        %v5991 = vld [vmem:[%s5983 + $0x1c] sm:$0xf]
        %v6000 = vunpack.c.l.b16 %v5984
        %v6001 = vunpack.c.l.b16 %v5985
        %v6002 = vunpack.c.l.b16 %v5986
        %v6003 = vunpack.c.l.b16 %v5987
        %v6004 = vunpack.c.l.b16 %v5988
        %v6005 = vunpack.c.l.b16 %v5989
        %v6006 = vunpack.c.l.b16 %v5990
        %v6007 = vunpack.c.l.b16 %v5991
        %v6008 = vpack.c.b16 %v6001, %v6000
        %v6009 = vpack.c.b16 %v6003, %v6002
        %v6010 = vpack.c.b16 %v6005, %v6004
        %v6011 = vpack.c.b16 %v6007, %v6006
        %v6017 = vsel %vm4853, %v5982, 0
        %6019 = vmatprep.subr.bf16.mxu0 0
        %6020 = vmatpush1.bf16.msra.mxu0 0
        %6021 = vmatprep.subr.bf16.mxu0 0
        %6022 = vmatpush1.bf16.msra.mxu0 0
        %6023 = vmatprep.subr.bf16.mxu0 0
        %6024 = vmatpush1.bf16.msra.mxu0 0
        %6025 = vmatprep.subr.bf16.mxu0 0
        %6026 = vmatpush1.bf16.msra.mxu0 0
        %6027 = vmatprep.subr.bf16.mxu0 0
        %6028 = vmatpush1.bf16.msra.mxu0 %v6011
        %6029 = vmatprep.subr.bf16.mxu0 0
        %6030 = vmatpush1.bf16.msra.mxu0 %v6010
        %6031 = vmatprep.subr.bf16.mxu0 0
        %6032 = vmatpush1.bf16.msra.mxu0 %v6009
        %6033 = vmatprep.subr.bf16.mxu0 0
        %6034 = vmatpush1.bf16.msra.mxu0 %v6008
        %6035 = vmatprep.subr.bf16.mxu0 0
        %6036 = vmatpush2.bf16.msra.mxu0 0
        %6037 = vmatprep.subr.bf16.mxu0 0
        %6038 = vmatpush2.bf16.msra.mxu0 0
        %6039 = vmatprep.subr.bf16.mxu0 0
        %6040 = vmatpush2.bf16.msra.mxu0 0
        %6041 = vmatprep.subr.bf16.mxu0 0
        %6042 = vmatpush2.bf16.msra.mxu0 0
        %6043 = vmatprep.subr.bf16.mxu0 0
        %6044 = vmatpush2.bf16.msra.mxu0 0
        %6045 = vmatprep.subr.bf16.mxu0 0
        %6046 = vmatpush2.bf16.msra.mxu0 0
        %6047 = vmatprep.subr.bf16.mxu0 0
        %6048 = vmatpush2.bf16.msra.mxu0 0
        %6049 = vmatprep.subr.bf16.mxu0 0
        %6050 = vmatpush2.bf16.msra.mxu0 0
        %6051 = vmatprep.mubr.bf16.mxu0 0
        %6052 = vmatmul.mubr.bf16.gmra.mxu0 %v6017
        %v6053 = vpop.f32.mrf.mxu0
        %v6054 = vadd.f32 0.0, %v6053
        %v6055 = vpop.f32.mrf.mxu0
        %v6056 = vpop.f32.mrf.mxu0
        %v6057 = vpop.f32.mrf.mxu0
        %6058 = vdwg.mxu0
        %v6059 = vadd.f32 %v5980, %v6054
        %v6060 = vld [vmem:[#allocation5 + $0x4c] sm:$0x1]
        %v6061 = vpack.c.bf16 %v6060, %v6060
        %s6062 = scalar_lea.vmem %s5, 448
        %v6063 = vld [vmem:[%s6062] sm:$0xf]
        %v6064 = vld [vmem:[%s6062 + $0x4] sm:$0xf]
        %v6065 = vld [vmem:[%s6062 + $0x8] sm:$0xf]
        %v6066 = vld [vmem:[%s6062 + $0xc] sm:$0xf]
        %v6067 = vld [vmem:[%s6062 + $0x10] sm:$0xf]
        %v6068 = vld [vmem:[%s6062 + $0x14] sm:$0xf]
        %v6069 = vld [vmem:[%s6062 + $0x18] sm:$0xf]
        %v6070 = vld [vmem:[%s6062 + $0x1c] sm:$0xf]
        %v6079 = vunpack.c.l.b16 %v6063
        %v6080 = vunpack.c.l.b16 %v6064
        %v6081 = vunpack.c.l.b16 %v6065
        %v6082 = vunpack.c.l.b16 %v6066
        %v6083 = vunpack.c.l.b16 %v6067
        %v6084 = vunpack.c.l.b16 %v6068
        %v6085 = vunpack.c.l.b16 %v6069
        %v6086 = vunpack.c.l.b16 %v6070
        %v6087 = vpack.c.b16 %v6080, %v6079
        %v6088 = vpack.c.b16 %v6082, %v6081
        %v6089 = vpack.c.b16 %v6084, %v6083
        %v6090 = vpack.c.b16 %v6086, %v6085
        %v6096 = vsel %vm4853, %v6061, 0
        %6098 = vmatprep.subr.bf16.mxu0 0
        %6099 = vmatpush1.bf16.msra.mxu0 0
        %6100 = vmatprep.subr.bf16.mxu0 0
        %6101 = vmatpush1.bf16.msra.mxu0 0
        %6102 = vmatprep.subr.bf16.mxu0 0
        %6103 = vmatpush1.bf16.msra.mxu0 0
        %6104 = vmatprep.subr.bf16.mxu0 0
        %6105 = vmatpush1.bf16.msra.mxu0 0
        %6106 = vmatprep.subr.bf16.mxu0 0
        %6107 = vmatpush1.bf16.msra.mxu0 %v6090
        %6108 = vmatprep.subr.bf16.mxu0 0
        %6109 = vmatpush1.bf16.msra.mxu0 %v6089
        %6110 = vmatprep.subr.bf16.mxu0 0
        %6111 = vmatpush1.bf16.msra.mxu0 %v6088
        %6112 = vmatprep.subr.bf16.mxu0 0
        %6113 = vmatpush1.bf16.msra.mxu0 %v6087
        %6114 = vmatprep.subr.bf16.mxu0 0
        %6115 = vmatpush2.bf16.msra.mxu0 0
        %6116 = vmatprep.subr.bf16.mxu0 0
        %6117 = vmatpush2.bf16.msra.mxu0 0
        %6118 = vmatprep.subr.bf16.mxu0 0
        %6119 = vmatpush2.bf16.msra.mxu0 0
        %6120 = vmatprep.subr.bf16.mxu0 0
        %6121 = vmatpush2.bf16.msra.mxu0 0
        %6122 = vmatprep.subr.bf16.mxu0 0
        %6123 = vmatpush2.bf16.msra.mxu0 0
        %6124 = vmatprep.subr.bf16.mxu0 0
        %6125 = vmatpush2.bf16.msra.mxu0 0
        %6126 = vmatprep.subr.bf16.mxu0 0
        %6127 = vmatpush2.bf16.msra.mxu0 0
        %6128 = vmatprep.subr.bf16.mxu0 0
        %6129 = vmatpush2.bf16.msra.mxu0 0
        %6130 = vmatprep.mubr.bf16.mxu0 0
        %6131 = vmatmul.mubr.bf16.gmra.mxu0 %v6096
        %v6132 = vpop.f32.mrf.mxu0
        %v6133 = vadd.f32 0.0, %v6132
        %v6134 = vpop.f32.mrf.mxu0
        %v6135 = vpop.f32.mrf.mxu0
        %v6136 = vpop.f32.mrf.mxu0
        %6137 = vdwg.mxu0
        %v6138 = vadd.f32 %v6059, %v6133
        %v6139 = vld [vmem:[#allocation5 + $0x4e] sm:$0x1]
        %v6140 = vpack.c.bf16 %v6139, %v6139
        %s6141 = scalar_lea.vmem %s5, 480
        %v6142 = vld [vmem:[%s6141] sm:$0xf]
        %v6143 = vld [vmem:[%s6141 + $0x4] sm:$0xf]
        %v6144 = vld [vmem:[%s6141 + $0x8] sm:$0xf]
        %v6145 = vld [vmem:[%s6141 + $0xc] sm:$0xf]
        %v6146 = vld [vmem:[%s6141 + $0x10] sm:$0xf]
        %v6147 = vld [vmem:[%s6141 + $0x14] sm:$0xf]
        %v6148 = vld [vmem:[%s6141 + $0x18] sm:$0xf]
        %v6149 = vld [vmem:[%s6141 + $0x1c] sm:$0xf]
        %v6158 = vunpack.c.l.b16 %v6142
        %v6159 = vunpack.c.l.b16 %v6143
        %v6160 = vunpack.c.l.b16 %v6144
        %v6161 = vunpack.c.l.b16 %v6145
        %v6162 = vunpack.c.l.b16 %v6146
        %v6163 = vunpack.c.l.b16 %v6147
        %v6164 = vunpack.c.l.b16 %v6148
        %v6165 = vunpack.c.l.b16 %v6149
        %v6166 = vpack.c.b16 %v6159, %v6158
        %v6167 = vpack.c.b16 %v6161, %v6160
        %v6168 = vpack.c.b16 %v6163, %v6162
        %v6169 = vpack.c.b16 %v6165, %v6164
        %v6175 = vsel %vm4853, %v6140, 0
        %6177 = vmatprep.subr.bf16.mxu0 0
        %6178 = vmatpush1.bf16.msra.mxu0 0
        %6179 = vmatprep.subr.bf16.mxu0 0
        %6180 = vmatpush1.bf16.msra.mxu0 0
        %6181 = vmatprep.subr.bf16.mxu0 0
        %6182 = vmatpush1.bf16.msra.mxu0 0
        %6183 = vmatprep.subr.bf16.mxu0 0
        %6184 = vmatpush1.bf16.msra.mxu0 0
        %6185 = vmatprep.subr.bf16.mxu0 0
        %6186 = vmatpush1.bf16.msra.mxu0 %v6169
        %6187 = vmatprep.subr.bf16.mxu0 0
        %6188 = vmatpush1.bf16.msra.mxu0 %v6168
        %6189 = vmatprep.subr.bf16.mxu0 0
        %6190 = vmatpush1.bf16.msra.mxu0 %v6167
        %6191 = vmatprep.subr.bf16.mxu0 0
        %6192 = vmatpush1.bf16.msra.mxu0 %v6166
        %6193 = vmatprep.subr.bf16.mxu0 0
        %6194 = vmatpush2.bf16.msra.mxu0 0
        %6195 = vmatprep.subr.bf16.mxu0 0
        %6196 = vmatpush2.bf16.msra.mxu0 0
        %6197 = vmatprep.subr.bf16.mxu0 0
        %6198 = vmatpush2.bf16.msra.mxu0 0
        %6199 = vmatprep.subr.bf16.mxu0 0
        %6200 = vmatpush2.bf16.msra.mxu0 0
        %6201 = vmatprep.subr.bf16.mxu0 0
        %6202 = vmatpush2.bf16.msra.mxu0 0
        %6203 = vmatprep.subr.bf16.mxu0 0
        %6204 = vmatpush2.bf16.msra.mxu0 0
        %6205 = vmatprep.subr.bf16.mxu0 0
        %6206 = vmatpush2.bf16.msra.mxu0 0
        %6207 = vmatprep.subr.bf16.mxu0 0
        %6208 = vmatpush2.bf16.msra.mxu0 0
        %6209 = vmatprep.mubr.bf16.mxu0 0
        %6210 = vmatmul.mubr.bf16.gmra.mxu0 %v6175
        %v6211 = vpop.f32.mrf.mxu0
        %v6212 = vadd.f32 0.0, %v6211
        %v6213 = vpop.f32.mrf.mxu0
        %v6214 = vpop.f32.mrf.mxu0
        %v6215 = vpop.f32.mrf.mxu0
        %6216 = vdwg.mxu0
        %v6217 = vadd.f32 %v6138, %v6212
        %v6218 = vld [vmem:[%s6] sm:$0x1]
        %v6219 = vadd.f32 %v6217, %v6218
        %vm6220 = vcmask 73728
        %v6221 = vsel %vm6220, %v6219, -inf
        %6222 = vmax.xlane.f32.xlu0 %v6221
        %v6223 = vpop.xlane.xlu0 %6222
        %v6224 = vsub.f32 %v6219, %v6223
        %v6225 = vmul.f32 %v6224, 1.442695
        %v6226 = vpow.pop %v6225
        %v6227 = vsel %vm6220, %v6226, 0.0
        %6228 = vadd.xlane.f32.xlu0 %v6227
        %v6229 = vpop.xlane.xlu0 %6228
        %v6230 = vlog2.pop %v6229
        %v6231 = vmul.f32 %v6230, 0.6931472
        %v6232 = vsub.f32 %v6224, %v6231
        %6233 = vst.msk [vmem:[%s273] sm:$0x1] %vm6220, %v6232
        %s6234 = sand.u32 %s181, 1
        %s6235 = scalar_lea.sflag [#allocation7], %s6234
        %s6236 = sand.u32 %s181, 1
        %s6237 = scalar_lea.vmem [#allocation6], %s6236
        // Predicated region
        $region49: #{mnist_net_forward.1} parent=47 // pred_check
          %p6238 = pneg %p191
        $region50: #{mnist_net_forward.1} parent=47 // pred_check_branch
          %6240 = sbr.rel (%p6238) target = $region52
        $region51: #{mnist_net_forward.1} parent=47 // pred_region
          %s6242 = ssub.s32 16, 16
          %6243 = vsyncadd %s6235, %s6242
          %s6244 = smul.addr %s21, 16
          %s6245 = scalar_lea.hbm %s7, %s6244
          %s6247 = sshll.u32 %s6237, 4
          %s6248 = int_to_ptr.vmem [resolvable:$true] %s6247
          %6250 = dma.vmem_to_hbm [thread:$0]  %s6248, 16, %s6245, %s6235
        $region52: #{mnist_net_forward.1} parent=47 // pred_fallthru
          _
      $region48: #{mnist_net_forward.1} parent=5 // pred_fallthru
        _
      %p6251 = scmp.le.s32.totalorder 2, %s16
      // Predicated region
      $region53: #{mnist_net_forward.1} parent=5 // pred_check
        %p6252 = pneg %p6251
      $region54: #{mnist_net_forward.1} parent=5 // pred_check_branch
        %6254 = sbr.rel (%p6252) target = $region56
      $region55: #{mnist_net_forward.1} parent=5 // pred_region
        %s6255 = ssub.s32 %s16, 2
        // Predicated region
        $region57: #{mnist_net_forward.1} parent=55 // pred_check
          %p6256 = pneg %p197
        $region58: #{mnist_net_forward.1} parent=55 // pred_check_branch
          %6258 = sbr.rel (%p6256) target = $region60
        $region59: #{mnist_net_forward.1} parent=55 // pred_region
          %s6259 = sand.u32 %s182, 1
          %s6260 = scalar_lea.sflag [#allocation7], %s6259
          %s6261 = sand.u32 %s182, 1
          %s6262 = scalar_lea.vmem [#allocation6], %s6261
          %6263 = dma.done %s6260, 16
        $region60: #{mnist_net_forward.1} parent=55 // pred_fallthru
          _
      $region56: #{mnist_net_forward.1} parent=5 // pred_fallthru
        _
    $region6: #{mnist_net_forward.1} parent=1 // loop_footer
      %s20 = sadd.s32 1, %s16
    $region7: #{mnist_net_forward.1} parent=1 // loop_footer_branch
      %15 = sbr.rel target = $region3
    $region8: #{mnist_net_forward.1} parent=1 // loop_exit
      _
    %6264 = vsyncpa [#allocation7], 1
    %s6265 = scalar_lea.sflag [#allocation7], 1
    %6266 = vsyncpa %s6265, 1

</llo_original>
